<compile_context>
chip_gen: v5e
topology: v5e:2x2
jax: 0.10.0
libtpu: 0.0.40
codegen_flags: <defaults>
</compile_context>

<pallas_src>
import math
from functools import partial

import jax
import jax.numpy as jnp
from jax.experimental import pallas as pl
from jax.experimental.pallas import tpu as pltpu

BN_EPS = 1e-5                     # nn.BatchNorm2d default
LANE = 128                        # lane width / MXU N alignment
TM_TARGET = 512                   # target rows per tile
VMEM_LIMIT = 32 * 1024 * 1024     # sized for v7x (64 MiB phys / 32 MiB scoped)


def _round_up(a, b):
    return (a + b - 1) // b * b


def _m_tiling(m_real):
    tm = min(TM_TARGET, _round_up(m_real, 8))
    mp = _round_up(m_real, tm)
    return tm, mp


# ----------------------------- Pallas kernels --------------------------------
def _make_matmul_stats_kernel(n_mats):
    """Pass A: for each weight matrix, y = patches @ W (bf16 in, f32 acc) plus
    per-channel sum / sum-of-squares accumulated across the M grid axis."""
    def kernel(*refs):
        x_ref = refs[0]
        w_refs = refs[1:1 + n_mats]
        y_refs = refs[1 + n_mats:1 + 2 * n_mats]
        sum_refs = refs[1 + 2 * n_mats:1 + 3 * n_mats]
        sq_refs = refs[1 + 3 * n_mats:1 + 4 * n_mats]

        @pl.when(pl.program_id(0) == 0)
        def _init():
            for r in sum_refs + sq_refs:
                r[...] = jnp.zeros_like(r)

        x = x_ref[...]
        for w_ref, y_ref, sum_ref, sq_ref in zip(w_refs, y_refs, sum_refs, sq_refs):
            y = jnp.dot(x, w_ref[...], preferred_element_type=jnp.float32)
            y_ref[...] = y
            sum_ref[...] += jnp.sum(y, axis=0, keepdims=True)
            sq_ref[...] += jnp.sum(y * y, axis=0, keepdims=True)
    return kernel


def _make_normalize_kernel(m_real, relu, residual):
    """Pass B: out = [ReLU]( BN(y) [+ BN(residual)] ), train-mode BN with the
    batch stats from pass A; f32 math, bf16 store."""
    inv_m = 1.0 / float(m_real)

    def _bn(v, vsum, vsq):
        mean = vsum * inv_m
        var = vsq * inv_m - mean * mean          # biased variance (torch BN)
        return (v - mean) * jax.lax.rsqrt(var + BN_EPS)

    def kernel(*refs):
        if residual:
            y_ref, sum_ref, sq_ref, r_ref, rsum_ref, rsq_ref, o_ref = refs
        else:
            y_ref, sum_ref, sq_ref, o_ref = refs
        out = _bn(y_ref[...], sum_ref[...], sq_ref[...])
        if residual:
            out = out + _bn(r_ref[...], rsum_ref[...], rsq_ref[...])
        if relu:
            out = jnp.maximum(out, 0.0)
        o_ref[...] = out.astype(o_ref.dtype)
    return kernel


# ------------------------------ pallas_call glue ------------------------------
def _matmul_stats(patches, weights, tm):
    """patches: (Mp, Kp) bf16; weights: list of (Kp, Coutp) bf16."""
    mp, kp = patches.shape
    coutp = weights[0].shape[1]
    n = len(weights)
    grid = (mp // tm,)

    x_spec = pl.BlockSpec((tm, kp), lambda i: (i, 0))
    w_spec = pl.BlockSpec((kp, coutp), lambda i: (0, 0))
    y_spec = pl.BlockSpec((tm, coutp), lambda i: (i, 0))
    s_spec = pl.BlockSpec((1, coutp), lambda i: (0, 0))   # VMEM-resident accumulator

    flops = 2 * mp * kp * coutp * n
    bytes_accessed = (mp * kp * 2 + n * kp * coutp * 2
                      + n * mp * coutp * 4 + 2 * n * coutp * 4)

    outs = pl.pallas_call(
        _make_matmul_stats_kernel(n),
        grid=grid,
        in_specs=[x_spec] + [w_spec] * n,
        out_specs=tuple([y_spec] * n + [s_spec] * (2 * n)),
        out_shape=tuple([jax.ShapeDtypeStruct((mp, coutp), jnp.float32)] * n
                        + [jax.ShapeDtypeStruct((1, coutp), jnp.float32)] * (2 * n)),
        compiler_params=pltpu.CompilerParams(
            dimension_semantics=("arbitrary",),           # stats accumulate across M
            vmem_limit_bytes=VMEM_LIMIT),
        cost_estimate=pl.CostEstimate(flops=int(flops), transcendentals=0,
                                      bytes_accessed=int(bytes_accessed)),
    )(patches, *weights)
    return list(outs[:n]), list(outs[n:2 * n]), list(outs[2 * n:])


def _normalize(y, vsum, vsq, m_real, tm, relu,
               residual=None, rsum=None, rsq=None):
    mp, coutp = y.shape
    grid = (mp // tm,)
    tile = pl.BlockSpec((tm, coutp), lambda i: (i, 0))
    vec = pl.BlockSpec((1, coutp), lambda i: (0, 0))

    args = [y, vsum, vsq]
    in_specs = [tile, vec, vec]
    if residual is not None:
        args += [residual, rsum, rsq]
        in_specs += [tile, vec, vec]
    n_br = 2 if residual is not None else 1
    bytes_accessed = int(sum(int(a.size) * a.dtype.itemsize for a in args)
                         + mp * coutp * 2)

    return pl.pallas_call(
        _make_normalize_kernel(m_real, relu, residual is not None),
        grid=grid,
        in_specs=in_specs,
        out_specs=tile,
        out_shape=jax.ShapeDtypeStruct((mp, coutp), jnp.bfloat16),
        compiler_params=pltpu.CompilerParams(
            dimension_semantics=("parallel",),
            vmem_limit_bytes=VMEM_LIMIT),
        cost_estimate=pl.CostEstimate(flops=int(6 * mp * coutp * n_br),
                                      transcendentals=int(coutp * n_br),
                                      bytes_accessed=bytes_accessed),
    )(*args)


# ----------------------------- im2col (wrapper) -------------------------------
def _im2col(x, kh, kw, stride, pad, kp):
    """x: (N,H,W,C) bf16 -> zero-padded patches (Mp, Kp) bf16 (tap-major,
    channel-minor columns) + meta with the true geometry."""
    n, h, w, c = x.shape
    if pad:
        x = jnp.pad(x, ((0, 0), (pad, pad), (pad, pad), (0, 0)))
    ho = (h + 2 * pad - kh) // stride + 1
    wo = (w + 2 * pad - kw) // stride + 1
    cols = []
    for dy in range(kh):
        for dx in range(kw):
            cols.append(x[:, dy:dy + ho * stride:stride,
                          dx:dx + wo * stride:stride, :])
    patches = jnp.concatenate(cols, axis=-1).reshape(n * ho * wo, kh * kw * c)
    m_real = n * ho * wo
    tm, mp = _m_tiling(m_real)
    patches = jnp.pad(patches, ((0, mp - m_real), (0, kp - kh * kw * c)))
    return patches, dict(n=n, ho=ho, wo=wo, m=m_real, tm=tm)


def _conv_pass_a(x_nhwc, weights, kh, stride):
    """Run pass A for a set of weight matrices that share the same patches."""
    kp = weights[0].shape[0]
    patches, meta = _im2col(x_nhwc, kh, kh, stride, kh // 2, kp)
    ys, sums, sqs = _matmul_stats(patches, weights, meta["tm"])
    return ys, sums, sqs, meta


def _to_nhwc(flat, meta, cout):
    return flat[:meta["m"], :cout].reshape(meta["n"], meta["ho"], meta["wo"], cout)


# --------------------------- parameter construction ---------------------------
def _conv_weight_raw(key, cin, cout, kh, kw):
    # init_weights: normal(0, sqrt(2 / (kh*kw*cout))), bias=False everywhere.
    std = math.sqrt(2.0 / (kh * kw * cout))
    return jax.random.normal(key, (cout, cin, kh, kw), jnp.float32) * std


def _flatten_pad(w, kp, coutp):
    """[Cout,Cin,kh,kw] -> zero-padded [Kp, Coutp] bf16 (matches im2col order)."""
    cout, cin, kh, kw = w.shape
    wf = jnp.transpose(w, (2, 3, 1, 0)).reshape(kh * kw * cin, cout)
    wf = jnp.pad(wf, ((0, kp - wf.shape[0]), (0, coutp - cout)))
    return wf.astype(jnp.bfloat16)


def _expand_shortcut(w_1x1, kh, kw, kp, coutp):
    """Embed a 1x1 conv at the center tap of a kh x kw patch matrix so the
    shortcut matmul reuses conv1's patches (exact: center tap == 1x1 input)."""
    cout, cin, _, _ = w_1x1.shape
    wf = jnp.transpose(w_1x1, (2, 3, 1, 0)).reshape(cin, cout)
    center = (kh // 2) * kw + (kw // 2)
    full = jnp.zeros((kh * kw * cin, cout), jnp.float32)
    full = full.at[center * cin:(center + 1) * cin, :].set(wf)
    full = jnp.pad(full, ((0, kp - full.shape[0]), (0, coutp - cout)))
    return full.astype(jnp.bfloat16)


def init_resnet_encoder_params(key, in_channels, blocks_size, depths):
    params = {}
    key, kg = jax.random.split(key)
    c0 = blocks_size[0]
    params["gate"] = {
        "w": _flatten_pad(_conv_weight_raw(kg, in_channels, c0, 3, 3),
                          _round_up(9 * in_channels, LANE), _round_up(c0, LANE)),
        "cout": c0,
    }

    layer_specs = [(c0, c0, depths[0])]
    layer_specs += [(cin, cout, n)
                    for (cin, cout), n in zip(zip(blocks_size, blocks_size[1:]),
                                              depths[1:])]
    layers = []
    for cin, cout, n in layer_specs:
        blocks = []
        for b in range(n):
            bin_ = cin if b == 0 else cout
            # use_down_sampling=True: stride 2 on first block iff channels change.
            stride = 2 if (b == 0 and cin != cout) else 1
            kp1 = _round_up(9 * bin_, LANE)
            kp2 = _round_up(9 * cout, LANE)
            coutp = _round_up(cout, LANE)
            key, k1, k2, k3 = jax.random.split(key, 4)
            blocks.append({
                "w_sc": _expand_shortcut(_conv_weight_raw(k1, bin_, cout, 1, 1),
                                         3, 3, kp1, coutp),
                "w1": _flatten_pad(_conv_weight_raw(k2, bin_, cout, 3, 3), kp1, coutp),
                "w2": _flatten_pad(_conv_weight_raw(k3, cout, cout, 3, 3), kp2, coutp),
                "stride": stride,      # static python int
                "cout": cout,
            })
        layers.append(blocks)
    params["layers"] = layers
    return params


# --------------------------------- forward ------------------------------------
def resnet_encoder_forward(x_nchw, params):
    x = jnp.transpose(x_nchw, (0, 2, 3, 1)).astype(jnp.bfloat16)   # NCHW -> NHWC

    # gate: conv3x3 + BN + ReLU
    ys, sums, sqs, meta = _conv_pass_a(x, [params["gate"]["w"]], kh=3, stride=1)
    x = _to_nhwc(_normalize(ys[0], sums[0], sqs[0], meta["m"], meta["tm"], relu=True),
                 meta, params["gate"]["cout"])

    for layer in params["layers"]:
        for blk in layer:
            cout = blk["cout"]
            # conv1 (3x3, stride s) and the 1x1 shortcut share one patches read.
            ys, sums, sqs, meta = _conv_pass_a(
                x, [blk["w1"], blk["w_sc"]], kh=3, stride=blk["stride"])
            y1, ysc = ys
            h = _to_nhwc(_normalize(y1, sums[0], sqs[0], meta["m"], meta["tm"],
                                    relu=True), meta, cout)
            # conv2 (3x3, stride 1) + BN, then += BN(shortcut), then ReLU.
            ys2, sums2, sqs2, meta2 = _conv_pass_a(h, [blk["w2"]], kh=3, stride=1)
            assert ysc.shape == ys2[0].shape
            out_flat = _normalize(ys2[0], sums2[0], sqs2[0], meta2["m"], meta2["tm"],
                                  relu=True, residual=ysc,
                                  rsum=sums[1], rsq=sqs[1])
            x = _to_nhwc(out_flat, meta2, cout)

    return jnp.transpose(x, (0, 3, 1, 2)).astype(jnp.float32)      # NHWC -> NCHW

# TODO(synk): BatchNorm running_mean/running_var updates (training-time buffer
# side effect) are not reproduced; they do not affect the forward output.


if __name__ == "__main__":
    key = jax.random.PRNGKey(0)
    kx, kp = jax.random.split(key)

    N, C, H, W = 2, 4, 16, 16
    blocks_size = (16, 32, 64, 128)
    depths = (1, 1, 1, 1)

    x = jax.random.normal(kx, (N, C, H, W), jnp.float32)
    params = init_resnet_encoder_params(kp, C, blocks_size, depths)

    fwd = jax.jit(partial(resnet_encoder_forward, params=params))
    out = jax.block_until_ready(fwd(x))

    # 3 stride-2 layers (channel changes) -> spatial / 8
    expected = (N, blocks_size[-1], H // 8, W // 8)
    assert out.shape == expected, (out.shape, expected)
    assert bool(jnp.all(jnp.isfinite(out)))
    print("KERNEL_OK")
</pallas_src>

<mosaic_0001>
module attributes {stable_mosaic.version = 11 : i64} {
  func.func @kernel(%arg0: i32, %arg1: memref<512x128xf32, #tpu.memory_space<vmem>>, %arg2: memref<1x128xf32, #tpu.memory_space<vmem>>, %arg3: memref<1x128xf32, #tpu.memory_space<vmem>>, %arg4: memref<512x128xbf16, #tpu.memory_space<vmem>>) attributes {dimension_semantics = [#tpu.dimension_semantics<parallel>], iteration_bounds = array<i64: 1>, scalar_prefetch = 0 : i64, scratch_operands = 0 : i64, tpu.core_type = #tpu.core_type<tc>, window_params = [{transform_indices = @transform_0, window_bounds = array<i64: 512, 128>}, {pipeline_mode = #tpu.pipeline_mode<synchronous>, transform_indices = @transform_1, window_bounds = array<i64: 1, 128>}, {pipeline_mode = #tpu.pipeline_mode<synchronous>, transform_indices = @transform_2, window_bounds = array<i64: 1, 128>}, {transform_indices = @transform_3, window_bounds = array<i64: 512, 128>}]} {
    %c0 = arith.constant 0 : index
    %c0_0 = arith.constant 0 : index
    %0 = vector.load %arg1[%c0, %c0_0] : memref<512x128xf32, #tpu.memory_space<vmem>>, vector<512x128xf32>
    %c0_1 = arith.constant 0 : index
    %c0_2 = arith.constant 0 : index
    %1 = vector.load %arg2[%c0_1, %c0_2] : memref<1x128xf32, #tpu.memory_space<vmem>>, vector<1x128xf32>
    %c0_3 = arith.constant 0 : index
    %c0_4 = arith.constant 0 : index
    %2 = vector.load %arg3[%c0_3, %c0_4] : memref<1x128xf32, #tpu.memory_space<vmem>>, vector<1x128xf32>
    %cst = arith.constant 0.001953125 : f32
    %3 = vector.broadcast %cst : f32 to vector<1x128xf32>
    %4 = arith.mulf %1, %3 : vector<1x128xf32>
    %cst_5 = arith.constant 0.001953125 : f32
    %5 = vector.broadcast %cst_5 : f32 to vector<1x128xf32>
    %6 = arith.mulf %2, %5 : vector<1x128xf32>
    %7 = arith.mulf %4, %4 : vector<1x128xf32>
    %8 = arith.subf %6, %7 : vector<1x128xf32>
    %9 = vector.broadcast %4 : vector<1x128xf32> to vector<512x128xf32>
    %10 = arith.subf %0, %9 : vector<512x128xf32>
    %cst_6 = arith.constant 9.99999974E-6 : f32
    %11 = vector.broadcast %cst_6 : f32 to vector<1x128xf32>
    %12 = arith.addf %8, %11 : vector<1x128xf32>
    %13 = math.rsqrt %12 : vector<1x128xf32>
    %14 = vector.broadcast %13 : vector<1x128xf32> to vector<512x128xf32>
    %15 = arith.mulf %10, %14 : vector<512x128xf32>
    %cst_7 = arith.constant 0.000000e+00 : f32
    %16 = vector.broadcast %cst_7 : f32 to vector<512x128xf32>
    %17 = arith.maximumf %15, %16 : vector<512x128xf32>
    %18 = arith.truncf %17 : vector<512x128xf32> to vector<512x128xbf16>
    %c0_8 = arith.constant 0 : index
    %c0_9 = arith.constant 0 : index
    %19 = vector.load %arg4[%c0_8, %c0_9] : memref<512x128xbf16, #tpu.memory_space<vmem>>, vector<512x128xbf16>
    tpu.vector_store %arg4[%c0_8, %c0_9], %18 {strides = array<i32>} : memref<512x128xbf16, #tpu.memory_space<vmem>>, vector<512x128xbf16>,
    return
  }
  func.func @transform_0(%arg0: i32) -> (i32, i32) {
    %c0_i32 = arith.constant 0 : i32
    %c0_i32_0 = arith.constant 0 : i32
    return %arg0, %c0_i32 : i32, i32
  }
  func.func @transform_1(%arg0: i32) -> (i32, i32) {
    %c0_i32 = arith.constant 0 : i32
    %c0_i32_0 = arith.constant 0 : i32
    %c0_i32_1 = arith.constant 0 : i32
    return %c0_i32, %c0_i32_0 : i32, i32
  }
  func.func @transform_2(%arg0: i32) -> (i32, i32) {
    %c0_i32 = arith.constant 0 : i32
    %c0_i32_0 = arith.constant 0 : i32
    %c0_i32_1 = arith.constant 0 : i32
    return %c0_i32, %c0_i32_0 : i32, i32
  }
  func.func @transform_3(%arg0: i32) -> (i32, i32) {
    %c0_i32 = arith.constant 0 : i32
    %c0_i32_0 = arith.constant 0 : i32
    return %arg0, %c0_i32 : i32, i32
  }
}

module attributes {stable_mosaic.version = 11 : i64} {
  func.func @kernel(%arg0: i32, %arg1: memref<512x128xbf16, #tpu.memory_space<vmem>>, %arg2: memref<128x128xbf16, #tpu.memory_space<vmem>>, %arg3: memref<512x128xf32, #tpu.memory_space<vmem>>, %arg4: memref<1x128xf32, #tpu.memory_space<vmem>>, %arg5: memref<1x128xf32, #tpu.memory_space<vmem>>) attributes {dimension_semantics = [#tpu.dimension_semantics<arbitrary>], iteration_bounds = array<i64: 1>, scalar_prefetch = 0 : i64, scratch_operands = 0 : i64, tpu.core_type = #tpu.core_type<tc>, window_params = [{transform_indices = @transform_0, window_bounds = array<i64: 512, 128>}, {pipeline_mode = #tpu.pipeline_mode<synchronous>, transform_indices = @transform_1, window_bounds = array<i64: 128, 128>}, {transform_indices = @transform_2, window_bounds = array<i64: 512, 128>}, {pipeline_mode = #tpu.pipeline_mode<synchronous>, transform_indices = @transform_3, window_bounds = array<i64: 1, 128>}, {pipeline_mode = #tpu.pipeline_mode<synchronous>, transform_indices = @transform_4, window_bounds = array<i64: 1, 128>}]} {
    %c0_i32 = arith.constant 0 : i32
    %0 = arith.cmpi eq, %arg0, %c0_i32 : i32
    %1 = arith.extui %0 : i1 to i32
    %c0_i32_0 = arith.constant 0 : i32
    %2 = arith.cmpi ne, %1, %c0_i32_0 : i32
    scf.if %2 {
      %cst_16 = arith.constant 0.000000e+00 : f32
      %18 = vector.broadcast %cst_16 : f32 to vector<1x128xf32>
      %c0_17 = arith.constant 0 : index
      %c0_18 = arith.constant 0 : index
      %19 = vector.load %arg4[%c0_17, %c0_18] : memref<1x128xf32, #tpu.memory_space<vmem>>, vector<1x128xf32>
      tpu.vector_store %arg4[%c0_17, %c0_18], %18 {strides = array<i32>} : memref<1x128xf32, #tpu.memory_space<vmem>>, vector<1x128xf32>,
      %cst_19 = arith.constant 0.000000e+00 : f32
      %20 = vector.broadcast %cst_19 : f32 to vector<1x128xf32>
      %c0_20 = arith.constant 0 : index
      %c0_21 = arith.constant 0 : index
      %21 = vector.load %arg5[%c0_20, %c0_21] : memref<1x128xf32, #tpu.memory_space<vmem>>, vector<1x128xf32>
      tpu.vector_store %arg5[%c0_20, %c0_21], %20 {strides = array<i32>} : memref<1x128xf32, #tpu.memory_space<vmem>>, vector<1x128xf32>,
    } else {
    }
    %c0 = arith.constant 0 : index
    %c0_1 = arith.constant 0 : index
    %3 = vector.load %arg1[%c0, %c0_1] : memref<512x128xbf16, #tpu.memory_space<vmem>>, vector<512x128xbf16>
    %c0_2 = arith.constant 0 : index
    %c0_3 = arith.constant 0 : index
    %4 = vector.load %arg2[%c0_2, %c0_3] : memref<128x128xbf16, #tpu.memory_space<vmem>>, vector<128x128xbf16>
    %cst = arith.constant dense<0.000000e+00> : vector<512x128xf32>
    %5 = tpu.matmul %3, %4, %cst {dimension_numbers = #tpu.dot_dimension_numbers<[1], [0], [0], [1], [0, 0, 1, 1], [], []>} : vector<512x128xbf16>, vector<128x128xbf16>, vector<512x128xf32> -> vector<512x128xf32>
    %c0_4 = arith.constant 0 : index
    %c0_5 = arith.constant 0 : index
    %6 = vector.load %arg3[%c0_4, %c0_5] : memref<512x128xf32, #tpu.memory_space<vmem>>, vector<512x128xf32>
    tpu.vector_store %arg3[%c0_4, %c0_5], %5 {strides = array<i32>} : memref<512x128xf32, #tpu.memory_space<vmem>>, vector<512x128xf32>,
    %c0_6 = arith.constant 0 : index
    %c0_7 = arith.constant 0 : index
    %7 = vector.load %arg4[%c0_6, %c0_7] : memref<1x128xf32, #tpu.memory_space<vmem>>, vector<1x128xf32>
    %cst_8 = arith.constant dense<0.000000e+00> : vector<128xf32>
    %8 = vector.multi_reduction <add>, %5, %cst_8 [0] : vector<512x128xf32> to vector<128xf32>
    %9 = vector.shape_cast %8 : vector<128xf32> to vector<1x128xf32>
    %10 = arith.addf %7, %9 : vector<1x128xf32>
    %c0_9 = arith.constant 0 : index
    %c0_10 = arith.constant 0 : index
    %11 = vector.load %arg4[%c0_9, %c0_10] : memref<1x128xf32, #tpu.memory_space<vmem>>, vector<1x128xf32>
    tpu.vector_store %arg4[%c0_9, %c0_10], %10 {strides = array<i32>} : memref<1x128xf32, #tpu.memory_space<vmem>>, vector<1x128xf32>,
    %c0_11 = arith.constant 0 : index
    %c0_12 = arith.constant 0 : index
    %12 = vector.load %arg5[%c0_11, %c0_12] : memref<1x128xf32, #tpu.memory_space<vmem>>, vector<1x128xf32>
    %13 = arith.mulf %5, %5 : vector<512x128xf32>
    %cst_13 = arith.constant dense<0.000000e+00> : vector<128xf32>
    %14 = vector.multi_reduction <add>, %13, %cst_13 [0] : vector<512x128xf32> to vector<128xf32>
    %15 = vector.shape_cast %14 : vector<128xf32> to vector<1x128xf32>
    %16 = arith.addf %12, %15 : vector<1x128xf32>
    %c0_14 = arith.constant 0 : index
    %c0_15 = arith.constant 0 : index
    %17 = vector.load %arg5[%c0_14, %c0_15] : memref<1x128xf32, #tpu.memory_space<vmem>>, vector<1x128xf32>
    tpu.vector_store %arg5[%c0_14, %c0_15], %16 {strides = array<i32>} : memref<1x128xf32, #tpu.memory_space<vmem>>, vector<1x128xf32>,
    return
  }
  func.func @transform_0(%arg0: i32) -> (i32, i32) {
    %c0_i32 = arith.constant 0 : i32
    %c0_i32_0 = arith.constant 0 : i32
    return %arg0, %c0_i32 : i32, i32
  }
  func.func @transform_1(%arg0: i32) -> (i32, i32) {
    %c0_i32 = arith.constant 0 : i32
    %c0_i32_0 = arith.constant 0 : i32
    %c0_i32_1 = arith.constant 0 : i32
    return %c0_i32, %c0_i32_0 : i32, i32
  }
  func.func @transform_2(%arg0: i32) -> (i32, i32) {
    %c0_i32 = arith.constant 0 : i32
    %c0_i32_0 = arith.constant 0 : i32
    return %arg0, %c0_i32 : i32, i32
  }
  func.func @transform_3(%arg0: i32) -> (i32, i32) {
    %c0_i32 = arith.constant 0 : i32
    %c0_i32_0 = arith.constant 0 : i32
    %c0_i32_1 = arith.constant 0 : i32
    return %c0_i32, %c0_i32_0 : i32, i32
  }
  func.func @transform_4(%arg0: i32) -> (i32, i32) {
    %c0_i32 = arith.constant 0 : i32
    %c0_i32_0 = arith.constant 0 : i32
    %c0_i32_1 = arith.constant 0 : i32
    return %c0_i32, %c0_i32_0 : i32, i32
  }
}

module attributes {stable_mosaic.version = 11 : i64} {
  func.func @kernel(%arg0: i32, %arg1: memref<512x256xbf16, #tpu.memory_space<vmem>>, %arg2: memref<256x128xbf16, #tpu.memory_space<vmem>>, %arg3: memref<256x128xbf16, #tpu.memory_space<vmem>>, %arg4: memref<512x128xf32, #tpu.memory_space<vmem>>, %arg5: memref<512x128xf32, #tpu.memory_space<vmem>>, %arg6: memref<1x128xf32, #tpu.memory_space<vmem>>, %arg7: memref<1x128xf32, #tpu.memory_space<vmem>>, %arg8: memref<1x128xf32, #tpu.memory_space<vmem>>, %arg9: memref<1x128xf32, #tpu.memory_space<vmem>>) attributes {dimension_semantics = [#tpu.dimension_semantics<arbitrary>], iteration_bounds = array<i64: 1>, scalar_prefetch = 0 : i64, scratch_operands = 0 : i64, tpu.core_type = #tpu.core_type<tc>, window_params = [{transform_indices = @transform_0, window_bounds = array<i64: 512, 256>}, {pipeline_mode = #tpu.pipeline_mode<synchronous>, transform_indices = @transform_1, window_bounds = array<i64: 256, 128>}, {pipeline_mode = #tpu.pipeline_mode<synchronous>, transform_indices = @transform_2, window_bounds = array<i64: 256, 128>}, {transform_indices = @transform_3, window_bounds = array<i64: 512, 128>}, {transform_indices = @transform_4, window_bounds = array<i64: 512, 128>}, {pipeline_mode = #tpu.pipeline_mode<synchronous>, transform_indices = @transform_5, window_bounds = array<i64: 1, 128>}, {pipeline_mode = #tpu.pipeline_mode<synchronous>, transform_indices = @transform_6, window_bounds = array<i64: 1, 128>}, {pipeline_mode = #tpu.pipeline_mode<synchronous>, transform_indices = @transform_7, window_bounds = array<i64: 1, 128>}, {pipeline_mode = #tpu.pipeline_mode<synchronous>, transform_indices = @transform_8, window_bounds = array<i64: 1, 128>}]} {
    %c0_i32 = arith.constant 0 : i32
    %0 = arith.cmpi eq, %arg0, %c0_i32 : i32
    %1 = arith.extui %0 : i1 to i32
    %c0_i32_0 = arith.constant 0 : i32
    %2 = arith.cmpi ne, %1, %c0_i32_0 : i32
    scf.if %2 {
      %cst_31 = arith.constant 0.000000e+00 : f32
      %32 = vector.broadcast %cst_31 : f32 to vector<1x128xf32>
      %c0_32 = arith.constant 0 : index
      %c0_33 = arith.constant 0 : index
      %33 = vector.load %arg6[%c0_32, %c0_33] : memref<1x128xf32, #tpu.memory_space<vmem>>, vector<1x128xf32>
      tpu.vector_store %arg6[%c0_32, %c0_33], %32 {strides = array<i32>} : memref<1x128xf32, #tpu.memory_space<vmem>>, vector<1x128xf32>,
      %cst_34 = arith.constant 0.000000e+00 : f32
      %34 = vector.broadcast %cst_34 : f32 to vector<1x128xf32>
      %c0_35 = arith.constant 0 : index
      %c0_36 = arith.constant 0 : index
      %35 = vector.load %arg7[%c0_35, %c0_36] : memref<1x128xf32, #tpu.memory_space<vmem>>, vector<1x128xf32>
      tpu.vector_store %arg7[%c0_35, %c0_36], %34 {strides = array<i32>} : memref<1x128xf32, #tpu.memory_space<vmem>>, vector<1x128xf32>,
      %cst_37 = arith.constant 0.000000e+00 : f32
      %36 = vector.broadcast %cst_37 : f32 to vector<1x128xf32>
      %c0_38 = arith.constant 0 : index
      %c0_39 = arith.constant 0 : index
      %37 = vector.load %arg8[%c0_38, %c0_39] : memref<1x128xf32, #tpu.memory_space<vmem>>, vector<1x128xf32>
      tpu.vector_store %arg8[%c0_38, %c0_39], %36 {strides = array<i32>} : memref<1x128xf32, #tpu.memory_space<vmem>>, vector<1x128xf32>,
      %cst_40 = arith.constant 0.000000e+00 : f32
      %38 = vector.broadcast %cst_40 : f32 to vector<1x128xf32>
      %c0_41 = arith.constant 0 : index
      %c0_42 = arith.constant 0 : index
      %39 = vector.load %arg9[%c0_41, %c0_42] : memref<1x128xf32, #tpu.memory_space<vmem>>, vector<1x128xf32>
      tpu.vector_store %arg9[%c0_41, %c0_42], %38 {strides = array<i32>} : memref<1x128xf32, #tpu.memory_space<vmem>>, vector<1x128xf32>,
    } else {
    }
    %c0 = arith.constant 0 : index
    %c0_1 = arith.constant 0 : index
    %3 = vector.load %arg1[%c0, %c0_1] : memref<512x256xbf16, #tpu.memory_space<vmem>>, vector<512x256xbf16>
    %c0_2 = arith.constant 0 : index
    %c0_3 = arith.constant 0 : index
    %4 = vector.load %arg2[%c0_2, %c0_3] : memref<256x128xbf16, #tpu.memory_space<vmem>>, vector<256x128xbf16>
    %cst = arith.constant dense<0.000000e+00> : vector<512x128xf32>
    %5 = tpu.matmul %3, %4, %cst {dimension_numbers = #tpu.dot_dimension_numbers<[1], [0], [0], [1], [0, 0, 1, 1], [], []>} : vector<512x256xbf16>, vector<256x128xbf16>, vector<512x128xf32> -> vector<512x128xf32>
    %c0_4 = arith.constant 0 : index
    %c0_5 = arith.constant 0 : index
    %6 = vector.load %arg4[%c0_4, %c0_5] : memref<512x128xf32, #tpu.memory_space<vmem>>, vector<512x128xf32>
    tpu.vector_store %arg4[%c0_4, %c0_5], %5 {strides = array<i32>} : memref<512x128xf32, #tpu.memory_space<vmem>>, vector<512x128xf32>,
    %c0_6 = arith.constant 0 : index
    %c0_7 = arith.constant 0 : index
    %7 = vector.load %arg6[%c0_6, %c0_7] : memref<1x128xf32, #tpu.memory_space<vmem>>, vector<1x128xf32>
    %cst_8 = arith.constant dense<0.000000e+00> : vector<128xf32>
    %8 = vector.multi_reduction <add>, %5, %cst_8 [0] : vector<512x128xf32> to vector<128xf32>
    %9 = vector.shape_cast %8 : vector<128xf32> to vector<1x128xf32>
    %10 = arith.addf %7, %9 : vector<1x128xf32>
    %c0_9 = arith.constant 0 : index
    %c0_10 = arith.constant 0 : index
    %11 = vector.load %arg6[%c0_9, %c0_10] : memref<1x128xf32, #tpu.memory_space<vmem>>, vector<1x128xf32>
    tpu.vector_store %arg6[%c0_9, %c0_10], %10 {strides = array<i32>} : memref<1x128xf32, #tpu.memory_space<vmem>>, vector<1x128xf32>,
    %c0_11 = arith.constant 0 : index
    %c0_12 = arith.constant 0 : index
    %12 = vector.load %arg8[%c0_11, %c0_12] : memref<1x128xf32, #tpu.memory_space<vmem>>, vector<1x128xf32>
    %13 = arith.mulf %5, %5 : vector<512x128xf32>
    %cst_13 = arith.constant dense<0.000000e+00> : vector<128xf32>
    %14 = vector.multi_reduction <add>, %13, %cst_13 [0] : vector<512x128xf32> to vector<128xf32>
    %15 = vector.shape_cast %14 : vector<128xf32> to vector<1x128xf32>
    %16 = arith.addf %12, %15 : vector<1x128xf32>
    %c0_14 = arith.constant 0 : index
    %c0_15 = arith.constant 0 : index
    %17 = vector.load %arg8[%c0_14, %c0_15] : memref<1x128xf32, #tpu.memory_space<vmem>>, vector<1x128xf32>
    tpu.vector_store %arg8[%c0_14, %c0_15], %16 {strides = array<i32>} : memref<1x128xf32, #tpu.memory_space<vmem>>, vector<1x128xf32>,
    %c0_16 = arith.constant 0 : index
    %c0_17 = arith.constant 0 : index
    %18 = vector.load %arg3[%c0_16, %c0_17] : memref<256x128xbf16, #tpu.memory_space<vmem>>, vector<256x128xbf16>
    %cst_18 = arith.constant dense<0.000000e+00> : vector<512x128xf32>
    %19 = tpu.matmul %3, %18, %cst_18 {dimension_numbers = #tpu.dot_dimension_numbers<[1], [0], [0], [1], [0, 0, 1, 1], [], []>} : vector<512x256xbf16>, vector<256x128xbf16>, vector<512x128xf32> -> vector<512x128xf32>
    %c0_19 = arith.constant 0 : index
    %c0_20 = arith.constant 0 : index
    %20 = vector.load %arg5[%c0_19, %c0_20] : memref<512x128xf32, #tpu.memory_space<vmem>>, vector<512x128xf32>
    tpu.vector_store %arg5[%c0_19, %c0_20], %19 {strides = array<i32>} : memref<512x128xf32, #tpu.memory_space<vmem>>, vector<512x128xf32>,
    %c0_21 = arith.constant 0 : index
    %c0_22 = arith.constant 0 : index
    %21 = vector.load %arg7[%c0_21, %c0_22] : memref<1x128xf32, #tpu.memory_space<vmem>>, vector<1x128xf32>
    %cst_23 = arith.constant dense<0.000000e+00> : vector<128xf32>
    %22 = vector.multi_reduction <add>, %19, %cst_23 [0] : vector<512x128xf32> to vector<128xf32>
    %23 = vector.shape_cast %22 : vector<128xf32> to vector<1x128xf32>
    %24 = arith.addf %21, %23 : vector<1x128xf32>
    %c0_24 = arith.constant 0 : index
    %c0_25 = arith.constant 0 : index
    %25 = vector.load %arg7[%c0_24, %c0_25] : memref<1x128xf32, #tpu.memory_space<vmem>>, vector<1x128xf32>
    tpu.vector_store %arg7[%c0_24, %c0_25], %24 {strides = array<i32>} : memref<1x128xf32, #tpu.memory_space<vmem>>, vector<1x128xf32>,
    %c0_26 = arith.constant 0 : index
    %c0_27 = arith.constant 0 : index
    %26 = vector.load %arg9[%c0_26, %c0_27] : memref<1x128xf32, #tpu.memory_space<vmem>>, vector<1x128xf32>
    %27 = arith.mulf %19, %19 : vector<512x128xf32>
    %cst_28 = arith.constant dense<0.000000e+00> : vector<128xf32>
    %28 = vector.multi_reduction <add>, %27, %cst_28 [0] : vector<512x128xf32> to vector<128xf32>
    %29 = vector.shape_cast %28 : vector<128xf32> to vector<1x128xf32>
    %30 = arith.addf %26, %29 : vector<1x128xf32>
    %c0_29 = arith.constant 0 : index
    %c0_30 = arith.constant 0 : index
    %31 = vector.load %arg9[%c0_29, %c0_30] : memref<1x128xf32, #tpu.memory_space<vmem>>, vector<1x128xf32>
    tpu.vector_store %arg9[%c0_29, %c0_30], %30 {strides = array<i32>} : memref<1x128xf32, #tpu.memory_space<vmem>>, vector<1x128xf32>,
    return
  }
  func.func @transform_0(%arg0: i32) -> (i32, i32) {
    %c0_i32 = arith.constant 0 : i32
    %c0_i32_0 = arith.constant 0 : i32
    return %arg0, %c0_i32 : i32, i32
  }
  func.func @transform_1(%arg0: i32) -> (i32, i32) {
    %c0_i32 = arith.constant 0 : i32
    %c0_i32_0 = arith.constant 0 : i32
    %c0_i32_1 = arith.constant 0 : i32
    return %c0_i32, %c0_i32_0 : i32, i32
  }
  func.func @transform_2(%arg0: i32) -> (i32, i32) {
    %c0_i32 = arith.constant 0 : i32
    %c0_i32_0 = arith.constant 0 : i32
    %c0_i32_1 = arith.constant 0 : i32
    return %c0_i32, %c0_i32_0 : i32, i32
  }
  func.func @transform_3(%arg0: i32) -> (i32, i32) {
    %c0_i32 = arith.constant 0 : i32
    %c0_i32_0 = arith.constant 0 : i32
    return %arg0, %c0_i32 : i32, i32
  }
  func.func @transform_4(%arg0: i32) -> (i32, i32) {
    %c0_i32 = arith.constant 0 : i32
    %c0_i32_0 = arith.constant 0 : i32
    return %arg0, %c0_i32 : i32, i32
  }
  func.func @transform_5(%arg0: i32) -> (i32, i32) {
    %c0_i32 = arith.constant 0 : i32
    %c0_i32_0 = arith.constant 0 : i32
    %c0_i32_1 = arith.constant 0 : i32
    return %c0_i32, %c0_i32_0 : i32, i32
  }
  func.func @transform_6(%arg0: i32) -> (i32, i32) {
    %c0_i32 = arith.constant 0 : i32
    %c0_i32_0 = arith.constant 0 : i32
    %c0_i32_1 = arith.constant 0 : i32
    return %c0_i32, %c0_i32_0 : i32, i32
  }
  func.func @transform_7(%arg0: i32) -> (i32, i32) {
    %c0_i32 = arith.constant 0 : i32
    %c0_i32_0 = arith.constant 0 : i32
    %c0_i32_1 = arith.constant 0 : i32
    return %c0_i32, %c0_i32_0 : i32, i32
  }
  func.func @transform_8(%arg0: i32) -> (i32, i32) {
    %c0_i32 = arith.constant 0 : i32
    %c0_i32_0 = arith.constant 0 : i32
    %c0_i32_1 = arith.constant 0 : i32
    return %c0_i32, %c0_i32_0 : i32, i32
  }
}

module attributes {stable_mosaic.version = 11 : i64} {
  func.func @kernel(%arg0: i32, %arg1: memref<512x256xbf16, #tpu.memory_space<vmem>>, %arg2: memref<256x128xbf16, #tpu.memory_space<vmem>>, %arg3: memref<512x128xf32, #tpu.memory_space<vmem>>, %arg4: memref<1x128xf32, #tpu.memory_space<vmem>>, %arg5: memref<1x128xf32, #tpu.memory_space<vmem>>) attributes {dimension_semantics = [#tpu.dimension_semantics<arbitrary>], iteration_bounds = array<i64: 1>, scalar_prefetch = 0 : i64, scratch_operands = 0 : i64, tpu.core_type = #tpu.core_type<tc>, window_params = [{transform_indices = @transform_0, window_bounds = array<i64: 512, 256>}, {pipeline_mode = #tpu.pipeline_mode<synchronous>, transform_indices = @transform_1, window_bounds = array<i64: 256, 128>}, {transform_indices = @transform_2, window_bounds = array<i64: 512, 128>}, {pipeline_mode = #tpu.pipeline_mode<synchronous>, transform_indices = @transform_3, window_bounds = array<i64: 1, 128>}, {pipeline_mode = #tpu.pipeline_mode<synchronous>, transform_indices = @transform_4, window_bounds = array<i64: 1, 128>}]} {
    %c0_i32 = arith.constant 0 : i32
    %0 = arith.cmpi eq, %arg0, %c0_i32 : i32
    %1 = arith.extui %0 : i1 to i32
    %c0_i32_0 = arith.constant 0 : i32
    %2 = arith.cmpi ne, %1, %c0_i32_0 : i32
    scf.if %2 {
      %cst_16 = arith.constant 0.000000e+00 : f32
      %18 = vector.broadcast %cst_16 : f32 to vector<1x128xf32>
      %c0_17 = arith.constant 0 : index
      %c0_18 = arith.constant 0 : index
      %19 = vector.load %arg4[%c0_17, %c0_18] : memref<1x128xf32, #tpu.memory_space<vmem>>, vector<1x128xf32>
      tpu.vector_store %arg4[%c0_17, %c0_18], %18 {strides = array<i32>} : memref<1x128xf32, #tpu.memory_space<vmem>>, vector<1x128xf32>,
      %cst_19 = arith.constant 0.000000e+00 : f32
      %20 = vector.broadcast %cst_19 : f32 to vector<1x128xf32>
      %c0_20 = arith.constant 0 : index
      %c0_21 = arith.constant 0 : index
      %21 = vector.load %arg5[%c0_20, %c0_21] : memref<1x128xf32, #tpu.memory_space<vmem>>, vector<1x128xf32>
      tpu.vector_store %arg5[%c0_20, %c0_21], %20 {strides = array<i32>} : memref<1x128xf32, #tpu.memory_space<vmem>>, vector<1x128xf32>,
    } else {
    }
    %c0 = arith.constant 0 : index
    %c0_1 = arith.constant 0 : index
    %3 = vector.load %arg1[%c0, %c0_1] : memref<512x256xbf16, #tpu.memory_space<vmem>>, vector<512x256xbf16>
    %c0_2 = arith.constant 0 : index
    %c0_3 = arith.constant 0 : index
    %4 = vector.load %arg2[%c0_2, %c0_3] : memref<256x128xbf16, #tpu.memory_space<vmem>>, vector<256x128xbf16>
    %cst = arith.constant dense<0.000000e+00> : vector<512x128xf32>
    %5 = tpu.matmul %3, %4, %cst {dimension_numbers = #tpu.dot_dimension_numbers<[1], [0], [0], [1], [0, 0, 1, 1], [], []>} : vector<512x256xbf16>, vector<256x128xbf16>, vector<512x128xf32> -> vector<512x128xf32>
    %c0_4 = arith.constant 0 : index
    %c0_5 = arith.constant 0 : index
    %6 = vector.load %arg3[%c0_4, %c0_5] : memref<512x128xf32, #tpu.memory_space<vmem>>, vector<512x128xf32>
    tpu.vector_store %arg3[%c0_4, %c0_5], %5 {strides = array<i32>} : memref<512x128xf32, #tpu.memory_space<vmem>>, vector<512x128xf32>,
    %c0_6 = arith.constant 0 : index
    %c0_7 = arith.constant 0 : index
    %7 = vector.load %arg4[%c0_6, %c0_7] : memref<1x128xf32, #tpu.memory_space<vmem>>, vector<1x128xf32>
    %cst_8 = arith.constant dense<0.000000e+00> : vector<128xf32>
    %8 = vector.multi_reduction <add>, %5, %cst_8 [0] : vector<512x128xf32> to vector<128xf32>
    %9 = vector.shape_cast %8 : vector<128xf32> to vector<1x128xf32>
    %10 = arith.addf %7, %9 : vector<1x128xf32>
    %c0_9 = arith.constant 0 : index
    %c0_10 = arith.constant 0 : index
    %11 = vector.load %arg4[%c0_9, %c0_10] : memref<1x128xf32, #tpu.memory_space<vmem>>, vector<1x128xf32>
    tpu.vector_store %arg4[%c0_9, %c0_10], %10 {strides = array<i32>} : memref<1x128xf32, #tpu.memory_space<vmem>>, vector<1x128xf32>,
    %c0_11 = arith.constant 0 : index
    %c0_12 = arith.constant 0 : index
    %12 = vector.load %arg5[%c0_11, %c0_12] : memref<1x128xf32, #tpu.memory_space<vmem>>, vector<1x128xf32>
    %13 = arith.mulf %5, %5 : vector<512x128xf32>
    %cst_13 = arith.constant dense<0.000000e+00> : vector<128xf32>
    %14 = vector.multi_reduction <add>, %13, %cst_13 [0] : vector<512x128xf32> to vector<128xf32>
    %15 = vector.shape_cast %14 : vector<128xf32> to vector<1x128xf32>
    %16 = arith.addf %12, %15 : vector<1x128xf32>
    %c0_14 = arith.constant 0 : index
    %c0_15 = arith.constant 0 : index
    %17 = vector.load %arg5[%c0_14, %c0_15] : memref<1x128xf32, #tpu.memory_space<vmem>>, vector<1x128xf32>
    tpu.vector_store %arg5[%c0_14, %c0_15], %16 {strides = array<i32>} : memref<1x128xf32, #tpu.memory_space<vmem>>, vector<1x128xf32>,
    return
  }
  func.func @transform_0(%arg0: i32) -> (i32, i32) {
    %c0_i32 = arith.constant 0 : i32
    %c0_i32_0 = arith.constant 0 : i32
    return %arg0, %c0_i32 : i32, i32
  }
  func.func @transform_1(%arg0: i32) -> (i32, i32) {
    %c0_i32 = arith.constant 0 : i32
    %c0_i32_0 = arith.constant 0 : i32
    %c0_i32_1 = arith.constant 0 : i32
    return %c0_i32, %c0_i32_0 : i32, i32
  }
  func.func @transform_2(%arg0: i32) -> (i32, i32) {
    %c0_i32 = arith.constant 0 : i32
    %c0_i32_0 = arith.constant 0 : i32
    return %arg0, %c0_i32 : i32, i32
  }
  func.func @transform_3(%arg0: i32) -> (i32, i32) {
    %c0_i32 = arith.constant 0 : i32
    %c0_i32_0 = arith.constant 0 : i32
    %c0_i32_1 = arith.constant 0 : i32
    return %c0_i32, %c0_i32_0 : i32, i32
  }
  func.func @transform_4(%arg0: i32) -> (i32, i32) {
    %c0_i32 = arith.constant 0 : i32
    %c0_i32_0 = arith.constant 0 : i32
    %c0_i32_1 = arith.constant 0 : i32
    return %c0_i32, %c0_i32_0 : i32, i32
  }
}

module attributes {stable_mosaic.version = 11 : i64} {
  func.func @kernel(%arg0: i32, %arg1: memref<512x128xf32, #tpu.memory_space<vmem>>, %arg2: memref<1x128xf32, #tpu.memory_space<vmem>>, %arg3: memref<1x128xf32, #tpu.memory_space<vmem>>, %arg4: memref<512x128xf32, #tpu.memory_space<vmem>>, %arg5: memref<1x128xf32, #tpu.memory_space<vmem>>, %arg6: memref<1x128xf32, #tpu.memory_space<vmem>>, %arg7: memref<512x128xbf16, #tpu.memory_space<vmem>>) attributes {dimension_semantics = [#tpu.dimension_semantics<parallel>], iteration_bounds = array<i64: 1>, scalar_prefetch = 0 : i64, scratch_operands = 0 : i64, tpu.core_type = #tpu.core_type<tc>, window_params = [{transform_indices = @transform_0, window_bounds = array<i64: 512, 128>}, {pipeline_mode = #tpu.pipeline_mode<synchronous>, transform_indices = @transform_1, window_bounds = array<i64: 1, 128>}, {pipeline_mode = #tpu.pipeline_mode<synchronous>, transform_indices = @transform_2, window_bounds = array<i64: 1, 128>}, {transform_indices = @transform_3, window_bounds = array<i64: 512, 128>}, {pipeline_mode = #tpu.pipeline_mode<synchronous>, transform_indices = @transform_4, window_bounds = array<i64: 1, 128>}, {pipeline_mode = #tpu.pipeline_mode<synchronous>, transform_indices = @transform_5, window_bounds = array<i64: 1, 128>}, {transform_indices = @transform_6, window_bounds = array<i64: 512, 128>}]} {
    %c0 = arith.constant 0 : index
    %c0_0 = arith.constant 0 : index
    %0 = vector.load %arg1[%c0, %c0_0] : memref<512x128xf32, #tpu.memory_space<vmem>>, vector<512x128xf32>
    %c0_1 = arith.constant 0 : index
    %c0_2 = arith.constant 0 : index
    %1 = vector.load %arg2[%c0_1, %c0_2] : memref<1x128xf32, #tpu.memory_space<vmem>>, vector<1x128xf32>
    %c0_3 = arith.constant 0 : index
    %c0_4 = arith.constant 0 : index
    %2 = vector.load %arg3[%c0_3, %c0_4] : memref<1x128xf32, #tpu.memory_space<vmem>>, vector<1x128xf32>
    %cst = arith.constant 0.001953125 : f32
    %3 = vector.broadcast %cst : f32 to vector<1x128xf32>
    %4 = arith.mulf %1, %3 : vector<1x128xf32>
    %cst_5 = arith.constant 0.001953125 : f32
    %5 = vector.broadcast %cst_5 : f32 to vector<1x128xf32>
    %6 = arith.mulf %2, %5 : vector<1x128xf32>
    %7 = arith.mulf %4, %4 : vector<1x128xf32>
    %8 = arith.subf %6, %7 : vector<1x128xf32>
    %9 = vector.broadcast %4 : vector<1x128xf32> to vector<512x128xf32>
    %10 = arith.subf %0, %9 : vector<512x128xf32>
    %cst_6 = arith.constant 9.99999974E-6 : f32
    %11 = vector.broadcast %cst_6 : f32 to vector<1x128xf32>
    %12 = arith.addf %8, %11 : vector<1x128xf32>
    %13 = math.rsqrt %12 : vector<1x128xf32>
    %14 = vector.broadcast %13 : vector<1x128xf32> to vector<512x128xf32>
    %15 = arith.mulf %10, %14 : vector<512x128xf32>
    %c0_7 = arith.constant 0 : index
    %c0_8 = arith.constant 0 : index
    %16 = vector.load %arg4[%c0_7, %c0_8] : memref<512x128xf32, #tpu.memory_space<vmem>>, vector<512x128xf32>
    %c0_9 = arith.constant 0 : index
    %c0_10 = arith.constant 0 : index
    %17 = vector.load %arg5[%c0_9, %c0_10] : memref<1x128xf32, #tpu.memory_space<vmem>>, vector<1x128xf32>
    %c0_11 = arith.constant 0 : index
    %c0_12 = arith.constant 0 : index
    %18 = vector.load %arg6[%c0_11, %c0_12] : memref<1x128xf32, #tpu.memory_space<vmem>>, vector<1x128xf32>
    %cst_13 = arith.constant 0.001953125 : f32
    %19 = vector.broadcast %cst_13 : f32 to vector<1x128xf32>
    %20 = arith.mulf %17, %19 : vector<1x128xf32>
    %cst_14 = arith.constant 0.001953125 : f32
    %21 = vector.broadcast %cst_14 : f32 to vector<1x128xf32>
    %22 = arith.mulf %18, %21 : vector<1x128xf32>
    %23 = arith.mulf %20, %20 : vector<1x128xf32>
    %24 = arith.subf %22, %23 : vector<1x128xf32>
    %25 = vector.broadcast %20 : vector<1x128xf32> to vector<512x128xf32>
    %26 = arith.subf %16, %25 : vector<512x128xf32>
    %cst_15 = arith.constant 9.99999974E-6 : f32
    %27 = vector.broadcast %cst_15 : f32 to vector<1x128xf32>
    %28 = arith.addf %24, %27 : vector<1x128xf32>
    %29 = math.rsqrt %28 : vector<1x128xf32>
    %30 = vector.broadcast %29 : vector<1x128xf32> to vector<512x128xf32>
    %31 = arith.mulf %26, %30 : vector<512x128xf32>
    %32 = arith.addf %15, %31 : vector<512x128xf32>
    %cst_16 = arith.constant 0.000000e+00 : f32
    %33 = vector.broadcast %cst_16 : f32 to vector<512x128xf32>
    %34 = arith.maximumf %32, %33 : vector<512x128xf32>
    %35 = arith.truncf %34 : vector<512x128xf32> to vector<512x128xbf16>
    %c0_17 = arith.constant 0 : index
    %c0_18 = arith.constant 0 : index
    %36 = vector.load %arg7[%c0_17, %c0_18] : memref<512x128xbf16, #tpu.memory_space<vmem>>, vector<512x128xbf16>
    tpu.vector_store %arg7[%c0_17, %c0_18], %35 {strides = array<i32>} : memref<512x128xbf16, #tpu.memory_space<vmem>>, vector<512x128xbf16>,
    return
  }
  func.func @transform_0(%arg0: i32) -> (i32, i32) {
    %c0_i32 = arith.constant 0 : i32
    %c0_i32_0 = arith.constant 0 : i32
    return %arg0, %c0_i32 : i32, i32
  }
  func.func @transform_1(%arg0: i32) -> (i32, i32) {
    %c0_i32 = arith.constant 0 : i32
    %c0_i32_0 = arith.constant 0 : i32
    %c0_i32_1 = arith.constant 0 : i32
    return %c0_i32, %c0_i32_0 : i32, i32
  }
  func.func @transform_2(%arg0: i32) -> (i32, i32) {
    %c0_i32 = arith.constant 0 : i32
    %c0_i32_0 = arith.constant 0 : i32
    %c0_i32_1 = arith.constant 0 : i32
    return %c0_i32, %c0_i32_0 : i32, i32
  }
  func.func @transform_3(%arg0: i32) -> (i32, i32) {
    %c0_i32 = arith.constant 0 : i32
    %c0_i32_0 = arith.constant 0 : i32
    return %arg0, %c0_i32 : i32, i32
  }
  func.func @transform_4(%arg0: i32) -> (i32, i32) {
    %c0_i32 = arith.constant 0 : i32
    %c0_i32_0 = arith.constant 0 : i32
    %c0_i32_1 = arith.constant 0 : i32
    return %c0_i32, %c0_i32_0 : i32, i32
  }
  func.func @transform_5(%arg0: i32) -> (i32, i32) {
    %c0_i32 = arith.constant 0 : i32
    %c0_i32_0 = arith.constant 0 : i32
    %c0_i32_1 = arith.constant 0 : i32
    return %c0_i32, %c0_i32_0 : i32, i32
  }
  func.func @transform_6(%arg0: i32) -> (i32, i32) {
    %c0_i32 = arith.constant 0 : i32
    %c0_i32_0 = arith.constant 0 : i32
    return %arg0, %c0_i32 : i32, i32
  }
}

module attributes {stable_mosaic.version = 11 : i64} {
  func.func @kernel(%arg0: i32, %arg1: memref<128x256xbf16, #tpu.memory_space<vmem>>, %arg2: memref<256x128xbf16, #tpu.memory_space<vmem>>, %arg3: memref<256x128xbf16, #tpu.memory_space<vmem>>, %arg4: memref<128x128xf32, #tpu.memory_space<vmem>>, %arg5: memref<128x128xf32, #tpu.memory_space<vmem>>, %arg6: memref<1x128xf32, #tpu.memory_space<vmem>>, %arg7: memref<1x128xf32, #tpu.memory_space<vmem>>, %arg8: memref<1x128xf32, #tpu.memory_space<vmem>>, %arg9: memref<1x128xf32, #tpu.memory_space<vmem>>) attributes {dimension_semantics = [#tpu.dimension_semantics<arbitrary>], iteration_bounds = array<i64: 1>, scalar_prefetch = 0 : i64, scratch_operands = 0 : i64, tpu.core_type = #tpu.core_type<tc>, window_params = [{transform_indices = @transform_0, window_bounds = array<i64: 128, 256>}, {pipeline_mode = #tpu.pipeline_mode<synchronous>, transform_indices = @transform_1, window_bounds = array<i64: 256, 128>}, {pipeline_mode = #tpu.pipeline_mode<synchronous>, transform_indices = @transform_2, window_bounds = array<i64: 256, 128>}, {transform_indices = @transform_3, window_bounds = array<i64: 128, 128>}, {transform_indices = @transform_4, window_bounds = array<i64: 128, 128>}, {pipeline_mode = #tpu.pipeline_mode<synchronous>, transform_indices = @transform_5, window_bounds = array<i64: 1, 128>}, {pipeline_mode = #tpu.pipeline_mode<synchronous>, transform_indices = @transform_6, window_bounds = array<i64: 1, 128>}, {pipeline_mode = #tpu.pipeline_mode<synchronous>, transform_indices = @transform_7, window_bounds = array<i64: 1, 128>}, {pipeline_mode = #tpu.pipeline_mode<synchronous>, transform_indices = @transform_8, window_bounds = array<i64: 1, 128>}]} {
    %c0_i32 = arith.constant 0 : i32
    %0 = arith.cmpi eq, %arg0, %c0_i32 : i32
    %1 = arith.extui %0 : i1 to i32
    %c0_i32_0 = arith.constant 0 : i32
    %2 = arith.cmpi ne, %1, %c0_i32_0 : i32
    scf.if %2 {
      %cst_31 = arith.constant 0.000000e+00 : f32
      %32 = vector.broadcast %cst_31 : f32 to vector<1x128xf32>
      %c0_32 = arith.constant 0 : index
      %c0_33 = arith.constant 0 : index
      %33 = vector.load %arg6[%c0_32, %c0_33] : memref<1x128xf32, #tpu.memory_space<vmem>>, vector<1x128xf32>
      tpu.vector_store %arg6[%c0_32, %c0_33], %32 {strides = array<i32>} : memref<1x128xf32, #tpu.memory_space<vmem>>, vector<1x128xf32>,
      %cst_34 = arith.constant 0.000000e+00 : f32
      %34 = vector.broadcast %cst_34 : f32 to vector<1x128xf32>
      %c0_35 = arith.constant 0 : index
      %c0_36 = arith.constant 0 : index
      %35 = vector.load %arg7[%c0_35, %c0_36] : memref<1x128xf32, #tpu.memory_space<vmem>>, vector<1x128xf32>
      tpu.vector_store %arg7[%c0_35, %c0_36], %34 {strides = array<i32>} : memref<1x128xf32, #tpu.memory_space<vmem>>, vector<1x128xf32>,
      %cst_37 = arith.constant 0.000000e+00 : f32
      %36 = vector.broadcast %cst_37 : f32 to vector<1x128xf32>
      %c0_38 = arith.constant 0 : index
      %c0_39 = arith.constant 0 : index
      %37 = vector.load %arg8[%c0_38, %c0_39] : memref<1x128xf32, #tpu.memory_space<vmem>>, vector<1x128xf32>
      tpu.vector_store %arg8[%c0_38, %c0_39], %36 {strides = array<i32>} : memref<1x128xf32, #tpu.memory_space<vmem>>, vector<1x128xf32>,
      %cst_40 = arith.constant 0.000000e+00 : f32
      %38 = vector.broadcast %cst_40 : f32 to vector<1x128xf32>
      %c0_41 = arith.constant 0 : index
      %c0_42 = arith.constant 0 : index
      %39 = vector.load %arg9[%c0_41, %c0_42] : memref<1x128xf32, #tpu.memory_space<vmem>>, vector<1x128xf32>
      tpu.vector_store %arg9[%c0_41, %c0_42], %38 {strides = array<i32>} : memref<1x128xf32, #tpu.memory_space<vmem>>, vector<1x128xf32>,
    } else {
    }
    %c0 = arith.constant 0 : index
    %c0_1 = arith.constant 0 : index
    %3 = vector.load %arg1[%c0, %c0_1] : memref<128x256xbf16, #tpu.memory_space<vmem>>, vector<128x256xbf16>
    %c0_2 = arith.constant 0 : index
    %c0_3 = arith.constant 0 : index
    %4 = vector.load %arg2[%c0_2, %c0_3] : memref<256x128xbf16, #tpu.memory_space<vmem>>, vector<256x128xbf16>
    %cst = arith.constant dense<0.000000e+00> : vector<128x128xf32>
    %5 = tpu.matmul %3, %4, %cst {dimension_numbers = #tpu.dot_dimension_numbers<[1], [0], [0], [1], [0, 0, 1, 1], [], []>} : vector<128x256xbf16>, vector<256x128xbf16>, vector<128x128xf32> -> vector<128x128xf32>
    %c0_4 = arith.constant 0 : index
    %c0_5 = arith.constant 0 : index
    %6 = vector.load %arg4[%c0_4, %c0_5] : memref<128x128xf32, #tpu.memory_space<vmem>>, vector<128x128xf32>
    tpu.vector_store %arg4[%c0_4, %c0_5], %5 {strides = array<i32>} : memref<128x128xf32, #tpu.memory_space<vmem>>, vector<128x128xf32>,
    %c0_6 = arith.constant 0 : index
    %c0_7 = arith.constant 0 : index
    %7 = vector.load %arg6[%c0_6, %c0_7] : memref<1x128xf32, #tpu.memory_space<vmem>>, vector<1x128xf32>
    %cst_8 = arith.constant dense<0.000000e+00> : vector<128xf32>
    %8 = vector.multi_reduction <add>, %5, %cst_8 [0] : vector<128x128xf32> to vector<128xf32>
    %9 = vector.shape_cast %8 : vector<128xf32> to vector<1x128xf32>
    %10 = arith.addf %7, %9 : vector<1x128xf32>
    %c0_9 = arith.constant 0 : index
    %c0_10 = arith.constant 0 : index
    %11 = vector.load %arg6[%c0_9, %c0_10] : memref<1x128xf32, #tpu.memory_space<vmem>>, vector<1x128xf32>
    tpu.vector_store %arg6[%c0_9, %c0_10], %10 {strides = array<i32>} : memref<1x128xf32, #tpu.memory_space<vmem>>, vector<1x128xf32>,
    %c0_11 = arith.constant 0 : index
    %c0_12 = arith.constant 0 : index
    %12 = vector.load %arg8[%c0_11, %c0_12] : memref<1x128xf32, #tpu.memory_space<vmem>>, vector<1x128xf32>
    %13 = arith.mulf %5, %5 : vector<128x128xf32>
    %cst_13 = arith.constant dense<0.000000e+00> : vector<128xf32>
    %14 = vector.multi_reduction <add>, %13, %cst_13 [0] : vector<128x128xf32> to vector<128xf32>
    %15 = vector.shape_cast %14 : vector<128xf32> to vector<1x128xf32>
    %16 = arith.addf %12, %15 : vector<1x128xf32>
    %c0_14 = arith.constant 0 : index
    %c0_15 = arith.constant 0 : index
    %17 = vector.load %arg8[%c0_14, %c0_15] : memref<1x128xf32, #tpu.memory_space<vmem>>, vector<1x128xf32>
    tpu.vector_store %arg8[%c0_14, %c0_15], %16 {strides = array<i32>} : memref<1x128xf32, #tpu.memory_space<vmem>>, vector<1x128xf32>,
    %c0_16 = arith.constant 0 : index
    %c0_17 = arith.constant 0 : index
    %18 = vector.load %arg3[%c0_16, %c0_17] : memref<256x128xbf16, #tpu.memory_space<vmem>>, vector<256x128xbf16>
    %cst_18 = arith.constant dense<0.000000e+00> : vector<128x128xf32>
    %19 = tpu.matmul %3, %18, %cst_18 {dimension_numbers = #tpu.dot_dimension_numbers<[1], [0], [0], [1], [0, 0, 1, 1], [], []>} : vector<128x256xbf16>, vector<256x128xbf16>, vector<128x128xf32> -> vector<128x128xf32>
    %c0_19 = arith.constant 0 : index
    %c0_20 = arith.constant 0 : index
    %20 = vector.load %arg5[%c0_19, %c0_20] : memref<128x128xf32, #tpu.memory_space<vmem>>, vector<128x128xf32>
    tpu.vector_store %arg5[%c0_19, %c0_20], %19 {strides = array<i32>} : memref<128x128xf32, #tpu.memory_space<vmem>>, vector<128x128xf32>,
    %c0_21 = arith.constant 0 : index
    %c0_22 = arith.constant 0 : index
    %21 = vector.load %arg7[%c0_21, %c0_22] : memref<1x128xf32, #tpu.memory_space<vmem>>, vector<1x128xf32>
    %cst_23 = arith.constant dense<0.000000e+00> : vector<128xf32>
    %22 = vector.multi_reduction <add>, %19, %cst_23 [0] : vector<128x128xf32> to vector<128xf32>
    %23 = vector.shape_cast %22 : vector<128xf32> to vector<1x128xf32>
    %24 = arith.addf %21, %23 : vector<1x128xf32>
    %c0_24 = arith.constant 0 : index
    %c0_25 = arith.constant 0 : index
    %25 = vector.load %arg7[%c0_24, %c0_25] : memref<1x128xf32, #tpu.memory_space<vmem>>, vector<1x128xf32>
    tpu.vector_store %arg7[%c0_24, %c0_25], %24 {strides = array<i32>} : memref<1x128xf32, #tpu.memory_space<vmem>>, vector<1x128xf32>,
    %c0_26 = arith.constant 0 : index
    %c0_27 = arith.constant 0 : index
    %26 = vector.load %arg9[%c0_26, %c0_27] : memref<1x128xf32, #tpu.memory_space<vmem>>, vector<1x128xf32>
    %27 = arith.mulf %19, %19 : vector<128x128xf32>
    %cst_28 = arith.constant dense<0.000000e+00> : vector<128xf32>
    %28 = vector.multi_reduction <add>, %27, %cst_28 [0] : vector<128x128xf32> to vector<128xf32>
    %29 = vector.shape_cast %28 : vector<128xf32> to vector<1x128xf32>
    %30 = arith.addf %26, %29 : vector<1x128xf32>
    %c0_29 = arith.constant 0 : index
    %c0_30 = arith.constant 0 : index
    %31 = vector.load %arg9[%c0_29, %c0_30] : memref<1x128xf32, #tpu.memory_space<vmem>>, vector<1x128xf32>
    tpu.vector_store %arg9[%c0_29, %c0_30], %30 {strides = array<i32>} : memref<1x128xf32, #tpu.memory_space<vmem>>, vector<1x128xf32>,
    return
  }
  func.func @transform_0(%arg0: i32) -> (i32, i32) {
    %c0_i32 = arith.constant 0 : i32
    %c0_i32_0 = arith.constant 0 : i32
    return %arg0, %c0_i32 : i32, i32
  }
  func.func @transform_1(%arg0: i32) -> (i32, i32) {
    %c0_i32 = arith.constant 0 : i32
    %c0_i32_0 = arith.constant 0 : i32
    %c0_i32_1 = arith.constant 0 : i32
    return %c0_i32, %c0_i32_0 : i32, i32
  }
  func.func @transform_2(%arg0: i32) -> (i32, i32) {
    %c0_i32 = arith.constant 0 : i32
    %c0_i32_0 = arith.constant 0 : i32
    %c0_i32_1 = arith.constant 0 : i32
    return %c0_i32, %c0_i32_0 : i32, i32
  }
  func.func @transform_3(%arg0: i32) -> (i32, i32) {
    %c0_i32 = arith.constant 0 : i32
    %c0_i32_0 = arith.constant 0 : i32
    return %arg0, %c0_i32 : i32, i32
  }
  func.func @transform_4(%arg0: i32) -> (i32, i32) {
    %c0_i32 = arith.constant 0 : i32
    %c0_i32_0 = arith.constant 0 : i32
    return %arg0, %c0_i32 : i32, i32
  }
  func.func @transform_5(%arg0: i32) -> (i32, i32) {
    %c0_i32 = arith.constant 0 : i32
    %c0_i32_0 = arith.constant 0 : i32
    %c0_i32_1 = arith.constant 0 : i32
    return %c0_i32, %c0_i32_0 : i32, i32
  }
  func.func @transform_6(%arg0: i32) -> (i32, i32) {
    %c0_i32 = arith.constant 0 : i32
    %c0_i32_0 = arith.constant 0 : i32
    %c0_i32_1 = arith.constant 0 : i32
    return %c0_i32, %c0_i32_0 : i32, i32
  }
  func.func @transform_7(%arg0: i32) -> (i32, i32) {
    %c0_i32 = arith.constant 0 : i32
    %c0_i32_0 = arith.constant 0 : i32
    %c0_i32_1 = arith.constant 0 : i32
    return %c0_i32, %c0_i32_0 : i32, i32
  }
  func.func @transform_8(%arg0: i32) -> (i32, i32) {
    %c0_i32 = arith.constant 0 : i32
    %c0_i32_0 = arith.constant 0 : i32
    %c0_i32_1 = arith.constant 0 : i32
    return %c0_i32, %c0_i32_0 : i32, i32
  }
}

module attributes {stable_mosaic.version = 11 : i64} {
  func.func @kernel(%arg0: i32, %arg1: memref<128x128xf32, #tpu.memory_space<vmem>>, %arg2: memref<1x128xf32, #tpu.memory_space<vmem>>, %arg3: memref<1x128xf32, #tpu.memory_space<vmem>>, %arg4: memref<128x128xbf16, #tpu.memory_space<vmem>>) attributes {dimension_semantics = [#tpu.dimension_semantics<parallel>], iteration_bounds = array<i64: 1>, scalar_prefetch = 0 : i64, scratch_operands = 0 : i64, tpu.core_type = #tpu.core_type<tc>, window_params = [{transform_indices = @transform_0, window_bounds = array<i64: 128, 128>}, {pipeline_mode = #tpu.pipeline_mode<synchronous>, transform_indices = @transform_1, window_bounds = array<i64: 1, 128>}, {pipeline_mode = #tpu.pipeline_mode<synchronous>, transform_indices = @transform_2, window_bounds = array<i64: 1, 128>}, {transform_indices = @transform_3, window_bounds = array<i64: 128, 128>}]} {
    %c0 = arith.constant 0 : index
    %c0_0 = arith.constant 0 : index
    %0 = vector.load %arg1[%c0, %c0_0] : memref<128x128xf32, #tpu.memory_space<vmem>>, vector<128x128xf32>
    %c0_1 = arith.constant 0 : index
    %c0_2 = arith.constant 0 : index
    %1 = vector.load %arg2[%c0_1, %c0_2] : memref<1x128xf32, #tpu.memory_space<vmem>>, vector<1x128xf32>
    %c0_3 = arith.constant 0 : index
    %c0_4 = arith.constant 0 : index
    %2 = vector.load %arg3[%c0_3, %c0_4] : memref<1x128xf32, #tpu.memory_space<vmem>>, vector<1x128xf32>
    %cst = arith.constant 7.812500e-03 : f32
    %3 = vector.broadcast %cst : f32 to vector<1x128xf32>
    %4 = arith.mulf %1, %3 : vector<1x128xf32>
    %cst_5 = arith.constant 7.812500e-03 : f32
    %5 = vector.broadcast %cst_5 : f32 to vector<1x128xf32>
    %6 = arith.mulf %2, %5 : vector<1x128xf32>
    %7 = arith.mulf %4, %4 : vector<1x128xf32>
    %8 = arith.subf %6, %7 : vector<1x128xf32>
    %9 = vector.broadcast %4 : vector<1x128xf32> to vector<128x128xf32>
    %10 = arith.subf %0, %9 : vector<128x128xf32>
    %cst_6 = arith.constant 9.99999974E-6 : f32
    %11 = vector.broadcast %cst_6 : f32 to vector<1x128xf32>
    %12 = arith.addf %8, %11 : vector<1x128xf32>
    %13 = math.rsqrt %12 : vector<1x128xf32>
    %14 = vector.broadcast %13 : vector<1x128xf32> to vector<128x128xf32>
    %15 = arith.mulf %10, %14 : vector<128x128xf32>
    %cst_7 = arith.constant 0.000000e+00 : f32
    %16 = vector.broadcast %cst_7 : f32 to vector<128x128xf32>
    %17 = arith.maximumf %15, %16 : vector<128x128xf32>
    %18 = arith.truncf %17 : vector<128x128xf32> to vector<128x128xbf16>
    %c0_8 = arith.constant 0 : index
    %c0_9 = arith.constant 0 : index
    %19 = vector.load %arg4[%c0_8, %c0_9] : memref<128x128xbf16, #tpu.memory_space<vmem>>, vector<128x128xbf16>
    tpu.vector_store %arg4[%c0_8, %c0_9], %18 {strides = array<i32>} : memref<128x128xbf16, #tpu.memory_space<vmem>>, vector<128x128xbf16>,
    return
  }
  func.func @transform_0(%arg0: i32) -> (i32, i32) {
    %c0_i32 = arith.constant 0 : i32
    %c0_i32_0 = arith.constant 0 : i32
    return %arg0, %c0_i32 : i32, i32
  }
  func.func @transform_1(%arg0: i32) -> (i32, i32) {
    %c0_i32 = arith.constant 0 : i32
    %c0_i32_0 = arith.constant 0 : i32
    %c0_i32_1 = arith.constant 0 : i32
    return %c0_i32, %c0_i32_0 : i32, i32
  }
  func.func @transform_2(%arg0: i32) -> (i32, i32) {
    %c0_i32 = arith.constant 0 : i32
    %c0_i32_0 = arith.constant 0 : i32
    %c0_i32_1 = arith.constant 0 : i32
    return %c0_i32, %c0_i32_0 : i32, i32
  }
  func.func @transform_3(%arg0: i32) -> (i32, i32) {
    %c0_i32 = arith.constant 0 : i32
    %c0_i32_0 = arith.constant 0 : i32
    return %arg0, %c0_i32 : i32, i32
  }
}

module attributes {stable_mosaic.version = 11 : i64} {
  func.func @kernel(%arg0: i32, %arg1: memref<128x384xbf16, #tpu.memory_space<vmem>>, %arg2: memref<384x128xbf16, #tpu.memory_space<vmem>>, %arg3: memref<128x128xf32, #tpu.memory_space<vmem>>, %arg4: memref<1x128xf32, #tpu.memory_space<vmem>>, %arg5: memref<1x128xf32, #tpu.memory_space<vmem>>) attributes {dimension_semantics = [#tpu.dimension_semantics<arbitrary>], iteration_bounds = array<i64: 1>, scalar_prefetch = 0 : i64, scratch_operands = 0 : i64, tpu.core_type = #tpu.core_type<tc>, window_params = [{transform_indices = @transform_0, window_bounds = array<i64: 128, 384>}, {pipeline_mode = #tpu.pipeline_mode<synchronous>, transform_indices = @transform_1, window_bounds = array<i64: 384, 128>}, {transform_indices = @transform_2, window_bounds = array<i64: 128, 128>}, {pipeline_mode = #tpu.pipeline_mode<synchronous>, transform_indices = @transform_3, window_bounds = array<i64: 1, 128>}, {pipeline_mode = #tpu.pipeline_mode<synchronous>, transform_indices = @transform_4, window_bounds = array<i64: 1, 128>}]} {
    %c0_i32 = arith.constant 0 : i32
    %0 = arith.cmpi eq, %arg0, %c0_i32 : i32
    %1 = arith.extui %0 : i1 to i32
    %c0_i32_0 = arith.constant 0 : i32
    %2 = arith.cmpi ne, %1, %c0_i32_0 : i32
    scf.if %2 {
      %cst_16 = arith.constant 0.000000e+00 : f32
      %18 = vector.broadcast %cst_16 : f32 to vector<1x128xf32>
      %c0_17 = arith.constant 0 : index
      %c0_18 = arith.constant 0 : index
      %19 = vector.load %arg4[%c0_17, %c0_18] : memref<1x128xf32, #tpu.memory_space<vmem>>, vector<1x128xf32>
      tpu.vector_store %arg4[%c0_17, %c0_18], %18 {strides = array<i32>} : memref<1x128xf32, #tpu.memory_space<vmem>>, vector<1x128xf32>,
      %cst_19 = arith.constant 0.000000e+00 : f32
      %20 = vector.broadcast %cst_19 : f32 to vector<1x128xf32>
      %c0_20 = arith.constant 0 : index
      %c0_21 = arith.constant 0 : index
      %21 = vector.load %arg5[%c0_20, %c0_21] : memref<1x128xf32, #tpu.memory_space<vmem>>, vector<1x128xf32>
      tpu.vector_store %arg5[%c0_20, %c0_21], %20 {strides = array<i32>} : memref<1x128xf32, #tpu.memory_space<vmem>>, vector<1x128xf32>,
    } else {
    }
    %c0 = arith.constant 0 : index
    %c0_1 = arith.constant 0 : index
    %3 = vector.load %arg1[%c0, %c0_1] : memref<128x384xbf16, #tpu.memory_space<vmem>>, vector<128x384xbf16>
    %c0_2 = arith.constant 0 : index
    %c0_3 = arith.constant 0 : index
    %4 = vector.load %arg2[%c0_2, %c0_3] : memref<384x128xbf16, #tpu.memory_space<vmem>>, vector<384x128xbf16>
    %cst = arith.constant dense<0.000000e+00> : vector<128x128xf32>
    %5 = tpu.matmul %3, %4, %cst {dimension_numbers = #tpu.dot_dimension_numbers<[1], [0], [0], [1], [0, 0, 1, 1], [], []>} : vector<128x384xbf16>, vector<384x128xbf16>, vector<128x128xf32> -> vector<128x128xf32>
    %c0_4 = arith.constant 0 : index
    %c0_5 = arith.constant 0 : index
    %6 = vector.load %arg3[%c0_4, %c0_5] : memref<128x128xf32, #tpu.memory_space<vmem>>, vector<128x128xf32>
    tpu.vector_store %arg3[%c0_4, %c0_5], %5 {strides = array<i32>} : memref<128x128xf32, #tpu.memory_space<vmem>>, vector<128x128xf32>,
    %c0_6 = arith.constant 0 : index
    %c0_7 = arith.constant 0 : index
    %7 = vector.load %arg4[%c0_6, %c0_7] : memref<1x128xf32, #tpu.memory_space<vmem>>, vector<1x128xf32>
    %cst_8 = arith.constant dense<0.000000e+00> : vector<128xf32>
    %8 = vector.multi_reduction <add>, %5, %cst_8 [0] : vector<128x128xf32> to vector<128xf32>
    %9 = vector.shape_cast %8 : vector<128xf32> to vector<1x128xf32>
    %10 = arith.addf %7, %9 : vector<1x128xf32>
    %c0_9 = arith.constant 0 : index
    %c0_10 = arith.constant 0 : index
    %11 = vector.load %arg4[%c0_9, %c0_10] : memref<1x128xf32, #tpu.memory_space<vmem>>, vector<1x128xf32>
    tpu.vector_store %arg4[%c0_9, %c0_10], %10 {strides = array<i32>} : memref<1x128xf32, #tpu.memory_space<vmem>>, vector<1x128xf32>,
    %c0_11 = arith.constant 0 : index
    %c0_12 = arith.constant 0 : index
    %12 = vector.load %arg5[%c0_11, %c0_12] : memref<1x128xf32, #tpu.memory_space<vmem>>, vector<1x128xf32>
    %13 = arith.mulf %5, %5 : vector<128x128xf32>
    %cst_13 = arith.constant dense<0.000000e+00> : vector<128xf32>
    %14 = vector.multi_reduction <add>, %13, %cst_13 [0] : vector<128x128xf32> to vector<128xf32>
    %15 = vector.shape_cast %14 : vector<128xf32> to vector<1x128xf32>
    %16 = arith.addf %12, %15 : vector<1x128xf32>
    %c0_14 = arith.constant 0 : index
    %c0_15 = arith.constant 0 : index
    %17 = vector.load %arg5[%c0_14, %c0_15] : memref<1x128xf32, #tpu.memory_space<vmem>>, vector<1x128xf32>
    tpu.vector_store %arg5[%c0_14, %c0_15], %16 {strides = array<i32>} : memref<1x128xf32, #tpu.memory_space<vmem>>, vector<1x128xf32>,
    return
  }
  func.func @transform_0(%arg0: i32) -> (i32, i32) {
    %c0_i32 = arith.constant 0 : i32
    %c0_i32_0 = arith.constant 0 : i32
    return %arg0, %c0_i32 : i32, i32
  }
  func.func @transform_1(%arg0: i32) -> (i32, i32) {
    %c0_i32 = arith.constant 0 : i32
    %c0_i32_0 = arith.constant 0 : i32
    %c0_i32_1 = arith.constant 0 : i32
    return %c0_i32, %c0_i32_0 : i32, i32
  }
  func.func @transform_2(%arg0: i32) -> (i32, i32) {
    %c0_i32 = arith.constant 0 : i32
    %c0_i32_0 = arith.constant 0 : i32
    return %arg0, %c0_i32 : i32, i32
  }
  func.func @transform_3(%arg0: i32) -> (i32, i32) {
    %c0_i32 = arith.constant 0 : i32
    %c0_i32_0 = arith.constant 0 : i32
    %c0_i32_1 = arith.constant 0 : i32
    return %c0_i32, %c0_i32_0 : i32, i32
  }
  func.func @transform_4(%arg0: i32) -> (i32, i32) {
    %c0_i32 = arith.constant 0 : i32
    %c0_i32_0 = arith.constant 0 : i32
    %c0_i32_1 = arith.constant 0 : i32
    return %c0_i32, %c0_i32_0 : i32, i32
  }
}

module attributes {stable_mosaic.version = 11 : i64} {
  func.func @kernel(%arg0: i32, %arg1: memref<128x128xf32, #tpu.memory_space<vmem>>, %arg2: memref<1x128xf32, #tpu.memory_space<vmem>>, %arg3: memref<1x128xf32, #tpu.memory_space<vmem>>, %arg4: memref<128x128xf32, #tpu.memory_space<vmem>>, %arg5: memref<1x128xf32, #tpu.memory_space<vmem>>, %arg6: memref<1x128xf32, #tpu.memory_space<vmem>>, %arg7: memref<128x128xbf16, #tpu.memory_space<vmem>>) attributes {dimension_semantics = [#tpu.dimension_semantics<parallel>], iteration_bounds = array<i64: 1>, scalar_prefetch = 0 : i64, scratch_operands = 0 : i64, tpu.core_type = #tpu.core_type<tc>, window_params = [{transform_indices = @transform_0, window_bounds = array<i64: 128, 128>}, {pipeline_mode = #tpu.pipeline_mode<synchronous>, transform_indices = @transform_1, window_bounds = array<i64: 1, 128>}, {pipeline_mode = #tpu.pipeline_mode<synchronous>, transform_indices = @transform_2, window_bounds = array<i64: 1, 128>}, {transform_indices = @transform_3, window_bounds = array<i64: 128, 128>}, {pipeline_mode = #tpu.pipeline_mode<synchronous>, transform_indices = @transform_4, window_bounds = array<i64: 1, 128>}, {pipeline_mode = #tpu.pipeline_mode<synchronous>, transform_indices = @transform_5, window_bounds = array<i64: 1, 128>}, {transform_indices = @transform_6, window_bounds = array<i64: 128, 128>}]} {
    %c0 = arith.constant 0 : index
    %c0_0 = arith.constant 0 : index
    %0 = vector.load %arg1[%c0, %c0_0] : memref<128x128xf32, #tpu.memory_space<vmem>>, vector<128x128xf32>
    %c0_1 = arith.constant 0 : index
    %c0_2 = arith.constant 0 : index
    %1 = vector.load %arg2[%c0_1, %c0_2] : memref<1x128xf32, #tpu.memory_space<vmem>>, vector<1x128xf32>
    %c0_3 = arith.constant 0 : index
    %c0_4 = arith.constant 0 : index
    %2 = vector.load %arg3[%c0_3, %c0_4] : memref<1x128xf32, #tpu.memory_space<vmem>>, vector<1x128xf32>
    %cst = arith.constant 7.812500e-03 : f32
    %3 = vector.broadcast %cst : f32 to vector<1x128xf32>
    %4 = arith.mulf %1, %3 : vector<1x128xf32>
    %cst_5 = arith.constant 7.812500e-03 : f32
    %5 = vector.broadcast %cst_5 : f32 to vector<1x128xf32>
    %6 = arith.mulf %2, %5 : vector<1x128xf32>
    %7 = arith.mulf %4, %4 : vector<1x128xf32>
    %8 = arith.subf %6, %7 : vector<1x128xf32>
    %9 = vector.broadcast %4 : vector<1x128xf32> to vector<128x128xf32>
    %10 = arith.subf %0, %9 : vector<128x128xf32>
    %cst_6 = arith.constant 9.99999974E-6 : f32
    %11 = vector.broadcast %cst_6 : f32 to vector<1x128xf32>
    %12 = arith.addf %8, %11 : vector<1x128xf32>
    %13 = math.rsqrt %12 : vector<1x128xf32>
    %14 = vector.broadcast %13 : vector<1x128xf32> to vector<128x128xf32>
    %15 = arith.mulf %10, %14 : vector<128x128xf32>
    %c0_7 = arith.constant 0 : index
    %c0_8 = arith.constant 0 : index
    %16 = vector.load %arg4[%c0_7, %c0_8] : memref<128x128xf32, #tpu.memory_space<vmem>>, vector<128x128xf32>
    %c0_9 = arith.constant 0 : index
    %c0_10 = arith.constant 0 : index
    %17 = vector.load %arg5[%c0_9, %c0_10] : memref<1x128xf32, #tpu.memory_space<vmem>>, vector<1x128xf32>
    %c0_11 = arith.constant 0 : index
    %c0_12 = arith.constant 0 : index
    %18 = vector.load %arg6[%c0_11, %c0_12] : memref<1x128xf32, #tpu.memory_space<vmem>>, vector<1x128xf32>
    %cst_13 = arith.constant 7.812500e-03 : f32
    %19 = vector.broadcast %cst_13 : f32 to vector<1x128xf32>
    %20 = arith.mulf %17, %19 : vector<1x128xf32>
    %cst_14 = arith.constant 7.812500e-03 : f32
    %21 = vector.broadcast %cst_14 : f32 to vector<1x128xf32>
    %22 = arith.mulf %18, %21 : vector<1x128xf32>
    %23 = arith.mulf %20, %20 : vector<1x128xf32>
    %24 = arith.subf %22, %23 : vector<1x128xf32>
    %25 = vector.broadcast %20 : vector<1x128xf32> to vector<128x128xf32>
    %26 = arith.subf %16, %25 : vector<128x128xf32>
    %cst_15 = arith.constant 9.99999974E-6 : f32
    %27 = vector.broadcast %cst_15 : f32 to vector<1x128xf32>
    %28 = arith.addf %24, %27 : vector<1x128xf32>
    %29 = math.rsqrt %28 : vector<1x128xf32>
    %30 = vector.broadcast %29 : vector<1x128xf32> to vector<128x128xf32>
    %31 = arith.mulf %26, %30 : vector<128x128xf32>
    %32 = arith.addf %15, %31 : vector<128x128xf32>
    %cst_16 = arith.constant 0.000000e+00 : f32
    %33 = vector.broadcast %cst_16 : f32 to vector<128x128xf32>
    %34 = arith.maximumf %32, %33 : vector<128x128xf32>
    %35 = arith.truncf %34 : vector<128x128xf32> to vector<128x128xbf16>
    %c0_17 = arith.constant 0 : index
    %c0_18 = arith.constant 0 : index
    %36 = vector.load %arg7[%c0_17, %c0_18] : memref<128x128xbf16, #tpu.memory_space<vmem>>, vector<128x128xbf16>
    tpu.vector_store %arg7[%c0_17, %c0_18], %35 {strides = array<i32>} : memref<128x128xbf16, #tpu.memory_space<vmem>>, vector<128x128xbf16>,
    return
  }
  func.func @transform_0(%arg0: i32) -> (i32, i32) {
    %c0_i32 = arith.constant 0 : i32
    %c0_i32_0 = arith.constant 0 : i32
    return %arg0, %c0_i32 : i32, i32
  }
  func.func @transform_1(%arg0: i32) -> (i32, i32) {
    %c0_i32 = arith.constant 0 : i32
    %c0_i32_0 = arith.constant 0 : i32
    %c0_i32_1 = arith.constant 0 : i32
    return %c0_i32, %c0_i32_0 : i32, i32
  }
  func.func @transform_2(%arg0: i32) -> (i32, i32) {
    %c0_i32 = arith.constant 0 : i32
    %c0_i32_0 = arith.constant 0 : i32
    %c0_i32_1 = arith.constant 0 : i32
    return %c0_i32, %c0_i32_0 : i32, i32
  }
  func.func @transform_3(%arg0: i32) -> (i32, i32) {
    %c0_i32 = arith.constant 0 : i32
    %c0_i32_0 = arith.constant 0 : i32
    return %arg0, %c0_i32 : i32, i32
  }
  func.func @transform_4(%arg0: i32) -> (i32, i32) {
    %c0_i32 = arith.constant 0 : i32
    %c0_i32_0 = arith.constant 0 : i32
    %c0_i32_1 = arith.constant 0 : i32
    return %c0_i32, %c0_i32_0 : i32, i32
  }
  func.func @transform_5(%arg0: i32) -> (i32, i32) {
    %c0_i32 = arith.constant 0 : i32
    %c0_i32_0 = arith.constant 0 : i32
    %c0_i32_1 = arith.constant 0 : i32
    return %c0_i32, %c0_i32_0 : i32, i32
  }
  func.func @transform_6(%arg0: i32) -> (i32, i32) {
    %c0_i32 = arith.constant 0 : i32
    %c0_i32_0 = arith.constant 0 : i32
    return %arg0, %c0_i32 : i32, i32
  }
}

module attributes {stable_mosaic.version = 11 : i64} {
  func.func @kernel(%arg0: i32, %arg1: memref<32x384xbf16, #tpu.memory_space<vmem>>, %arg2: memref<384x128xbf16, #tpu.memory_space<vmem>>, %arg3: memref<384x128xbf16, #tpu.memory_space<vmem>>, %arg4: memref<32x128xf32, #tpu.memory_space<vmem>>, %arg5: memref<32x128xf32, #tpu.memory_space<vmem>>, %arg6: memref<1x128xf32, #tpu.memory_space<vmem>>, %arg7: memref<1x128xf32, #tpu.memory_space<vmem>>, %arg8: memref<1x128xf32, #tpu.memory_space<vmem>>, %arg9: memref<1x128xf32, #tpu.memory_space<vmem>>) attributes {dimension_semantics = [#tpu.dimension_semantics<arbitrary>], iteration_bounds = array<i64: 1>, scalar_prefetch = 0 : i64, scratch_operands = 0 : i64, tpu.core_type = #tpu.core_type<tc>, window_params = [{transform_indices = @transform_0, window_bounds = array<i64: 32, 384>}, {pipeline_mode = #tpu.pipeline_mode<synchronous>, transform_indices = @transform_1, window_bounds = array<i64: 384, 128>}, {pipeline_mode = #tpu.pipeline_mode<synchronous>, transform_indices = @transform_2, window_bounds = array<i64: 384, 128>}, {transform_indices = @transform_3, window_bounds = array<i64: 32, 128>}, {transform_indices = @transform_4, window_bounds = array<i64: 32, 128>}, {pipeline_mode = #tpu.pipeline_mode<synchronous>, transform_indices = @transform_5, window_bounds = array<i64: 1, 128>}, {pipeline_mode = #tpu.pipeline_mode<synchronous>, transform_indices = @transform_6, window_bounds = array<i64: 1, 128>}, {pipeline_mode = #tpu.pipeline_mode<synchronous>, transform_indices = @transform_7, window_bounds = array<i64: 1, 128>}, {pipeline_mode = #tpu.pipeline_mode<synchronous>, transform_indices = @transform_8, window_bounds = array<i64: 1, 128>}]} {
    %c0_i32 = arith.constant 0 : i32
    %0 = arith.cmpi eq, %arg0, %c0_i32 : i32
    %1 = arith.extui %0 : i1 to i32
    %c0_i32_0 = arith.constant 0 : i32
    %2 = arith.cmpi ne, %1, %c0_i32_0 : i32
    scf.if %2 {
      %cst_31 = arith.constant 0.000000e+00 : f32
      %32 = vector.broadcast %cst_31 : f32 to vector<1x128xf32>
      %c0_32 = arith.constant 0 : index
      %c0_33 = arith.constant 0 : index
      %33 = vector.load %arg6[%c0_32, %c0_33] : memref<1x128xf32, #tpu.memory_space<vmem>>, vector<1x128xf32>
      tpu.vector_store %arg6[%c0_32, %c0_33], %32 {strides = array<i32>} : memref<1x128xf32, #tpu.memory_space<vmem>>, vector<1x128xf32>,
      %cst_34 = arith.constant 0.000000e+00 : f32
      %34 = vector.broadcast %cst_34 : f32 to vector<1x128xf32>
      %c0_35 = arith.constant 0 : index
      %c0_36 = arith.constant 0 : index
      %35 = vector.load %arg7[%c0_35, %c0_36] : memref<1x128xf32, #tpu.memory_space<vmem>>, vector<1x128xf32>
      tpu.vector_store %arg7[%c0_35, %c0_36], %34 {strides = array<i32>} : memref<1x128xf32, #tpu.memory_space<vmem>>, vector<1x128xf32>,
      %cst_37 = arith.constant 0.000000e+00 : f32
      %36 = vector.broadcast %cst_37 : f32 to vector<1x128xf32>
      %c0_38 = arith.constant 0 : index
      %c0_39 = arith.constant 0 : index
      %37 = vector.load %arg8[%c0_38, %c0_39] : memref<1x128xf32, #tpu.memory_space<vmem>>, vector<1x128xf32>
      tpu.vector_store %arg8[%c0_38, %c0_39], %36 {strides = array<i32>} : memref<1x128xf32, #tpu.memory_space<vmem>>, vector<1x128xf32>,
      %cst_40 = arith.constant 0.000000e+00 : f32
      %38 = vector.broadcast %cst_40 : f32 to vector<1x128xf32>
      %c0_41 = arith.constant 0 : index
      %c0_42 = arith.constant 0 : index
      %39 = vector.load %arg9[%c0_41, %c0_42] : memref<1x128xf32, #tpu.memory_space<vmem>>, vector<1x128xf32>
      tpu.vector_store %arg9[%c0_41, %c0_42], %38 {strides = array<i32>} : memref<1x128xf32, #tpu.memory_space<vmem>>, vector<1x128xf32>,
    } else {
    }
    %c0 = arith.constant 0 : index
    %c0_1 = arith.constant 0 : index
    %3 = vector.load %arg1[%c0, %c0_1] : memref<32x384xbf16, #tpu.memory_space<vmem>>, vector<32x384xbf16>
    %c0_2 = arith.constant 0 : index
    %c0_3 = arith.constant 0 : index
    %4 = vector.load %arg2[%c0_2, %c0_3] : memref<384x128xbf16, #tpu.memory_space<vmem>>, vector<384x128xbf16>
    %cst = arith.constant dense<0.000000e+00> : vector<32x128xf32>
    %5 = tpu.matmul %3, %4, %cst {dimension_numbers = #tpu.dot_dimension_numbers<[1], [0], [0], [1], [0, 0, 1, 1], [], []>} : vector<32x384xbf16>, vector<384x128xbf16>, vector<32x128xf32> -> vector<32x128xf32>
    %c0_4 = arith.constant 0 : index
    %c0_5 = arith.constant 0 : index
    %6 = vector.load %arg4[%c0_4, %c0_5] : memref<32x128xf32, #tpu.memory_space<vmem>>, vector<32x128xf32>
    tpu.vector_store %arg4[%c0_4, %c0_5], %5 {strides = array<i32>} : memref<32x128xf32, #tpu.memory_space<vmem>>, vector<32x128xf32>,
    %c0_6 = arith.constant 0 : index
    %c0_7 = arith.constant 0 : index
    %7 = vector.load %arg6[%c0_6, %c0_7] : memref<1x128xf32, #tpu.memory_space<vmem>>, vector<1x128xf32>
    %cst_8 = arith.constant dense<0.000000e+00> : vector<128xf32>
    %8 = vector.multi_reduction <add>, %5, %cst_8 [0] : vector<32x128xf32> to vector<128xf32>
    %9 = vector.shape_cast %8 : vector<128xf32> to vector<1x128xf32>
    %10 = arith.addf %7, %9 : vector<1x128xf32>
    %c0_9 = arith.constant 0 : index
    %c0_10 = arith.constant 0 : index
    %11 = vector.load %arg6[%c0_9, %c0_10] : memref<1x128xf32, #tpu.memory_space<vmem>>, vector<1x128xf32>
    tpu.vector_store %arg6[%c0_9, %c0_10], %10 {strides = array<i32>} : memref<1x128xf32, #tpu.memory_space<vmem>>, vector<1x128xf32>,
    %c0_11 = arith.constant 0 : index
    %c0_12 = arith.constant 0 : index
    %12 = vector.load %arg8[%c0_11, %c0_12] : memref<1x128xf32, #tpu.memory_space<vmem>>, vector<1x128xf32>
    %13 = arith.mulf %5, %5 : vector<32x128xf32>
    %cst_13 = arith.constant dense<0.000000e+00> : vector<128xf32>
    %14 = vector.multi_reduction <add>, %13, %cst_13 [0] : vector<32x128xf32> to vector<128xf32>
    %15 = vector.shape_cast %14 : vector<128xf32> to vector<1x128xf32>
    %16 = arith.addf %12, %15 : vector<1x128xf32>
    %c0_14 = arith.constant 0 : index
    %c0_15 = arith.constant 0 : index
    %17 = vector.load %arg8[%c0_14, %c0_15] : memref<1x128xf32, #tpu.memory_space<vmem>>, vector<1x128xf32>
    tpu.vector_store %arg8[%c0_14, %c0_15], %16 {strides = array<i32>} : memref<1x128xf32, #tpu.memory_space<vmem>>, vector<1x128xf32>,
    %c0_16 = arith.constant 0 : index
    %c0_17 = arith.constant 0 : index
    %18 = vector.load %arg3[%c0_16, %c0_17] : memref<384x128xbf16, #tpu.memory_space<vmem>>, vector<384x128xbf16>
    %cst_18 = arith.constant dense<0.000000e+00> : vector<32x128xf32>
    %19 = tpu.matmul %3, %18, %cst_18 {dimension_numbers = #tpu.dot_dimension_numbers<[1], [0], [0], [1], [0, 0, 1, 1], [], []>} : vector<32x384xbf16>, vector<384x128xbf16>, vector<32x128xf32> -> vector<32x128xf32>
    %c0_19 = arith.constant 0 : index
    %c0_20 = arith.constant 0 : index
    %20 = vector.load %arg5[%c0_19, %c0_20] : memref<32x128xf32, #tpu.memory_space<vmem>>, vector<32x128xf32>
    tpu.vector_store %arg5[%c0_19, %c0_20], %19 {strides = array<i32>} : memref<32x128xf32, #tpu.memory_space<vmem>>, vector<32x128xf32>,
    %c0_21 = arith.constant 0 : index
    %c0_22 = arith.constant 0 : index
    %21 = vector.load %arg7[%c0_21, %c0_22] : memref<1x128xf32, #tpu.memory_space<vmem>>, vector<1x128xf32>
    %cst_23 = arith.constant dense<0.000000e+00> : vector<128xf32>
    %22 = vector.multi_reduction <add>, %19, %cst_23 [0] : vector<32x128xf32> to vector<128xf32>
    %23 = vector.shape_cast %22 : vector<128xf32> to vector<1x128xf32>
    %24 = arith.addf %21, %23 : vector<1x128xf32>
    %c0_24 = arith.constant 0 : index
    %c0_25 = arith.constant 0 : index
    %25 = vector.load %arg7[%c0_24, %c0_25] : memref<1x128xf32, #tpu.memory_space<vmem>>, vector<1x128xf32>
    tpu.vector_store %arg7[%c0_24, %c0_25], %24 {strides = array<i32>} : memref<1x128xf32, #tpu.memory_space<vmem>>, vector<1x128xf32>,
    %c0_26 = arith.constant 0 : index
    %c0_27 = arith.constant 0 : index
    %26 = vector.load %arg9[%c0_26, %c0_27] : memref<1x128xf32, #tpu.memory_space<vmem>>, vector<1x128xf32>
    %27 = arith.mulf %19, %19 : vector<32x128xf32>
    %cst_28 = arith.constant dense<0.000000e+00> : vector<128xf32>
    %28 = vector.multi_reduction <add>, %27, %cst_28 [0] : vector<32x128xf32> to vector<128xf32>
    %29 = vector.shape_cast %28 : vector<128xf32> to vector<1x128xf32>
    %30 = arith.addf %26, %29 : vector<1x128xf32>
    %c0_29 = arith.constant 0 : index
    %c0_30 = arith.constant 0 : index
    %31 = vector.load %arg9[%c0_29, %c0_30] : memref<1x128xf32, #tpu.memory_space<vmem>>, vector<1x128xf32>
    tpu.vector_store %arg9[%c0_29, %c0_30], %30 {strides = array<i32>} : memref<1x128xf32, #tpu.memory_space<vmem>>, vector<1x128xf32>,
    return
  }
  func.func @transform_0(%arg0: i32) -> (i32, i32) {
    %c0_i32 = arith.constant 0 : i32
    %c0_i32_0 = arith.constant 0 : i32
    return %arg0, %c0_i32 : i32, i32
  }
  func.func @transform_1(%arg0: i32) -> (i32, i32) {
    %c0_i32 = arith.constant 0 : i32
    %c0_i32_0 = arith.constant 0 : i32
    %c0_i32_1 = arith.constant 0 : i32
    return %c0_i32, %c0_i32_0 : i32, i32
  }
  func.func @transform_2(%arg0: i32) -> (i32, i32) {
    %c0_i32 = arith.constant 0 : i32
    %c0_i32_0 = arith.constant 0 : i32
    %c0_i32_1 = arith.constant 0 : i32
    return %c0_i32, %c0_i32_0 : i32, i32
  }
  func.func @transform_3(%arg0: i32) -> (i32, i32) {
    %c0_i32 = arith.constant 0 : i32
    %c0_i32_0 = arith.constant 0 : i32
    return %arg0, %c0_i32 : i32, i32
  }
  func.func @transform_4(%arg0: i32) -> (i32, i32) {
    %c0_i32 = arith.constant 0 : i32
    %c0_i32_0 = arith.constant 0 : i32
    return %arg0, %c0_i32 : i32, i32
  }
  func.func @transform_5(%arg0: i32) -> (i32, i32) {
    %c0_i32 = arith.constant 0 : i32
    %c0_i32_0 = arith.constant 0 : i32
    %c0_i32_1 = arith.constant 0 : i32
    return %c0_i32, %c0_i32_0 : i32, i32
  }
  func.func @transform_6(%arg0: i32) -> (i32, i32) {
    %c0_i32 = arith.constant 0 : i32
    %c0_i32_0 = arith.constant 0 : i32
    %c0_i32_1 = arith.constant 0 : i32
    return %c0_i32, %c0_i32_0 : i32, i32
  }
  func.func @transform_7(%arg0: i32) -> (i32, i32) {
    %c0_i32 = arith.constant 0 : i32
    %c0_i32_0 = arith.constant 0 : i32
    %c0_i32_1 = arith.constant 0 : i32
    return %c0_i32, %c0_i32_0 : i32, i32
  }
  func.func @transform_8(%arg0: i32) -> (i32, i32) {
    %c0_i32 = arith.constant 0 : i32
    %c0_i32_0 = arith.constant 0 : i32
    %c0_i32_1 = arith.constant 0 : i32
    return %c0_i32, %c0_i32_0 : i32, i32
  }
}

module attributes {stable_mosaic.version = 11 : i64} {
  func.func @kernel(%arg0: i32, %arg1: memref<32x128xf32, #tpu.memory_space<vmem>>, %arg2: memref<1x128xf32, #tpu.memory_space<vmem>>, %arg3: memref<1x128xf32, #tpu.memory_space<vmem>>, %arg4: memref<32x128xbf16, #tpu.memory_space<vmem>>) attributes {dimension_semantics = [#tpu.dimension_semantics<parallel>], iteration_bounds = array<i64: 1>, scalar_prefetch = 0 : i64, scratch_operands = 0 : i64, tpu.core_type = #tpu.core_type<tc>, window_params = [{transform_indices = @transform_0, window_bounds = array<i64: 32, 128>}, {pipeline_mode = #tpu.pipeline_mode<synchronous>, transform_indices = @transform_1, window_bounds = array<i64: 1, 128>}, {pipeline_mode = #tpu.pipeline_mode<synchronous>, transform_indices = @transform_2, window_bounds = array<i64: 1, 128>}, {transform_indices = @transform_3, window_bounds = array<i64: 32, 128>}]} {
    %c0 = arith.constant 0 : index
    %c0_0 = arith.constant 0 : index
    %0 = vector.load %arg1[%c0, %c0_0] : memref<32x128xf32, #tpu.memory_space<vmem>>, vector<32x128xf32>
    %c0_1 = arith.constant 0 : index
    %c0_2 = arith.constant 0 : index
    %1 = vector.load %arg2[%c0_1, %c0_2] : memref<1x128xf32, #tpu.memory_space<vmem>>, vector<1x128xf32>
    %c0_3 = arith.constant 0 : index
    %c0_4 = arith.constant 0 : index
    %2 = vector.load %arg3[%c0_3, %c0_4] : memref<1x128xf32, #tpu.memory_space<vmem>>, vector<1x128xf32>
    %cst = arith.constant 3.125000e-02 : f32
    %3 = vector.broadcast %cst : f32 to vector<1x128xf32>
    %4 = arith.mulf %1, %3 : vector<1x128xf32>
    %cst_5 = arith.constant 3.125000e-02 : f32
    %5 = vector.broadcast %cst_5 : f32 to vector<1x128xf32>
    %6 = arith.mulf %2, %5 : vector<1x128xf32>
    %7 = arith.mulf %4, %4 : vector<1x128xf32>
    %8 = arith.subf %6, %7 : vector<1x128xf32>
    %9 = vector.broadcast %4 : vector<1x128xf32> to vector<32x128xf32>
    %10 = arith.subf %0, %9 : vector<32x128xf32>
    %cst_6 = arith.constant 9.99999974E-6 : f32
    %11 = vector.broadcast %cst_6 : f32 to vector<1x128xf32>
    %12 = arith.addf %8, %11 : vector<1x128xf32>
    %13 = math.rsqrt %12 : vector<1x128xf32>
    %14 = vector.broadcast %13 : vector<1x128xf32> to vector<32x128xf32>
    %15 = arith.mulf %10, %14 : vector<32x128xf32>
    %cst_7 = arith.constant 0.000000e+00 : f32
    %16 = vector.broadcast %cst_7 : f32 to vector<32x128xf32>
    %17 = arith.maximumf %15, %16 : vector<32x128xf32>
    %18 = arith.truncf %17 : vector<32x128xf32> to vector<32x128xbf16>
    %c0_8 = arith.constant 0 : index
    %c0_9 = arith.constant 0 : index
    %19 = vector.load %arg4[%c0_8, %c0_9] : memref<32x128xbf16, #tpu.memory_space<vmem>>, vector<32x128xbf16>
    tpu.vector_store %arg4[%c0_8, %c0_9], %18 {strides = array<i32>} : memref<32x128xbf16, #tpu.memory_space<vmem>>, vector<32x128xbf16>,
    return
  }
  func.func @transform_0(%arg0: i32) -> (i32, i32) {
    %c0_i32 = arith.constant 0 : i32
    %c0_i32_0 = arith.constant 0 : i32
    return %arg0, %c0_i32 : i32, i32
  }
  func.func @transform_1(%arg0: i32) -> (i32, i32) {
    %c0_i32 = arith.constant 0 : i32
    %c0_i32_0 = arith.constant 0 : i32
    %c0_i32_1 = arith.constant 0 : i32
    return %c0_i32, %c0_i32_0 : i32, i32
  }
  func.func @transform_2(%arg0: i32) -> (i32, i32) {
    %c0_i32 = arith.constant 0 : i32
    %c0_i32_0 = arith.constant 0 : i32
    %c0_i32_1 = arith.constant 0 : i32
    return %c0_i32, %c0_i32_0 : i32, i32
  }
  func.func @transform_3(%arg0: i32) -> (i32, i32) {
    %c0_i32 = arith.constant 0 : i32
    %c0_i32_0 = arith.constant 0 : i32
    return %arg0, %c0_i32 : i32, i32
  }
}

module attributes {stable_mosaic.version = 11 : i64} {
  func.func @kernel(%arg0: i32, %arg1: memref<32x640xbf16, #tpu.memory_space<vmem>>, %arg2: memref<640x128xbf16, #tpu.memory_space<vmem>>, %arg3: memref<32x128xf32, #tpu.memory_space<vmem>>, %arg4: memref<1x128xf32, #tpu.memory_space<vmem>>, %arg5: memref<1x128xf32, #tpu.memory_space<vmem>>) attributes {dimension_semantics = [#tpu.dimension_semantics<arbitrary>], iteration_bounds = array<i64: 1>, scalar_prefetch = 0 : i64, scratch_operands = 0 : i64, tpu.core_type = #tpu.core_type<tc>, window_params = [{transform_indices = @transform_0, window_bounds = array<i64: 32, 640>}, {pipeline_mode = #tpu.pipeline_mode<synchronous>, transform_indices = @transform_1, window_bounds = array<i64: 640, 128>}, {transform_indices = @transform_2, window_bounds = array<i64: 32, 128>}, {pipeline_mode = #tpu.pipeline_mode<synchronous>, transform_indices = @transform_3, window_bounds = array<i64: 1, 128>}, {pipeline_mode = #tpu.pipeline_mode<synchronous>, transform_indices = @transform_4, window_bounds = array<i64: 1, 128>}]} {
    %c0_i32 = arith.constant 0 : i32
    %0 = arith.cmpi eq, %arg0, %c0_i32 : i32
    %1 = arith.extui %0 : i1 to i32
    %c0_i32_0 = arith.constant 0 : i32
    %2 = arith.cmpi ne, %1, %c0_i32_0 : i32
    scf.if %2 {
      %cst_16 = arith.constant 0.000000e+00 : f32
      %18 = vector.broadcast %cst_16 : f32 to vector<1x128xf32>
      %c0_17 = arith.constant 0 : index
      %c0_18 = arith.constant 0 : index
      %19 = vector.load %arg4[%c0_17, %c0_18] : memref<1x128xf32, #tpu.memory_space<vmem>>, vector<1x128xf32>
      tpu.vector_store %arg4[%c0_17, %c0_18], %18 {strides = array<i32>} : memref<1x128xf32, #tpu.memory_space<vmem>>, vector<1x128xf32>,
      %cst_19 = arith.constant 0.000000e+00 : f32
      %20 = vector.broadcast %cst_19 : f32 to vector<1x128xf32>
      %c0_20 = arith.constant 0 : index
      %c0_21 = arith.constant 0 : index
      %21 = vector.load %arg5[%c0_20, %c0_21] : memref<1x128xf32, #tpu.memory_space<vmem>>, vector<1x128xf32>
      tpu.vector_store %arg5[%c0_20, %c0_21], %20 {strides = array<i32>} : memref<1x128xf32, #tpu.memory_space<vmem>>, vector<1x128xf32>,
    } else {
    }
    %c0 = arith.constant 0 : index
    %c0_1 = arith.constant 0 : index
    %3 = vector.load %arg1[%c0, %c0_1] : memref<32x640xbf16, #tpu.memory_space<vmem>>, vector<32x640xbf16>
    %c0_2 = arith.constant 0 : index
    %c0_3 = arith.constant 0 : index
    %4 = vector.load %arg2[%c0_2, %c0_3] : memref<640x128xbf16, #tpu.memory_space<vmem>>, vector<640x128xbf16>
    %cst = arith.constant dense<0.000000e+00> : vector<32x128xf32>
    %5 = tpu.matmul %3, %4, %cst {dimension_numbers = #tpu.dot_dimension_numbers<[1], [0], [0], [1], [0, 0, 1, 1], [], []>} : vector<32x640xbf16>, vector<640x128xbf16>, vector<32x128xf32> -> vector<32x128xf32>
    %c0_4 = arith.constant 0 : index
    %c0_5 = arith.constant 0 : index
    %6 = vector.load %arg3[%c0_4, %c0_5] : memref<32x128xf32, #tpu.memory_space<vmem>>, vector<32x128xf32>
    tpu.vector_store %arg3[%c0_4, %c0_5], %5 {strides = array<i32>} : memref<32x128xf32, #tpu.memory_space<vmem>>, vector<32x128xf32>,
    %c0_6 = arith.constant 0 : index
    %c0_7 = arith.constant 0 : index
    %7 = vector.load %arg4[%c0_6, %c0_7] : memref<1x128xf32, #tpu.memory_space<vmem>>, vector<1x128xf32>
    %cst_8 = arith.constant dense<0.000000e+00> : vector<128xf32>
    %8 = vector.multi_reduction <add>, %5, %cst_8 [0] : vector<32x128xf32> to vector<128xf32>
    %9 = vector.shape_cast %8 : vector<128xf32> to vector<1x128xf32>
    %10 = arith.addf %7, %9 : vector<1x128xf32>
    %c0_9 = arith.constant 0 : index
    %c0_10 = arith.constant 0 : index
    %11 = vector.load %arg4[%c0_9, %c0_10] : memref<1x128xf32, #tpu.memory_space<vmem>>, vector<1x128xf32>
    tpu.vector_store %arg4[%c0_9, %c0_10], %10 {strides = array<i32>} : memref<1x128xf32, #tpu.memory_space<vmem>>, vector<1x128xf32>,
    %c0_11 = arith.constant 0 : index
    %c0_12 = arith.constant 0 : index
    %12 = vector.load %arg5[%c0_11, %c0_12] : memref<1x128xf32, #tpu.memory_space<vmem>>, vector<1x128xf32>
    %13 = arith.mulf %5, %5 : vector<32x128xf32>
    %cst_13 = arith.constant dense<0.000000e+00> : vector<128xf32>
    %14 = vector.multi_reduction <add>, %13, %cst_13 [0] : vector<32x128xf32> to vector<128xf32>
    %15 = vector.shape_cast %14 : vector<128xf32> to vector<1x128xf32>
    %16 = arith.addf %12, %15 : vector<1x128xf32>
    %c0_14 = arith.constant 0 : index
    %c0_15 = arith.constant 0 : index
    %17 = vector.load %arg5[%c0_14, %c0_15] : memref<1x128xf32, #tpu.memory_space<vmem>>, vector<1x128xf32>
    tpu.vector_store %arg5[%c0_14, %c0_15], %16 {strides = array<i32>} : memref<1x128xf32, #tpu.memory_space<vmem>>, vector<1x128xf32>,
    return
  }
  func.func @transform_0(%arg0: i32) -> (i32, i32) {
    %c0_i32 = arith.constant 0 : i32
    %c0_i32_0 = arith.constant 0 : i32
    return %arg0, %c0_i32 : i32, i32
  }
  func.func @transform_1(%arg0: i32) -> (i32, i32) {
    %c0_i32 = arith.constant 0 : i32
    %c0_i32_0 = arith.constant 0 : i32
    %c0_i32_1 = arith.constant 0 : i32
    return %c0_i32, %c0_i32_0 : i32, i32
  }
  func.func @transform_2(%arg0: i32) -> (i32, i32) {
    %c0_i32 = arith.constant 0 : i32
    %c0_i32_0 = arith.constant 0 : i32
    return %arg0, %c0_i32 : i32, i32
  }
  func.func @transform_3(%arg0: i32) -> (i32, i32) {
    %c0_i32 = arith.constant 0 : i32
    %c0_i32_0 = arith.constant 0 : i32
    %c0_i32_1 = arith.constant 0 : i32
    return %c0_i32, %c0_i32_0 : i32, i32
  }
  func.func @transform_4(%arg0: i32) -> (i32, i32) {
    %c0_i32 = arith.constant 0 : i32
    %c0_i32_0 = arith.constant 0 : i32
    %c0_i32_1 = arith.constant 0 : i32
    return %c0_i32, %c0_i32_0 : i32, i32
  }
}

module attributes {stable_mosaic.version = 11 : i64} {
  func.func @kernel(%arg0: i32, %arg1: memref<32x128xf32, #tpu.memory_space<vmem>>, %arg2: memref<1x128xf32, #tpu.memory_space<vmem>>, %arg3: memref<1x128xf32, #tpu.memory_space<vmem>>, %arg4: memref<32x128xf32, #tpu.memory_space<vmem>>, %arg5: memref<1x128xf32, #tpu.memory_space<vmem>>, %arg6: memref<1x128xf32, #tpu.memory_space<vmem>>, %arg7: memref<32x128xbf16, #tpu.memory_space<vmem>>) attributes {dimension_semantics = [#tpu.dimension_semantics<parallel>], iteration_bounds = array<i64: 1>, scalar_prefetch = 0 : i64, scratch_operands = 0 : i64, tpu.core_type = #tpu.core_type<tc>, window_params = [{transform_indices = @transform_0, window_bounds = array<i64: 32, 128>}, {pipeline_mode = #tpu.pipeline_mode<synchronous>, transform_indices = @transform_1, window_bounds = array<i64: 1, 128>}, {pipeline_mode = #tpu.pipeline_mode<synchronous>, transform_indices = @transform_2, window_bounds = array<i64: 1, 128>}, {transform_indices = @transform_3, window_bounds = array<i64: 32, 128>}, {pipeline_mode = #tpu.pipeline_mode<synchronous>, transform_indices = @transform_4, window_bounds = array<i64: 1, 128>}, {pipeline_mode = #tpu.pipeline_mode<synchronous>, transform_indices = @transform_5, window_bounds = array<i64: 1, 128>}, {transform_indices = @transform_6, window_bounds = array<i64: 32, 128>}]} {
    %c0 = arith.constant 0 : index
    %c0_0 = arith.constant 0 : index
    %0 = vector.load %arg1[%c0, %c0_0] : memref<32x128xf32, #tpu.memory_space<vmem>>, vector<32x128xf32>
    %c0_1 = arith.constant 0 : index
    %c0_2 = arith.constant 0 : index
    %1 = vector.load %arg2[%c0_1, %c0_2] : memref<1x128xf32, #tpu.memory_space<vmem>>, vector<1x128xf32>
    %c0_3 = arith.constant 0 : index
    %c0_4 = arith.constant 0 : index
    %2 = vector.load %arg3[%c0_3, %c0_4] : memref<1x128xf32, #tpu.memory_space<vmem>>, vector<1x128xf32>
    %cst = arith.constant 3.125000e-02 : f32
    %3 = vector.broadcast %cst : f32 to vector<1x128xf32>
    %4 = arith.mulf %1, %3 : vector<1x128xf32>
    %cst_5 = arith.constant 3.125000e-02 : f32
    %5 = vector.broadcast %cst_5 : f32 to vector<1x128xf32>
    %6 = arith.mulf %2, %5 : vector<1x128xf32>
    %7 = arith.mulf %4, %4 : vector<1x128xf32>
    %8 = arith.subf %6, %7 : vector<1x128xf32>
    %9 = vector.broadcast %4 : vector<1x128xf32> to vector<32x128xf32>
    %10 = arith.subf %0, %9 : vector<32x128xf32>
    %cst_6 = arith.constant 9.99999974E-6 : f32
    %11 = vector.broadcast %cst_6 : f32 to vector<1x128xf32>
    %12 = arith.addf %8, %11 : vector<1x128xf32>
    %13 = math.rsqrt %12 : vector<1x128xf32>
    %14 = vector.broadcast %13 : vector<1x128xf32> to vector<32x128xf32>
    %15 = arith.mulf %10, %14 : vector<32x128xf32>
    %c0_7 = arith.constant 0 : index
    %c0_8 = arith.constant 0 : index
    %16 = vector.load %arg4[%c0_7, %c0_8] : memref<32x128xf32, #tpu.memory_space<vmem>>, vector<32x128xf32>
    %c0_9 = arith.constant 0 : index
    %c0_10 = arith.constant 0 : index
    %17 = vector.load %arg5[%c0_9, %c0_10] : memref<1x128xf32, #tpu.memory_space<vmem>>, vector<1x128xf32>
    %c0_11 = arith.constant 0 : index
    %c0_12 = arith.constant 0 : index
    %18 = vector.load %arg6[%c0_11, %c0_12] : memref<1x128xf32, #tpu.memory_space<vmem>>, vector<1x128xf32>
    %cst_13 = arith.constant 3.125000e-02 : f32
    %19 = vector.broadcast %cst_13 : f32 to vector<1x128xf32>
    %20 = arith.mulf %17, %19 : vector<1x128xf32>
    %cst_14 = arith.constant 3.125000e-02 : f32
    %21 = vector.broadcast %cst_14 : f32 to vector<1x128xf32>
    %22 = arith.mulf %18, %21 : vector<1x128xf32>
    %23 = arith.mulf %20, %20 : vector<1x128xf32>
    %24 = arith.subf %22, %23 : vector<1x128xf32>
    %25 = vector.broadcast %20 : vector<1x128xf32> to vector<32x128xf32>
    %26 = arith.subf %16, %25 : vector<32x128xf32>
    %cst_15 = arith.constant 9.99999974E-6 : f32
    %27 = vector.broadcast %cst_15 : f32 to vector<1x128xf32>
    %28 = arith.addf %24, %27 : vector<1x128xf32>
    %29 = math.rsqrt %28 : vector<1x128xf32>
    %30 = vector.broadcast %29 : vector<1x128xf32> to vector<32x128xf32>
    %31 = arith.mulf %26, %30 : vector<32x128xf32>
    %32 = arith.addf %15, %31 : vector<32x128xf32>
    %cst_16 = arith.constant 0.000000e+00 : f32
    %33 = vector.broadcast %cst_16 : f32 to vector<32x128xf32>
    %34 = arith.maximumf %32, %33 : vector<32x128xf32>
    %35 = arith.truncf %34 : vector<32x128xf32> to vector<32x128xbf16>
    %c0_17 = arith.constant 0 : index
    %c0_18 = arith.constant 0 : index
    %36 = vector.load %arg7[%c0_17, %c0_18] : memref<32x128xbf16, #tpu.memory_space<vmem>>, vector<32x128xbf16>
    tpu.vector_store %arg7[%c0_17, %c0_18], %35 {strides = array<i32>} : memref<32x128xbf16, #tpu.memory_space<vmem>>, vector<32x128xbf16>,
    return
  }
  func.func @transform_0(%arg0: i32) -> (i32, i32) {
    %c0_i32 = arith.constant 0 : i32
    %c0_i32_0 = arith.constant 0 : i32
    return %arg0, %c0_i32 : i32, i32
  }
  func.func @transform_1(%arg0: i32) -> (i32, i32) {
    %c0_i32 = arith.constant 0 : i32
    %c0_i32_0 = arith.constant 0 : i32
    %c0_i32_1 = arith.constant 0 : i32
    return %c0_i32, %c0_i32_0 : i32, i32
  }
  func.func @transform_2(%arg0: i32) -> (i32, i32) {
    %c0_i32 = arith.constant 0 : i32
    %c0_i32_0 = arith.constant 0 : i32
    %c0_i32_1 = arith.constant 0 : i32
    return %c0_i32, %c0_i32_0 : i32, i32
  }
  func.func @transform_3(%arg0: i32) -> (i32, i32) {
    %c0_i32 = arith.constant 0 : i32
    %c0_i32_0 = arith.constant 0 : i32
    return %arg0, %c0_i32 : i32, i32
  }
  func.func @transform_4(%arg0: i32) -> (i32, i32) {
    %c0_i32 = arith.constant 0 : i32
    %c0_i32_0 = arith.constant 0 : i32
    %c0_i32_1 = arith.constant 0 : i32
    return %c0_i32, %c0_i32_0 : i32, i32
  }
  func.func @transform_5(%arg0: i32) -> (i32, i32) {
    %c0_i32 = arith.constant 0 : i32
    %c0_i32_0 = arith.constant 0 : i32
    %c0_i32_1 = arith.constant 0 : i32
    return %c0_i32, %c0_i32_0 : i32, i32
  }
  func.func @transform_6(%arg0: i32) -> (i32, i32) {
    %c0_i32 = arith.constant 0 : i32
    %c0_i32_0 = arith.constant 0 : i32
    return %arg0, %c0_i32 : i32, i32
  }
}

module attributes {stable_mosaic.version = 11 : i64} {
  func.func @kernel(%arg0: i32, %arg1: memref<8x128xf32, #tpu.memory_space<vmem>>, %arg2: memref<1x128xf32, #tpu.memory_space<vmem>>, %arg3: memref<1x128xf32, #tpu.memory_space<vmem>>, %arg4: memref<8x128xbf16, #tpu.memory_space<vmem>>) attributes {dimension_semantics = [#tpu.dimension_semantics<parallel>], iteration_bounds = array<i64: 1>, scalar_prefetch = 0 : i64, scratch_operands = 0 : i64, tpu.core_type = #tpu.core_type<tc>, window_params = [{transform_indices = @transform_0, window_bounds = array<i64: 8, 128>}, {pipeline_mode = #tpu.pipeline_mode<synchronous>, transform_indices = @transform_1, window_bounds = array<i64: 1, 128>}, {pipeline_mode = #tpu.pipeline_mode<synchronous>, transform_indices = @transform_2, window_bounds = array<i64: 1, 128>}, {transform_indices = @transform_3, window_bounds = array<i64: 8, 128>}]} {
    %c0 = arith.constant 0 : index
    %c0_0 = arith.constant 0 : index
    %0 = vector.load %arg1[%c0, %c0_0] : memref<8x128xf32, #tpu.memory_space<vmem>>, vector<8x128xf32>
    %c0_1 = arith.constant 0 : index
    %c0_2 = arith.constant 0 : index
    %1 = vector.load %arg2[%c0_1, %c0_2] : memref<1x128xf32, #tpu.memory_space<vmem>>, vector<1x128xf32>
    %c0_3 = arith.constant 0 : index
    %c0_4 = arith.constant 0 : index
    %2 = vector.load %arg3[%c0_3, %c0_4] : memref<1x128xf32, #tpu.memory_space<vmem>>, vector<1x128xf32>
    %cst = arith.constant 1.250000e-01 : f32
    %3 = vector.broadcast %cst : f32 to vector<1x128xf32>
    %4 = arith.mulf %1, %3 : vector<1x128xf32>
    %cst_5 = arith.constant 1.250000e-01 : f32
    %5 = vector.broadcast %cst_5 : f32 to vector<1x128xf32>
    %6 = arith.mulf %2, %5 : vector<1x128xf32>
    %7 = arith.mulf %4, %4 : vector<1x128xf32>
    %8 = arith.subf %6, %7 : vector<1x128xf32>
    %9 = vector.broadcast %4 : vector<1x128xf32> to vector<8x128xf32>
    %10 = arith.subf %0, %9 : vector<8x128xf32>
    %cst_6 = arith.constant 9.99999974E-6 : f32
    %11 = vector.broadcast %cst_6 : f32 to vector<1x128xf32>
    %12 = arith.addf %8, %11 : vector<1x128xf32>
    %13 = math.rsqrt %12 : vector<1x128xf32>
    %14 = vector.broadcast %13 : vector<1x128xf32> to vector<8x128xf32>
    %15 = arith.mulf %10, %14 : vector<8x128xf32>
    %cst_7 = arith.constant 0.000000e+00 : f32
    %16 = vector.broadcast %cst_7 : f32 to vector<8x128xf32>
    %17 = arith.maximumf %15, %16 : vector<8x128xf32>
    %18 = arith.truncf %17 : vector<8x128xf32> to vector<8x128xbf16>
    %c0_8 = arith.constant 0 : index
    %c0_9 = arith.constant 0 : index
    %19 = vector.load %arg4[%c0_8, %c0_9] : memref<8x128xbf16, #tpu.memory_space<vmem>>, vector<8x128xbf16>
    tpu.vector_store %arg4[%c0_8, %c0_9], %18 {strides = array<i32>} : memref<8x128xbf16, #tpu.memory_space<vmem>>, vector<8x128xbf16>,
    return
  }
  func.func @transform_0(%arg0: i32) -> (i32, i32) {
    %c0_i32 = arith.constant 0 : i32
    %c0_i32_0 = arith.constant 0 : i32
    return %arg0, %c0_i32 : i32, i32
  }
  func.func @transform_1(%arg0: i32) -> (i32, i32) {
    %c0_i32 = arith.constant 0 : i32
    %c0_i32_0 = arith.constant 0 : i32
    %c0_i32_1 = arith.constant 0 : i32
    return %c0_i32, %c0_i32_0 : i32, i32
  }
  func.func @transform_2(%arg0: i32) -> (i32, i32) {
    %c0_i32 = arith.constant 0 : i32
    %c0_i32_0 = arith.constant 0 : i32
    %c0_i32_1 = arith.constant 0 : i32
    return %c0_i32, %c0_i32_0 : i32, i32
  }
  func.func @transform_3(%arg0: i32) -> (i32, i32) {
    %c0_i32 = arith.constant 0 : i32
    %c0_i32_0 = arith.constant 0 : i32
    return %arg0, %c0_i32 : i32, i32
  }
}

module attributes {stable_mosaic.version = 11 : i64} {
  func.func @kernel(%arg0: i32, %arg1: memref<8x640xbf16, #tpu.memory_space<vmem>>, %arg2: memref<640x128xbf16, #tpu.memory_space<vmem>>, %arg3: memref<640x128xbf16, #tpu.memory_space<vmem>>, %arg4: memref<8x128xf32, #tpu.memory_space<vmem>>, %arg5: memref<8x128xf32, #tpu.memory_space<vmem>>, %arg6: memref<1x128xf32, #tpu.memory_space<vmem>>, %arg7: memref<1x128xf32, #tpu.memory_space<vmem>>, %arg8: memref<1x128xf32, #tpu.memory_space<vmem>>, %arg9: memref<1x128xf32, #tpu.memory_space<vmem>>) attributes {dimension_semantics = [#tpu.dimension_semantics<arbitrary>], iteration_bounds = array<i64: 1>, scalar_prefetch = 0 : i64, scratch_operands = 0 : i64, tpu.core_type = #tpu.core_type<tc>, window_params = [{transform_indices = @transform_0, window_bounds = array<i64: 8, 640>}, {pipeline_mode = #tpu.pipeline_mode<synchronous>, transform_indices = @transform_1, window_bounds = array<i64: 640, 128>}, {pipeline_mode = #tpu.pipeline_mode<synchronous>, transform_indices = @transform_2, window_bounds = array<i64: 640, 128>}, {transform_indices = @transform_3, window_bounds = array<i64: 8, 128>}, {transform_indices = @transform_4, window_bounds = array<i64: 8, 128>}, {pipeline_mode = #tpu.pipeline_mode<synchronous>, transform_indices = @transform_5, window_bounds = array<i64: 1, 128>}, {pipeline_mode = #tpu.pipeline_mode<synchronous>, transform_indices = @transform_6, window_bounds = array<i64: 1, 128>}, {pipeline_mode = #tpu.pipeline_mode<synchronous>, transform_indices = @transform_7, window_bounds = array<i64: 1, 128>}, {pipeline_mode = #tpu.pipeline_mode<synchronous>, transform_indices = @transform_8, window_bounds = array<i64: 1, 128>}]} {
    %c0_i32 = arith.constant 0 : i32
    %0 = arith.cmpi eq, %arg0, %c0_i32 : i32
    %1 = arith.extui %0 : i1 to i32
    %c0_i32_0 = arith.constant 0 : i32
    %2 = arith.cmpi ne, %1, %c0_i32_0 : i32
    scf.if %2 {
      %cst_31 = arith.constant 0.000000e+00 : f32
      %32 = vector.broadcast %cst_31 : f32 to vector<1x128xf32>
      %c0_32 = arith.constant 0 : index
      %c0_33 = arith.constant 0 : index
      %33 = vector.load %arg6[%c0_32, %c0_33] : memref<1x128xf32, #tpu.memory_space<vmem>>, vector<1x128xf32>
      tpu.vector_store %arg6[%c0_32, %c0_33], %32 {strides = array<i32>} : memref<1x128xf32, #tpu.memory_space<vmem>>, vector<1x128xf32>,
      %cst_34 = arith.constant 0.000000e+00 : f32
      %34 = vector.broadcast %cst_34 : f32 to vector<1x128xf32>
      %c0_35 = arith.constant 0 : index
      %c0_36 = arith.constant 0 : index
      %35 = vector.load %arg7[%c0_35, %c0_36] : memref<1x128xf32, #tpu.memory_space<vmem>>, vector<1x128xf32>
      tpu.vector_store %arg7[%c0_35, %c0_36], %34 {strides = array<i32>} : memref<1x128xf32, #tpu.memory_space<vmem>>, vector<1x128xf32>,
      %cst_37 = arith.constant 0.000000e+00 : f32
      %36 = vector.broadcast %cst_37 : f32 to vector<1x128xf32>
      %c0_38 = arith.constant 0 : index
      %c0_39 = arith.constant 0 : index
      %37 = vector.load %arg8[%c0_38, %c0_39] : memref<1x128xf32, #tpu.memory_space<vmem>>, vector<1x128xf32>
      tpu.vector_store %arg8[%c0_38, %c0_39], %36 {strides = array<i32>} : memref<1x128xf32, #tpu.memory_space<vmem>>, vector<1x128xf32>,
      %cst_40 = arith.constant 0.000000e+00 : f32
      %38 = vector.broadcast %cst_40 : f32 to vector<1x128xf32>
      %c0_41 = arith.constant 0 : index
      %c0_42 = arith.constant 0 : index
      %39 = vector.load %arg9[%c0_41, %c0_42] : memref<1x128xf32, #tpu.memory_space<vmem>>, vector<1x128xf32>
      tpu.vector_store %arg9[%c0_41, %c0_42], %38 {strides = array<i32>} : memref<1x128xf32, #tpu.memory_space<vmem>>, vector<1x128xf32>,
    } else {
    }
    %c0 = arith.constant 0 : index
    %c0_1 = arith.constant 0 : index
    %3 = vector.load %arg1[%c0, %c0_1] : memref<8x640xbf16, #tpu.memory_space<vmem>>, vector<8x640xbf16>
    %c0_2 = arith.constant 0 : index
    %c0_3 = arith.constant 0 : index
    %4 = vector.load %arg2[%c0_2, %c0_3] : memref<640x128xbf16, #tpu.memory_space<vmem>>, vector<640x128xbf16>
    %cst = arith.constant dense<0.000000e+00> : vector<8x128xf32>
    %5 = tpu.matmul %3, %4, %cst {dimension_numbers = #tpu.dot_dimension_numbers<[1], [0], [0], [1], [0, 0, 1, 1], [], []>} : vector<8x640xbf16>, vector<640x128xbf16>, vector<8x128xf32> -> vector<8x128xf32>
    %c0_4 = arith.constant 0 : index
    %c0_5 = arith.constant 0 : index
    %6 = vector.load %arg4[%c0_4, %c0_5] : memref<8x128xf32, #tpu.memory_space<vmem>>, vector<8x128xf32>
    tpu.vector_store %arg4[%c0_4, %c0_5], %5 {strides = array<i32>} : memref<8x128xf32, #tpu.memory_space<vmem>>, vector<8x128xf32>,
    %c0_6 = arith.constant 0 : index
    %c0_7 = arith.constant 0 : index
    %7 = vector.load %arg6[%c0_6, %c0_7] : memref<1x128xf32, #tpu.memory_space<vmem>>, vector<1x128xf32>
    %cst_8 = arith.constant dense<0.000000e+00> : vector<128xf32>
    %8 = vector.multi_reduction <add>, %5, %cst_8 [0] : vector<8x128xf32> to vector<128xf32>
    %9 = vector.shape_cast %8 : vector<128xf32> to vector<1x128xf32>
    %10 = arith.addf %7, %9 : vector<1x128xf32>
    %c0_9 = arith.constant 0 : index
    %c0_10 = arith.constant 0 : index
    %11 = vector.load %arg6[%c0_9, %c0_10] : memref<1x128xf32, #tpu.memory_space<vmem>>, vector<1x128xf32>
    tpu.vector_store %arg6[%c0_9, %c0_10], %10 {strides = array<i32>} : memref<1x128xf32, #tpu.memory_space<vmem>>, vector<1x128xf32>,
    %c0_11 = arith.constant 0 : index
    %c0_12 = arith.constant 0 : index
    %12 = vector.load %arg8[%c0_11, %c0_12] : memref<1x128xf32, #tpu.memory_space<vmem>>, vector<1x128xf32>
    %13 = arith.mulf %5, %5 : vector<8x128xf32>
    %cst_13 = arith.constant dense<0.000000e+00> : vector<128xf32>
    %14 = vector.multi_reduction <add>, %13, %cst_13 [0] : vector<8x128xf32> to vector<128xf32>
    %15 = vector.shape_cast %14 : vector<128xf32> to vector<1x128xf32>
    %16 = arith.addf %12, %15 : vector<1x128xf32>
    %c0_14 = arith.constant 0 : index
    %c0_15 = arith.constant 0 : index
    %17 = vector.load %arg8[%c0_14, %c0_15] : memref<1x128xf32, #tpu.memory_space<vmem>>, vector<1x128xf32>
    tpu.vector_store %arg8[%c0_14, %c0_15], %16 {strides = array<i32>} : memref<1x128xf32, #tpu.memory_space<vmem>>, vector<1x128xf32>,
    %c0_16 = arith.constant 0 : index
    %c0_17 = arith.constant 0 : index
    %18 = vector.load %arg3[%c0_16, %c0_17] : memref<640x128xbf16, #tpu.memory_space<vmem>>, vector<640x128xbf16>
    %cst_18 = arith.constant dense<0.000000e+00> : vector<8x128xf32>
    %19 = tpu.matmul %3, %18, %cst_18 {dimension_numbers = #tpu.dot_dimension_numbers<[1], [0], [0], [1], [0, 0, 1, 1], [], []>} : vector<8x640xbf16>, vector<640x128xbf16>, vector<8x128xf32> -> vector<8x128xf32>
    %c0_19 = arith.constant 0 : index
    %c0_20 = arith.constant 0 : index
    %20 = vector.load %arg5[%c0_19, %c0_20] : memref<8x128xf32, #tpu.memory_space<vmem>>, vector<8x128xf32>
    tpu.vector_store %arg5[%c0_19, %c0_20], %19 {strides = array<i32>} : memref<8x128xf32, #tpu.memory_space<vmem>>, vector<8x128xf32>,
    %c0_21 = arith.constant 0 : index
    %c0_22 = arith.constant 0 : index
    %21 = vector.load %arg7[%c0_21, %c0_22] : memref<1x128xf32, #tpu.memory_space<vmem>>, vector<1x128xf32>
    %cst_23 = arith.constant dense<0.000000e+00> : vector<128xf32>
    %22 = vector.multi_reduction <add>, %19, %cst_23 [0] : vector<8x128xf32> to vector<128xf32>
    %23 = vector.shape_cast %22 : vector<128xf32> to vector<1x128xf32>
    %24 = arith.addf %21, %23 : vector<1x128xf32>
    %c0_24 = arith.constant 0 : index
    %c0_25 = arith.constant 0 : index
    %25 = vector.load %arg7[%c0_24, %c0_25] : memref<1x128xf32, #tpu.memory_space<vmem>>, vector<1x128xf32>
    tpu.vector_store %arg7[%c0_24, %c0_25], %24 {strides = array<i32>} : memref<1x128xf32, #tpu.memory_space<vmem>>, vector<1x128xf32>,
    %c0_26 = arith.constant 0 : index
    %c0_27 = arith.constant 0 : index
    %26 = vector.load %arg9[%c0_26, %c0_27] : memref<1x128xf32, #tpu.memory_space<vmem>>, vector<1x128xf32>
    %27 = arith.mulf %19, %19 : vector<8x128xf32>
    %cst_28 = arith.constant dense<0.000000e+00> : vector<128xf32>
    %28 = vector.multi_reduction <add>, %27, %cst_28 [0] : vector<8x128xf32> to vector<128xf32>
    %29 = vector.shape_cast %28 : vector<128xf32> to vector<1x128xf32>
    %30 = arith.addf %26, %29 : vector<1x128xf32>
    %c0_29 = arith.constant 0 : index
    %c0_30 = arith.constant 0 : index
    %31 = vector.load %arg9[%c0_29, %c0_30] : memref<1x128xf32, #tpu.memory_space<vmem>>, vector<1x128xf32>
    tpu.vector_store %arg9[%c0_29, %c0_30], %30 {strides = array<i32>} : memref<1x128xf32, #tpu.memory_space<vmem>>, vector<1x128xf32>,
    return
  }
  func.func @transform_0(%arg0: i32) -> (i32, i32) {
    %c0_i32 = arith.constant 0 : i32
    %c0_i32_0 = arith.constant 0 : i32
    return %arg0, %c0_i32 : i32, i32
  }
  func.func @transform_1(%arg0: i32) -> (i32, i32) {
    %c0_i32 = arith.constant 0 : i32
    %c0_i32_0 = arith.constant 0 : i32
    %c0_i32_1 = arith.constant 0 : i32
    return %c0_i32, %c0_i32_0 : i32, i32
  }
  func.func @transform_2(%arg0: i32) -> (i32, i32) {
    %c0_i32 = arith.constant 0 : i32
    %c0_i32_0 = arith.constant 0 : i32
    %c0_i32_1 = arith.constant 0 : i32
    return %c0_i32, %c0_i32_0 : i32, i32
  }
  func.func @transform_3(%arg0: i32) -> (i32, i32) {
    %c0_i32 = arith.constant 0 : i32
    %c0_i32_0 = arith.constant 0 : i32
    return %arg0, %c0_i32 : i32, i32
  }
  func.func @transform_4(%arg0: i32) -> (i32, i32) {
    %c0_i32 = arith.constant 0 : i32
    %c0_i32_0 = arith.constant 0 : i32
    return %arg0, %c0_i32 : i32, i32
  }
  func.func @transform_5(%arg0: i32) -> (i32, i32) {
    %c0_i32 = arith.constant 0 : i32
    %c0_i32_0 = arith.constant 0 : i32
    %c0_i32_1 = arith.constant 0 : i32
    return %c0_i32, %c0_i32_0 : i32, i32
  }
  func.func @transform_6(%arg0: i32) -> (i32, i32) {
    %c0_i32 = arith.constant 0 : i32
    %c0_i32_0 = arith.constant 0 : i32
    %c0_i32_1 = arith.constant 0 : i32
    return %c0_i32, %c0_i32_0 : i32, i32
  }
  func.func @transform_7(%arg0: i32) -> (i32, i32) {
    %c0_i32 = arith.constant 0 : i32
    %c0_i32_0 = arith.constant 0 : i32
    %c0_i32_1 = arith.constant 0 : i32
    return %c0_i32, %c0_i32_0 : i32, i32
  }
  func.func @transform_8(%arg0: i32) -> (i32, i32) {
    %c0_i32 = arith.constant 0 : i32
    %c0_i32_0 = arith.constant 0 : i32
    %c0_i32_1 = arith.constant 0 : i32
    return %c0_i32, %c0_i32_0 : i32, i32
  }
}

module attributes {stable_mosaic.version = 11 : i64} {
  func.func @kernel(%arg0: i32, %arg1: memref<8x1152xbf16, #tpu.memory_space<vmem>>, %arg2: memref<1152x128xbf16, #tpu.memory_space<vmem>>, %arg3: memref<8x128xf32, #tpu.memory_space<vmem>>, %arg4: memref<1x128xf32, #tpu.memory_space<vmem>>, %arg5: memref<1x128xf32, #tpu.memory_space<vmem>>) attributes {dimension_semantics = [#tpu.dimension_semantics<arbitrary>], iteration_bounds = array<i64: 1>, scalar_prefetch = 0 : i64, scratch_operands = 0 : i64, tpu.core_type = #tpu.core_type<tc>, window_params = [{transform_indices = @transform_0, window_bounds = array<i64: 8, 1152>}, {pipeline_mode = #tpu.pipeline_mode<synchronous>, transform_indices = @transform_1, window_bounds = array<i64: 1152, 128>}, {transform_indices = @transform_2, window_bounds = array<i64: 8, 128>}, {pipeline_mode = #tpu.pipeline_mode<synchronous>, transform_indices = @transform_3, window_bounds = array<i64: 1, 128>}, {pipeline_mode = #tpu.pipeline_mode<synchronous>, transform_indices = @transform_4, window_bounds = array<i64: 1, 128>}]} {
    %c0_i32 = arith.constant 0 : i32
    %0 = arith.cmpi eq, %arg0, %c0_i32 : i32
    %1 = arith.extui %0 : i1 to i32
    %c0_i32_0 = arith.constant 0 : i32
    %2 = arith.cmpi ne, %1, %c0_i32_0 : i32
    scf.if %2 {
      %cst_16 = arith.constant 0.000000e+00 : f32
      %18 = vector.broadcast %cst_16 : f32 to vector<1x128xf32>
      %c0_17 = arith.constant 0 : index
      %c0_18 = arith.constant 0 : index
      %19 = vector.load %arg4[%c0_17, %c0_18] : memref<1x128xf32, #tpu.memory_space<vmem>>, vector<1x128xf32>
      tpu.vector_store %arg4[%c0_17, %c0_18], %18 {strides = array<i32>} : memref<1x128xf32, #tpu.memory_space<vmem>>, vector<1x128xf32>,
      %cst_19 = arith.constant 0.000000e+00 : f32
      %20 = vector.broadcast %cst_19 : f32 to vector<1x128xf32>
      %c0_20 = arith.constant 0 : index
      %c0_21 = arith.constant 0 : index
      %21 = vector.load %arg5[%c0_20, %c0_21] : memref<1x128xf32, #tpu.memory_space<vmem>>, vector<1x128xf32>
      tpu.vector_store %arg5[%c0_20, %c0_21], %20 {strides = array<i32>} : memref<1x128xf32, #tpu.memory_space<vmem>>, vector<1x128xf32>,
    } else {
    }
    %c0 = arith.constant 0 : index
    %c0_1 = arith.constant 0 : index
    %3 = vector.load %arg1[%c0, %c0_1] : memref<8x1152xbf16, #tpu.memory_space<vmem>>, vector<8x1152xbf16>
    %c0_2 = arith.constant 0 : index
    %c0_3 = arith.constant 0 : index
    %4 = vector.load %arg2[%c0_2, %c0_3] : memref<1152x128xbf16, #tpu.memory_space<vmem>>, vector<1152x128xbf16>
    %cst = arith.constant dense<0.000000e+00> : vector<8x128xf32>
    %5 = tpu.matmul %3, %4, %cst {dimension_numbers = #tpu.dot_dimension_numbers<[1], [0], [0], [1], [0, 0, 1, 1], [], []>} : vector<8x1152xbf16>, vector<1152x128xbf16>, vector<8x128xf32> -> vector<8x128xf32>
    %c0_4 = arith.constant 0 : index
    %c0_5 = arith.constant 0 : index
    %6 = vector.load %arg3[%c0_4, %c0_5] : memref<8x128xf32, #tpu.memory_space<vmem>>, vector<8x128xf32>
    tpu.vector_store %arg3[%c0_4, %c0_5], %5 {strides = array<i32>} : memref<8x128xf32, #tpu.memory_space<vmem>>, vector<8x128xf32>,
    %c0_6 = arith.constant 0 : index
    %c0_7 = arith.constant 0 : index
    %7 = vector.load %arg4[%c0_6, %c0_7] : memref<1x128xf32, #tpu.memory_space<vmem>>, vector<1x128xf32>
    %cst_8 = arith.constant dense<0.000000e+00> : vector<128xf32>
    %8 = vector.multi_reduction <add>, %5, %cst_8 [0] : vector<8x128xf32> to vector<128xf32>
    %9 = vector.shape_cast %8 : vector<128xf32> to vector<1x128xf32>
    %10 = arith.addf %7, %9 : vector<1x128xf32>
    %c0_9 = arith.constant 0 : index
    %c0_10 = arith.constant 0 : index
    %11 = vector.load %arg4[%c0_9, %c0_10] : memref<1x128xf32, #tpu.memory_space<vmem>>, vector<1x128xf32>
    tpu.vector_store %arg4[%c0_9, %c0_10], %10 {strides = array<i32>} : memref<1x128xf32, #tpu.memory_space<vmem>>, vector<1x128xf32>,
    %c0_11 = arith.constant 0 : index
    %c0_12 = arith.constant 0 : index
    %12 = vector.load %arg5[%c0_11, %c0_12] : memref<1x128xf32, #tpu.memory_space<vmem>>, vector<1x128xf32>
    %13 = arith.mulf %5, %5 : vector<8x128xf32>
    %cst_13 = arith.constant dense<0.000000e+00> : vector<128xf32>
    %14 = vector.multi_reduction <add>, %13, %cst_13 [0] : vector<8x128xf32> to vector<128xf32>
    %15 = vector.shape_cast %14 : vector<128xf32> to vector<1x128xf32>
    %16 = arith.addf %12, %15 : vector<1x128xf32>
    %c0_14 = arith.constant 0 : index
    %c0_15 = arith.constant 0 : index
    %17 = vector.load %arg5[%c0_14, %c0_15] : memref<1x128xf32, #tpu.memory_space<vmem>>, vector<1x128xf32>
    tpu.vector_store %arg5[%c0_14, %c0_15], %16 {strides = array<i32>} : memref<1x128xf32, #tpu.memory_space<vmem>>, vector<1x128xf32>,
    return
  }
  func.func @transform_0(%arg0: i32) -> (i32, i32) {
    %c0_i32 = arith.constant 0 : i32
    %c0_i32_0 = arith.constant 0 : i32
    return %arg0, %c0_i32 : i32, i32
  }
  func.func @transform_1(%arg0: i32) -> (i32, i32) {
    %c0_i32 = arith.constant 0 : i32
    %c0_i32_0 = arith.constant 0 : i32
    %c0_i32_1 = arith.constant 0 : i32
    return %c0_i32, %c0_i32_0 : i32, i32
  }
  func.func @transform_2(%arg0: i32) -> (i32, i32) {
    %c0_i32 = arith.constant 0 : i32
    %c0_i32_0 = arith.constant 0 : i32
    return %arg0, %c0_i32 : i32, i32
  }
  func.func @transform_3(%arg0: i32) -> (i32, i32) {
    %c0_i32 = arith.constant 0 : i32
    %c0_i32_0 = arith.constant 0 : i32
    %c0_i32_1 = arith.constant 0 : i32
    return %c0_i32, %c0_i32_0 : i32, i32
  }
  func.func @transform_4(%arg0: i32) -> (i32, i32) {
    %c0_i32 = arith.constant 0 : i32
    %c0_i32_0 = arith.constant 0 : i32
    %c0_i32_1 = arith.constant 0 : i32
    return %c0_i32, %c0_i32_0 : i32, i32
  }
}

module attributes {stable_mosaic.version = 11 : i64} {
  func.func @kernel(%arg0: i32, %arg1: memref<8x128xf32, #tpu.memory_space<vmem>>, %arg2: memref<1x128xf32, #tpu.memory_space<vmem>>, %arg3: memref<1x128xf32, #tpu.memory_space<vmem>>, %arg4: memref<8x128xf32, #tpu.memory_space<vmem>>, %arg5: memref<1x128xf32, #tpu.memory_space<vmem>>, %arg6: memref<1x128xf32, #tpu.memory_space<vmem>>, %arg7: memref<8x128xbf16, #tpu.memory_space<vmem>>) attributes {dimension_semantics = [#tpu.dimension_semantics<parallel>], iteration_bounds = array<i64: 1>, scalar_prefetch = 0 : i64, scratch_operands = 0 : i64, tpu.core_type = #tpu.core_type<tc>, window_params = [{transform_indices = @transform_0, window_bounds = array<i64: 8, 128>}, {pipeline_mode = #tpu.pipeline_mode<synchronous>, transform_indices = @transform_1, window_bounds = array<i64: 1, 128>}, {pipeline_mode = #tpu.pipeline_mode<synchronous>, transform_indices = @transform_2, window_bounds = array<i64: 1, 128>}, {transform_indices = @transform_3, window_bounds = array<i64: 8, 128>}, {pipeline_mode = #tpu.pipeline_mode<synchronous>, transform_indices = @transform_4, window_bounds = array<i64: 1, 128>}, {pipeline_mode = #tpu.pipeline_mode<synchronous>, transform_indices = @transform_5, window_bounds = array<i64: 1, 128>}, {transform_indices = @transform_6, window_bounds = array<i64: 8, 128>}]} {
    %c0 = arith.constant 0 : index
    %c0_0 = arith.constant 0 : index
    %0 = vector.load %arg1[%c0, %c0_0] : memref<8x128xf32, #tpu.memory_space<vmem>>, vector<8x128xf32>
    %c0_1 = arith.constant 0 : index
    %c0_2 = arith.constant 0 : index
    %1 = vector.load %arg2[%c0_1, %c0_2] : memref<1x128xf32, #tpu.memory_space<vmem>>, vector<1x128xf32>
    %c0_3 = arith.constant 0 : index
    %c0_4 = arith.constant 0 : index
    %2 = vector.load %arg3[%c0_3, %c0_4] : memref<1x128xf32, #tpu.memory_space<vmem>>, vector<1x128xf32>
    %cst = arith.constant 1.250000e-01 : f32
    %3 = vector.broadcast %cst : f32 to vector<1x128xf32>
    %4 = arith.mulf %1, %3 : vector<1x128xf32>
    %cst_5 = arith.constant 1.250000e-01 : f32
    %5 = vector.broadcast %cst_5 : f32 to vector<1x128xf32>
    %6 = arith.mulf %2, %5 : vector<1x128xf32>
    %7 = arith.mulf %4, %4 : vector<1x128xf32>
    %8 = arith.subf %6, %7 : vector<1x128xf32>
    %9 = vector.broadcast %4 : vector<1x128xf32> to vector<8x128xf32>
    %10 = arith.subf %0, %9 : vector<8x128xf32>
    %cst_6 = arith.constant 9.99999974E-6 : f32
    %11 = vector.broadcast %cst_6 : f32 to vector<1x128xf32>
    %12 = arith.addf %8, %11 : vector<1x128xf32>
    %13 = math.rsqrt %12 : vector<1x128xf32>
    %14 = vector.broadcast %13 : vector<1x128xf32> to vector<8x128xf32>
    %15 = arith.mulf %10, %14 : vector<8x128xf32>
    %c0_7 = arith.constant 0 : index
    %c0_8 = arith.constant 0 : index
    %16 = vector.load %arg4[%c0_7, %c0_8] : memref<8x128xf32, #tpu.memory_space<vmem>>, vector<8x128xf32>
    %c0_9 = arith.constant 0 : index
    %c0_10 = arith.constant 0 : index
    %17 = vector.load %arg5[%c0_9, %c0_10] : memref<1x128xf32, #tpu.memory_space<vmem>>, vector<1x128xf32>
    %c0_11 = arith.constant 0 : index
    %c0_12 = arith.constant 0 : index
    %18 = vector.load %arg6[%c0_11, %c0_12] : memref<1x128xf32, #tpu.memory_space<vmem>>, vector<1x128xf32>
    %cst_13 = arith.constant 1.250000e-01 : f32
    %19 = vector.broadcast %cst_13 : f32 to vector<1x128xf32>
    %20 = arith.mulf %17, %19 : vector<1x128xf32>
    %cst_14 = arith.constant 1.250000e-01 : f32
    %21 = vector.broadcast %cst_14 : f32 to vector<1x128xf32>
    %22 = arith.mulf %18, %21 : vector<1x128xf32>
    %23 = arith.mulf %20, %20 : vector<1x128xf32>
    %24 = arith.subf %22, %23 : vector<1x128xf32>
    %25 = vector.broadcast %20 : vector<1x128xf32> to vector<8x128xf32>
    %26 = arith.subf %16, %25 : vector<8x128xf32>
    %cst_15 = arith.constant 9.99999974E-6 : f32
    %27 = vector.broadcast %cst_15 : f32 to vector<1x128xf32>
    %28 = arith.addf %24, %27 : vector<1x128xf32>
    %29 = math.rsqrt %28 : vector<1x128xf32>
    %30 = vector.broadcast %29 : vector<1x128xf32> to vector<8x128xf32>
    %31 = arith.mulf %26, %30 : vector<8x128xf32>
    %32 = arith.addf %15, %31 : vector<8x128xf32>
    %cst_16 = arith.constant 0.000000e+00 : f32
    %33 = vector.broadcast %cst_16 : f32 to vector<8x128xf32>
    %34 = arith.maximumf %32, %33 : vector<8x128xf32>
    %35 = arith.truncf %34 : vector<8x128xf32> to vector<8x128xbf16>
    %c0_17 = arith.constant 0 : index
    %c0_18 = arith.constant 0 : index
    %36 = vector.load %arg7[%c0_17, %c0_18] : memref<8x128xbf16, #tpu.memory_space<vmem>>, vector<8x128xbf16>
    tpu.vector_store %arg7[%c0_17, %c0_18], %35 {strides = array<i32>} : memref<8x128xbf16, #tpu.memory_space<vmem>>, vector<8x128xbf16>,
    return
  }
  func.func @transform_0(%arg0: i32) -> (i32, i32) {
    %c0_i32 = arith.constant 0 : i32
    %c0_i32_0 = arith.constant 0 : i32
    return %arg0, %c0_i32 : i32, i32
  }
  func.func @transform_1(%arg0: i32) -> (i32, i32) {
    %c0_i32 = arith.constant 0 : i32
    %c0_i32_0 = arith.constant 0 : i32
    %c0_i32_1 = arith.constant 0 : i32
    return %c0_i32, %c0_i32_0 : i32, i32
  }
  func.func @transform_2(%arg0: i32) -> (i32, i32) {
    %c0_i32 = arith.constant 0 : i32
    %c0_i32_0 = arith.constant 0 : i32
    %c0_i32_1 = arith.constant 0 : i32
    return %c0_i32, %c0_i32_0 : i32, i32
  }
  func.func @transform_3(%arg0: i32) -> (i32, i32) {
    %c0_i32 = arith.constant 0 : i32
    %c0_i32_0 = arith.constant 0 : i32
    return %arg0, %c0_i32 : i32, i32
  }
  func.func @transform_4(%arg0: i32) -> (i32, i32) {
    %c0_i32 = arith.constant 0 : i32
    %c0_i32_0 = arith.constant 0 : i32
    %c0_i32_1 = arith.constant 0 : i32
    return %c0_i32, %c0_i32_0 : i32, i32
  }
  func.func @transform_5(%arg0: i32) -> (i32, i32) {
    %c0_i32 = arith.constant 0 : i32
    %c0_i32_0 = arith.constant 0 : i32
    %c0_i32_1 = arith.constant 0 : i32
    return %c0_i32, %c0_i32_0 : i32, i32
  }
  func.func @transform_6(%arg0: i32) -> (i32, i32) {
    %c0_i32 = arith.constant 0 : i32
    %c0_i32_0 = arith.constant 0 : i32
    return %arg0, %c0_i32 : i32, i32
  }
}

</mosaic_0001>

<llo_original>
// kernel: resnet_encoder_forward.19
$region0: #{resnet_encoder_forward.19}
  #allocation0 [shape = 'u32[]', space=smem, size = 0x4, offset = 0x4, fixed_abs, tag = 'smem constant byte address 0x4 - core index']
  #allocation1 [shape = 'u32[72,128]{1,0:T(1,128)}', space=vmem, size = 0x9000, scoped, tag = 'internal scratch']
  %s0 = inlined_call_operand.vmem [shape: f32[512,128], index: 0, kind: input, shape index: {}]
  %s1 = inlined_call_operand.vmem [shape: f32[1,128], index: 1, kind: input, shape index: {}]
  %s2 = inlined_call_operand.vmem [shape: f32[1,128], index: 2, kind: input, shape index: {}]
  %s3 = inlined_call_operand.vmem [shape: bf16[512,128], index: 3, kind: output, shape index: {}]
  %s4 = sld [smem:[#allocation0]]
  $region22: #{resnet_encoder_forward.19} parent=0
    _
  %s6 = ssub.s32 1, %s4
  %s7 = scalar_select 0, %s6, %s4
  // Predicated region
  $region2: #{resnet_encoder_forward.19} parent=0 // pred_check
    _
  $region3: #{resnet_encoder_forward.19} parent=0 // pred_check_branch
    %9 = sbr.rel (0) target = $region5
  $region4: #{resnet_encoder_forward.19} parent=0 // pred_region
    _
  $region5: #{resnet_encoder_forward.19} parent=0 // pred_fallthru
    _
  // Predicated region
  $region6: #{resnet_encoder_forward.19} parent=0 // pred_check
    _
  $region7: #{resnet_encoder_forward.19} parent=0 // pred_check_branch
    %11 = sbr.rel (0) target = $region9
  $region8: #{resnet_encoder_forward.19} parent=0 // pred_region
    _
  $region9: #{resnet_encoder_forward.19} parent=0 // pred_fallthru
    _
  // Predicated region
  $region10: #{resnet_encoder_forward.19} parent=0 // pred_check
    _
  $region11: #{resnet_encoder_forward.19} parent=0 // pred_check_branch
    %13 = sbr.rel (0) target = $region13
  $region12: #{resnet_encoder_forward.19} parent=0 // pred_region
    _
  $region13: #{resnet_encoder_forward.19} parent=0 // pred_fallthru
    _
  %v14 = vld [vmem:[%s0] sm:$0xff]
  %v15 = vld [vmem:[%s0 + $0x8] sm:$0xff]
  %v16 = vld [vmem:[%s0 + $0x10] sm:$0xff]
  %v17 = vld [vmem:[%s0 + $0x18] sm:$0xff]
  %v18 = vld [vmem:[%s0 + $0x20] sm:$0xff]
  %v19 = vld [vmem:[%s0 + $0x28] sm:$0xff]
  %v20 = vld [vmem:[%s0 + $0x30] sm:$0xff]
  %v21 = vld [vmem:[%s0 + $0x38] sm:$0xff]
  %v22 = vld [vmem:[%s0 + $0x40] sm:$0xff]
  %v23 = vld [vmem:[%s0 + $0x48] sm:$0xff]
  %v24 = vld [vmem:[%s0 + $0x50] sm:$0xff]
  %v25 = vld [vmem:[%s0 + $0x58] sm:$0xff]
  %v26 = vld [vmem:[%s0 + $0x60] sm:$0xff]
  %v27 = vld [vmem:[%s0 + $0x68] sm:$0xff]
  %v28 = vld [vmem:[%s0 + $0x70] sm:$0xff]
  %v29 = vld [vmem:[%s0 + $0x78] sm:$0xff]
  %v30 = vld [vmem:[%s0 + $0x80] sm:$0xff]
  %v31 = vld [vmem:[%s0 + $0x88] sm:$0xff]
  %v32 = vld [vmem:[%s0 + $0x90] sm:$0xff]
  %v33 = vld [vmem:[%s0 + $0x98] sm:$0xff]
  %v34 = vld [vmem:[%s0 + $0xa0] sm:$0xff]
  %v35 = vld [vmem:[%s0 + $0xa8] sm:$0xff]
  %v36 = vld [vmem:[%s0 + $0xb0] sm:$0xff]
  %v37 = vld [vmem:[%s0 + $0xb8] sm:$0xff]
  %v38 = vld [vmem:[%s0 + $0xc0] sm:$0xff]
  %v39 = vld [vmem:[%s0 + $0xc8] sm:$0xff]
  %v40 = vld [vmem:[%s0 + $0xd0] sm:$0xff]
  %v41 = vld [vmem:[%s0 + $0xd8] sm:$0xff]
  %v42 = vld [vmem:[%s0 + $0xe0] sm:$0xff]
  %v43 = vld [vmem:[%s0 + $0xe8] sm:$0xff]
  %v44 = vld [vmem:[%s0 + $0xf0] sm:$0xff]
  %v45 = vld [vmem:[%s0 + $0xf8] sm:$0xff]
  %v46 = vld [vmem:[%s0 + $0x100] sm:$0xff]
  %v47 = vld [vmem:[%s0 + $0x108] sm:$0xff]
  %v48 = vld [vmem:[%s0 + $0x110] sm:$0xff]
  %v49 = vld [vmem:[%s0 + $0x118] sm:$0xff]
  %v50 = vld [vmem:[%s0 + $0x120] sm:$0xff]
  %v51 = vld [vmem:[%s0 + $0x128] sm:$0xff]
  %v52 = vld [vmem:[%s0 + $0x130] sm:$0xff]
  %v53 = vld [vmem:[%s0 + $0x138] sm:$0xff]
  %v54 = vld [vmem:[%s0 + $0x140] sm:$0xff]
  %v55 = vld [vmem:[%s0 + $0x148] sm:$0xff]
  %v56 = vld [vmem:[%s0 + $0x150] sm:$0xff]
  %v57 = vld [vmem:[%s0 + $0x158] sm:$0xff]
  %v58 = vld [vmem:[%s0 + $0x160] sm:$0xff]
  %v59 = vld [vmem:[%s0 + $0x168] sm:$0xff]
  %v60 = vld [vmem:[%s0 + $0x170] sm:$0xff]
  %v61 = vld [vmem:[%s0 + $0x178] sm:$0xff]
  %v62 = vld [vmem:[%s0 + $0x180] sm:$0xff]
  %v63 = vld [vmem:[%s0 + $0x188] sm:$0xff]
  %v64 = vld [vmem:[%s0 + $0x190] sm:$0xff]
  %v65 = vld [vmem:[%s0 + $0x198] sm:$0xff]
  %v66 = vld [vmem:[%s0 + $0x1a0] sm:$0xff]
  %v67 = vld [vmem:[%s0 + $0x1a8] sm:$0xff]
  %v68 = vld [vmem:[%s0 + $0x1b0] sm:$0xff]
  %v69 = vld [vmem:[%s0 + $0x1b8] sm:$0xff]
  %v70 = vld [vmem:[%s0 + $0x1c0] sm:$0xff]
  %v71 = vld [vmem:[%s0 + $0x1c8] sm:$0xff]
  %v72 = vld [vmem:[%s0 + $0x1d0] sm:$0xff]
  %v73 = vld [vmem:[%s0 + $0x1d8] sm:$0xff]
  %v74 = vld [vmem:[%s0 + $0x1e0] sm:$0xff]
  %v75 = vld [vmem:[%s0 + $0x1e8] sm:$0xff]
  %v76 = vld [vmem:[%s0 + $0x1f0] sm:$0xff]
  %v77 = vld [vmem:[%s0 + $0x1f8] sm:$0xff]
  %v78 = vld [vmem:[%s1] sm:$0x1]
  %v79 = vld [vmem:[%s2] sm:$0x1]
  %v80 = vmul.f32 %v78, 0.001953125
  %v81 = vmul.f32 %v79, 0.001953125
  %v82 = vmul.f32 %v80, %v80
  %v83 = vsub.f32 %v81, %v82
  %v85 = vperm.slane %v80, 0
  %v87 = vsub.f32 %v14, %v85
  %v88 = vsub.f32 %v15, %v85
  %v89 = vsub.f32 %v16, %v85
  %v90 = vsub.f32 %v17, %v85
  %v91 = vsub.f32 %v18, %v85
  %v92 = vsub.f32 %v19, %v85
  %v93 = vsub.f32 %v20, %v85
  %v94 = vsub.f32 %v21, %v85
  %v95 = vsub.f32 %v22, %v85
  %v96 = vsub.f32 %v23, %v85
  %v97 = vsub.f32 %v24, %v85
  %v98 = vsub.f32 %v25, %v85
  %v99 = vsub.f32 %v26, %v85
  %v100 = vsub.f32 %v27, %v85
  %v101 = vsub.f32 %v28, %v85
  %v102 = vsub.f32 %v29, %v85
  %v103 = vsub.f32 %v30, %v85
  %v104 = vsub.f32 %v31, %v85
  %v105 = vsub.f32 %v32, %v85
  %v106 = vsub.f32 %v33, %v85
  %v107 = vsub.f32 %v34, %v85
  %v108 = vsub.f32 %v35, %v85
  %v109 = vsub.f32 %v36, %v85
  %v110 = vsub.f32 %v37, %v85
  %v111 = vsub.f32 %v38, %v85
  %v112 = vsub.f32 %v39, %v85
  %v113 = vsub.f32 %v40, %v85
  %v114 = vsub.f32 %v41, %v85
  %v115 = vsub.f32 %v42, %v85
  %v116 = vsub.f32 %v43, %v85
  %v117 = vsub.f32 %v44, %v85
  %v118 = vsub.f32 %v45, %v85
  %v119 = vsub.f32 %v46, %v85
  %v120 = vsub.f32 %v47, %v85
  %v121 = vsub.f32 %v48, %v85
  %v122 = vsub.f32 %v49, %v85
  %v123 = vsub.f32 %v50, %v85
  %v124 = vsub.f32 %v51, %v85
  %v125 = vsub.f32 %v52, %v85
  %v126 = vsub.f32 %v53, %v85
  %v127 = vsub.f32 %v54, %v85
  %v128 = vsub.f32 %v55, %v85
  %v129 = vsub.f32 %v56, %v85
  %v130 = vsub.f32 %v57, %v85
  %v131 = vsub.f32 %v58, %v85
  %v132 = vsub.f32 %v59, %v85
  %v133 = vsub.f32 %v60, %v85
  %v134 = vsub.f32 %v61, %v85
  %v135 = vsub.f32 %v62, %v85
  %v136 = vsub.f32 %v63, %v85
  %v137 = vsub.f32 %v64, %v85
  %v138 = vsub.f32 %v65, %v85
  %v139 = vsub.f32 %v66, %v85
  %v140 = vsub.f32 %v67, %v85
  %v141 = vsub.f32 %v68, %v85
  %v142 = vsub.f32 %v69, %v85
  %v143 = vsub.f32 %v70, %v85
  %v144 = vsub.f32 %v71, %v85
  %v145 = vsub.f32 %v72, %v85
  %v146 = vsub.f32 %v73, %v85
  %v147 = vsub.f32 %v74, %v85
  %v148 = vsub.f32 %v75, %v85
  %v149 = vsub.f32 %v76, %v85
  %v150 = vsub.f32 %v77, %v85
  %v151 = vadd.f32 %v83, 1e-05
  %v152 = vrsqrt.pop %v151
  %v153 = vmul.f32 %v152, %v151
  %v154 = vmul.f32 %v153, %v152
  %v155 = vmul.f32 0.5, %v154
  %v156 = vsub.f32 1.5, %v155
  %v157 = vmul.f32 %v152, %v156
  %vm158 = vweird.f32 %v151
  %vm159 = vweird.f32 %v152
  %vm160 = vmor %vm158, %vm159
  %v161 = vsel %vm160, %v152, %v157
  %v163 = vperm.slane %v161, 0
  %v165 = vmul.f32 %v87, %v163
  %v166 = vmul.f32 %v88, %v163
  %v167 = vmul.f32 %v89, %v163
  %v168 = vmul.f32 %v90, %v163
  %v169 = vmul.f32 %v91, %v163
  %v170 = vmul.f32 %v92, %v163
  %v171 = vmul.f32 %v93, %v163
  %v172 = vmul.f32 %v94, %v163
  %v173 = vmul.f32 %v95, %v163
  %v174 = vmul.f32 %v96, %v163
  %v175 = vmul.f32 %v97, %v163
  %v176 = vmul.f32 %v98, %v163
  %v177 = vmul.f32 %v99, %v163
  %v178 = vmul.f32 %v100, %v163
  %v179 = vmul.f32 %v101, %v163
  %v180 = vmul.f32 %v102, %v163
  %v181 = vmul.f32 %v103, %v163
  %v182 = vmul.f32 %v104, %v163
  %v183 = vmul.f32 %v105, %v163
  %v184 = vmul.f32 %v106, %v163
  %v185 = vmul.f32 %v107, %v163
  %v186 = vmul.f32 %v108, %v163
  %v187 = vmul.f32 %v109, %v163
  %v188 = vmul.f32 %v110, %v163
  %v189 = vmul.f32 %v111, %v163
  %v190 = vmul.f32 %v112, %v163
  %v191 = vmul.f32 %v113, %v163
  %v192 = vmul.f32 %v114, %v163
  %v193 = vmul.f32 %v115, %v163
  %v194 = vmul.f32 %v116, %v163
  %v195 = vmul.f32 %v117, %v163
  %v196 = vmul.f32 %v118, %v163
  %v197 = vmul.f32 %v119, %v163
  %v198 = vmul.f32 %v120, %v163
  %v199 = vmul.f32 %v121, %v163
  %v200 = vmul.f32 %v122, %v163
  %v201 = vmul.f32 %v123, %v163
  %v202 = vmul.f32 %v124, %v163
  %v203 = vmul.f32 %v125, %v163
  %v204 = vmul.f32 %v126, %v163
  %v205 = vmul.f32 %v127, %v163
  %v206 = vmul.f32 %v128, %v163
  %v207 = vmul.f32 %v129, %v163
  %v208 = vmul.f32 %v130, %v163
  %v209 = vmul.f32 %v131, %v163
  %v210 = vmul.f32 %v132, %v163
  %v211 = vmul.f32 %v133, %v163
  %v212 = vmul.f32 %v134, %v163
  %v213 = vmul.f32 %v135, %v163
  %v214 = vmul.f32 %v136, %v163
  %v215 = vmul.f32 %v137, %v163
  %v216 = vmul.f32 %v138, %v163
  %v217 = vmul.f32 %v139, %v163
  %v218 = vmul.f32 %v140, %v163
  %v219 = vmul.f32 %v141, %v163
  %v220 = vmul.f32 %v142, %v163
  %v221 = vmul.f32 %v143, %v163
  %v222 = vmul.f32 %v144, %v163
  %v223 = vmul.f32 %v145, %v163
  %v224 = vmul.f32 %v146, %v163
  %v225 = vmul.f32 %v147, %v163
  %v226 = vmul.f32 %v148, %v163
  %v227 = vmul.f32 %v149, %v163
  %v228 = vmul.f32 %v150, %v163
  %v229 = vmax.f32 %v165, 0.0
  %v230 = vmax.f32 %v166, 0.0
  %v231 = vmax.f32 %v167, 0.0
  %v232 = vmax.f32 %v168, 0.0
  %v233 = vmax.f32 %v169, 0.0
  %v234 = vmax.f32 %v170, 0.0
  %v235 = vmax.f32 %v171, 0.0
  %v236 = vmax.f32 %v172, 0.0
  %v237 = vmax.f32 %v173, 0.0
  %v238 = vmax.f32 %v174, 0.0
  %v239 = vmax.f32 %v175, 0.0
  %v240 = vmax.f32 %v176, 0.0
  %v241 = vmax.f32 %v177, 0.0
  %v242 = vmax.f32 %v178, 0.0
  %v243 = vmax.f32 %v179, 0.0
  %v244 = vmax.f32 %v180, 0.0
  %v245 = vmax.f32 %v181, 0.0
  %v246 = vmax.f32 %v182, 0.0
  %v247 = vmax.f32 %v183, 0.0
  %v248 = vmax.f32 %v184, 0.0
  %v249 = vmax.f32 %v185, 0.0
  %v250 = vmax.f32 %v186, 0.0
  %v251 = vmax.f32 %v187, 0.0
  %v252 = vmax.f32 %v188, 0.0
  %v253 = vmax.f32 %v189, 0.0
  %v254 = vmax.f32 %v190, 0.0
  %v255 = vmax.f32 %v191, 0.0
  %v256 = vmax.f32 %v192, 0.0
  %v257 = vmax.f32 %v193, 0.0
  %v258 = vmax.f32 %v194, 0.0
  %v259 = vmax.f32 %v195, 0.0
  %v260 = vmax.f32 %v196, 0.0
  %v261 = vmax.f32 %v197, 0.0
  %v262 = vmax.f32 %v198, 0.0
  %v263 = vmax.f32 %v199, 0.0
  %v264 = vmax.f32 %v200, 0.0
  %v265 = vmax.f32 %v201, 0.0
  %v266 = vmax.f32 %v202, 0.0
  %v267 = vmax.f32 %v203, 0.0
  %v268 = vmax.f32 %v204, 0.0
  %v269 = vmax.f32 %v205, 0.0
  %v270 = vmax.f32 %v206, 0.0
  %v271 = vmax.f32 %v207, 0.0
  %v272 = vmax.f32 %v208, 0.0
  %v273 = vmax.f32 %v209, 0.0
  %v274 = vmax.f32 %v210, 0.0
  %v275 = vmax.f32 %v211, 0.0
  %v276 = vmax.f32 %v212, 0.0
  %v277 = vmax.f32 %v213, 0.0
  %v278 = vmax.f32 %v214, 0.0
  %v279 = vmax.f32 %v215, 0.0
  %v280 = vmax.f32 %v216, 0.0
  %v281 = vmax.f32 %v217, 0.0
  %v282 = vmax.f32 %v218, 0.0
  %v283 = vmax.f32 %v219, 0.0
  %v284 = vmax.f32 %v220, 0.0
  %v285 = vmax.f32 %v221, 0.0
  %v286 = vmax.f32 %v222, 0.0
  %v287 = vmax.f32 %v223, 0.0
  %v288 = vmax.f32 %v224, 0.0
  %v289 = vmax.f32 %v225, 0.0
  %v290 = vmax.f32 %v226, 0.0
  %v291 = vmax.f32 %v227, 0.0
  %v292 = vmax.f32 %v228, 0.0
  %v293 = vpack.c.bf16 %v229, %v229
  %v294 = vpack.c.bf16 %v230, %v230
  %v295 = vpack.c.bf16 %v231, %v231
  %v296 = vpack.c.bf16 %v232, %v232
  %v297 = vpack.c.bf16 %v233, %v233
  %v298 = vpack.c.bf16 %v234, %v234
  %v299 = vpack.c.bf16 %v235, %v235
  %v300 = vpack.c.bf16 %v236, %v236
  %v301 = vpack.c.bf16 %v237, %v237
  %v302 = vpack.c.bf16 %v238, %v238
  %v303 = vpack.c.bf16 %v239, %v239
  %v304 = vpack.c.bf16 %v240, %v240
  %v305 = vpack.c.bf16 %v241, %v241
  %v306 = vpack.c.bf16 %v242, %v242
  %v307 = vpack.c.bf16 %v243, %v243
  %v308 = vpack.c.bf16 %v244, %v244
  %v309 = vpack.c.bf16 %v245, %v245
  %v310 = vpack.c.bf16 %v246, %v246
  %v311 = vpack.c.bf16 %v247, %v247
  %v312 = vpack.c.bf16 %v248, %v248
  %v313 = vpack.c.bf16 %v249, %v249
  %v314 = vpack.c.bf16 %v250, %v250
  %v315 = vpack.c.bf16 %v251, %v251
  %v316 = vpack.c.bf16 %v252, %v252
  %v317 = vpack.c.bf16 %v253, %v253
  %v318 = vpack.c.bf16 %v254, %v254
  %v319 = vpack.c.bf16 %v255, %v255
  %v320 = vpack.c.bf16 %v256, %v256
  %v321 = vpack.c.bf16 %v257, %v257
  %v322 = vpack.c.bf16 %v258, %v258
  %v323 = vpack.c.bf16 %v259, %v259
  %v324 = vpack.c.bf16 %v260, %v260
  %v325 = vpack.c.bf16 %v261, %v261
  %v326 = vpack.c.bf16 %v262, %v262
  %v327 = vpack.c.bf16 %v263, %v263
  %v328 = vpack.c.bf16 %v264, %v264
  %v329 = vpack.c.bf16 %v265, %v265
  %v330 = vpack.c.bf16 %v266, %v266
  %v331 = vpack.c.bf16 %v267, %v267
  %v332 = vpack.c.bf16 %v268, %v268
  %v333 = vpack.c.bf16 %v269, %v269
  %v334 = vpack.c.bf16 %v270, %v270
  %v335 = vpack.c.bf16 %v271, %v271
  %v336 = vpack.c.bf16 %v272, %v272
  %v337 = vpack.c.bf16 %v273, %v273
  %v338 = vpack.c.bf16 %v274, %v274
  %v339 = vpack.c.bf16 %v275, %v275
  %v340 = vpack.c.bf16 %v276, %v276
  %v341 = vpack.c.bf16 %v277, %v277
  %v342 = vpack.c.bf16 %v278, %v278
  %v343 = vpack.c.bf16 %v279, %v279
  %v344 = vpack.c.bf16 %v280, %v280
  %v345 = vpack.c.bf16 %v281, %v281
  %v346 = vpack.c.bf16 %v282, %v282
  %v347 = vpack.c.bf16 %v283, %v283
  %v348 = vpack.c.bf16 %v284, %v284
  %v349 = vpack.c.bf16 %v285, %v285
  %v350 = vpack.c.bf16 %v286, %v286
  %v351 = vpack.c.bf16 %v287, %v287
  %v352 = vpack.c.bf16 %v288, %v288
  %v353 = vpack.c.bf16 %v289, %v289
  %v354 = vpack.c.bf16 %v290, %v290
  %v355 = vpack.c.bf16 %v291, %v291
  %v356 = vpack.c.bf16 %v292, %v292
  %357 = vst [vmem:[%s3] sm:$0xf] %v293
  %358 = vst [vmem:[%s3 + $0x4] sm:$0xf] %v294
  %359 = vst [vmem:[%s3 + $0x8] sm:$0xf] %v295
  %360 = vst [vmem:[%s3 + $0xc] sm:$0xf] %v296
  %361 = vst [vmem:[%s3 + $0x10] sm:$0xf] %v297
  %362 = vst [vmem:[%s3 + $0x14] sm:$0xf] %v298
  %363 = vst [vmem:[%s3 + $0x18] sm:$0xf] %v299
  %364 = vst [vmem:[%s3 + $0x1c] sm:$0xf] %v300
  %365 = vst [vmem:[%s3 + $0x20] sm:$0xf] %v301
  %366 = vst [vmem:[%s3 + $0x24] sm:$0xf] %v302
  %367 = vst [vmem:[%s3 + $0x28] sm:$0xf] %v303
  %368 = vst [vmem:[%s3 + $0x2c] sm:$0xf] %v304
  %369 = vst [vmem:[%s3 + $0x30] sm:$0xf] %v305
  %370 = vst [vmem:[%s3 + $0x34] sm:$0xf] %v306
  %371 = vst [vmem:[%s3 + $0x38] sm:$0xf] %v307
  %372 = vst [vmem:[%s3 + $0x3c] sm:$0xf] %v308
  %373 = vst [vmem:[%s3 + $0x40] sm:$0xf] %v309
  %374 = vst [vmem:[%s3 + $0x44] sm:$0xf] %v310
  %375 = vst [vmem:[%s3 + $0x48] sm:$0xf] %v311
  %376 = vst [vmem:[%s3 + $0x4c] sm:$0xf] %v312
  %377 = vst [vmem:[%s3 + $0x50] sm:$0xf] %v313
  %378 = vst [vmem:[%s3 + $0x54] sm:$0xf] %v314
  %379 = vst [vmem:[%s3 + $0x58] sm:$0xf] %v315
  %380 = vst [vmem:[%s3 + $0x5c] sm:$0xf] %v316
  %381 = vst [vmem:[%s3 + $0x60] sm:$0xf] %v317
  %382 = vst [vmem:[%s3 + $0x64] sm:$0xf] %v318
  %383 = vst [vmem:[%s3 + $0x68] sm:$0xf] %v319
  %384 = vst [vmem:[%s3 + $0x6c] sm:$0xf] %v320
  %385 = vst [vmem:[%s3 + $0x70] sm:$0xf] %v321
  %386 = vst [vmem:[%s3 + $0x74] sm:$0xf] %v322
  %387 = vst [vmem:[%s3 + $0x78] sm:$0xf] %v323
  %388 = vst [vmem:[%s3 + $0x7c] sm:$0xf] %v324
  %389 = vst [vmem:[%s3 + $0x80] sm:$0xf] %v325
  %390 = vst [vmem:[%s3 + $0x84] sm:$0xf] %v326
  %391 = vst [vmem:[%s3 + $0x88] sm:$0xf] %v327
  %392 = vst [vmem:[%s3 + $0x8c] sm:$0xf] %v328
  %393 = vst [vmem:[%s3 + $0x90] sm:$0xf] %v329
  %394 = vst [vmem:[%s3 + $0x94] sm:$0xf] %v330
  %395 = vst [vmem:[%s3 + $0x98] sm:$0xf] %v331
  %396 = vst [vmem:[%s3 + $0x9c] sm:$0xf] %v332
  %397 = vst [vmem:[%s3 + $0xa0] sm:$0xf] %v333
  %398 = vst [vmem:[%s3 + $0xa4] sm:$0xf] %v334
  %399 = vst [vmem:[%s3 + $0xa8] sm:$0xf] %v335
  %400 = vst [vmem:[%s3 + $0xac] sm:$0xf] %v336
  %401 = vst [vmem:[%s3 + $0xb0] sm:$0xf] %v337
  %402 = vst [vmem:[%s3 + $0xb4] sm:$0xf] %v338
  %403 = vst [vmem:[%s3 + $0xb8] sm:$0xf] %v339
  %404 = vst [vmem:[%s3 + $0xbc] sm:$0xf] %v340
  %405 = vst [vmem:[%s3 + $0xc0] sm:$0xf] %v341
  %406 = vst [vmem:[%s3 + $0xc4] sm:$0xf] %v342
  %407 = vst [vmem:[%s3 + $0xc8] sm:$0xf] %v343
  %408 = vst [vmem:[%s3 + $0xcc] sm:$0xf] %v344
  %409 = vst [vmem:[%s3 + $0xd0] sm:$0xf] %v345
  %410 = vst [vmem:[%s3 + $0xd4] sm:$0xf] %v346
  %411 = vst [vmem:[%s3 + $0xd8] sm:$0xf] %v347
  %412 = vst [vmem:[%s3 + $0xdc] sm:$0xf] %v348
  %413 = vst [vmem:[%s3 + $0xe0] sm:$0xf] %v349
  %414 = vst [vmem:[%s3 + $0xe4] sm:$0xf] %v350
  %415 = vst [vmem:[%s3 + $0xe8] sm:$0xf] %v351
  %416 = vst [vmem:[%s3 + $0xec] sm:$0xf] %v352
  %417 = vst [vmem:[%s3 + $0xf0] sm:$0xf] %v353
  %418 = vst [vmem:[%s3 + $0xf4] sm:$0xf] %v354
  %419 = vst [vmem:[%s3 + $0xf8] sm:$0xf] %v355
  %420 = vst [vmem:[%s3 + $0xfc] sm:$0xf] %v356
  // Predicated region
  $region14: #{resnet_encoder_forward.19} parent=0 // pred_check
    _
  $region15: #{resnet_encoder_forward.19} parent=0 // pred_check_branch
    %422 = sbr.rel (0) target = $region17
  $region16: #{resnet_encoder_forward.19} parent=0 // pred_region
    _
  $region17: #{resnet_encoder_forward.19} parent=0 // pred_fallthru
    _
  // Predicated region
  $region18: #{resnet_encoder_forward.19} parent=0 // pred_check
    _
  $region19: #{resnet_encoder_forward.19} parent=0 // pred_check_branch
    %424 = sbr.rel (0) target = $region21
  $region20: #{resnet_encoder_forward.19} parent=0 // pred_region
    _
  $region21: #{resnet_encoder_forward.19} parent=0 // pred_fallthru
    _

// kernel: resnet_encoder_forward.18
$region0: #{resnet_encoder_forward.18}
  #allocation0 [shape = 'u32[]', space=smem, size = 0x4, offset = 0x4, fixed_abs, tag = 'smem constant byte address 0x4 - core index']
  #allocation1 [shape = 'u32[72,128]{1,0:T(1,128)}', space=vmem, size = 0x9000, scoped, tag = 'internal scratch']
  %s0 = inlined_call_operand.vmem [shape: bf16[512,128], index: 0, kind: input, shape index: {}]
  %s1 = inlined_call_operand.vmem [shape: bf16[128,128], index: 1, kind: input, shape index: {}]
  %s2 = inlined_call_operand.vmem [shape: f32[512,128], index: 2, kind: output, shape index: {0}]
  %s3 = inlined_call_operand.vmem [shape: f32[1,128], index: 3, kind: output, shape index: {1}]
  %s4 = inlined_call_operand.vmem [shape: f32[1,128], index: 4, kind: output, shape index: {2}]
  %5 = xla_tuple %s2, %s3, %s4
  %s6 = sld [smem:[#allocation0]]
  $region38: #{resnet_encoder_forward.18} parent=0
    _
  %s8 = ssub.s32 1, %s6
  %s9 = scalar_select 0, %s8, %s6
  // Predicated region
  $region2: #{resnet_encoder_forward.18} parent=0 // pred_check
    _
  $region3: #{resnet_encoder_forward.18} parent=0 // pred_check_branch
    %11 = sbr.rel (0) target = $region5
  $region4: #{resnet_encoder_forward.18} parent=0 // pred_region
    _
  $region5: #{resnet_encoder_forward.18} parent=0 // pred_fallthru
    _
  // Predicated region
  $region6: #{resnet_encoder_forward.18} parent=0 // pred_check
    _
  $region7: #{resnet_encoder_forward.18} parent=0 // pred_check_branch
    %13 = sbr.rel (0) target = $region9
  $region8: #{resnet_encoder_forward.18} parent=0 // pred_region
    _
  $region9: #{resnet_encoder_forward.18} parent=0 // pred_fallthru
    _
  %p14 = scmp.eq.s32.totalorder 0, 0
  // Predicated region
  $region10: #{resnet_encoder_forward.18} parent=0 // pred_check
    %p15 = pneg %p14
  $region11: #{resnet_encoder_forward.18} parent=0 // pred_check_branch
    %17 = sbr.rel (%p15) target = $region13
  $region12: #{resnet_encoder_forward.18} parent=0 // pred_region
    %18 = vst [vmem:[%s3] sm:$0x1] 0.0
    %19 = vst [vmem:[%s4] sm:$0x1] 0.0
  $region13: #{resnet_encoder_forward.18} parent=0 // pred_fallthru
    _
  %v20 = vld [vmem:[%s0] sm:$0xf]
  %v21 = vld [vmem:[%s0 + $0x4] sm:$0xf]
  %v22 = vld [vmem:[%s0 + $0x8] sm:$0xf]
  %v23 = vld [vmem:[%s0 + $0xc] sm:$0xf]
  %v24 = vld [vmem:[%s0 + $0x10] sm:$0xf]
  %v25 = vld [vmem:[%s0 + $0x14] sm:$0xf]
  %v26 = vld [vmem:[%s0 + $0x18] sm:$0xf]
  %v27 = vld [vmem:[%s0 + $0x1c] sm:$0xf]
  %v28 = vld [vmem:[%s0 + $0x20] sm:$0xf]
  %v29 = vld [vmem:[%s0 + $0x24] sm:$0xf]
  %v30 = vld [vmem:[%s0 + $0x28] sm:$0xf]
  %v31 = vld [vmem:[%s0 + $0x2c] sm:$0xf]
  %v32 = vld [vmem:[%s0 + $0x30] sm:$0xf]
  %v33 = vld [vmem:[%s0 + $0x34] sm:$0xf]
  %v34 = vld [vmem:[%s0 + $0x38] sm:$0xf]
  %v35 = vld [vmem:[%s0 + $0x3c] sm:$0xf]
  %v36 = vld [vmem:[%s0 + $0x40] sm:$0xf]
  %v37 = vld [vmem:[%s0 + $0x44] sm:$0xf]
  %v38 = vld [vmem:[%s0 + $0x48] sm:$0xf]
  %v39 = vld [vmem:[%s0 + $0x4c] sm:$0xf]
  %v40 = vld [vmem:[%s0 + $0x50] sm:$0xf]
  %v41 = vld [vmem:[%s0 + $0x54] sm:$0xf]
  %v42 = vld [vmem:[%s0 + $0x58] sm:$0xf]
  %v43 = vld [vmem:[%s0 + $0x5c] sm:$0xf]
  %v44 = vld [vmem:[%s0 + $0x60] sm:$0xf]
  %v45 = vld [vmem:[%s0 + $0x64] sm:$0xf]
  %v46 = vld [vmem:[%s0 + $0x68] sm:$0xf]
  %v47 = vld [vmem:[%s0 + $0x6c] sm:$0xf]
  %v48 = vld [vmem:[%s0 + $0x70] sm:$0xf]
  %v49 = vld [vmem:[%s0 + $0x74] sm:$0xf]
  %v50 = vld [vmem:[%s0 + $0x78] sm:$0xf]
  %v51 = vld [vmem:[%s0 + $0x7c] sm:$0xf]
  %v52 = vld [vmem:[%s0 + $0x80] sm:$0xf]
  %v53 = vld [vmem:[%s0 + $0x84] sm:$0xf]
  %v54 = vld [vmem:[%s0 + $0x88] sm:$0xf]
  %v55 = vld [vmem:[%s0 + $0x8c] sm:$0xf]
  %v56 = vld [vmem:[%s0 + $0x90] sm:$0xf]
  %v57 = vld [vmem:[%s0 + $0x94] sm:$0xf]
  %v58 = vld [vmem:[%s0 + $0x98] sm:$0xf]
  %v59 = vld [vmem:[%s0 + $0x9c] sm:$0xf]
  %v60 = vld [vmem:[%s0 + $0xa0] sm:$0xf]
  %v61 = vld [vmem:[%s0 + $0xa4] sm:$0xf]
  %v62 = vld [vmem:[%s0 + $0xa8] sm:$0xf]
  %v63 = vld [vmem:[%s0 + $0xac] sm:$0xf]
  %v64 = vld [vmem:[%s0 + $0xb0] sm:$0xf]
  %v65 = vld [vmem:[%s0 + $0xb4] sm:$0xf]
  %v66 = vld [vmem:[%s0 + $0xb8] sm:$0xf]
  %v67 = vld [vmem:[%s0 + $0xbc] sm:$0xf]
  %v68 = vld [vmem:[%s0 + $0xc0] sm:$0xf]
  %v69 = vld [vmem:[%s0 + $0xc4] sm:$0xf]
  %v70 = vld [vmem:[%s0 + $0xc8] sm:$0xf]
  %v71 = vld [vmem:[%s0 + $0xcc] sm:$0xf]
  %v72 = vld [vmem:[%s0 + $0xd0] sm:$0xf]
  %v73 = vld [vmem:[%s0 + $0xd4] sm:$0xf]
  %v74 = vld [vmem:[%s0 + $0xd8] sm:$0xf]
  %v75 = vld [vmem:[%s0 + $0xdc] sm:$0xf]
  %v76 = vld [vmem:[%s0 + $0xe0] sm:$0xf]
  %v77 = vld [vmem:[%s0 + $0xe4] sm:$0xf]
  %v78 = vld [vmem:[%s0 + $0xe8] sm:$0xf]
  %v79 = vld [vmem:[%s0 + $0xec] sm:$0xf]
  %v80 = vld [vmem:[%s0 + $0xf0] sm:$0xf]
  %v81 = vld [vmem:[%s0 + $0xf4] sm:$0xf]
  %v82 = vld [vmem:[%s0 + $0xf8] sm:$0xf]
  %v83 = vld [vmem:[%s0 + $0xfc] sm:$0xf]
  %v84 = vld [vmem:[%s1] sm:$0xf]
  %v85 = vld [vmem:[%s1 + $0x4] sm:$0xf]
  %v86 = vld [vmem:[%s1 + $0x8] sm:$0xf]
  %v87 = vld [vmem:[%s1 + $0xc] sm:$0xf]
  %v88 = vld [vmem:[%s1 + $0x10] sm:$0xf]
  %v89 = vld [vmem:[%s1 + $0x14] sm:$0xf]
  %v90 = vld [vmem:[%s1 + $0x18] sm:$0xf]
  %v91 = vld [vmem:[%s1 + $0x1c] sm:$0xf]
  %v92 = vld [vmem:[%s1 + $0x20] sm:$0xf]
  %v93 = vld [vmem:[%s1 + $0x24] sm:$0xf]
  %v94 = vld [vmem:[%s1 + $0x28] sm:$0xf]
  %v95 = vld [vmem:[%s1 + $0x2c] sm:$0xf]
  %v96 = vld [vmem:[%s1 + $0x30] sm:$0xf]
  %v97 = vld [vmem:[%s1 + $0x34] sm:$0xf]
  %v98 = vld [vmem:[%s1 + $0x38] sm:$0xf]
  %v99 = vld [vmem:[%s1 + $0x3c] sm:$0xf]
  %v164 = vunpack.c.l.b16 %v20
  %v165 = vunpack.c.l.b16 %v21
  %v166 = vunpack.c.l.b16 %v22
  %v167 = vunpack.c.l.b16 %v23
  %v168 = vunpack.c.l.b16 %v24
  %v169 = vunpack.c.l.b16 %v25
  %v170 = vunpack.c.l.b16 %v26
  %v171 = vunpack.c.l.b16 %v27
  %v172 = vunpack.c.l.b16 %v28
  %v173 = vunpack.c.l.b16 %v29
  %v174 = vunpack.c.l.b16 %v30
  %v175 = vunpack.c.l.b16 %v31
  %v176 = vunpack.c.l.b16 %v32
  %v177 = vunpack.c.l.b16 %v33
  %v178 = vunpack.c.l.b16 %v34
  %v179 = vunpack.c.l.b16 %v35
  %v180 = vunpack.c.l.b16 %v36
  %v181 = vunpack.c.l.b16 %v37
  %v182 = vunpack.c.l.b16 %v38
  %v183 = vunpack.c.l.b16 %v39
  %v184 = vunpack.c.l.b16 %v40
  %v185 = vunpack.c.l.b16 %v41
  %v186 = vunpack.c.l.b16 %v42
  %v187 = vunpack.c.l.b16 %v43
  %v188 = vunpack.c.l.b16 %v44
  %v189 = vunpack.c.l.b16 %v45
  %v190 = vunpack.c.l.b16 %v46
  %v191 = vunpack.c.l.b16 %v47
  %v192 = vunpack.c.l.b16 %v48
  %v193 = vunpack.c.l.b16 %v49
  %v194 = vunpack.c.l.b16 %v50
  %v195 = vunpack.c.l.b16 %v51
  %v196 = vunpack.c.l.b16 %v52
  %v197 = vunpack.c.l.b16 %v53
  %v198 = vunpack.c.l.b16 %v54
  %v199 = vunpack.c.l.b16 %v55
  %v200 = vunpack.c.l.b16 %v56
  %v201 = vunpack.c.l.b16 %v57
  %v202 = vunpack.c.l.b16 %v58
  %v203 = vunpack.c.l.b16 %v59
  %v204 = vunpack.c.l.b16 %v60
  %v205 = vunpack.c.l.b16 %v61
  %v206 = vunpack.c.l.b16 %v62
  %v207 = vunpack.c.l.b16 %v63
  %v208 = vunpack.c.l.b16 %v64
  %v209 = vunpack.c.l.b16 %v65
  %v210 = vunpack.c.l.b16 %v66
  %v211 = vunpack.c.l.b16 %v67
  %v212 = vunpack.c.l.b16 %v68
  %v213 = vunpack.c.l.b16 %v69
  %v214 = vunpack.c.l.b16 %v70
  %v215 = vunpack.c.l.b16 %v71
  %v216 = vunpack.c.l.b16 %v72
  %v217 = vunpack.c.l.b16 %v73
  %v218 = vunpack.c.l.b16 %v74
  %v219 = vunpack.c.l.b16 %v75
  %v220 = vunpack.c.l.b16 %v76
  %v221 = vunpack.c.l.b16 %v77
  %v222 = vunpack.c.l.b16 %v78
  %v223 = vunpack.c.l.b16 %v79
  %v224 = vunpack.c.l.b16 %v80
  %v225 = vunpack.c.l.b16 %v81
  %v226 = vunpack.c.l.b16 %v82
  %v227 = vunpack.c.l.b16 %v83
  %v228 = vpack.c.b16 %v165, %v164
  %v229 = vpack.c.b16 %v167, %v166
  %v230 = vpack.c.b16 %v169, %v168
  %v231 = vpack.c.b16 %v171, %v170
  %v232 = vpack.c.b16 %v173, %v172
  %v233 = vpack.c.b16 %v175, %v174
  %v234 = vpack.c.b16 %v177, %v176
  %v235 = vpack.c.b16 %v179, %v178
  %v236 = vpack.c.b16 %v181, %v180
  %v237 = vpack.c.b16 %v183, %v182
  %v238 = vpack.c.b16 %v185, %v184
  %v239 = vpack.c.b16 %v187, %v186
  %v240 = vpack.c.b16 %v189, %v188
  %v241 = vpack.c.b16 %v191, %v190
  %v242 = vpack.c.b16 %v193, %v192
  %v243 = vpack.c.b16 %v195, %v194
  %v244 = vpack.c.b16 %v197, %v196
  %v245 = vpack.c.b16 %v199, %v198
  %v246 = vpack.c.b16 %v201, %v200
  %v247 = vpack.c.b16 %v203, %v202
  %v248 = vpack.c.b16 %v205, %v204
  %v249 = vpack.c.b16 %v207, %v206
  %v250 = vpack.c.b16 %v209, %v208
  %v251 = vpack.c.b16 %v211, %v210
  %v252 = vpack.c.b16 %v213, %v212
  %v253 = vpack.c.b16 %v215, %v214
  %v254 = vpack.c.b16 %v217, %v216
  %v255 = vpack.c.b16 %v219, %v218
  %v256 = vpack.c.b16 %v221, %v220
  %v257 = vpack.c.b16 %v223, %v222
  %v258 = vpack.c.b16 %v225, %v224
  %v259 = vpack.c.b16 %v227, %v226
  %v308 = vunpack.c.l.b16 %v84
  %v309 = vunpack.c.l.b16 %v85
  %v310 = vunpack.c.l.b16 %v86
  %v311 = vunpack.c.l.b16 %v87
  %v312 = vunpack.c.l.b16 %v88
  %v313 = vunpack.c.l.b16 %v89
  %v314 = vunpack.c.l.b16 %v90
  %v315 = vunpack.c.l.b16 %v91
  %v316 = vunpack.c.l.b16 %v92
  %v317 = vunpack.c.l.b16 %v93
  %v318 = vunpack.c.l.b16 %v94
  %v319 = vunpack.c.l.b16 %v95
  %v320 = vunpack.c.l.b16 %v96
  %v321 = vunpack.c.l.b16 %v97
  %v322 = vunpack.c.l.b16 %v98
  %v323 = vunpack.c.l.b16 %v99
  %v324 = vpack.c.b16 %v309, %v308
  %v325 = vpack.c.b16 %v311, %v310
  %v326 = vpack.c.b16 %v313, %v312
  %v327 = vpack.c.b16 %v315, %v314
  %v328 = vpack.c.b16 %v317, %v316
  %v329 = vpack.c.b16 %v319, %v318
  %v330 = vpack.c.b16 %v321, %v320
  %v331 = vpack.c.b16 %v323, %v322
  %340 = vmatpush.bf16.msra.mxu0 %v331
  %341 = vmatpush.bf16.msra.mxu0 %v330
  %342 = vmatpush.bf16.msra.mxu0 %v329
  %343 = vmatpush.bf16.msra.mxu0 %v328
  %344 = vmatpush.bf16.msra.mxu0 %v327
  %345 = vmatpush.bf16.msra.mxu0 %v326
  %346 = vmatpush.bf16.msra.mxu0 %v325
  %347 = vmatpush.bf16.msra.mxu0 %v324
  %348 = vmatmul.bf16.gmra.mxu0 %v228
  %v349 = vpop.f32.mrf.mxu0
  %v350 = vadd.f32 0.0, %v349
  %v351 = vpop.f32.mrf.mxu0
  %v352 = vadd.f32 0.0, %v351
  %353 = vmatmul.bf16.gmra.mxu0 %v229
  %v354 = vpop.f32.mrf.mxu0
  %v355 = vadd.f32 0.0, %v354
  %v356 = vpop.f32.mrf.mxu0
  %v357 = vadd.f32 0.0, %v356
  %358 = vmatmul.bf16.gmra.mxu0 %v230
  %v359 = vpop.f32.mrf.mxu0
  %v360 = vadd.f32 0.0, %v359
  %v361 = vpop.f32.mrf.mxu0
  %v362 = vadd.f32 0.0, %v361
  %363 = vmatmul.bf16.gmra.mxu0 %v231
  %v364 = vpop.f32.mrf.mxu0
  %v365 = vadd.f32 0.0, %v364
  %v366 = vpop.f32.mrf.mxu0
  %v367 = vadd.f32 0.0, %v366
  %368 = vmatmul.bf16.gmra.mxu0 %v232
  %v369 = vpop.f32.mrf.mxu0
  %v370 = vadd.f32 0.0, %v369
  %v371 = vpop.f32.mrf.mxu0
  %v372 = vadd.f32 0.0, %v371
  %373 = vmatmul.bf16.gmra.mxu0 %v233
  %v374 = vpop.f32.mrf.mxu0
  %v375 = vadd.f32 0.0, %v374
  %v376 = vpop.f32.mrf.mxu0
  %v377 = vadd.f32 0.0, %v376
  %378 = vmatmul.bf16.gmra.mxu0 %v234
  %v379 = vpop.f32.mrf.mxu0
  %v380 = vadd.f32 0.0, %v379
  %v381 = vpop.f32.mrf.mxu0
  %v382 = vadd.f32 0.0, %v381
  %383 = vmatmul.bf16.gmra.mxu0 %v235
  %v384 = vpop.f32.mrf.mxu0
  %v385 = vadd.f32 0.0, %v384
  %v386 = vpop.f32.mrf.mxu0
  %v387 = vadd.f32 0.0, %v386
  %388 = vmatmul.bf16.gmra.mxu0 %v236
  %v389 = vpop.f32.mrf.mxu0
  %v390 = vadd.f32 0.0, %v389
  %v391 = vpop.f32.mrf.mxu0
  %v392 = vadd.f32 0.0, %v391
  %393 = vmatmul.bf16.gmra.mxu0 %v237
  %v394 = vpop.f32.mrf.mxu0
  %v395 = vadd.f32 0.0, %v394
  %v396 = vpop.f32.mrf.mxu0
  %v397 = vadd.f32 0.0, %v396
  %398 = vmatmul.bf16.gmra.mxu0 %v238
  %v399 = vpop.f32.mrf.mxu0
  %v400 = vadd.f32 0.0, %v399
  %v401 = vpop.f32.mrf.mxu0
  %v402 = vadd.f32 0.0, %v401
  %403 = vmatmul.bf16.gmra.mxu0 %v239
  %v404 = vpop.f32.mrf.mxu0
  %v405 = vadd.f32 0.0, %v404
  %v406 = vpop.f32.mrf.mxu0
  %v407 = vadd.f32 0.0, %v406
  %408 = vmatmul.bf16.gmra.mxu0 %v240
  %v409 = vpop.f32.mrf.mxu0
  %v410 = vadd.f32 0.0, %v409
  %v411 = vpop.f32.mrf.mxu0
  %v412 = vadd.f32 0.0, %v411
  %413 = vmatmul.bf16.gmra.mxu0 %v241
  %v414 = vpop.f32.mrf.mxu0
  %v415 = vadd.f32 0.0, %v414
  %v416 = vpop.f32.mrf.mxu0
  %v417 = vadd.f32 0.0, %v416
  %418 = vmatmul.bf16.gmra.mxu0 %v242
  %v419 = vpop.f32.mrf.mxu0
  %v420 = vadd.f32 0.0, %v419
  %v421 = vpop.f32.mrf.mxu0
  %v422 = vadd.f32 0.0, %v421
  %423 = vmatmul.bf16.gmra.mxu0 %v243
  %v424 = vpop.f32.mrf.mxu0
  %v425 = vadd.f32 0.0, %v424
  %v426 = vpop.f32.mrf.mxu0
  %v427 = vadd.f32 0.0, %v426
  %428 = vmatmul.bf16.gmra.mxu0 %v244
  %v429 = vpop.f32.mrf.mxu0
  %v430 = vadd.f32 0.0, %v429
  %v431 = vpop.f32.mrf.mxu0
  %v432 = vadd.f32 0.0, %v431
  %433 = vmatmul.bf16.gmra.mxu0 %v245
  %v434 = vpop.f32.mrf.mxu0
  %v435 = vadd.f32 0.0, %v434
  %v436 = vpop.f32.mrf.mxu0
  %v437 = vadd.f32 0.0, %v436
  %438 = vmatmul.bf16.gmra.mxu0 %v246
  %v439 = vpop.f32.mrf.mxu0
  %v440 = vadd.f32 0.0, %v439
  %v441 = vpop.f32.mrf.mxu0
  %v442 = vadd.f32 0.0, %v441
  %443 = vmatmul.bf16.gmra.mxu0 %v247
  %v444 = vpop.f32.mrf.mxu0
  %v445 = vadd.f32 0.0, %v444
  %v446 = vpop.f32.mrf.mxu0
  %v447 = vadd.f32 0.0, %v446
  %448 = vmatmul.bf16.gmra.mxu0 %v248
  %v449 = vpop.f32.mrf.mxu0
  %v450 = vadd.f32 0.0, %v449
  %v451 = vpop.f32.mrf.mxu0
  %v452 = vadd.f32 0.0, %v451
  %453 = vmatmul.bf16.gmra.mxu0 %v249
  %v454 = vpop.f32.mrf.mxu0
  %v455 = vadd.f32 0.0, %v454
  %v456 = vpop.f32.mrf.mxu0
  %v457 = vadd.f32 0.0, %v456
  %458 = vmatmul.bf16.gmra.mxu0 %v250
  %v459 = vpop.f32.mrf.mxu0
  %v460 = vadd.f32 0.0, %v459
  %v461 = vpop.f32.mrf.mxu0
  %v462 = vadd.f32 0.0, %v461
  %463 = vmatmul.bf16.gmra.mxu0 %v251
  %v464 = vpop.f32.mrf.mxu0
  %v465 = vadd.f32 0.0, %v464
  %v466 = vpop.f32.mrf.mxu0
  %v467 = vadd.f32 0.0, %v466
  %468 = vmatmul.bf16.gmra.mxu0 %v252
  %v469 = vpop.f32.mrf.mxu0
  %v470 = vadd.f32 0.0, %v469
  %v471 = vpop.f32.mrf.mxu0
  %v472 = vadd.f32 0.0, %v471
  %473 = vmatmul.bf16.gmra.mxu0 %v253
  %v474 = vpop.f32.mrf.mxu0
  %v475 = vadd.f32 0.0, %v474
  %v476 = vpop.f32.mrf.mxu0
  %v477 = vadd.f32 0.0, %v476
  %478 = vmatmul.bf16.gmra.mxu0 %v254
  %v479 = vpop.f32.mrf.mxu0
  %v480 = vadd.f32 0.0, %v479
  %v481 = vpop.f32.mrf.mxu0
  %v482 = vadd.f32 0.0, %v481
  %483 = vmatmul.bf16.gmra.mxu0 %v255
  %v484 = vpop.f32.mrf.mxu0
  %v485 = vadd.f32 0.0, %v484
  %v486 = vpop.f32.mrf.mxu0
  %v487 = vadd.f32 0.0, %v486
  %488 = vmatmul.bf16.gmra.mxu0 %v256
  %v489 = vpop.f32.mrf.mxu0
  %v490 = vadd.f32 0.0, %v489
  %v491 = vpop.f32.mrf.mxu0
  %v492 = vadd.f32 0.0, %v491
  %493 = vmatmul.bf16.gmra.mxu0 %v257
  %v494 = vpop.f32.mrf.mxu0
  %v495 = vadd.f32 0.0, %v494
  %v496 = vpop.f32.mrf.mxu0
  %v497 = vadd.f32 0.0, %v496
  %498 = vmatmul.bf16.gmra.mxu0 %v258
  %v499 = vpop.f32.mrf.mxu0
  %v500 = vadd.f32 0.0, %v499
  %v501 = vpop.f32.mrf.mxu0
  %v502 = vadd.f32 0.0, %v501
  %503 = vmatmul.bf16.gmra.mxu0 %v259
  %v504 = vpop.f32.mrf.mxu0
  %v505 = vadd.f32 0.0, %v504
  %v506 = vpop.f32.mrf.mxu0
  %v507 = vadd.f32 0.0, %v506
  %508 = vdwg.mxu0
  %509 = vst [vmem:[%s2] sm:$0xff] %v350
  %510 = vst [vmem:[%s2 + $0x8] sm:$0xff] %v352
  %511 = vst [vmem:[%s2 + $0x10] sm:$0xff] %v355
  %512 = vst [vmem:[%s2 + $0x18] sm:$0xff] %v357
  %513 = vst [vmem:[%s2 + $0x20] sm:$0xff] %v360
  %514 = vst [vmem:[%s2 + $0x28] sm:$0xff] %v362
  %515 = vst [vmem:[%s2 + $0x30] sm:$0xff] %v365
  %516 = vst [vmem:[%s2 + $0x38] sm:$0xff] %v367
  %517 = vst [vmem:[%s2 + $0x40] sm:$0xff] %v370
  %518 = vst [vmem:[%s2 + $0x48] sm:$0xff] %v372
  %519 = vst [vmem:[%s2 + $0x50] sm:$0xff] %v375
  %520 = vst [vmem:[%s2 + $0x58] sm:$0xff] %v377
  %521 = vst [vmem:[%s2 + $0x60] sm:$0xff] %v380
  %522 = vst [vmem:[%s2 + $0x68] sm:$0xff] %v382
  %523 = vst [vmem:[%s2 + $0x70] sm:$0xff] %v385
  %524 = vst [vmem:[%s2 + $0x78] sm:$0xff] %v387
  %525 = vst [vmem:[%s2 + $0x80] sm:$0xff] %v390
  %526 = vst [vmem:[%s2 + $0x88] sm:$0xff] %v392
  %527 = vst [vmem:[%s2 + $0x90] sm:$0xff] %v395
  %528 = vst [vmem:[%s2 + $0x98] sm:$0xff] %v397
  %529 = vst [vmem:[%s2 + $0xa0] sm:$0xff] %v400
  %530 = vst [vmem:[%s2 + $0xa8] sm:$0xff] %v402
  %531 = vst [vmem:[%s2 + $0xb0] sm:$0xff] %v405
  %532 = vst [vmem:[%s2 + $0xb8] sm:$0xff] %v407
  %533 = vst [vmem:[%s2 + $0xc0] sm:$0xff] %v410
  %534 = vst [vmem:[%s2 + $0xc8] sm:$0xff] %v412
  %535 = vst [vmem:[%s2 + $0xd0] sm:$0xff] %v415
  %536 = vst [vmem:[%s2 + $0xd8] sm:$0xff] %v417
  %537 = vst [vmem:[%s2 + $0xe0] sm:$0xff] %v420
  %538 = vst [vmem:[%s2 + $0xe8] sm:$0xff] %v422
  %539 = vst [vmem:[%s2 + $0xf0] sm:$0xff] %v425
  %540 = vst [vmem:[%s2 + $0xf8] sm:$0xff] %v427
  %541 = vst [vmem:[%s2 + $0x100] sm:$0xff] %v430
  %542 = vst [vmem:[%s2 + $0x108] sm:$0xff] %v432
  %543 = vst [vmem:[%s2 + $0x110] sm:$0xff] %v435
  %544 = vst [vmem:[%s2 + $0x118] sm:$0xff] %v437
  %545 = vst [vmem:[%s2 + $0x120] sm:$0xff] %v440
  %546 = vst [vmem:[%s2 + $0x128] sm:$0xff] %v442
  %547 = vst [vmem:[%s2 + $0x130] sm:$0xff] %v445
  %548 = vst [vmem:[%s2 + $0x138] sm:$0xff] %v447
  %549 = vst [vmem:[%s2 + $0x140] sm:$0xff] %v450
  %550 = vst [vmem:[%s2 + $0x148] sm:$0xff] %v452
  %551 = vst [vmem:[%s2 + $0x150] sm:$0xff] %v455
  %552 = vst [vmem:[%s2 + $0x158] sm:$0xff] %v457
  %553 = vst [vmem:[%s2 + $0x160] sm:$0xff] %v460
  %554 = vst [vmem:[%s2 + $0x168] sm:$0xff] %v462
  %555 = vst [vmem:[%s2 + $0x170] sm:$0xff] %v465
  %556 = vst [vmem:[%s2 + $0x178] sm:$0xff] %v467
  %557 = vst [vmem:[%s2 + $0x180] sm:$0xff] %v470
  %558 = vst [vmem:[%s2 + $0x188] sm:$0xff] %v472
  %559 = vst [vmem:[%s2 + $0x190] sm:$0xff] %v475
  %560 = vst [vmem:[%s2 + $0x198] sm:$0xff] %v477
  %561 = vst [vmem:[%s2 + $0x1a0] sm:$0xff] %v480
  %562 = vst [vmem:[%s2 + $0x1a8] sm:$0xff] %v482
  %563 = vst [vmem:[%s2 + $0x1b0] sm:$0xff] %v485
  %564 = vst [vmem:[%s2 + $0x1b8] sm:$0xff] %v487
  %565 = vst [vmem:[%s2 + $0x1c0] sm:$0xff] %v490
  %566 = vst [vmem:[%s2 + $0x1c8] sm:$0xff] %v492
  %567 = vst [vmem:[%s2 + $0x1d0] sm:$0xff] %v495
  %568 = vst [vmem:[%s2 + $0x1d8] sm:$0xff] %v497
  %569 = vst [vmem:[%s2 + $0x1e0] sm:$0xff] %v500
  %570 = vst [vmem:[%s2 + $0x1e8] sm:$0xff] %v502
  %571 = vst [vmem:[%s2 + $0x1f0] sm:$0xff] %v505
  %572 = vst [vmem:[%s2 + $0x1f8] sm:$0xff] %v507
  %v573 = vld [vmem:[%s3] sm:$0x1]
  %v574 = vadd.f32 %v350, %v352
  %v575 = vadd.f32 %v574, %v355
  %v576 = vadd.f32 %v575, %v357
  %v577 = vadd.f32 %v576, %v360
  %v578 = vadd.f32 %v577, %v362
  %v579 = vadd.f32 %v578, %v365
  %v580 = vadd.f32 %v579, %v367
  %v581 = vadd.f32 %v580, %v370
  %v582 = vadd.f32 %v581, %v372
  %v583 = vadd.f32 %v582, %v375
  %v584 = vadd.f32 %v583, %v377
  %v585 = vadd.f32 %v584, %v380
  %v586 = vadd.f32 %v585, %v382
  %v587 = vadd.f32 %v586, %v385
  %v588 = vadd.f32 %v587, %v387
  %v589 = vadd.f32 %v588, %v390
  %v590 = vadd.f32 %v589, %v392
  %v591 = vadd.f32 %v590, %v395
  %v592 = vadd.f32 %v591, %v397
  %v593 = vadd.f32 %v592, %v400
  %v594 = vadd.f32 %v593, %v402
  %v595 = vadd.f32 %v594, %v405
  %v596 = vadd.f32 %v595, %v407
  %v597 = vadd.f32 %v596, %v410
  %v598 = vadd.f32 %v597, %v412
  %v599 = vadd.f32 %v598, %v415
  %v600 = vadd.f32 %v599, %v417
  %v601 = vadd.f32 %v600, %v420
  %v602 = vadd.f32 %v601, %v422
  %v603 = vadd.f32 %v602, %v425
  %v604 = vadd.f32 %v603, %v427
  %v605 = vadd.f32 %v604, %v430
  %v606 = vadd.f32 %v605, %v432
  %v607 = vadd.f32 %v606, %v435
  %v608 = vadd.f32 %v607, %v437
  %v609 = vadd.f32 %v608, %v440
  %v610 = vadd.f32 %v609, %v442
  %v611 = vadd.f32 %v610, %v445
  %v612 = vadd.f32 %v611, %v447
  %v613 = vadd.f32 %v612, %v450
  %v614 = vadd.f32 %v613, %v452
  %v615 = vadd.f32 %v614, %v455
  %v616 = vadd.f32 %v615, %v457
  %v617 = vadd.f32 %v616, %v460
  %v618 = vadd.f32 %v617, %v462
  %v619 = vadd.f32 %v618, %v465
  %v620 = vadd.f32 %v619, %v467
  %v621 = vadd.f32 %v620, %v470
  %v622 = vadd.f32 %v621, %v472
  %v623 = vadd.f32 %v622, %v475
  %v624 = vadd.f32 %v623, %v477
  %v625 = vadd.f32 %v624, %v480
  %v626 = vadd.f32 %v625, %v482
  %v627 = vadd.f32 %v626, %v485
  %v628 = vadd.f32 %v627, %v487
  %v629 = vadd.f32 %v628, %v490
  %v630 = vadd.f32 %v629, %v492
  %v631 = vadd.f32 %v630, %v495
  %v632 = vadd.f32 %v631, %v497
  %v633 = vadd.f32 %v632, %v500
  %v634 = vadd.f32 %v633, %v502
  %v635 = vadd.f32 %v634, %v505
  %v636 = vadd.f32 %v635, %v507
  %v637 = vrot.slane %v636, 4
  %v638 = vadd.f32 %v636, %v637
  %v639 = vrot.slane %v638, 2
  %v640 = vadd.f32 %v638, %v639
  %v641 = vrot.slane %v640, 1
  %v642 = vadd.f32 %v640, %v641
  %v643 = vadd.f32 %v573, %v642
  %644 = vst [vmem:[%s3] sm:$0x1] %v643
  %v645 = vld [vmem:[%s4] sm:$0x1]
  %v646 = vmul.f32 %v350, %v350
  %v647 = vmul.f32 %v352, %v352
  %v648 = vmul.f32 %v355, %v355
  %v649 = vmul.f32 %v357, %v357
  %v650 = vmul.f32 %v360, %v360
  %v651 = vmul.f32 %v362, %v362
  %v652 = vmul.f32 %v365, %v365
  %v653 = vmul.f32 %v367, %v367
  %v654 = vmul.f32 %v370, %v370
  %v655 = vmul.f32 %v372, %v372
  %v656 = vmul.f32 %v375, %v375
  %v657 = vmul.f32 %v377, %v377
  %v658 = vmul.f32 %v380, %v380
  %v659 = vmul.f32 %v382, %v382
  %v660 = vmul.f32 %v385, %v385
  %v661 = vmul.f32 %v387, %v387
  %v662 = vmul.f32 %v390, %v390
  %v663 = vmul.f32 %v392, %v392
  %v664 = vmul.f32 %v395, %v395
  %v665 = vmul.f32 %v397, %v397
  %v666 = vmul.f32 %v400, %v400
  %v667 = vmul.f32 %v402, %v402
  %v668 = vmul.f32 %v405, %v405
  %v669 = vmul.f32 %v407, %v407
  %v670 = vmul.f32 %v410, %v410
  %v671 = vmul.f32 %v412, %v412
  %v672 = vmul.f32 %v415, %v415
  %v673 = vmul.f32 %v417, %v417
  %v674 = vmul.f32 %v420, %v420
  %v675 = vmul.f32 %v422, %v422
  %v676 = vmul.f32 %v425, %v425
  %v677 = vmul.f32 %v427, %v427
  %v678 = vmul.f32 %v430, %v430
  %v679 = vmul.f32 %v432, %v432
  %v680 = vmul.f32 %v435, %v435
  %v681 = vmul.f32 %v437, %v437
  %v682 = vmul.f32 %v440, %v440
  %v683 = vmul.f32 %v442, %v442
  %v684 = vmul.f32 %v445, %v445
  %v685 = vmul.f32 %v447, %v447
  %v686 = vmul.f32 %v450, %v450
  %v687 = vmul.f32 %v452, %v452
  %v688 = vmul.f32 %v455, %v455
  %v689 = vmul.f32 %v457, %v457
  %v690 = vmul.f32 %v460, %v460
  %v691 = vmul.f32 %v462, %v462
  %v692 = vmul.f32 %v465, %v465
  %v693 = vmul.f32 %v467, %v467
  %v694 = vmul.f32 %v470, %v470
  %v695 = vmul.f32 %v472, %v472
  %v696 = vmul.f32 %v475, %v475
  %v697 = vmul.f32 %v477, %v477
  %v698 = vmul.f32 %v480, %v480
  %v699 = vmul.f32 %v482, %v482
  %v700 = vmul.f32 %v485, %v485
  %v701 = vmul.f32 %v487, %v487
  %v702 = vmul.f32 %v490, %v490
  %v703 = vmul.f32 %v492, %v492
  %v704 = vmul.f32 %v495, %v495
  %v705 = vmul.f32 %v497, %v497
  %v706 = vmul.f32 %v500, %v500
  %v707 = vmul.f32 %v502, %v502
  %v708 = vmul.f32 %v505, %v505
  %v709 = vmul.f32 %v507, %v507
  %v710 = vadd.f32 %v646, %v647
  %v711 = vadd.f32 %v710, %v648
  %v712 = vadd.f32 %v711, %v649
  %v713 = vadd.f32 %v712, %v650
  %v714 = vadd.f32 %v713, %v651
  %v715 = vadd.f32 %v714, %v652
  %v716 = vadd.f32 %v715, %v653
  %v717 = vadd.f32 %v716, %v654
  %v718 = vadd.f32 %v717, %v655
  %v719 = vadd.f32 %v718, %v656
  %v720 = vadd.f32 %v719, %v657
  %v721 = vadd.f32 %v720, %v658
  %v722 = vadd.f32 %v721, %v659
  %v723 = vadd.f32 %v722, %v660
  %v724 = vadd.f32 %v723, %v661
  %v725 = vadd.f32 %v724, %v662
  %v726 = vadd.f32 %v725, %v663
  %v727 = vadd.f32 %v726, %v664
  %v728 = vadd.f32 %v727, %v665
  %v729 = vadd.f32 %v728, %v666
  %v730 = vadd.f32 %v729, %v667
  %v731 = vadd.f32 %v730, %v668
  %v732 = vadd.f32 %v731, %v669
  %v733 = vadd.f32 %v732, %v670
  %v734 = vadd.f32 %v733, %v671
  %v735 = vadd.f32 %v734, %v672
  %v736 = vadd.f32 %v735, %v673
  %v737 = vadd.f32 %v736, %v674
  %v738 = vadd.f32 %v737, %v675
  %v739 = vadd.f32 %v738, %v676
  %v740 = vadd.f32 %v739, %v677
  %v741 = vadd.f32 %v740, %v678
  %v742 = vadd.f32 %v741, %v679
  %v743 = vadd.f32 %v742, %v680
  %v744 = vadd.f32 %v743, %v681
  %v745 = vadd.f32 %v744, %v682
  %v746 = vadd.f32 %v745, %v683
  %v747 = vadd.f32 %v746, %v684
  %v748 = vadd.f32 %v747, %v685
  %v749 = vadd.f32 %v748, %v686
  %v750 = vadd.f32 %v749, %v687
  %v751 = vadd.f32 %v750, %v688
  %v752 = vadd.f32 %v751, %v689
  %v753 = vadd.f32 %v752, %v690
  %v754 = vadd.f32 %v753, %v691
  %v755 = vadd.f32 %v754, %v692
  %v756 = vadd.f32 %v755, %v693
  %v757 = vadd.f32 %v756, %v694
  %v758 = vadd.f32 %v757, %v695
  %v759 = vadd.f32 %v758, %v696
  %v760 = vadd.f32 %v759, %v697
  %v761 = vadd.f32 %v760, %v698
  %v762 = vadd.f32 %v761, %v699
  %v763 = vadd.f32 %v762, %v700
  %v764 = vadd.f32 %v763, %v701
  %v765 = vadd.f32 %v764, %v702
  %v766 = vadd.f32 %v765, %v703
  %v767 = vadd.f32 %v766, %v704
  %v768 = vadd.f32 %v767, %v705
  %v769 = vadd.f32 %v768, %v706
  %v770 = vadd.f32 %v769, %v707
  %v771 = vadd.f32 %v770, %v708
  %v772 = vadd.f32 %v771, %v709
  %v773 = vrot.slane %v772, 4
  %v774 = vadd.f32 %v772, %v773
  %v775 = vrot.slane %v774, 2
  %v776 = vadd.f32 %v774, %v775
  %v777 = vrot.slane %v776, 1
  %v778 = vadd.f32 %v776, %v777
  %v779 = vadd.f32 %v645, %v778
  %780 = vst [vmem:[%s4] sm:$0x1] %v779
  // Predicated region
  $region14: #{resnet_encoder_forward.18} parent=0 // pred_check
    _
  $region15: #{resnet_encoder_forward.18} parent=0 // pred_check_branch
    %782 = sbr.rel (0) target = $region17
  $region16: #{resnet_encoder_forward.18} parent=0 // pred_region
    _
  $region17: #{resnet_encoder_forward.18} parent=0 // pred_fallthru
    _
  // Predicated region
  $region18: #{resnet_encoder_forward.18} parent=0 // pred_check
    _
  $region19: #{resnet_encoder_forward.18} parent=0 // pred_check_branch
    %784 = sbr.rel (0) target = $region21
  $region20: #{resnet_encoder_forward.18} parent=0 // pred_region
    _
  $region21: #{resnet_encoder_forward.18} parent=0 // pred_fallthru
    _
  // Predicated region
  $region22: #{resnet_encoder_forward.18} parent=0 // pred_check
    _
  $region23: #{resnet_encoder_forward.18} parent=0 // pred_check_branch
    %786 = sbr.rel (0) target = $region25
  $region24: #{resnet_encoder_forward.18} parent=0 // pred_region
    _
  $region25: #{resnet_encoder_forward.18} parent=0 // pred_fallthru
    _
  // Predicated region
  $region26: #{resnet_encoder_forward.18} parent=0 // pred_check
    _
  $region27: #{resnet_encoder_forward.18} parent=0 // pred_check_branch
    %788 = sbr.rel (0) target = $region29
  $region28: #{resnet_encoder_forward.18} parent=0 // pred_region
    _
  $region29: #{resnet_encoder_forward.18} parent=0 // pred_fallthru
    _
  // Predicated region
  $region30: #{resnet_encoder_forward.18} parent=0 // pred_check
    _
  $region31: #{resnet_encoder_forward.18} parent=0 // pred_check_branch
    %790 = sbr.rel (0) target = $region33
  $region32: #{resnet_encoder_forward.18} parent=0 // pred_region
    _
  $region33: #{resnet_encoder_forward.18} parent=0 // pred_fallthru
    _
  // Predicated region
  $region34: #{resnet_encoder_forward.18} parent=0 // pred_check
    _
  $region35: #{resnet_encoder_forward.18} parent=0 // pred_check_branch
    %792 = sbr.rel (0) target = $region37
  $region36: #{resnet_encoder_forward.18} parent=0 // pred_region
    _
  $region37: #{resnet_encoder_forward.18} parent=0 // pred_fallthru
    _

// kernel: resnet_encoder_forward.22
$region0: #{resnet_encoder_forward.22}
  #allocation0 [shape = 'u32[]', space=smem, size = 0x4, offset = 0x4, fixed_abs, tag = 'smem constant byte address 0x4 - core index']
  #allocation1 [shape = 'u32[72,128]{1,0:T(1,128)}', space=vmem, size = 0x9000, scoped, tag = 'internal scratch']
  %s0 = inlined_call_operand.vmem [shape: bf16[512,256], index: 0, kind: input, shape index: {}]
  %s1 = inlined_call_operand.vmem [shape: bf16[256,128], index: 1, kind: input, shape index: {}]
  %s2 = inlined_call_operand.vmem [shape: f32[512,128], index: 2, kind: output, shape index: {0}]
  %s3 = inlined_call_operand.vmem [shape: f32[1,128], index: 3, kind: output, shape index: {1}]
  %s4 = inlined_call_operand.vmem [shape: f32[1,128], index: 4, kind: output, shape index: {2}]
  %5 = xla_tuple %s2, %s3, %s4
  %s6 = sld [smem:[#allocation0]]
  $region38: #{resnet_encoder_forward.22} parent=0
    _
  %s8 = ssub.s32 1, %s6
  %s9 = scalar_select 0, %s8, %s6
  // Predicated region
  $region2: #{resnet_encoder_forward.22} parent=0 // pred_check
    _
  $region3: #{resnet_encoder_forward.22} parent=0 // pred_check_branch
    %11 = sbr.rel (0) target = $region5
  $region4: #{resnet_encoder_forward.22} parent=0 // pred_region
    _
  $region5: #{resnet_encoder_forward.22} parent=0 // pred_fallthru
    _
  // Predicated region
  $region6: #{resnet_encoder_forward.22} parent=0 // pred_check
    _
  $region7: #{resnet_encoder_forward.22} parent=0 // pred_check_branch
    %13 = sbr.rel (0) target = $region9
  $region8: #{resnet_encoder_forward.22} parent=0 // pred_region
    _
  $region9: #{resnet_encoder_forward.22} parent=0 // pred_fallthru
    _
  %p14 = scmp.eq.s32.totalorder 0, 0
  // Predicated region
  $region10: #{resnet_encoder_forward.22} parent=0 // pred_check
    %p15 = pneg %p14
  $region11: #{resnet_encoder_forward.22} parent=0 // pred_check_branch
    %17 = sbr.rel (%p15) target = $region13
  $region12: #{resnet_encoder_forward.22} parent=0 // pred_region
    %18 = vst [vmem:[%s3] sm:$0x1] 0.0
    %19 = vst [vmem:[%s4] sm:$0x1] 0.0
  $region13: #{resnet_encoder_forward.22} parent=0 // pred_fallthru
    _
  %v20 = vld [vmem:[%s0] sm:$0xff]
  %v21 = vld [vmem:[%s0 + $0x8] sm:$0xff]
  %v22 = vld [vmem:[%s0 + $0x10] sm:$0xff]
  %v23 = vld [vmem:[%s0 + $0x18] sm:$0xff]
  %v24 = vld [vmem:[%s0 + $0x20] sm:$0xff]
  %v25 = vld [vmem:[%s0 + $0x28] sm:$0xff]
  %v26 = vld [vmem:[%s0 + $0x30] sm:$0xff]
  %v27 = vld [vmem:[%s0 + $0x38] sm:$0xff]
  %v28 = vld [vmem:[%s0 + $0x40] sm:$0xff]
  %v29 = vld [vmem:[%s0 + $0x48] sm:$0xff]
  %v30 = vld [vmem:[%s0 + $0x50] sm:$0xff]
  %v31 = vld [vmem:[%s0 + $0x58] sm:$0xff]
  %v32 = vld [vmem:[%s0 + $0x60] sm:$0xff]
  %v33 = vld [vmem:[%s0 + $0x68] sm:$0xff]
  %v34 = vld [vmem:[%s0 + $0x70] sm:$0xff]
  %v35 = vld [vmem:[%s0 + $0x78] sm:$0xff]
  %v36 = vld [vmem:[%s0 + $0x80] sm:$0xff]
  %v37 = vld [vmem:[%s0 + $0x88] sm:$0xff]
  %v38 = vld [vmem:[%s0 + $0x90] sm:$0xff]
  %v39 = vld [vmem:[%s0 + $0x98] sm:$0xff]
  %v40 = vld [vmem:[%s0 + $0xa0] sm:$0xff]
  %v41 = vld [vmem:[%s0 + $0xa8] sm:$0xff]
  %v42 = vld [vmem:[%s0 + $0xb0] sm:$0xff]
  %v43 = vld [vmem:[%s0 + $0xb8] sm:$0xff]
  %v44 = vld [vmem:[%s0 + $0xc0] sm:$0xff]
  %v45 = vld [vmem:[%s0 + $0xc8] sm:$0xff]
  %v46 = vld [vmem:[%s0 + $0xd0] sm:$0xff]
  %v47 = vld [vmem:[%s0 + $0xd8] sm:$0xff]
  %v48 = vld [vmem:[%s0 + $0xe0] sm:$0xff]
  %v49 = vld [vmem:[%s0 + $0xe8] sm:$0xff]
  %v50 = vld [vmem:[%s0 + $0xf0] sm:$0xff]
  %v51 = vld [vmem:[%s0 + $0xf8] sm:$0xff]
  %v52 = vld [vmem:[%s0 + $0x100] sm:$0xff]
  %v53 = vld [vmem:[%s0 + $0x108] sm:$0xff]
  %v54 = vld [vmem:[%s0 + $0x110] sm:$0xff]
  %v55 = vld [vmem:[%s0 + $0x118] sm:$0xff]
  %v56 = vld [vmem:[%s0 + $0x120] sm:$0xff]
  %v57 = vld [vmem:[%s0 + $0x128] sm:$0xff]
  %v58 = vld [vmem:[%s0 + $0x130] sm:$0xff]
  %v59 = vld [vmem:[%s0 + $0x138] sm:$0xff]
  %v60 = vld [vmem:[%s0 + $0x140] sm:$0xff]
  %v61 = vld [vmem:[%s0 + $0x148] sm:$0xff]
  %v62 = vld [vmem:[%s0 + $0x150] sm:$0xff]
  %v63 = vld [vmem:[%s0 + $0x158] sm:$0xff]
  %v64 = vld [vmem:[%s0 + $0x160] sm:$0xff]
  %v65 = vld [vmem:[%s0 + $0x168] sm:$0xff]
  %v66 = vld [vmem:[%s0 + $0x170] sm:$0xff]
  %v67 = vld [vmem:[%s0 + $0x178] sm:$0xff]
  %v68 = vld [vmem:[%s0 + $0x180] sm:$0xff]
  %v69 = vld [vmem:[%s0 + $0x188] sm:$0xff]
  %v70 = vld [vmem:[%s0 + $0x190] sm:$0xff]
  %v71 = vld [vmem:[%s0 + $0x198] sm:$0xff]
  %v72 = vld [vmem:[%s0 + $0x1a0] sm:$0xff]
  %v73 = vld [vmem:[%s0 + $0x1a8] sm:$0xff]
  %v74 = vld [vmem:[%s0 + $0x1b0] sm:$0xff]
  %v75 = vld [vmem:[%s0 + $0x1b8] sm:$0xff]
  %v76 = vld [vmem:[%s0 + $0x1c0] sm:$0xff]
  %v77 = vld [vmem:[%s0 + $0x1c8] sm:$0xff]
  %v78 = vld [vmem:[%s0 + $0x1d0] sm:$0xff]
  %v79 = vld [vmem:[%s0 + $0x1d8] sm:$0xff]
  %v80 = vld [vmem:[%s0 + $0x1e0] sm:$0xff]
  %v81 = vld [vmem:[%s0 + $0x1e8] sm:$0xff]
  %v82 = vld [vmem:[%s0 + $0x1f0] sm:$0xff]
  %v83 = vld [vmem:[%s0 + $0x1f8] sm:$0xff]
  %v84 = vld [vmem:[%s1] sm:$0xf]
  %v85 = vld [vmem:[%s1 + $0x4] sm:$0xf]
  %v86 = vld [vmem:[%s1 + $0x8] sm:$0xf]
  %v87 = vld [vmem:[%s1 + $0xc] sm:$0xf]
  %v88 = vld [vmem:[%s1 + $0x10] sm:$0xf]
  %v89 = vld [vmem:[%s1 + $0x14] sm:$0xf]
  %v90 = vld [vmem:[%s1 + $0x18] sm:$0xf]
  %v91 = vld [vmem:[%s1 + $0x1c] sm:$0xf]
  %v92 = vld [vmem:[%s1 + $0x20] sm:$0xf]
  %v93 = vld [vmem:[%s1 + $0x24] sm:$0xf]
  %v94 = vld [vmem:[%s1 + $0x28] sm:$0xf]
  %v95 = vld [vmem:[%s1 + $0x2c] sm:$0xf]
  %v96 = vld [vmem:[%s1 + $0x30] sm:$0xf]
  %v97 = vld [vmem:[%s1 + $0x34] sm:$0xf]
  %v98 = vld [vmem:[%s1 + $0x38] sm:$0xf]
  %v99 = vld [vmem:[%s1 + $0x3c] sm:$0xf]
  %v100 = vld [vmem:[%s1 + $0x40] sm:$0xf]
  %v101 = vld [vmem:[%s1 + $0x44] sm:$0xf]
  %v102 = vld [vmem:[%s1 + $0x48] sm:$0xf]
  %v103 = vld [vmem:[%s1 + $0x4c] sm:$0xf]
  %v104 = vld [vmem:[%s1 + $0x50] sm:$0xf]
  %v105 = vld [vmem:[%s1 + $0x54] sm:$0xf]
  %v106 = vld [vmem:[%s1 + $0x58] sm:$0xf]
  %v107 = vld [vmem:[%s1 + $0x5c] sm:$0xf]
  %v108 = vld [vmem:[%s1 + $0x60] sm:$0xf]
  %v109 = vld [vmem:[%s1 + $0x64] sm:$0xf]
  %v110 = vld [vmem:[%s1 + $0x68] sm:$0xf]
  %v111 = vld [vmem:[%s1 + $0x6c] sm:$0xf]
  %v112 = vld [vmem:[%s1 + $0x70] sm:$0xf]
  %v113 = vld [vmem:[%s1 + $0x74] sm:$0xf]
  %v114 = vld [vmem:[%s1 + $0x78] sm:$0xf]
  %v115 = vld [vmem:[%s1 + $0x7c] sm:$0xf]
  %v180 = vunpack.c.l.b16 %v20
  %v181 = vunpack.c.h.b16 %v20
  %v182 = vunpack.c.l.b16 %v21
  %v183 = vunpack.c.h.b16 %v21
  %v184 = vunpack.c.l.b16 %v22
  %v185 = vunpack.c.h.b16 %v22
  %v186 = vunpack.c.l.b16 %v23
  %v187 = vunpack.c.h.b16 %v23
  %v188 = vunpack.c.l.b16 %v24
  %v189 = vunpack.c.h.b16 %v24
  %v190 = vunpack.c.l.b16 %v25
  %v191 = vunpack.c.h.b16 %v25
  %v192 = vunpack.c.l.b16 %v26
  %v193 = vunpack.c.h.b16 %v26
  %v194 = vunpack.c.l.b16 %v27
  %v195 = vunpack.c.h.b16 %v27
  %v196 = vunpack.c.l.b16 %v28
  %v197 = vunpack.c.h.b16 %v28
  %v198 = vunpack.c.l.b16 %v29
  %v199 = vunpack.c.h.b16 %v29
  %v200 = vunpack.c.l.b16 %v30
  %v201 = vunpack.c.h.b16 %v30
  %v202 = vunpack.c.l.b16 %v31
  %v203 = vunpack.c.h.b16 %v31
  %v204 = vunpack.c.l.b16 %v32
  %v205 = vunpack.c.h.b16 %v32
  %v206 = vunpack.c.l.b16 %v33
  %v207 = vunpack.c.h.b16 %v33
  %v208 = vunpack.c.l.b16 %v34
  %v209 = vunpack.c.h.b16 %v34
  %v210 = vunpack.c.l.b16 %v35
  %v211 = vunpack.c.h.b16 %v35
  %v212 = vunpack.c.l.b16 %v36
  %v213 = vunpack.c.h.b16 %v36
  %v214 = vunpack.c.l.b16 %v37
  %v215 = vunpack.c.h.b16 %v37
  %v216 = vunpack.c.l.b16 %v38
  %v217 = vunpack.c.h.b16 %v38
  %v218 = vunpack.c.l.b16 %v39
  %v219 = vunpack.c.h.b16 %v39
  %v220 = vunpack.c.l.b16 %v40
  %v221 = vunpack.c.h.b16 %v40
  %v222 = vunpack.c.l.b16 %v41
  %v223 = vunpack.c.h.b16 %v41
  %v224 = vunpack.c.l.b16 %v42
  %v225 = vunpack.c.h.b16 %v42
  %v226 = vunpack.c.l.b16 %v43
  %v227 = vunpack.c.h.b16 %v43
  %v228 = vunpack.c.l.b16 %v44
  %v229 = vunpack.c.h.b16 %v44
  %v230 = vunpack.c.l.b16 %v45
  %v231 = vunpack.c.h.b16 %v45
  %v232 = vunpack.c.l.b16 %v46
  %v233 = vunpack.c.h.b16 %v46
  %v234 = vunpack.c.l.b16 %v47
  %v235 = vunpack.c.h.b16 %v47
  %v236 = vunpack.c.l.b16 %v48
  %v237 = vunpack.c.h.b16 %v48
  %v238 = vunpack.c.l.b16 %v49
  %v239 = vunpack.c.h.b16 %v49
  %v240 = vunpack.c.l.b16 %v50
  %v241 = vunpack.c.h.b16 %v50
  %v242 = vunpack.c.l.b16 %v51
  %v243 = vunpack.c.h.b16 %v51
  %v244 = vunpack.c.l.b16 %v52
  %v245 = vunpack.c.h.b16 %v52
  %v246 = vunpack.c.l.b16 %v53
  %v247 = vunpack.c.h.b16 %v53
  %v248 = vunpack.c.l.b16 %v54
  %v249 = vunpack.c.h.b16 %v54
  %v250 = vunpack.c.l.b16 %v55
  %v251 = vunpack.c.h.b16 %v55
  %v252 = vunpack.c.l.b16 %v56
  %v253 = vunpack.c.h.b16 %v56
  %v254 = vunpack.c.l.b16 %v57
  %v255 = vunpack.c.h.b16 %v57
  %v256 = vunpack.c.l.b16 %v58
  %v257 = vunpack.c.h.b16 %v58
  %v258 = vunpack.c.l.b16 %v59
  %v259 = vunpack.c.h.b16 %v59
  %v260 = vunpack.c.l.b16 %v60
  %v261 = vunpack.c.h.b16 %v60
  %v262 = vunpack.c.l.b16 %v61
  %v263 = vunpack.c.h.b16 %v61
  %v264 = vunpack.c.l.b16 %v62
  %v265 = vunpack.c.h.b16 %v62
  %v266 = vunpack.c.l.b16 %v63
  %v267 = vunpack.c.h.b16 %v63
  %v268 = vunpack.c.l.b16 %v64
  %v269 = vunpack.c.h.b16 %v64
  %v270 = vunpack.c.l.b16 %v65
  %v271 = vunpack.c.h.b16 %v65
  %v272 = vunpack.c.l.b16 %v66
  %v273 = vunpack.c.h.b16 %v66
  %v274 = vunpack.c.l.b16 %v67
  %v275 = vunpack.c.h.b16 %v67
  %v276 = vunpack.c.l.b16 %v68
  %v277 = vunpack.c.h.b16 %v68
  %v278 = vunpack.c.l.b16 %v69
  %v279 = vunpack.c.h.b16 %v69
  %v280 = vunpack.c.l.b16 %v70
  %v281 = vunpack.c.h.b16 %v70
  %v282 = vunpack.c.l.b16 %v71
  %v283 = vunpack.c.h.b16 %v71
  %v284 = vunpack.c.l.b16 %v72
  %v285 = vunpack.c.h.b16 %v72
  %v286 = vunpack.c.l.b16 %v73
  %v287 = vunpack.c.h.b16 %v73
  %v288 = vunpack.c.l.b16 %v74
  %v289 = vunpack.c.h.b16 %v74
  %v290 = vunpack.c.l.b16 %v75
  %v291 = vunpack.c.h.b16 %v75
  %v292 = vunpack.c.l.b16 %v76
  %v293 = vunpack.c.h.b16 %v76
  %v294 = vunpack.c.l.b16 %v77
  %v295 = vunpack.c.h.b16 %v77
  %v296 = vunpack.c.l.b16 %v78
  %v297 = vunpack.c.h.b16 %v78
  %v298 = vunpack.c.l.b16 %v79
  %v299 = vunpack.c.h.b16 %v79
  %v300 = vunpack.c.l.b16 %v80
  %v301 = vunpack.c.h.b16 %v80
  %v302 = vunpack.c.l.b16 %v81
  %v303 = vunpack.c.h.b16 %v81
  %v304 = vunpack.c.l.b16 %v82
  %v305 = vunpack.c.h.b16 %v82
  %v306 = vunpack.c.l.b16 %v83
  %v307 = vunpack.c.h.b16 %v83
  %v308 = vpack.c.b16 %v182, %v180
  %v309 = vpack.c.b16 %v183, %v181
  %v310 = vpack.c.b16 %v186, %v184
  %v311 = vpack.c.b16 %v187, %v185
  %v312 = vpack.c.b16 %v190, %v188
  %v313 = vpack.c.b16 %v191, %v189
  %v314 = vpack.c.b16 %v194, %v192
  %v315 = vpack.c.b16 %v195, %v193
  %v316 = vpack.c.b16 %v198, %v196
  %v317 = vpack.c.b16 %v199, %v197
  %v318 = vpack.c.b16 %v202, %v200
  %v319 = vpack.c.b16 %v203, %v201
  %v320 = vpack.c.b16 %v206, %v204
  %v321 = vpack.c.b16 %v207, %v205
  %v322 = vpack.c.b16 %v210, %v208
  %v323 = vpack.c.b16 %v211, %v209
  %v324 = vpack.c.b16 %v214, %v212
  %v325 = vpack.c.b16 %v215, %v213
  %v326 = vpack.c.b16 %v218, %v216
  %v327 = vpack.c.b16 %v219, %v217
  %v328 = vpack.c.b16 %v222, %v220
  %v329 = vpack.c.b16 %v223, %v221
  %v330 = vpack.c.b16 %v226, %v224
  %v331 = vpack.c.b16 %v227, %v225
  %v332 = vpack.c.b16 %v230, %v228
  %v333 = vpack.c.b16 %v231, %v229
  %v334 = vpack.c.b16 %v234, %v232
  %v335 = vpack.c.b16 %v235, %v233
  %v336 = vpack.c.b16 %v238, %v236
  %v337 = vpack.c.b16 %v239, %v237
  %v338 = vpack.c.b16 %v242, %v240
  %v339 = vpack.c.b16 %v243, %v241
  %v340 = vpack.c.b16 %v246, %v244
  %v341 = vpack.c.b16 %v247, %v245
  %v342 = vpack.c.b16 %v250, %v248
  %v343 = vpack.c.b16 %v251, %v249
  %v344 = vpack.c.b16 %v254, %v252
  %v345 = vpack.c.b16 %v255, %v253
  %v346 = vpack.c.b16 %v258, %v256
  %v347 = vpack.c.b16 %v259, %v257
  %v348 = vpack.c.b16 %v262, %v260
  %v349 = vpack.c.b16 %v263, %v261
  %v350 = vpack.c.b16 %v266, %v264
  %v351 = vpack.c.b16 %v267, %v265
  %v352 = vpack.c.b16 %v270, %v268
  %v353 = vpack.c.b16 %v271, %v269
  %v354 = vpack.c.b16 %v274, %v272
  %v355 = vpack.c.b16 %v275, %v273
  %v356 = vpack.c.b16 %v278, %v276
  %v357 = vpack.c.b16 %v279, %v277
  %v358 = vpack.c.b16 %v282, %v280
  %v359 = vpack.c.b16 %v283, %v281
  %v360 = vpack.c.b16 %v286, %v284
  %v361 = vpack.c.b16 %v287, %v285
  %v362 = vpack.c.b16 %v290, %v288
  %v363 = vpack.c.b16 %v291, %v289
  %v364 = vpack.c.b16 %v294, %v292
  %v365 = vpack.c.b16 %v295, %v293
  %v366 = vpack.c.b16 %v298, %v296
  %v367 = vpack.c.b16 %v299, %v297
  %v368 = vpack.c.b16 %v302, %v300
  %v369 = vpack.c.b16 %v303, %v301
  %v370 = vpack.c.b16 %v306, %v304
  %v371 = vpack.c.b16 %v307, %v305
  %v468 = vunpack.c.l.b16 %v84
  %v469 = vunpack.c.l.b16 %v85
  %v470 = vunpack.c.l.b16 %v86
  %v471 = vunpack.c.l.b16 %v87
  %v472 = vunpack.c.l.b16 %v88
  %v473 = vunpack.c.l.b16 %v89
  %v474 = vunpack.c.l.b16 %v90
  %v475 = vunpack.c.l.b16 %v91
  %v476 = vunpack.c.l.b16 %v92
  %v477 = vunpack.c.l.b16 %v93
  %v478 = vunpack.c.l.b16 %v94
  %v479 = vunpack.c.l.b16 %v95
  %v480 = vunpack.c.l.b16 %v96
  %v481 = vunpack.c.l.b16 %v97
  %v482 = vunpack.c.l.b16 %v98
  %v483 = vunpack.c.l.b16 %v99
  %v484 = vunpack.c.l.b16 %v100
  %v485 = vunpack.c.l.b16 %v101
  %v486 = vunpack.c.l.b16 %v102
  %v487 = vunpack.c.l.b16 %v103
  %v488 = vunpack.c.l.b16 %v104
  %v489 = vunpack.c.l.b16 %v105
  %v490 = vunpack.c.l.b16 %v106
  %v491 = vunpack.c.l.b16 %v107
  %v492 = vunpack.c.l.b16 %v108
  %v493 = vunpack.c.l.b16 %v109
  %v494 = vunpack.c.l.b16 %v110
  %v495 = vunpack.c.l.b16 %v111
  %v496 = vunpack.c.l.b16 %v112
  %v497 = vunpack.c.l.b16 %v113
  %v498 = vunpack.c.l.b16 %v114
  %v499 = vunpack.c.l.b16 %v115
  %v500 = vpack.c.b16 %v469, %v468
  %v501 = vpack.c.b16 %v471, %v470
  %v502 = vpack.c.b16 %v473, %v472
  %v503 = vpack.c.b16 %v475, %v474
  %v504 = vpack.c.b16 %v477, %v476
  %v505 = vpack.c.b16 %v479, %v478
  %v506 = vpack.c.b16 %v481, %v480
  %v507 = vpack.c.b16 %v483, %v482
  %v508 = vpack.c.b16 %v485, %v484
  %v509 = vpack.c.b16 %v487, %v486
  %v510 = vpack.c.b16 %v489, %v488
  %v511 = vpack.c.b16 %v491, %v490
  %v512 = vpack.c.b16 %v493, %v492
  %v513 = vpack.c.b16 %v495, %v494
  %v514 = vpack.c.b16 %v497, %v496
  %v515 = vpack.c.b16 %v499, %v498
  %532 = vmatpush.bf16.msra.mxu0 %v507
  %533 = vmatpush.bf16.msra.mxu0 %v506
  %534 = vmatpush.bf16.msra.mxu0 %v505
  %535 = vmatpush.bf16.msra.mxu0 %v504
  %536 = vmatpush.bf16.msra.mxu0 %v503
  %537 = vmatpush.bf16.msra.mxu0 %v502
  %538 = vmatpush.bf16.msra.mxu0 %v501
  %539 = vmatpush.bf16.msra.mxu0 %v500
  %540 = vmatmul.bf16.gmra.mxu0 %v308
  %v541 = vpop.f32.mrf.mxu0
  %v542 = vadd.f32 0.0, %v541
  %v543 = vpop.f32.mrf.mxu0
  %v544 = vadd.f32 0.0, %v543
  %545 = vmatmul.bf16.gmra.mxu0 %v310
  %v546 = vpop.f32.mrf.mxu0
  %v547 = vadd.f32 0.0, %v546
  %v548 = vpop.f32.mrf.mxu0
  %v549 = vadd.f32 0.0, %v548
  %550 = vmatmul.bf16.gmra.mxu0 %v312
  %v551 = vpop.f32.mrf.mxu0
  %v552 = vadd.f32 0.0, %v551
  %v553 = vpop.f32.mrf.mxu0
  %v554 = vadd.f32 0.0, %v553
  %555 = vmatmul.bf16.gmra.mxu0 %v314
  %v556 = vpop.f32.mrf.mxu0
  %v557 = vadd.f32 0.0, %v556
  %v558 = vpop.f32.mrf.mxu0
  %v559 = vadd.f32 0.0, %v558
  %560 = vmatmul.bf16.gmra.mxu0 %v316
  %v561 = vpop.f32.mrf.mxu0
  %v562 = vadd.f32 0.0, %v561
  %v563 = vpop.f32.mrf.mxu0
  %v564 = vadd.f32 0.0, %v563
  %565 = vmatmul.bf16.gmra.mxu0 %v318
  %v566 = vpop.f32.mrf.mxu0
  %v567 = vadd.f32 0.0, %v566
  %v568 = vpop.f32.mrf.mxu0
  %v569 = vadd.f32 0.0, %v568
  %570 = vmatmul.bf16.gmra.mxu0 %v320
  %v571 = vpop.f32.mrf.mxu0
  %v572 = vadd.f32 0.0, %v571
  %v573 = vpop.f32.mrf.mxu0
  %v574 = vadd.f32 0.0, %v573
  %575 = vmatmul.bf16.gmra.mxu0 %v322
  %v576 = vpop.f32.mrf.mxu0
  %v577 = vadd.f32 0.0, %v576
  %v578 = vpop.f32.mrf.mxu0
  %v579 = vadd.f32 0.0, %v578
  %580 = vmatmul.bf16.gmra.mxu0 %v324
  %v581 = vpop.f32.mrf.mxu0
  %v582 = vadd.f32 0.0, %v581
  %v583 = vpop.f32.mrf.mxu0
  %v584 = vadd.f32 0.0, %v583
  %585 = vmatmul.bf16.gmra.mxu0 %v326
  %v586 = vpop.f32.mrf.mxu0
  %v587 = vadd.f32 0.0, %v586
  %v588 = vpop.f32.mrf.mxu0
  %v589 = vadd.f32 0.0, %v588
  %590 = vmatmul.bf16.gmra.mxu0 %v328
  %v591 = vpop.f32.mrf.mxu0
  %v592 = vadd.f32 0.0, %v591
  %v593 = vpop.f32.mrf.mxu0
  %v594 = vadd.f32 0.0, %v593
  %595 = vmatmul.bf16.gmra.mxu0 %v330
  %v596 = vpop.f32.mrf.mxu0
  %v597 = vadd.f32 0.0, %v596
  %v598 = vpop.f32.mrf.mxu0
  %v599 = vadd.f32 0.0, %v598
  %600 = vmatmul.bf16.gmra.mxu0 %v332
  %v601 = vpop.f32.mrf.mxu0
  %v602 = vadd.f32 0.0, %v601
  %v603 = vpop.f32.mrf.mxu0
  %v604 = vadd.f32 0.0, %v603
  %605 = vmatmul.bf16.gmra.mxu0 %v334
  %v606 = vpop.f32.mrf.mxu0
  %v607 = vadd.f32 0.0, %v606
  %v608 = vpop.f32.mrf.mxu0
  %v609 = vadd.f32 0.0, %v608
  %610 = vmatmul.bf16.gmra.mxu0 %v336
  %v611 = vpop.f32.mrf.mxu0
  %v612 = vadd.f32 0.0, %v611
  %v613 = vpop.f32.mrf.mxu0
  %v614 = vadd.f32 0.0, %v613
  %615 = vmatmul.bf16.gmra.mxu0 %v338
  %v616 = vpop.f32.mrf.mxu0
  %v617 = vadd.f32 0.0, %v616
  %v618 = vpop.f32.mrf.mxu0
  %v619 = vadd.f32 0.0, %v618
  %620 = vmatmul.bf16.gmra.mxu0 %v340
  %v621 = vpop.f32.mrf.mxu0
  %v622 = vadd.f32 0.0, %v621
  %v623 = vpop.f32.mrf.mxu0
  %v624 = vadd.f32 0.0, %v623
  %625 = vmatmul.bf16.gmra.mxu0 %v342
  %v626 = vpop.f32.mrf.mxu0
  %v627 = vadd.f32 0.0, %v626
  %v628 = vpop.f32.mrf.mxu0
  %v629 = vadd.f32 0.0, %v628
  %630 = vmatmul.bf16.gmra.mxu0 %v344
  %v631 = vpop.f32.mrf.mxu0
  %v632 = vadd.f32 0.0, %v631
  %v633 = vpop.f32.mrf.mxu0
  %v634 = vadd.f32 0.0, %v633
  %635 = vmatmul.bf16.gmra.mxu0 %v346
  %v636 = vpop.f32.mrf.mxu0
  %v637 = vadd.f32 0.0, %v636
  %v638 = vpop.f32.mrf.mxu0
  %v639 = vadd.f32 0.0, %v638
  %640 = vmatmul.bf16.gmra.mxu0 %v348
  %v641 = vpop.f32.mrf.mxu0
  %v642 = vadd.f32 0.0, %v641
  %v643 = vpop.f32.mrf.mxu0
  %v644 = vadd.f32 0.0, %v643
  %645 = vmatmul.bf16.gmra.mxu0 %v350
  %v646 = vpop.f32.mrf.mxu0
  %v647 = vadd.f32 0.0, %v646
  %v648 = vpop.f32.mrf.mxu0
  %v649 = vadd.f32 0.0, %v648
  %650 = vmatmul.bf16.gmra.mxu0 %v352
  %v651 = vpop.f32.mrf.mxu0
  %v652 = vadd.f32 0.0, %v651
  %v653 = vpop.f32.mrf.mxu0
  %v654 = vadd.f32 0.0, %v653
  %655 = vmatmul.bf16.gmra.mxu0 %v354
  %v656 = vpop.f32.mrf.mxu0
  %v657 = vadd.f32 0.0, %v656
  %v658 = vpop.f32.mrf.mxu0
  %v659 = vadd.f32 0.0, %v658
  %660 = vmatmul.bf16.gmra.mxu0 %v356
  %v661 = vpop.f32.mrf.mxu0
  %v662 = vadd.f32 0.0, %v661
  %v663 = vpop.f32.mrf.mxu0
  %v664 = vadd.f32 0.0, %v663
  %665 = vmatmul.bf16.gmra.mxu0 %v358
  %v666 = vpop.f32.mrf.mxu0
  %v667 = vadd.f32 0.0, %v666
  %v668 = vpop.f32.mrf.mxu0
  %v669 = vadd.f32 0.0, %v668
  %670 = vmatmul.bf16.gmra.mxu0 %v360
  %v671 = vpop.f32.mrf.mxu0
  %v672 = vadd.f32 0.0, %v671
  %v673 = vpop.f32.mrf.mxu0
  %v674 = vadd.f32 0.0, %v673
  %675 = vmatmul.bf16.gmra.mxu0 %v362
  %v676 = vpop.f32.mrf.mxu0
  %v677 = vadd.f32 0.0, %v676
  %v678 = vpop.f32.mrf.mxu0
  %v679 = vadd.f32 0.0, %v678
  %680 = vmatmul.bf16.gmra.mxu0 %v364
  %v681 = vpop.f32.mrf.mxu0
  %v682 = vadd.f32 0.0, %v681
  %v683 = vpop.f32.mrf.mxu0
  %v684 = vadd.f32 0.0, %v683
  %685 = vmatmul.bf16.gmra.mxu0 %v366
  %v686 = vpop.f32.mrf.mxu0
  %v687 = vadd.f32 0.0, %v686
  %v688 = vpop.f32.mrf.mxu0
  %v689 = vadd.f32 0.0, %v688
  %690 = vmatmul.bf16.gmra.mxu0 %v368
  %v691 = vpop.f32.mrf.mxu0
  %v692 = vadd.f32 0.0, %v691
  %v693 = vpop.f32.mrf.mxu0
  %v694 = vadd.f32 0.0, %v693
  %695 = vmatmul.bf16.gmra.mxu0 %v370
  %v696 = vpop.f32.mrf.mxu0
  %v697 = vadd.f32 0.0, %v696
  %v698 = vpop.f32.mrf.mxu0
  %v699 = vadd.f32 0.0, %v698
  %700 = vdwg.mxu0
  %701 = vmatpush.bf16.msra.mxu0 %v515
  %702 = vmatpush.bf16.msra.mxu0 %v514
  %703 = vmatpush.bf16.msra.mxu0 %v513
  %704 = vmatpush.bf16.msra.mxu0 %v512
  %705 = vmatpush.bf16.msra.mxu0 %v511
  %706 = vmatpush.bf16.msra.mxu0 %v510
  %707 = vmatpush.bf16.msra.mxu0 %v509
  %708 = vmatpush.bf16.msra.mxu0 %v508
  %709 = vmatmul.bf16.gmra.mxu0 %v309
  %v710 = vpop.f32.mrf.mxu0
  %v711 = vadd.f32 %v542, %v710
  %v712 = vpop.f32.mrf.mxu0
  %v713 = vadd.f32 %v544, %v712
  %714 = vmatmul.bf16.gmra.mxu0 %v311
  %v715 = vpop.f32.mrf.mxu0
  %v716 = vadd.f32 %v547, %v715
  %v717 = vpop.f32.mrf.mxu0
  %v718 = vadd.f32 %v549, %v717
  %719 = vmatmul.bf16.gmra.mxu0 %v313
  %v720 = vpop.f32.mrf.mxu0
  %v721 = vadd.f32 %v552, %v720
  %v722 = vpop.f32.mrf.mxu0
  %v723 = vadd.f32 %v554, %v722
  %724 = vmatmul.bf16.gmra.mxu0 %v315
  %v725 = vpop.f32.mrf.mxu0
  %v726 = vadd.f32 %v557, %v725
  %v727 = vpop.f32.mrf.mxu0
  %v728 = vadd.f32 %v559, %v727
  %729 = vmatmul.bf16.gmra.mxu0 %v317
  %v730 = vpop.f32.mrf.mxu0
  %v731 = vadd.f32 %v562, %v730
  %v732 = vpop.f32.mrf.mxu0
  %v733 = vadd.f32 %v564, %v732
  %734 = vmatmul.bf16.gmra.mxu0 %v319
  %v735 = vpop.f32.mrf.mxu0
  %v736 = vadd.f32 %v567, %v735
  %v737 = vpop.f32.mrf.mxu0
  %v738 = vadd.f32 %v569, %v737
  %739 = vmatmul.bf16.gmra.mxu0 %v321
  %v740 = vpop.f32.mrf.mxu0
  %v741 = vadd.f32 %v572, %v740
  %v742 = vpop.f32.mrf.mxu0
  %v743 = vadd.f32 %v574, %v742
  %744 = vmatmul.bf16.gmra.mxu0 %v323
  %v745 = vpop.f32.mrf.mxu0
  %v746 = vadd.f32 %v577, %v745
  %v747 = vpop.f32.mrf.mxu0
  %v748 = vadd.f32 %v579, %v747
  %749 = vmatmul.bf16.gmra.mxu0 %v325
  %v750 = vpop.f32.mrf.mxu0
  %v751 = vadd.f32 %v582, %v750
  %v752 = vpop.f32.mrf.mxu0
  %v753 = vadd.f32 %v584, %v752
  %754 = vmatmul.bf16.gmra.mxu0 %v327
  %v755 = vpop.f32.mrf.mxu0
  %v756 = vadd.f32 %v587, %v755
  %v757 = vpop.f32.mrf.mxu0
  %v758 = vadd.f32 %v589, %v757
  %759 = vmatmul.bf16.gmra.mxu0 %v329
  %v760 = vpop.f32.mrf.mxu0
  %v761 = vadd.f32 %v592, %v760
  %v762 = vpop.f32.mrf.mxu0
  %v763 = vadd.f32 %v594, %v762
  %764 = vmatmul.bf16.gmra.mxu0 %v331
  %v765 = vpop.f32.mrf.mxu0
  %v766 = vadd.f32 %v597, %v765
  %v767 = vpop.f32.mrf.mxu0
  %v768 = vadd.f32 %v599, %v767
  %769 = vmatmul.bf16.gmra.mxu0 %v333
  %v770 = vpop.f32.mrf.mxu0
  %v771 = vadd.f32 %v602, %v770
  %v772 = vpop.f32.mrf.mxu0
  %v773 = vadd.f32 %v604, %v772
  %774 = vmatmul.bf16.gmra.mxu0 %v335
  %v775 = vpop.f32.mrf.mxu0
  %v776 = vadd.f32 %v607, %v775
  %v777 = vpop.f32.mrf.mxu0
  %v778 = vadd.f32 %v609, %v777
  %779 = vmatmul.bf16.gmra.mxu0 %v337
  %v780 = vpop.f32.mrf.mxu0
  %v781 = vadd.f32 %v612, %v780
  %v782 = vpop.f32.mrf.mxu0
  %v783 = vadd.f32 %v614, %v782
  %784 = vmatmul.bf16.gmra.mxu0 %v339
  %v785 = vpop.f32.mrf.mxu0
  %v786 = vadd.f32 %v617, %v785
  %v787 = vpop.f32.mrf.mxu0
  %v788 = vadd.f32 %v619, %v787
  %789 = vmatmul.bf16.gmra.mxu0 %v341
  %v790 = vpop.f32.mrf.mxu0
  %v791 = vadd.f32 %v622, %v790
  %v792 = vpop.f32.mrf.mxu0
  %v793 = vadd.f32 %v624, %v792
  %794 = vmatmul.bf16.gmra.mxu0 %v343
  %v795 = vpop.f32.mrf.mxu0
  %v796 = vadd.f32 %v627, %v795
  %v797 = vpop.f32.mrf.mxu0
  %v798 = vadd.f32 %v629, %v797
  %799 = vmatmul.bf16.gmra.mxu0 %v345
  %v800 = vpop.f32.mrf.mxu0
  %v801 = vadd.f32 %v632, %v800
  %v802 = vpop.f32.mrf.mxu0
  %v803 = vadd.f32 %v634, %v802
  %804 = vmatmul.bf16.gmra.mxu0 %v347
  %v805 = vpop.f32.mrf.mxu0
  %v806 = vadd.f32 %v637, %v805
  %v807 = vpop.f32.mrf.mxu0
  %v808 = vadd.f32 %v639, %v807
  %809 = vmatmul.bf16.gmra.mxu0 %v349
  %v810 = vpop.f32.mrf.mxu0
  %v811 = vadd.f32 %v642, %v810
  %v812 = vpop.f32.mrf.mxu0
  %v813 = vadd.f32 %v644, %v812
  %814 = vmatmul.bf16.gmra.mxu0 %v351
  %v815 = vpop.f32.mrf.mxu0
  %v816 = vadd.f32 %v647, %v815
  %v817 = vpop.f32.mrf.mxu0
  %v818 = vadd.f32 %v649, %v817
  %819 = vmatmul.bf16.gmra.mxu0 %v353
  %v820 = vpop.f32.mrf.mxu0
  %v821 = vadd.f32 %v652, %v820
  %v822 = vpop.f32.mrf.mxu0
  %v823 = vadd.f32 %v654, %v822
  %824 = vmatmul.bf16.gmra.mxu0 %v355
  %v825 = vpop.f32.mrf.mxu0
  %v826 = vadd.f32 %v657, %v825
  %v827 = vpop.f32.mrf.mxu0
  %v828 = vadd.f32 %v659, %v827
  %829 = vmatmul.bf16.gmra.mxu0 %v357
  %v830 = vpop.f32.mrf.mxu0
  %v831 = vadd.f32 %v662, %v830
  %v832 = vpop.f32.mrf.mxu0
  %v833 = vadd.f32 %v664, %v832
  %834 = vmatmul.bf16.gmra.mxu0 %v359
  %v835 = vpop.f32.mrf.mxu0
  %v836 = vadd.f32 %v667, %v835
  %v837 = vpop.f32.mrf.mxu0
  %v838 = vadd.f32 %v669, %v837
  %839 = vmatmul.bf16.gmra.mxu0 %v361
  %v840 = vpop.f32.mrf.mxu0
  %v841 = vadd.f32 %v672, %v840
  %v842 = vpop.f32.mrf.mxu0
  %v843 = vadd.f32 %v674, %v842
  %844 = vmatmul.bf16.gmra.mxu0 %v363
  %v845 = vpop.f32.mrf.mxu0
  %v846 = vadd.f32 %v677, %v845
  %v847 = vpop.f32.mrf.mxu0
  %v848 = vadd.f32 %v679, %v847
  %849 = vmatmul.bf16.gmra.mxu0 %v365
  %v850 = vpop.f32.mrf.mxu0
  %v851 = vadd.f32 %v682, %v850
  %v852 = vpop.f32.mrf.mxu0
  %v853 = vadd.f32 %v684, %v852
  %854 = vmatmul.bf16.gmra.mxu0 %v367
  %v855 = vpop.f32.mrf.mxu0
  %v856 = vadd.f32 %v687, %v855
  %v857 = vpop.f32.mrf.mxu0
  %v858 = vadd.f32 %v689, %v857
  %859 = vmatmul.bf16.gmra.mxu0 %v369
  %v860 = vpop.f32.mrf.mxu0
  %v861 = vadd.f32 %v692, %v860
  %v862 = vpop.f32.mrf.mxu0
  %v863 = vadd.f32 %v694, %v862
  %864 = vmatmul.bf16.gmra.mxu0 %v371
  %v865 = vpop.f32.mrf.mxu0
  %v866 = vadd.f32 %v697, %v865
  %v867 = vpop.f32.mrf.mxu0
  %v868 = vadd.f32 %v699, %v867
  %869 = vdwg.mxu0
  %870 = vst [vmem:[%s2] sm:$0xff] %v711
  %871 = vst [vmem:[%s2 + $0x8] sm:$0xff] %v713
  %872 = vst [vmem:[%s2 + $0x10] sm:$0xff] %v716
  %873 = vst [vmem:[%s2 + $0x18] sm:$0xff] %v718
  %874 = vst [vmem:[%s2 + $0x20] sm:$0xff] %v721
  %875 = vst [vmem:[%s2 + $0x28] sm:$0xff] %v723
  %876 = vst [vmem:[%s2 + $0x30] sm:$0xff] %v726
  %877 = vst [vmem:[%s2 + $0x38] sm:$0xff] %v728
  %878 = vst [vmem:[%s2 + $0x40] sm:$0xff] %v731
  %879 = vst [vmem:[%s2 + $0x48] sm:$0xff] %v733
  %880 = vst [vmem:[%s2 + $0x50] sm:$0xff] %v736
  %881 = vst [vmem:[%s2 + $0x58] sm:$0xff] %v738
  %882 = vst [vmem:[%s2 + $0x60] sm:$0xff] %v741
  %883 = vst [vmem:[%s2 + $0x68] sm:$0xff] %v743
  %884 = vst [vmem:[%s2 + $0x70] sm:$0xff] %v746
  %885 = vst [vmem:[%s2 + $0x78] sm:$0xff] %v748
  %886 = vst [vmem:[%s2 + $0x80] sm:$0xff] %v751
  %887 = vst [vmem:[%s2 + $0x88] sm:$0xff] %v753
  %888 = vst [vmem:[%s2 + $0x90] sm:$0xff] %v756
  %889 = vst [vmem:[%s2 + $0x98] sm:$0xff] %v758
  %890 = vst [vmem:[%s2 + $0xa0] sm:$0xff] %v761
  %891 = vst [vmem:[%s2 + $0xa8] sm:$0xff] %v763
  %892 = vst [vmem:[%s2 + $0xb0] sm:$0xff] %v766
  %893 = vst [vmem:[%s2 + $0xb8] sm:$0xff] %v768
  %894 = vst [vmem:[%s2 + $0xc0] sm:$0xff] %v771
  %895 = vst [vmem:[%s2 + $0xc8] sm:$0xff] %v773
  %896 = vst [vmem:[%s2 + $0xd0] sm:$0xff] %v776
  %897 = vst [vmem:[%s2 + $0xd8] sm:$0xff] %v778
  %898 = vst [vmem:[%s2 + $0xe0] sm:$0xff] %v781
  %899 = vst [vmem:[%s2 + $0xe8] sm:$0xff] %v783
  %900 = vst [vmem:[%s2 + $0xf0] sm:$0xff] %v786
  %901 = vst [vmem:[%s2 + $0xf8] sm:$0xff] %v788
  %902 = vst [vmem:[%s2 + $0x100] sm:$0xff] %v791
  %903 = vst [vmem:[%s2 + $0x108] sm:$0xff] %v793
  %904 = vst [vmem:[%s2 + $0x110] sm:$0xff] %v796
  %905 = vst [vmem:[%s2 + $0x118] sm:$0xff] %v798
  %906 = vst [vmem:[%s2 + $0x120] sm:$0xff] %v801
  %907 = vst [vmem:[%s2 + $0x128] sm:$0xff] %v803
  %908 = vst [vmem:[%s2 + $0x130] sm:$0xff] %v806
  %909 = vst [vmem:[%s2 + $0x138] sm:$0xff] %v808
  %910 = vst [vmem:[%s2 + $0x140] sm:$0xff] %v811
  %911 = vst [vmem:[%s2 + $0x148] sm:$0xff] %v813
  %912 = vst [vmem:[%s2 + $0x150] sm:$0xff] %v816
  %913 = vst [vmem:[%s2 + $0x158] sm:$0xff] %v818
  %914 = vst [vmem:[%s2 + $0x160] sm:$0xff] %v821
  %915 = vst [vmem:[%s2 + $0x168] sm:$0xff] %v823
  %916 = vst [vmem:[%s2 + $0x170] sm:$0xff] %v826
  %917 = vst [vmem:[%s2 + $0x178] sm:$0xff] %v828
  %918 = vst [vmem:[%s2 + $0x180] sm:$0xff] %v831
  %919 = vst [vmem:[%s2 + $0x188] sm:$0xff] %v833
  %920 = vst [vmem:[%s2 + $0x190] sm:$0xff] %v836
  %921 = vst [vmem:[%s2 + $0x198] sm:$0xff] %v838
  %922 = vst [vmem:[%s2 + $0x1a0] sm:$0xff] %v841
  %923 = vst [vmem:[%s2 + $0x1a8] sm:$0xff] %v843
  %924 = vst [vmem:[%s2 + $0x1b0] sm:$0xff] %v846
  %925 = vst [vmem:[%s2 + $0x1b8] sm:$0xff] %v848
  %926 = vst [vmem:[%s2 + $0x1c0] sm:$0xff] %v851
  %927 = vst [vmem:[%s2 + $0x1c8] sm:$0xff] %v853
  %928 = vst [vmem:[%s2 + $0x1d0] sm:$0xff] %v856
  %929 = vst [vmem:[%s2 + $0x1d8] sm:$0xff] %v858
  %930 = vst [vmem:[%s2 + $0x1e0] sm:$0xff] %v861
  %931 = vst [vmem:[%s2 + $0x1e8] sm:$0xff] %v863
  %932 = vst [vmem:[%s2 + $0x1f0] sm:$0xff] %v866
  %933 = vst [vmem:[%s2 + $0x1f8] sm:$0xff] %v868
  %v934 = vld [vmem:[%s3] sm:$0x1]
  %v935 = vadd.f32 %v711, %v713
  %v936 = vadd.f32 %v935, %v716
  %v937 = vadd.f32 %v936, %v718
  %v938 = vadd.f32 %v937, %v721
  %v939 = vadd.f32 %v938, %v723
  %v940 = vadd.f32 %v939, %v726
  %v941 = vadd.f32 %v940, %v728
  %v942 = vadd.f32 %v941, %v731
  %v943 = vadd.f32 %v942, %v733
  %v944 = vadd.f32 %v943, %v736
  %v945 = vadd.f32 %v944, %v738
  %v946 = vadd.f32 %v945, %v741
  %v947 = vadd.f32 %v946, %v743
  %v948 = vadd.f32 %v947, %v746
  %v949 = vadd.f32 %v948, %v748
  %v950 = vadd.f32 %v949, %v751
  %v951 = vadd.f32 %v950, %v753
  %v952 = vadd.f32 %v951, %v756
  %v953 = vadd.f32 %v952, %v758
  %v954 = vadd.f32 %v953, %v761
  %v955 = vadd.f32 %v954, %v763
  %v956 = vadd.f32 %v955, %v766
  %v957 = vadd.f32 %v956, %v768
  %v958 = vadd.f32 %v957, %v771
  %v959 = vadd.f32 %v958, %v773
  %v960 = vadd.f32 %v959, %v776
  %v961 = vadd.f32 %v960, %v778
  %v962 = vadd.f32 %v961, %v781
  %v963 = vadd.f32 %v962, %v783
  %v964 = vadd.f32 %v963, %v786
  %v965 = vadd.f32 %v964, %v788
  %v966 = vadd.f32 %v965, %v791
  %v967 = vadd.f32 %v966, %v793
  %v968 = vadd.f32 %v967, %v796
  %v969 = vadd.f32 %v968, %v798
  %v970 = vadd.f32 %v969, %v801
  %v971 = vadd.f32 %v970, %v803
  %v972 = vadd.f32 %v971, %v806
  %v973 = vadd.f32 %v972, %v808
  %v974 = vadd.f32 %v973, %v811
  %v975 = vadd.f32 %v974, %v813
  %v976 = vadd.f32 %v975, %v816
  %v977 = vadd.f32 %v976, %v818
  %v978 = vadd.f32 %v977, %v821
  %v979 = vadd.f32 %v978, %v823
  %v980 = vadd.f32 %v979, %v826
  %v981 = vadd.f32 %v980, %v828
  %v982 = vadd.f32 %v981, %v831
  %v983 = vadd.f32 %v982, %v833
  %v984 = vadd.f32 %v983, %v836
  %v985 = vadd.f32 %v984, %v838
  %v986 = vadd.f32 %v985, %v841
  %v987 = vadd.f32 %v986, %v843
  %v988 = vadd.f32 %v987, %v846
  %v989 = vadd.f32 %v988, %v848
  %v990 = vadd.f32 %v989, %v851
  %v991 = vadd.f32 %v990, %v853
  %v992 = vadd.f32 %v991, %v856
  %v993 = vadd.f32 %v992, %v858
  %v994 = vadd.f32 %v993, %v861
  %v995 = vadd.f32 %v994, %v863
  %v996 = vadd.f32 %v995, %v866
  %v997 = vadd.f32 %v996, %v868
  %v998 = vrot.slane %v997, 4
  %v999 = vadd.f32 %v997, %v998
  %v1000 = vrot.slane %v999, 2
  %v1001 = vadd.f32 %v999, %v1000
  %v1002 = vrot.slane %v1001, 1
  %v1003 = vadd.f32 %v1001, %v1002
  %v1004 = vadd.f32 %v934, %v1003
  %1005 = vst [vmem:[%s3] sm:$0x1] %v1004
  %v1006 = vld [vmem:[%s4] sm:$0x1]
  %v1007 = vmul.f32 %v711, %v711
  %v1008 = vmul.f32 %v713, %v713
  %v1009 = vmul.f32 %v716, %v716
  %v1010 = vmul.f32 %v718, %v718
  %v1011 = vmul.f32 %v721, %v721
  %v1012 = vmul.f32 %v723, %v723
  %v1013 = vmul.f32 %v726, %v726
  %v1014 = vmul.f32 %v728, %v728
  %v1015 = vmul.f32 %v731, %v731
  %v1016 = vmul.f32 %v733, %v733
  %v1017 = vmul.f32 %v736, %v736
  %v1018 = vmul.f32 %v738, %v738
  %v1019 = vmul.f32 %v741, %v741
  %v1020 = vmul.f32 %v743, %v743
  %v1021 = vmul.f32 %v746, %v746
  %v1022 = vmul.f32 %v748, %v748
  %v1023 = vmul.f32 %v751, %v751
  %v1024 = vmul.f32 %v753, %v753
  %v1025 = vmul.f32 %v756, %v756
  %v1026 = vmul.f32 %v758, %v758
  %v1027 = vmul.f32 %v761, %v761
  %v1028 = vmul.f32 %v763, %v763
  %v1029 = vmul.f32 %v766, %v766
  %v1030 = vmul.f32 %v768, %v768
  %v1031 = vmul.f32 %v771, %v771
  %v1032 = vmul.f32 %v773, %v773
  %v1033 = vmul.f32 %v776, %v776
  %v1034 = vmul.f32 %v778, %v778
  %v1035 = vmul.f32 %v781, %v781
  %v1036 = vmul.f32 %v783, %v783
  %v1037 = vmul.f32 %v786, %v786
  %v1038 = vmul.f32 %v788, %v788
  %v1039 = vmul.f32 %v791, %v791
  %v1040 = vmul.f32 %v793, %v793
  %v1041 = vmul.f32 %v796, %v796
  %v1042 = vmul.f32 %v798, %v798
  %v1043 = vmul.f32 %v801, %v801
  %v1044 = vmul.f32 %v803, %v803
  %v1045 = vmul.f32 %v806, %v806
  %v1046 = vmul.f32 %v808, %v808
  %v1047 = vmul.f32 %v811, %v811
  %v1048 = vmul.f32 %v813, %v813
  %v1049 = vmul.f32 %v816, %v816
  %v1050 = vmul.f32 %v818, %v818
  %v1051 = vmul.f32 %v821, %v821
  %v1052 = vmul.f32 %v823, %v823
  %v1053 = vmul.f32 %v826, %v826
  %v1054 = vmul.f32 %v828, %v828
  %v1055 = vmul.f32 %v831, %v831
  %v1056 = vmul.f32 %v833, %v833
  %v1057 = vmul.f32 %v836, %v836
  %v1058 = vmul.f32 %v838, %v838
  %v1059 = vmul.f32 %v841, %v841
  %v1060 = vmul.f32 %v843, %v843
  %v1061 = vmul.f32 %v846, %v846
  %v1062 = vmul.f32 %v848, %v848
  %v1063 = vmul.f32 %v851, %v851
  %v1064 = vmul.f32 %v853, %v853
  %v1065 = vmul.f32 %v856, %v856
  %v1066 = vmul.f32 %v858, %v858
  %v1067 = vmul.f32 %v861, %v861
  %v1068 = vmul.f32 %v863, %v863
  %v1069 = vmul.f32 %v866, %v866
  %v1070 = vmul.f32 %v868, %v868
  %v1071 = vadd.f32 %v1007, %v1008
  %v1072 = vadd.f32 %v1071, %v1009
  %v1073 = vadd.f32 %v1072, %v1010
  %v1074 = vadd.f32 %v1073, %v1011
  %v1075 = vadd.f32 %v1074, %v1012
  %v1076 = vadd.f32 %v1075, %v1013
  %v1077 = vadd.f32 %v1076, %v1014
  %v1078 = vadd.f32 %v1077, %v1015
  %v1079 = vadd.f32 %v1078, %v1016
  %v1080 = vadd.f32 %v1079, %v1017
  %v1081 = vadd.f32 %v1080, %v1018
  %v1082 = vadd.f32 %v1081, %v1019
  %v1083 = vadd.f32 %v1082, %v1020
  %v1084 = vadd.f32 %v1083, %v1021
  %v1085 = vadd.f32 %v1084, %v1022
  %v1086 = vadd.f32 %v1085, %v1023
  %v1087 = vadd.f32 %v1086, %v1024
  %v1088 = vadd.f32 %v1087, %v1025
  %v1089 = vadd.f32 %v1088, %v1026
  %v1090 = vadd.f32 %v1089, %v1027
  %v1091 = vadd.f32 %v1090, %v1028
  %v1092 = vadd.f32 %v1091, %v1029
  %v1093 = vadd.f32 %v1092, %v1030
  %v1094 = vadd.f32 %v1093, %v1031
  %v1095 = vadd.f32 %v1094, %v1032
  %v1096 = vadd.f32 %v1095, %v1033
  %v1097 = vadd.f32 %v1096, %v1034
  %v1098 = vadd.f32 %v1097, %v1035
  %v1099 = vadd.f32 %v1098, %v1036
  %v1100 = vadd.f32 %v1099, %v1037
  %v1101 = vadd.f32 %v1100, %v1038
  %v1102 = vadd.f32 %v1101, %v1039
  %v1103 = vadd.f32 %v1102, %v1040
  %v1104 = vadd.f32 %v1103, %v1041
  %v1105 = vadd.f32 %v1104, %v1042
  %v1106 = vadd.f32 %v1105, %v1043
  %v1107 = vadd.f32 %v1106, %v1044
  %v1108 = vadd.f32 %v1107, %v1045
  %v1109 = vadd.f32 %v1108, %v1046
  %v1110 = vadd.f32 %v1109, %v1047
  %v1111 = vadd.f32 %v1110, %v1048
  %v1112 = vadd.f32 %v1111, %v1049
  %v1113 = vadd.f32 %v1112, %v1050
  %v1114 = vadd.f32 %v1113, %v1051
  %v1115 = vadd.f32 %v1114, %v1052
  %v1116 = vadd.f32 %v1115, %v1053
  %v1117 = vadd.f32 %v1116, %v1054
  %v1118 = vadd.f32 %v1117, %v1055
  %v1119 = vadd.f32 %v1118, %v1056
  %v1120 = vadd.f32 %v1119, %v1057
  %v1121 = vadd.f32 %v1120, %v1058
  %v1122 = vadd.f32 %v1121, %v1059
  %v1123 = vadd.f32 %v1122, %v1060
  %v1124 = vadd.f32 %v1123, %v1061
  %v1125 = vadd.f32 %v1124, %v1062
  %v1126 = vadd.f32 %v1125, %v1063
  %v1127 = vadd.f32 %v1126, %v1064
  %v1128 = vadd.f32 %v1127, %v1065
  %v1129 = vadd.f32 %v1128, %v1066
  %v1130 = vadd.f32 %v1129, %v1067
  %v1131 = vadd.f32 %v1130, %v1068
  %v1132 = vadd.f32 %v1131, %v1069
  %v1133 = vadd.f32 %v1132, %v1070
  %v1134 = vrot.slane %v1133, 4
  %v1135 = vadd.f32 %v1133, %v1134
  %v1136 = vrot.slane %v1135, 2
  %v1137 = vadd.f32 %v1135, %v1136
  %v1138 = vrot.slane %v1137, 1
  %v1139 = vadd.f32 %v1137, %v1138
  %v1140 = vadd.f32 %v1006, %v1139
  %1141 = vst [vmem:[%s4] sm:$0x1] %v1140
  // Predicated region
  $region14: #{resnet_encoder_forward.22} parent=0 // pred_check
    _
  $region15: #{resnet_encoder_forward.22} parent=0 // pred_check_branch
    %1143 = sbr.rel (0) target = $region17
  $region16: #{resnet_encoder_forward.22} parent=0 // pred_region
    _
  $region17: #{resnet_encoder_forward.22} parent=0 // pred_fallthru
    _
  // Predicated region
  $region18: #{resnet_encoder_forward.22} parent=0 // pred_check
    _
  $region19: #{resnet_encoder_forward.22} parent=0 // pred_check_branch
    %1145 = sbr.rel (0) target = $region21
  $region20: #{resnet_encoder_forward.22} parent=0 // pred_region
    _
  $region21: #{resnet_encoder_forward.22} parent=0 // pred_fallthru
    _
  // Predicated region
  $region22: #{resnet_encoder_forward.22} parent=0 // pred_check
    _
  $region23: #{resnet_encoder_forward.22} parent=0 // pred_check_branch
    %1147 = sbr.rel (0) target = $region25
  $region24: #{resnet_encoder_forward.22} parent=0 // pred_region
    _
  $region25: #{resnet_encoder_forward.22} parent=0 // pred_fallthru
    _
  // Predicated region
  $region26: #{resnet_encoder_forward.22} parent=0 // pred_check
    _
  $region27: #{resnet_encoder_forward.22} parent=0 // pred_check_branch
    %1149 = sbr.rel (0) target = $region29
  $region28: #{resnet_encoder_forward.22} parent=0 // pred_region
    _
  $region29: #{resnet_encoder_forward.22} parent=0 // pred_fallthru
    _
  // Predicated region
  $region30: #{resnet_encoder_forward.22} parent=0 // pred_check
    _
  $region31: #{resnet_encoder_forward.22} parent=0 // pred_check_branch
    %1151 = sbr.rel (0) target = $region33
  $region32: #{resnet_encoder_forward.22} parent=0 // pred_region
    _
  $region33: #{resnet_encoder_forward.22} parent=0 // pred_fallthru
    _
  // Predicated region
  $region34: #{resnet_encoder_forward.22} parent=0 // pred_check
    _
  $region35: #{resnet_encoder_forward.22} parent=0 // pred_check_branch
    %1153 = sbr.rel (0) target = $region37
  $region36: #{resnet_encoder_forward.22} parent=0 // pred_region
    _
  $region37: #{resnet_encoder_forward.22} parent=0 // pred_fallthru
    _

// kernel: resnet_encoder_forward.20
$region0: #{resnet_encoder_forward.20}
  #allocation0 [shape = 'u32[]', space=smem, size = 0x4, offset = 0x4, fixed_abs, tag = 'smem constant byte address 0x4 - core index']
  #allocation1 [shape = 'u32[72,128]{1,0:T(1,128)}', space=vmem, size = 0x9000, scoped, tag = 'internal scratch']
  %s0 = inlined_call_operand.vmem [shape: bf16[512,256], index: 0, kind: input, shape index: {}]
  %s1 = inlined_call_operand.vmem [shape: bf16[256,128], index: 1, kind: input, shape index: {}]
  %s2 = inlined_call_operand.vmem [shape: bf16[256,128], index: 2, kind: input, shape index: {}]
  %s3 = inlined_call_operand.vmem [shape: f32[512,128], index: 3, kind: output, shape index: {0}]
  %s4 = inlined_call_operand.vmem [shape: f32[512,128], index: 4, kind: output, shape index: {1}]
  %s5 = inlined_call_operand.vmem [shape: f32[1,128], index: 5, kind: output, shape index: {2}]
  %s6 = inlined_call_operand.vmem [shape: f32[1,128], index: 6, kind: output, shape index: {3}]
  %s7 = inlined_call_operand.vmem [shape: f32[1,128], index: 7, kind: output, shape index: {4}]
  %s8 = inlined_call_operand.vmem [shape: f32[1,128], index: 8, kind: output, shape index: {5}]
  %9 = xla_tuple %s3, %s4, %s5, %s6, %s7, %s8
  %s10 = sld [smem:[#allocation0]]
  $region66: #{resnet_encoder_forward.20} parent=0
    _
  %s12 = ssub.s32 1, %s10
  %s13 = scalar_select 0, %s12, %s10
  // Predicated region
  $region2: #{resnet_encoder_forward.20} parent=0 // pred_check
    _
  $region3: #{resnet_encoder_forward.20} parent=0 // pred_check_branch
    %15 = sbr.rel (0) target = $region5
  $region4: #{resnet_encoder_forward.20} parent=0 // pred_region
    _
  $region5: #{resnet_encoder_forward.20} parent=0 // pred_fallthru
    _
  // Predicated region
  $region6: #{resnet_encoder_forward.20} parent=0 // pred_check
    _
  $region7: #{resnet_encoder_forward.20} parent=0 // pred_check_branch
    %17 = sbr.rel (0) target = $region9
  $region8: #{resnet_encoder_forward.20} parent=0 // pred_region
    _
  $region9: #{resnet_encoder_forward.20} parent=0 // pred_fallthru
    _
  // Predicated region
  $region10: #{resnet_encoder_forward.20} parent=0 // pred_check
    _
  $region11: #{resnet_encoder_forward.20} parent=0 // pred_check_branch
    %19 = sbr.rel (0) target = $region13
  $region12: #{resnet_encoder_forward.20} parent=0 // pred_region
    _
  $region13: #{resnet_encoder_forward.20} parent=0 // pred_fallthru
    _
  %p20 = scmp.eq.s32.totalorder 0, 0
  // Predicated region
  $region14: #{resnet_encoder_forward.20} parent=0 // pred_check
    %p21 = pneg %p20
  $region15: #{resnet_encoder_forward.20} parent=0 // pred_check_branch
    %23 = sbr.rel (%p21) target = $region17
  $region16: #{resnet_encoder_forward.20} parent=0 // pred_region
    %24 = vst [vmem:[%s5] sm:$0x1] 0.0
    %25 = vst [vmem:[%s6] sm:$0x1] 0.0
    %26 = vst [vmem:[%s7] sm:$0x1] 0.0
    %27 = vst [vmem:[%s8] sm:$0x1] 0.0
  $region17: #{resnet_encoder_forward.20} parent=0 // pred_fallthru
    _
  %v28 = vld [vmem:[%s0] sm:$0xff]
  %v29 = vld [vmem:[%s0 + $0x8] sm:$0xff]
  %v30 = vld [vmem:[%s0 + $0x10] sm:$0xff]
  %v31 = vld [vmem:[%s0 + $0x18] sm:$0xff]
  %v32 = vld [vmem:[%s0 + $0x20] sm:$0xff]
  %v33 = vld [vmem:[%s0 + $0x28] sm:$0xff]
  %v34 = vld [vmem:[%s0 + $0x30] sm:$0xff]
  %v35 = vld [vmem:[%s0 + $0x38] sm:$0xff]
  %v36 = vld [vmem:[%s0 + $0x40] sm:$0xff]
  %v37 = vld [vmem:[%s0 + $0x48] sm:$0xff]
  %v38 = vld [vmem:[%s0 + $0x50] sm:$0xff]
  %v39 = vld [vmem:[%s0 + $0x58] sm:$0xff]
  %v40 = vld [vmem:[%s0 + $0x60] sm:$0xff]
  %v41 = vld [vmem:[%s0 + $0x68] sm:$0xff]
  %v42 = vld [vmem:[%s0 + $0x70] sm:$0xff]
  %v43 = vld [vmem:[%s0 + $0x78] sm:$0xff]
  %v44 = vld [vmem:[%s0 + $0x80] sm:$0xff]
  %v45 = vld [vmem:[%s0 + $0x88] sm:$0xff]
  %v46 = vld [vmem:[%s0 + $0x90] sm:$0xff]
  %v47 = vld [vmem:[%s0 + $0x98] sm:$0xff]
  %v48 = vld [vmem:[%s0 + $0xa0] sm:$0xff]
  %v49 = vld [vmem:[%s0 + $0xa8] sm:$0xff]
  %v50 = vld [vmem:[%s0 + $0xb0] sm:$0xff]
  %v51 = vld [vmem:[%s0 + $0xb8] sm:$0xff]
  %v52 = vld [vmem:[%s0 + $0xc0] sm:$0xff]
  %v53 = vld [vmem:[%s0 + $0xc8] sm:$0xff]
  %v54 = vld [vmem:[%s0 + $0xd0] sm:$0xff]
  %v55 = vld [vmem:[%s0 + $0xd8] sm:$0xff]
  %v56 = vld [vmem:[%s0 + $0xe0] sm:$0xff]
  %v57 = vld [vmem:[%s0 + $0xe8] sm:$0xff]
  %v58 = vld [vmem:[%s0 + $0xf0] sm:$0xff]
  %v59 = vld [vmem:[%s0 + $0xf8] sm:$0xff]
  %v60 = vld [vmem:[%s0 + $0x100] sm:$0xff]
  %v61 = vld [vmem:[%s0 + $0x108] sm:$0xff]
  %v62 = vld [vmem:[%s0 + $0x110] sm:$0xff]
  %v63 = vld [vmem:[%s0 + $0x118] sm:$0xff]
  %v64 = vld [vmem:[%s0 + $0x120] sm:$0xff]
  %v65 = vld [vmem:[%s0 + $0x128] sm:$0xff]
  %v66 = vld [vmem:[%s0 + $0x130] sm:$0xff]
  %v67 = vld [vmem:[%s0 + $0x138] sm:$0xff]
  %v68 = vld [vmem:[%s0 + $0x140] sm:$0xff]
  %v69 = vld [vmem:[%s0 + $0x148] sm:$0xff]
  %v70 = vld [vmem:[%s0 + $0x150] sm:$0xff]
  %v71 = vld [vmem:[%s0 + $0x158] sm:$0xff]
  %v72 = vld [vmem:[%s0 + $0x160] sm:$0xff]
  %v73 = vld [vmem:[%s0 + $0x168] sm:$0xff]
  %v74 = vld [vmem:[%s0 + $0x170] sm:$0xff]
  %v75 = vld [vmem:[%s0 + $0x178] sm:$0xff]
  %v76 = vld [vmem:[%s0 + $0x180] sm:$0xff]
  %v77 = vld [vmem:[%s0 + $0x188] sm:$0xff]
  %v78 = vld [vmem:[%s0 + $0x190] sm:$0xff]
  %v79 = vld [vmem:[%s0 + $0x198] sm:$0xff]
  %v80 = vld [vmem:[%s0 + $0x1a0] sm:$0xff]
  %v81 = vld [vmem:[%s0 + $0x1a8] sm:$0xff]
  %v82 = vld [vmem:[%s0 + $0x1b0] sm:$0xff]
  %v83 = vld [vmem:[%s0 + $0x1b8] sm:$0xff]
  %v84 = vld [vmem:[%s0 + $0x1c0] sm:$0xff]
  %v85 = vld [vmem:[%s0 + $0x1c8] sm:$0xff]
  %v86 = vld [vmem:[%s0 + $0x1d0] sm:$0xff]
  %v87 = vld [vmem:[%s0 + $0x1d8] sm:$0xff]
  %v88 = vld [vmem:[%s0 + $0x1e0] sm:$0xff]
  %v89 = vld [vmem:[%s0 + $0x1e8] sm:$0xff]
  %v90 = vld [vmem:[%s0 + $0x1f0] sm:$0xff]
  %v91 = vld [vmem:[%s0 + $0x1f8] sm:$0xff]
  %v92 = vld [vmem:[%s1] sm:$0xf]
  %v93 = vld [vmem:[%s1 + $0x4] sm:$0xf]
  %v94 = vld [vmem:[%s1 + $0x8] sm:$0xf]
  %v95 = vld [vmem:[%s1 + $0xc] sm:$0xf]
  %v96 = vld [vmem:[%s1 + $0x10] sm:$0xf]
  %v97 = vld [vmem:[%s1 + $0x14] sm:$0xf]
  %v98 = vld [vmem:[%s1 + $0x18] sm:$0xf]
  %v99 = vld [vmem:[%s1 + $0x1c] sm:$0xf]
  %v100 = vld [vmem:[%s1 + $0x20] sm:$0xf]
  %v101 = vld [vmem:[%s1 + $0x24] sm:$0xf]
  %v102 = vld [vmem:[%s1 + $0x28] sm:$0xf]
  %v103 = vld [vmem:[%s1 + $0x2c] sm:$0xf]
  %v104 = vld [vmem:[%s1 + $0x30] sm:$0xf]
  %v105 = vld [vmem:[%s1 + $0x34] sm:$0xf]
  %v106 = vld [vmem:[%s1 + $0x38] sm:$0xf]
  %v107 = vld [vmem:[%s1 + $0x3c] sm:$0xf]
  %v108 = vld [vmem:[%s1 + $0x40] sm:$0xf]
  %v109 = vld [vmem:[%s1 + $0x44] sm:$0xf]
  %v110 = vld [vmem:[%s1 + $0x48] sm:$0xf]
  %v111 = vld [vmem:[%s1 + $0x4c] sm:$0xf]
  %v112 = vld [vmem:[%s1 + $0x50] sm:$0xf]
  %v113 = vld [vmem:[%s1 + $0x54] sm:$0xf]
  %v114 = vld [vmem:[%s1 + $0x58] sm:$0xf]
  %v115 = vld [vmem:[%s1 + $0x5c] sm:$0xf]
  %v116 = vld [vmem:[%s1 + $0x60] sm:$0xf]
  %v117 = vld [vmem:[%s1 + $0x64] sm:$0xf]
  %v118 = vld [vmem:[%s1 + $0x68] sm:$0xf]
  %v119 = vld [vmem:[%s1 + $0x6c] sm:$0xf]
  %v120 = vld [vmem:[%s1 + $0x70] sm:$0xf]
  %v121 = vld [vmem:[%s1 + $0x74] sm:$0xf]
  %v122 = vld [vmem:[%s1 + $0x78] sm:$0xf]
  %v123 = vld [vmem:[%s1 + $0x7c] sm:$0xf]
  %v188 = vunpack.c.l.b16 %v28
  %v189 = vunpack.c.h.b16 %v28
  %v190 = vunpack.c.l.b16 %v29
  %v191 = vunpack.c.h.b16 %v29
  %v192 = vunpack.c.l.b16 %v30
  %v193 = vunpack.c.h.b16 %v30
  %v194 = vunpack.c.l.b16 %v31
  %v195 = vunpack.c.h.b16 %v31
  %v196 = vunpack.c.l.b16 %v32
  %v197 = vunpack.c.h.b16 %v32
  %v198 = vunpack.c.l.b16 %v33
  %v199 = vunpack.c.h.b16 %v33
  %v200 = vunpack.c.l.b16 %v34
  %v201 = vunpack.c.h.b16 %v34
  %v202 = vunpack.c.l.b16 %v35
  %v203 = vunpack.c.h.b16 %v35
  %v204 = vunpack.c.l.b16 %v36
  %v205 = vunpack.c.h.b16 %v36
  %v206 = vunpack.c.l.b16 %v37
  %v207 = vunpack.c.h.b16 %v37
  %v208 = vunpack.c.l.b16 %v38
  %v209 = vunpack.c.h.b16 %v38
  %v210 = vunpack.c.l.b16 %v39
  %v211 = vunpack.c.h.b16 %v39
  %v212 = vunpack.c.l.b16 %v40
  %v213 = vunpack.c.h.b16 %v40
  %v214 = vunpack.c.l.b16 %v41
  %v215 = vunpack.c.h.b16 %v41
  %v216 = vunpack.c.l.b16 %v42
  %v217 = vunpack.c.h.b16 %v42
  %v218 = vunpack.c.l.b16 %v43
  %v219 = vunpack.c.h.b16 %v43
  %v220 = vunpack.c.l.b16 %v44
  %v221 = vunpack.c.h.b16 %v44
  %v222 = vunpack.c.l.b16 %v45
  %v223 = vunpack.c.h.b16 %v45
  %v224 = vunpack.c.l.b16 %v46
  %v225 = vunpack.c.h.b16 %v46
  %v226 = vunpack.c.l.b16 %v47
  %v227 = vunpack.c.h.b16 %v47
  %v228 = vunpack.c.l.b16 %v48
  %v229 = vunpack.c.h.b16 %v48
  %v230 = vunpack.c.l.b16 %v49
  %v231 = vunpack.c.h.b16 %v49
  %v232 = vunpack.c.l.b16 %v50
  %v233 = vunpack.c.h.b16 %v50
  %v234 = vunpack.c.l.b16 %v51
  %v235 = vunpack.c.h.b16 %v51
  %v236 = vunpack.c.l.b16 %v52
  %v237 = vunpack.c.h.b16 %v52
  %v238 = vunpack.c.l.b16 %v53
  %v239 = vunpack.c.h.b16 %v53
  %v240 = vunpack.c.l.b16 %v54
  %v241 = vunpack.c.h.b16 %v54
  %v242 = vunpack.c.l.b16 %v55
  %v243 = vunpack.c.h.b16 %v55
  %v244 = vunpack.c.l.b16 %v56
  %v245 = vunpack.c.h.b16 %v56
  %v246 = vunpack.c.l.b16 %v57
  %v247 = vunpack.c.h.b16 %v57
  %v248 = vunpack.c.l.b16 %v58
  %v249 = vunpack.c.h.b16 %v58
  %v250 = vunpack.c.l.b16 %v59
  %v251 = vunpack.c.h.b16 %v59
  %v252 = vunpack.c.l.b16 %v60
  %v253 = vunpack.c.h.b16 %v60
  %v254 = vunpack.c.l.b16 %v61
  %v255 = vunpack.c.h.b16 %v61
  %v256 = vunpack.c.l.b16 %v62
  %v257 = vunpack.c.h.b16 %v62
  %v258 = vunpack.c.l.b16 %v63
  %v259 = vunpack.c.h.b16 %v63
  %v260 = vunpack.c.l.b16 %v64
  %v261 = vunpack.c.h.b16 %v64
  %v262 = vunpack.c.l.b16 %v65
  %v263 = vunpack.c.h.b16 %v65
  %v264 = vunpack.c.l.b16 %v66
  %v265 = vunpack.c.h.b16 %v66
  %v266 = vunpack.c.l.b16 %v67
  %v267 = vunpack.c.h.b16 %v67
  %v268 = vunpack.c.l.b16 %v68
  %v269 = vunpack.c.h.b16 %v68
  %v270 = vunpack.c.l.b16 %v69
  %v271 = vunpack.c.h.b16 %v69
  %v272 = vunpack.c.l.b16 %v70
  %v273 = vunpack.c.h.b16 %v70
  %v274 = vunpack.c.l.b16 %v71
  %v275 = vunpack.c.h.b16 %v71
  %v276 = vunpack.c.l.b16 %v72
  %v277 = vunpack.c.h.b16 %v72
  %v278 = vunpack.c.l.b16 %v73
  %v279 = vunpack.c.h.b16 %v73
  %v280 = vunpack.c.l.b16 %v74
  %v281 = vunpack.c.h.b16 %v74
  %v282 = vunpack.c.l.b16 %v75
  %v283 = vunpack.c.h.b16 %v75
  %v284 = vunpack.c.l.b16 %v76
  %v285 = vunpack.c.h.b16 %v76
  %v286 = vunpack.c.l.b16 %v77
  %v287 = vunpack.c.h.b16 %v77
  %v288 = vunpack.c.l.b16 %v78
  %v289 = vunpack.c.h.b16 %v78
  %v290 = vunpack.c.l.b16 %v79
  %v291 = vunpack.c.h.b16 %v79
  %v292 = vunpack.c.l.b16 %v80
  %v293 = vunpack.c.h.b16 %v80
  %v294 = vunpack.c.l.b16 %v81
  %v295 = vunpack.c.h.b16 %v81
  %v296 = vunpack.c.l.b16 %v82
  %v297 = vunpack.c.h.b16 %v82
  %v298 = vunpack.c.l.b16 %v83
  %v299 = vunpack.c.h.b16 %v83
  %v300 = vunpack.c.l.b16 %v84
  %v301 = vunpack.c.h.b16 %v84
  %v302 = vunpack.c.l.b16 %v85
  %v303 = vunpack.c.h.b16 %v85
  %v304 = vunpack.c.l.b16 %v86
  %v305 = vunpack.c.h.b16 %v86
  %v306 = vunpack.c.l.b16 %v87
  %v307 = vunpack.c.h.b16 %v87
  %v308 = vunpack.c.l.b16 %v88
  %v309 = vunpack.c.h.b16 %v88
  %v310 = vunpack.c.l.b16 %v89
  %v311 = vunpack.c.h.b16 %v89
  %v312 = vunpack.c.l.b16 %v90
  %v313 = vunpack.c.h.b16 %v90
  %v314 = vunpack.c.l.b16 %v91
  %v315 = vunpack.c.h.b16 %v91
  %v316 = vpack.c.b16 %v190, %v188
  %v317 = vpack.c.b16 %v191, %v189
  %v318 = vpack.c.b16 %v194, %v192
  %v319 = vpack.c.b16 %v195, %v193
  %v320 = vpack.c.b16 %v198, %v196
  %v321 = vpack.c.b16 %v199, %v197
  %v322 = vpack.c.b16 %v202, %v200
  %v323 = vpack.c.b16 %v203, %v201
  %v324 = vpack.c.b16 %v206, %v204
  %v325 = vpack.c.b16 %v207, %v205
  %v326 = vpack.c.b16 %v210, %v208
  %v327 = vpack.c.b16 %v211, %v209
  %v328 = vpack.c.b16 %v214, %v212
  %v329 = vpack.c.b16 %v215, %v213
  %v330 = vpack.c.b16 %v218, %v216
  %v331 = vpack.c.b16 %v219, %v217
  %v332 = vpack.c.b16 %v222, %v220
  %v333 = vpack.c.b16 %v223, %v221
  %v334 = vpack.c.b16 %v226, %v224
  %v335 = vpack.c.b16 %v227, %v225
  %v336 = vpack.c.b16 %v230, %v228
  %v337 = vpack.c.b16 %v231, %v229
  %v338 = vpack.c.b16 %v234, %v232
  %v339 = vpack.c.b16 %v235, %v233
  %v340 = vpack.c.b16 %v238, %v236
  %v341 = vpack.c.b16 %v239, %v237
  %v342 = vpack.c.b16 %v242, %v240
  %v343 = vpack.c.b16 %v243, %v241
  %v344 = vpack.c.b16 %v246, %v244
  %v345 = vpack.c.b16 %v247, %v245
  %v346 = vpack.c.b16 %v250, %v248
  %v347 = vpack.c.b16 %v251, %v249
  %v348 = vpack.c.b16 %v254, %v252
  %v349 = vpack.c.b16 %v255, %v253
  %v350 = vpack.c.b16 %v258, %v256
  %v351 = vpack.c.b16 %v259, %v257
  %v352 = vpack.c.b16 %v262, %v260
  %v353 = vpack.c.b16 %v263, %v261
  %v354 = vpack.c.b16 %v266, %v264
  %v355 = vpack.c.b16 %v267, %v265
  %v356 = vpack.c.b16 %v270, %v268
  %v357 = vpack.c.b16 %v271, %v269
  %v358 = vpack.c.b16 %v274, %v272
  %v359 = vpack.c.b16 %v275, %v273
  %v360 = vpack.c.b16 %v278, %v276
  %v361 = vpack.c.b16 %v279, %v277
  %v362 = vpack.c.b16 %v282, %v280
  %v363 = vpack.c.b16 %v283, %v281
  %v364 = vpack.c.b16 %v286, %v284
  %v365 = vpack.c.b16 %v287, %v285
  %v366 = vpack.c.b16 %v290, %v288
  %v367 = vpack.c.b16 %v291, %v289
  %v368 = vpack.c.b16 %v294, %v292
  %v369 = vpack.c.b16 %v295, %v293
  %v370 = vpack.c.b16 %v298, %v296
  %v371 = vpack.c.b16 %v299, %v297
  %v372 = vpack.c.b16 %v302, %v300
  %v373 = vpack.c.b16 %v303, %v301
  %v374 = vpack.c.b16 %v306, %v304
  %v375 = vpack.c.b16 %v307, %v305
  %v376 = vpack.c.b16 %v310, %v308
  %v377 = vpack.c.b16 %v311, %v309
  %v378 = vpack.c.b16 %v314, %v312
  %v379 = vpack.c.b16 %v315, %v313
  %v476 = vunpack.c.l.b16 %v92
  %v477 = vunpack.c.l.b16 %v93
  %v478 = vunpack.c.l.b16 %v94
  %v479 = vunpack.c.l.b16 %v95
  %v480 = vunpack.c.l.b16 %v96
  %v481 = vunpack.c.l.b16 %v97
  %v482 = vunpack.c.l.b16 %v98
  %v483 = vunpack.c.l.b16 %v99
  %v484 = vunpack.c.l.b16 %v100
  %v485 = vunpack.c.l.b16 %v101
  %v486 = vunpack.c.l.b16 %v102
  %v487 = vunpack.c.l.b16 %v103
  %v488 = vunpack.c.l.b16 %v104
  %v489 = vunpack.c.l.b16 %v105
  %v490 = vunpack.c.l.b16 %v106
  %v491 = vunpack.c.l.b16 %v107
  %v492 = vunpack.c.l.b16 %v108
  %v493 = vunpack.c.l.b16 %v109
  %v494 = vunpack.c.l.b16 %v110
  %v495 = vunpack.c.l.b16 %v111
  %v496 = vunpack.c.l.b16 %v112
  %v497 = vunpack.c.l.b16 %v113
  %v498 = vunpack.c.l.b16 %v114
  %v499 = vunpack.c.l.b16 %v115
  %v500 = vunpack.c.l.b16 %v116
  %v501 = vunpack.c.l.b16 %v117
  %v502 = vunpack.c.l.b16 %v118
  %v503 = vunpack.c.l.b16 %v119
  %v504 = vunpack.c.l.b16 %v120
  %v505 = vunpack.c.l.b16 %v121
  %v506 = vunpack.c.l.b16 %v122
  %v507 = vunpack.c.l.b16 %v123
  %v508 = vpack.c.b16 %v477, %v476
  %v509 = vpack.c.b16 %v479, %v478
  %v510 = vpack.c.b16 %v481, %v480
  %v511 = vpack.c.b16 %v483, %v482
  %v512 = vpack.c.b16 %v485, %v484
  %v513 = vpack.c.b16 %v487, %v486
  %v514 = vpack.c.b16 %v489, %v488
  %v515 = vpack.c.b16 %v491, %v490
  %v516 = vpack.c.b16 %v493, %v492
  %v517 = vpack.c.b16 %v495, %v494
  %v518 = vpack.c.b16 %v497, %v496
  %v519 = vpack.c.b16 %v499, %v498
  %v520 = vpack.c.b16 %v501, %v500
  %v521 = vpack.c.b16 %v503, %v502
  %v522 = vpack.c.b16 %v505, %v504
  %v523 = vpack.c.b16 %v507, %v506
  %540 = vmatpush.bf16.msra.mxu0 %v515
  %541 = vmatpush.bf16.msra.mxu0 %v514
  %542 = vmatpush.bf16.msra.mxu0 %v513
  %543 = vmatpush.bf16.msra.mxu0 %v512
  %544 = vmatpush.bf16.msra.mxu0 %v511
  %545 = vmatpush.bf16.msra.mxu0 %v510
  %546 = vmatpush.bf16.msra.mxu0 %v509
  %547 = vmatpush.bf16.msra.mxu0 %v508
  %548 = vmatmul.bf16.gmra.mxu0 %v316
  %v549 = vpop.f32.mrf.mxu0
  %v550 = vadd.f32 0.0, %v549
  %v551 = vpop.f32.mrf.mxu0
  %v552 = vadd.f32 0.0, %v551
  %553 = vmatmul.bf16.gmra.mxu0 %v318
  %v554 = vpop.f32.mrf.mxu0
  %v555 = vadd.f32 0.0, %v554
  %v556 = vpop.f32.mrf.mxu0
  %v557 = vadd.f32 0.0, %v556
  %558 = vmatmul.bf16.gmra.mxu0 %v320
  %v559 = vpop.f32.mrf.mxu0
  %v560 = vadd.f32 0.0, %v559
  %v561 = vpop.f32.mrf.mxu0
  %v562 = vadd.f32 0.0, %v561
  %563 = vmatmul.bf16.gmra.mxu0 %v322
  %v564 = vpop.f32.mrf.mxu0
  %v565 = vadd.f32 0.0, %v564
  %v566 = vpop.f32.mrf.mxu0
  %v567 = vadd.f32 0.0, %v566
  %568 = vmatmul.bf16.gmra.mxu0 %v324
  %v569 = vpop.f32.mrf.mxu0
  %v570 = vadd.f32 0.0, %v569
  %v571 = vpop.f32.mrf.mxu0
  %v572 = vadd.f32 0.0, %v571
  %573 = vmatmul.bf16.gmra.mxu0 %v326
  %v574 = vpop.f32.mrf.mxu0
  %v575 = vadd.f32 0.0, %v574
  %v576 = vpop.f32.mrf.mxu0
  %v577 = vadd.f32 0.0, %v576
  %578 = vmatmul.bf16.gmra.mxu0 %v328
  %v579 = vpop.f32.mrf.mxu0
  %v580 = vadd.f32 0.0, %v579
  %v581 = vpop.f32.mrf.mxu0
  %v582 = vadd.f32 0.0, %v581
  %583 = vmatmul.bf16.gmra.mxu0 %v330
  %v584 = vpop.f32.mrf.mxu0
  %v585 = vadd.f32 0.0, %v584
  %v586 = vpop.f32.mrf.mxu0
  %v587 = vadd.f32 0.0, %v586
  %588 = vmatmul.bf16.gmra.mxu0 %v332
  %v589 = vpop.f32.mrf.mxu0
  %v590 = vadd.f32 0.0, %v589
  %v591 = vpop.f32.mrf.mxu0
  %v592 = vadd.f32 0.0, %v591
  %593 = vmatmul.bf16.gmra.mxu0 %v334
  %v594 = vpop.f32.mrf.mxu0
  %v595 = vadd.f32 0.0, %v594
  %v596 = vpop.f32.mrf.mxu0
  %v597 = vadd.f32 0.0, %v596
  %598 = vmatmul.bf16.gmra.mxu0 %v336
  %v599 = vpop.f32.mrf.mxu0
  %v600 = vadd.f32 0.0, %v599
  %v601 = vpop.f32.mrf.mxu0
  %v602 = vadd.f32 0.0, %v601
  %603 = vmatmul.bf16.gmra.mxu0 %v338
  %v604 = vpop.f32.mrf.mxu0
  %v605 = vadd.f32 0.0, %v604
  %v606 = vpop.f32.mrf.mxu0
  %v607 = vadd.f32 0.0, %v606
  %608 = vmatmul.bf16.gmra.mxu0 %v340
  %v609 = vpop.f32.mrf.mxu0
  %v610 = vadd.f32 0.0, %v609
  %v611 = vpop.f32.mrf.mxu0
  %v612 = vadd.f32 0.0, %v611
  %613 = vmatmul.bf16.gmra.mxu0 %v342
  %v614 = vpop.f32.mrf.mxu0
  %v615 = vadd.f32 0.0, %v614
  %v616 = vpop.f32.mrf.mxu0
  %v617 = vadd.f32 0.0, %v616
  %618 = vmatmul.bf16.gmra.mxu0 %v344
  %v619 = vpop.f32.mrf.mxu0
  %v620 = vadd.f32 0.0, %v619
  %v621 = vpop.f32.mrf.mxu0
  %v622 = vadd.f32 0.0, %v621
  %623 = vmatmul.bf16.gmra.mxu0 %v346
  %v624 = vpop.f32.mrf.mxu0
  %v625 = vadd.f32 0.0, %v624
  %v626 = vpop.f32.mrf.mxu0
  %v627 = vadd.f32 0.0, %v626
  %628 = vmatmul.bf16.gmra.mxu0 %v348
  %v629 = vpop.f32.mrf.mxu0
  %v630 = vadd.f32 0.0, %v629
  %v631 = vpop.f32.mrf.mxu0
  %v632 = vadd.f32 0.0, %v631
  %633 = vmatmul.bf16.gmra.mxu0 %v350
  %v634 = vpop.f32.mrf.mxu0
  %v635 = vadd.f32 0.0, %v634
  %v636 = vpop.f32.mrf.mxu0
  %v637 = vadd.f32 0.0, %v636
  %638 = vmatmul.bf16.gmra.mxu0 %v352
  %v639 = vpop.f32.mrf.mxu0
  %v640 = vadd.f32 0.0, %v639
  %v641 = vpop.f32.mrf.mxu0
  %v642 = vadd.f32 0.0, %v641
  %643 = vmatmul.bf16.gmra.mxu0 %v354
  %v644 = vpop.f32.mrf.mxu0
  %v645 = vadd.f32 0.0, %v644
  %v646 = vpop.f32.mrf.mxu0
  %v647 = vadd.f32 0.0, %v646
  %648 = vmatmul.bf16.gmra.mxu0 %v356
  %v649 = vpop.f32.mrf.mxu0
  %v650 = vadd.f32 0.0, %v649
  %v651 = vpop.f32.mrf.mxu0
  %v652 = vadd.f32 0.0, %v651
  %653 = vmatmul.bf16.gmra.mxu0 %v358
  %v654 = vpop.f32.mrf.mxu0
  %v655 = vadd.f32 0.0, %v654
  %v656 = vpop.f32.mrf.mxu0
  %v657 = vadd.f32 0.0, %v656
  %658 = vmatmul.bf16.gmra.mxu0 %v360
  %v659 = vpop.f32.mrf.mxu0
  %v660 = vadd.f32 0.0, %v659
  %v661 = vpop.f32.mrf.mxu0
  %v662 = vadd.f32 0.0, %v661
  %663 = vmatmul.bf16.gmra.mxu0 %v362
  %v664 = vpop.f32.mrf.mxu0
  %v665 = vadd.f32 0.0, %v664
  %v666 = vpop.f32.mrf.mxu0
  %v667 = vadd.f32 0.0, %v666
  %668 = vmatmul.bf16.gmra.mxu0 %v364
  %v669 = vpop.f32.mrf.mxu0
  %v670 = vadd.f32 0.0, %v669
  %v671 = vpop.f32.mrf.mxu0
  %v672 = vadd.f32 0.0, %v671
  %673 = vmatmul.bf16.gmra.mxu0 %v366
  %v674 = vpop.f32.mrf.mxu0
  %v675 = vadd.f32 0.0, %v674
  %v676 = vpop.f32.mrf.mxu0
  %v677 = vadd.f32 0.0, %v676
  %678 = vmatmul.bf16.gmra.mxu0 %v368
  %v679 = vpop.f32.mrf.mxu0
  %v680 = vadd.f32 0.0, %v679
  %v681 = vpop.f32.mrf.mxu0
  %v682 = vadd.f32 0.0, %v681
  %683 = vmatmul.bf16.gmra.mxu0 %v370
  %v684 = vpop.f32.mrf.mxu0
  %v685 = vadd.f32 0.0, %v684
  %v686 = vpop.f32.mrf.mxu0
  %v687 = vadd.f32 0.0, %v686
  %688 = vmatmul.bf16.gmra.mxu0 %v372
  %v689 = vpop.f32.mrf.mxu0
  %v690 = vadd.f32 0.0, %v689
  %v691 = vpop.f32.mrf.mxu0
  %v692 = vadd.f32 0.0, %v691
  %693 = vmatmul.bf16.gmra.mxu0 %v374
  %v694 = vpop.f32.mrf.mxu0
  %v695 = vadd.f32 0.0, %v694
  %v696 = vpop.f32.mrf.mxu0
  %v697 = vadd.f32 0.0, %v696
  %698 = vmatmul.bf16.gmra.mxu0 %v376
  %v699 = vpop.f32.mrf.mxu0
  %v700 = vadd.f32 0.0, %v699
  %v701 = vpop.f32.mrf.mxu0
  %v702 = vadd.f32 0.0, %v701
  %703 = vmatmul.bf16.gmra.mxu0 %v378
  %v704 = vpop.f32.mrf.mxu0
  %v705 = vadd.f32 0.0, %v704
  %v706 = vpop.f32.mrf.mxu0
  %v707 = vadd.f32 0.0, %v706
  %708 = vdwg.mxu0
  %709 = vmatpush.bf16.msra.mxu0 %v523
  %710 = vmatpush.bf16.msra.mxu0 %v522
  %711 = vmatpush.bf16.msra.mxu0 %v521
  %712 = vmatpush.bf16.msra.mxu0 %v520
  %713 = vmatpush.bf16.msra.mxu0 %v519
  %714 = vmatpush.bf16.msra.mxu0 %v518
  %715 = vmatpush.bf16.msra.mxu0 %v517
  %716 = vmatpush.bf16.msra.mxu0 %v516
  %717 = vmatmul.bf16.gmra.mxu0 %v317
  %v718 = vpop.f32.mrf.mxu0
  %v719 = vadd.f32 %v550, %v718
  %v720 = vpop.f32.mrf.mxu0
  %v721 = vadd.f32 %v552, %v720
  %722 = vmatmul.bf16.gmra.mxu0 %v319
  %v723 = vpop.f32.mrf.mxu0
  %v724 = vadd.f32 %v555, %v723
  %v725 = vpop.f32.mrf.mxu0
  %v726 = vadd.f32 %v557, %v725
  %727 = vmatmul.bf16.gmra.mxu0 %v321
  %v728 = vpop.f32.mrf.mxu0
  %v729 = vadd.f32 %v560, %v728
  %v730 = vpop.f32.mrf.mxu0
  %v731 = vadd.f32 %v562, %v730
  %732 = vmatmul.bf16.gmra.mxu0 %v323
  %v733 = vpop.f32.mrf.mxu0
  %v734 = vadd.f32 %v565, %v733
  %v735 = vpop.f32.mrf.mxu0
  %v736 = vadd.f32 %v567, %v735
  %737 = vmatmul.bf16.gmra.mxu0 %v325
  %v738 = vpop.f32.mrf.mxu0
  %v739 = vadd.f32 %v570, %v738
  %v740 = vpop.f32.mrf.mxu0
  %v741 = vadd.f32 %v572, %v740
  %742 = vmatmul.bf16.gmra.mxu0 %v327
  %v743 = vpop.f32.mrf.mxu0
  %v744 = vadd.f32 %v575, %v743
  %v745 = vpop.f32.mrf.mxu0
  %v746 = vadd.f32 %v577, %v745
  %747 = vmatmul.bf16.gmra.mxu0 %v329
  %v748 = vpop.f32.mrf.mxu0
  %v749 = vadd.f32 %v580, %v748
  %v750 = vpop.f32.mrf.mxu0
  %v751 = vadd.f32 %v582, %v750
  %752 = vmatmul.bf16.gmra.mxu0 %v331
  %v753 = vpop.f32.mrf.mxu0
  %v754 = vadd.f32 %v585, %v753
  %v755 = vpop.f32.mrf.mxu0
  %v756 = vadd.f32 %v587, %v755
  %757 = vmatmul.bf16.gmra.mxu0 %v333
  %v758 = vpop.f32.mrf.mxu0
  %v759 = vadd.f32 %v590, %v758
  %v760 = vpop.f32.mrf.mxu0
  %v761 = vadd.f32 %v592, %v760
  %762 = vmatmul.bf16.gmra.mxu0 %v335
  %v763 = vpop.f32.mrf.mxu0
  %v764 = vadd.f32 %v595, %v763
  %v765 = vpop.f32.mrf.mxu0
  %v766 = vadd.f32 %v597, %v765
  %767 = vmatmul.bf16.gmra.mxu0 %v337
  %v768 = vpop.f32.mrf.mxu0
  %v769 = vadd.f32 %v600, %v768
  %v770 = vpop.f32.mrf.mxu0
  %v771 = vadd.f32 %v602, %v770
  %772 = vmatmul.bf16.gmra.mxu0 %v339
  %v773 = vpop.f32.mrf.mxu0
  %v774 = vadd.f32 %v605, %v773
  %v775 = vpop.f32.mrf.mxu0
  %v776 = vadd.f32 %v607, %v775
  %777 = vmatmul.bf16.gmra.mxu0 %v341
  %v778 = vpop.f32.mrf.mxu0
  %v779 = vadd.f32 %v610, %v778
  %v780 = vpop.f32.mrf.mxu0
  %v781 = vadd.f32 %v612, %v780
  %782 = vmatmul.bf16.gmra.mxu0 %v343
  %v783 = vpop.f32.mrf.mxu0
  %v784 = vadd.f32 %v615, %v783
  %v785 = vpop.f32.mrf.mxu0
  %v786 = vadd.f32 %v617, %v785
  %787 = vmatmul.bf16.gmra.mxu0 %v345
  %v788 = vpop.f32.mrf.mxu0
  %v789 = vadd.f32 %v620, %v788
  %v790 = vpop.f32.mrf.mxu0
  %v791 = vadd.f32 %v622, %v790
  %792 = vmatmul.bf16.gmra.mxu0 %v347
  %v793 = vpop.f32.mrf.mxu0
  %v794 = vadd.f32 %v625, %v793
  %v795 = vpop.f32.mrf.mxu0
  %v796 = vadd.f32 %v627, %v795
  %797 = vmatmul.bf16.gmra.mxu0 %v349
  %v798 = vpop.f32.mrf.mxu0
  %v799 = vadd.f32 %v630, %v798
  %v800 = vpop.f32.mrf.mxu0
  %v801 = vadd.f32 %v632, %v800
  %802 = vmatmul.bf16.gmra.mxu0 %v351
  %v803 = vpop.f32.mrf.mxu0
  %v804 = vadd.f32 %v635, %v803
  %v805 = vpop.f32.mrf.mxu0
  %v806 = vadd.f32 %v637, %v805
  %807 = vmatmul.bf16.gmra.mxu0 %v353
  %v808 = vpop.f32.mrf.mxu0
  %v809 = vadd.f32 %v640, %v808
  %v810 = vpop.f32.mrf.mxu0
  %v811 = vadd.f32 %v642, %v810
  %812 = vmatmul.bf16.gmra.mxu0 %v355
  %v813 = vpop.f32.mrf.mxu0
  %v814 = vadd.f32 %v645, %v813
  %v815 = vpop.f32.mrf.mxu0
  %v816 = vadd.f32 %v647, %v815
  %817 = vmatmul.bf16.gmra.mxu0 %v357
  %v818 = vpop.f32.mrf.mxu0
  %v819 = vadd.f32 %v650, %v818
  %v820 = vpop.f32.mrf.mxu0
  %v821 = vadd.f32 %v652, %v820
  %822 = vmatmul.bf16.gmra.mxu0 %v359
  %v823 = vpop.f32.mrf.mxu0
  %v824 = vadd.f32 %v655, %v823
  %v825 = vpop.f32.mrf.mxu0
  %v826 = vadd.f32 %v657, %v825
  %827 = vmatmul.bf16.gmra.mxu0 %v361
  %v828 = vpop.f32.mrf.mxu0
  %v829 = vadd.f32 %v660, %v828
  %v830 = vpop.f32.mrf.mxu0
  %v831 = vadd.f32 %v662, %v830
  %832 = vmatmul.bf16.gmra.mxu0 %v363
  %v833 = vpop.f32.mrf.mxu0
  %v834 = vadd.f32 %v665, %v833
  %v835 = vpop.f32.mrf.mxu0
  %v836 = vadd.f32 %v667, %v835
  %837 = vmatmul.bf16.gmra.mxu0 %v365
  %v838 = vpop.f32.mrf.mxu0
  %v839 = vadd.f32 %v670, %v838
  %v840 = vpop.f32.mrf.mxu0
  %v841 = vadd.f32 %v672, %v840
  %842 = vmatmul.bf16.gmra.mxu0 %v367
  %v843 = vpop.f32.mrf.mxu0
  %v844 = vadd.f32 %v675, %v843
  %v845 = vpop.f32.mrf.mxu0
  %v846 = vadd.f32 %v677, %v845
  %847 = vmatmul.bf16.gmra.mxu0 %v369
  %v848 = vpop.f32.mrf.mxu0
  %v849 = vadd.f32 %v680, %v848
  %v850 = vpop.f32.mrf.mxu0
  %v851 = vadd.f32 %v682, %v850
  %852 = vmatmul.bf16.gmra.mxu0 %v371
  %v853 = vpop.f32.mrf.mxu0
  %v854 = vadd.f32 %v685, %v853
  %v855 = vpop.f32.mrf.mxu0
  %v856 = vadd.f32 %v687, %v855
  %857 = vmatmul.bf16.gmra.mxu0 %v373
  %v858 = vpop.f32.mrf.mxu0
  %v859 = vadd.f32 %v690, %v858
  %v860 = vpop.f32.mrf.mxu0
  %v861 = vadd.f32 %v692, %v860
  %862 = vmatmul.bf16.gmra.mxu0 %v375
  %v863 = vpop.f32.mrf.mxu0
  %v864 = vadd.f32 %v695, %v863
  %v865 = vpop.f32.mrf.mxu0
  %v866 = vadd.f32 %v697, %v865
  %867 = vmatmul.bf16.gmra.mxu0 %v377
  %v868 = vpop.f32.mrf.mxu0
  %v869 = vadd.f32 %v700, %v868
  %v870 = vpop.f32.mrf.mxu0
  %v871 = vadd.f32 %v702, %v870
  %872 = vmatmul.bf16.gmra.mxu0 %v379
  %v873 = vpop.f32.mrf.mxu0
  %v874 = vadd.f32 %v705, %v873
  %v875 = vpop.f32.mrf.mxu0
  %v876 = vadd.f32 %v707, %v875
  %877 = vdwg.mxu0
  %878 = vst [vmem:[%s3] sm:$0xff] %v719
  %879 = vst [vmem:[%s3 + $0x8] sm:$0xff] %v721
  %880 = vst [vmem:[%s3 + $0x10] sm:$0xff] %v724
  %881 = vst [vmem:[%s3 + $0x18] sm:$0xff] %v726
  %882 = vst [vmem:[%s3 + $0x20] sm:$0xff] %v729
  %883 = vst [vmem:[%s3 + $0x28] sm:$0xff] %v731
  %884 = vst [vmem:[%s3 + $0x30] sm:$0xff] %v734
  %885 = vst [vmem:[%s3 + $0x38] sm:$0xff] %v736
  %886 = vst [vmem:[%s3 + $0x40] sm:$0xff] %v739
  %887 = vst [vmem:[%s3 + $0x48] sm:$0xff] %v741
  %888 = vst [vmem:[%s3 + $0x50] sm:$0xff] %v744
  %889 = vst [vmem:[%s3 + $0x58] sm:$0xff] %v746
  %890 = vst [vmem:[%s3 + $0x60] sm:$0xff] %v749
  %891 = vst [vmem:[%s3 + $0x68] sm:$0xff] %v751
  %892 = vst [vmem:[%s3 + $0x70] sm:$0xff] %v754
  %893 = vst [vmem:[%s3 + $0x78] sm:$0xff] %v756
  %894 = vst [vmem:[%s3 + $0x80] sm:$0xff] %v759
  %895 = vst [vmem:[%s3 + $0x88] sm:$0xff] %v761
  %896 = vst [vmem:[%s3 + $0x90] sm:$0xff] %v764
  %897 = vst [vmem:[%s3 + $0x98] sm:$0xff] %v766
  %898 = vst [vmem:[%s3 + $0xa0] sm:$0xff] %v769
  %899 = vst [vmem:[%s3 + $0xa8] sm:$0xff] %v771
  %900 = vst [vmem:[%s3 + $0xb0] sm:$0xff] %v774
  %901 = vst [vmem:[%s3 + $0xb8] sm:$0xff] %v776
  %902 = vst [vmem:[%s3 + $0xc0] sm:$0xff] %v779
  %903 = vst [vmem:[%s3 + $0xc8] sm:$0xff] %v781
  %904 = vst [vmem:[%s3 + $0xd0] sm:$0xff] %v784
  %905 = vst [vmem:[%s3 + $0xd8] sm:$0xff] %v786
  %906 = vst [vmem:[%s3 + $0xe0] sm:$0xff] %v789
  %907 = vst [vmem:[%s3 + $0xe8] sm:$0xff] %v791
  %908 = vst [vmem:[%s3 + $0xf0] sm:$0xff] %v794
  %909 = vst [vmem:[%s3 + $0xf8] sm:$0xff] %v796
  %910 = vst [vmem:[%s3 + $0x100] sm:$0xff] %v799
  %911 = vst [vmem:[%s3 + $0x108] sm:$0xff] %v801
  %912 = vst [vmem:[%s3 + $0x110] sm:$0xff] %v804
  %913 = vst [vmem:[%s3 + $0x118] sm:$0xff] %v806
  %914 = vst [vmem:[%s3 + $0x120] sm:$0xff] %v809
  %915 = vst [vmem:[%s3 + $0x128] sm:$0xff] %v811
  %916 = vst [vmem:[%s3 + $0x130] sm:$0xff] %v814
  %917 = vst [vmem:[%s3 + $0x138] sm:$0xff] %v816
  %918 = vst [vmem:[%s3 + $0x140] sm:$0xff] %v819
  %919 = vst [vmem:[%s3 + $0x148] sm:$0xff] %v821
  %920 = vst [vmem:[%s3 + $0x150] sm:$0xff] %v824
  %921 = vst [vmem:[%s3 + $0x158] sm:$0xff] %v826
  %922 = vst [vmem:[%s3 + $0x160] sm:$0xff] %v829
  %923 = vst [vmem:[%s3 + $0x168] sm:$0xff] %v831
  %924 = vst [vmem:[%s3 + $0x170] sm:$0xff] %v834
  %925 = vst [vmem:[%s3 + $0x178] sm:$0xff] %v836
  %926 = vst [vmem:[%s3 + $0x180] sm:$0xff] %v839
  %927 = vst [vmem:[%s3 + $0x188] sm:$0xff] %v841
  %928 = vst [vmem:[%s3 + $0x190] sm:$0xff] %v844
  %929 = vst [vmem:[%s3 + $0x198] sm:$0xff] %v846
  %930 = vst [vmem:[%s3 + $0x1a0] sm:$0xff] %v849
  %931 = vst [vmem:[%s3 + $0x1a8] sm:$0xff] %v851
  %932 = vst [vmem:[%s3 + $0x1b0] sm:$0xff] %v854
  %933 = vst [vmem:[%s3 + $0x1b8] sm:$0xff] %v856
  %934 = vst [vmem:[%s3 + $0x1c0] sm:$0xff] %v859
  %935 = vst [vmem:[%s3 + $0x1c8] sm:$0xff] %v861
  %936 = vst [vmem:[%s3 + $0x1d0] sm:$0xff] %v864
  %937 = vst [vmem:[%s3 + $0x1d8] sm:$0xff] %v866
  %938 = vst [vmem:[%s3 + $0x1e0] sm:$0xff] %v869
  %939 = vst [vmem:[%s3 + $0x1e8] sm:$0xff] %v871
  %940 = vst [vmem:[%s3 + $0x1f0] sm:$0xff] %v874
  %941 = vst [vmem:[%s3 + $0x1f8] sm:$0xff] %v876
  %v942 = vld [vmem:[%s5] sm:$0x1]
  %v943 = vadd.f32 %v719, %v721
  %v944 = vadd.f32 %v943, %v724
  %v945 = vadd.f32 %v944, %v726
  %v946 = vadd.f32 %v945, %v729
  %v947 = vadd.f32 %v946, %v731
  %v948 = vadd.f32 %v947, %v734
  %v949 = vadd.f32 %v948, %v736
  %v950 = vadd.f32 %v949, %v739
  %v951 = vadd.f32 %v950, %v741
  %v952 = vadd.f32 %v951, %v744
  %v953 = vadd.f32 %v952, %v746
  %v954 = vadd.f32 %v953, %v749
  %v955 = vadd.f32 %v954, %v751
  %v956 = vadd.f32 %v955, %v754
  %v957 = vadd.f32 %v956, %v756
  %v958 = vadd.f32 %v957, %v759
  %v959 = vadd.f32 %v958, %v761
  %v960 = vadd.f32 %v959, %v764
  %v961 = vadd.f32 %v960, %v766
  %v962 = vadd.f32 %v961, %v769
  %v963 = vadd.f32 %v962, %v771
  %v964 = vadd.f32 %v963, %v774
  %v965 = vadd.f32 %v964, %v776
  %v966 = vadd.f32 %v965, %v779
  %v967 = vadd.f32 %v966, %v781
  %v968 = vadd.f32 %v967, %v784
  %v969 = vadd.f32 %v968, %v786
  %v970 = vadd.f32 %v969, %v789
  %v971 = vadd.f32 %v970, %v791
  %v972 = vadd.f32 %v971, %v794
  %v973 = vadd.f32 %v972, %v796
  %v974 = vadd.f32 %v973, %v799
  %v975 = vadd.f32 %v974, %v801
  %v976 = vadd.f32 %v975, %v804
  %v977 = vadd.f32 %v976, %v806
  %v978 = vadd.f32 %v977, %v809
  %v979 = vadd.f32 %v978, %v811
  %v980 = vadd.f32 %v979, %v814
  %v981 = vadd.f32 %v980, %v816
  %v982 = vadd.f32 %v981, %v819
  %v983 = vadd.f32 %v982, %v821
  %v984 = vadd.f32 %v983, %v824
  %v985 = vadd.f32 %v984, %v826
  %v986 = vadd.f32 %v985, %v829
  %v987 = vadd.f32 %v986, %v831
  %v988 = vadd.f32 %v987, %v834
  %v989 = vadd.f32 %v988, %v836
  %v990 = vadd.f32 %v989, %v839
  %v991 = vadd.f32 %v990, %v841
  %v992 = vadd.f32 %v991, %v844
  %v993 = vadd.f32 %v992, %v846
  %v994 = vadd.f32 %v993, %v849
  %v995 = vadd.f32 %v994, %v851
  %v996 = vadd.f32 %v995, %v854
  %v997 = vadd.f32 %v996, %v856
  %v998 = vadd.f32 %v997, %v859
  %v999 = vadd.f32 %v998, %v861
  %v1000 = vadd.f32 %v999, %v864
  %v1001 = vadd.f32 %v1000, %v866
  %v1002 = vadd.f32 %v1001, %v869
  %v1003 = vadd.f32 %v1002, %v871
  %v1004 = vadd.f32 %v1003, %v874
  %v1005 = vadd.f32 %v1004, %v876
  %v1006 = vrot.slane %v1005, 4
  %v1007 = vadd.f32 %v1005, %v1006
  %v1008 = vrot.slane %v1007, 2
  %v1009 = vadd.f32 %v1007, %v1008
  %v1010 = vrot.slane %v1009, 1
  %v1011 = vadd.f32 %v1009, %v1010
  %v1012 = vadd.f32 %v942, %v1011
  %1013 = vst [vmem:[%s5] sm:$0x1] %v1012
  %v1014 = vld [vmem:[%s7] sm:$0x1]
  %v1015 = vmul.f32 %v719, %v719
  %v1016 = vmul.f32 %v721, %v721
  %v1017 = vmul.f32 %v724, %v724
  %v1018 = vmul.f32 %v726, %v726
  %v1019 = vmul.f32 %v729, %v729
  %v1020 = vmul.f32 %v731, %v731
  %v1021 = vmul.f32 %v734, %v734
  %v1022 = vmul.f32 %v736, %v736
  %v1023 = vmul.f32 %v739, %v739
  %v1024 = vmul.f32 %v741, %v741
  %v1025 = vmul.f32 %v744, %v744
  %v1026 = vmul.f32 %v746, %v746
  %v1027 = vmul.f32 %v749, %v749
  %v1028 = vmul.f32 %v751, %v751
  %v1029 = vmul.f32 %v754, %v754
  %v1030 = vmul.f32 %v756, %v756
  %v1031 = vmul.f32 %v759, %v759
  %v1032 = vmul.f32 %v761, %v761
  %v1033 = vmul.f32 %v764, %v764
  %v1034 = vmul.f32 %v766, %v766
  %v1035 = vmul.f32 %v769, %v769
  %v1036 = vmul.f32 %v771, %v771
  %v1037 = vmul.f32 %v774, %v774
  %v1038 = vmul.f32 %v776, %v776
  %v1039 = vmul.f32 %v779, %v779
  %v1040 = vmul.f32 %v781, %v781
  %v1041 = vmul.f32 %v784, %v784
  %v1042 = vmul.f32 %v786, %v786
  %v1043 = vmul.f32 %v789, %v789
  %v1044 = vmul.f32 %v791, %v791
  %v1045 = vmul.f32 %v794, %v794
  %v1046 = vmul.f32 %v796, %v796
  %v1047 = vmul.f32 %v799, %v799
  %v1048 = vmul.f32 %v801, %v801
  %v1049 = vmul.f32 %v804, %v804
  %v1050 = vmul.f32 %v806, %v806
  %v1051 = vmul.f32 %v809, %v809
  %v1052 = vmul.f32 %v811, %v811
  %v1053 = vmul.f32 %v814, %v814
  %v1054 = vmul.f32 %v816, %v816
  %v1055 = vmul.f32 %v819, %v819
  %v1056 = vmul.f32 %v821, %v821
  %v1057 = vmul.f32 %v824, %v824
  %v1058 = vmul.f32 %v826, %v826
  %v1059 = vmul.f32 %v829, %v829
  %v1060 = vmul.f32 %v831, %v831
  %v1061 = vmul.f32 %v834, %v834
  %v1062 = vmul.f32 %v836, %v836
  %v1063 = vmul.f32 %v839, %v839
  %v1064 = vmul.f32 %v841, %v841
  %v1065 = vmul.f32 %v844, %v844
  %v1066 = vmul.f32 %v846, %v846
  %v1067 = vmul.f32 %v849, %v849
  %v1068 = vmul.f32 %v851, %v851
  %v1069 = vmul.f32 %v854, %v854
  %v1070 = vmul.f32 %v856, %v856
  %v1071 = vmul.f32 %v859, %v859
  %v1072 = vmul.f32 %v861, %v861
  %v1073 = vmul.f32 %v864, %v864
  %v1074 = vmul.f32 %v866, %v866
  %v1075 = vmul.f32 %v869, %v869
  %v1076 = vmul.f32 %v871, %v871
  %v1077 = vmul.f32 %v874, %v874
  %v1078 = vmul.f32 %v876, %v876
  %v1079 = vadd.f32 %v1015, %v1016
  %v1080 = vadd.f32 %v1079, %v1017
  %v1081 = vadd.f32 %v1080, %v1018
  %v1082 = vadd.f32 %v1081, %v1019
  %v1083 = vadd.f32 %v1082, %v1020
  %v1084 = vadd.f32 %v1083, %v1021
  %v1085 = vadd.f32 %v1084, %v1022
  %v1086 = vadd.f32 %v1085, %v1023
  %v1087 = vadd.f32 %v1086, %v1024
  %v1088 = vadd.f32 %v1087, %v1025
  %v1089 = vadd.f32 %v1088, %v1026
  %v1090 = vadd.f32 %v1089, %v1027
  %v1091 = vadd.f32 %v1090, %v1028
  %v1092 = vadd.f32 %v1091, %v1029
  %v1093 = vadd.f32 %v1092, %v1030
  %v1094 = vadd.f32 %v1093, %v1031
  %v1095 = vadd.f32 %v1094, %v1032
  %v1096 = vadd.f32 %v1095, %v1033
  %v1097 = vadd.f32 %v1096, %v1034
  %v1098 = vadd.f32 %v1097, %v1035
  %v1099 = vadd.f32 %v1098, %v1036
  %v1100 = vadd.f32 %v1099, %v1037
  %v1101 = vadd.f32 %v1100, %v1038
  %v1102 = vadd.f32 %v1101, %v1039
  %v1103 = vadd.f32 %v1102, %v1040
  %v1104 = vadd.f32 %v1103, %v1041
  %v1105 = vadd.f32 %v1104, %v1042
  %v1106 = vadd.f32 %v1105, %v1043
  %v1107 = vadd.f32 %v1106, %v1044
  %v1108 = vadd.f32 %v1107, %v1045
  %v1109 = vadd.f32 %v1108, %v1046
  %v1110 = vadd.f32 %v1109, %v1047
  %v1111 = vadd.f32 %v1110, %v1048
  %v1112 = vadd.f32 %v1111, %v1049
  %v1113 = vadd.f32 %v1112, %v1050
  %v1114 = vadd.f32 %v1113, %v1051
  %v1115 = vadd.f32 %v1114, %v1052
  %v1116 = vadd.f32 %v1115, %v1053
  %v1117 = vadd.f32 %v1116, %v1054
  %v1118 = vadd.f32 %v1117, %v1055
  %v1119 = vadd.f32 %v1118, %v1056
  %v1120 = vadd.f32 %v1119, %v1057
  %v1121 = vadd.f32 %v1120, %v1058
  %v1122 = vadd.f32 %v1121, %v1059
  %v1123 = vadd.f32 %v1122, %v1060
  %v1124 = vadd.f32 %v1123, %v1061
  %v1125 = vadd.f32 %v1124, %v1062
  %v1126 = vadd.f32 %v1125, %v1063
  %v1127 = vadd.f32 %v1126, %v1064
  %v1128 = vadd.f32 %v1127, %v1065
  %v1129 = vadd.f32 %v1128, %v1066
  %v1130 = vadd.f32 %v1129, %v1067
  %v1131 = vadd.f32 %v1130, %v1068
  %v1132 = vadd.f32 %v1131, %v1069
  %v1133 = vadd.f32 %v1132, %v1070
  %v1134 = vadd.f32 %v1133, %v1071
  %v1135 = vadd.f32 %v1134, %v1072
  %v1136 = vadd.f32 %v1135, %v1073
  %v1137 = vadd.f32 %v1136, %v1074
  %v1138 = vadd.f32 %v1137, %v1075
  %v1139 = vadd.f32 %v1138, %v1076
  %v1140 = vadd.f32 %v1139, %v1077
  %v1141 = vadd.f32 %v1140, %v1078
  %v1142 = vrot.slane %v1141, 4
  %v1143 = vadd.f32 %v1141, %v1142
  %v1144 = vrot.slane %v1143, 2
  %v1145 = vadd.f32 %v1143, %v1144
  %v1146 = vrot.slane %v1145, 1
  %v1147 = vadd.f32 %v1145, %v1146
  %v1148 = vadd.f32 %v1014, %v1147
  %1149 = vst [vmem:[%s7] sm:$0x1] %v1148
  %v1150 = vld [vmem:[%s2] sm:$0xf]
  %v1151 = vld [vmem:[%s2 + $0x4] sm:$0xf]
  %v1152 = vld [vmem:[%s2 + $0x8] sm:$0xf]
  %v1153 = vld [vmem:[%s2 + $0xc] sm:$0xf]
  %v1154 = vld [vmem:[%s2 + $0x10] sm:$0xf]
  %v1155 = vld [vmem:[%s2 + $0x14] sm:$0xf]
  %v1156 = vld [vmem:[%s2 + $0x18] sm:$0xf]
  %v1157 = vld [vmem:[%s2 + $0x1c] sm:$0xf]
  %v1158 = vld [vmem:[%s2 + $0x20] sm:$0xf]
  %v1159 = vld [vmem:[%s2 + $0x24] sm:$0xf]
  %v1160 = vld [vmem:[%s2 + $0x28] sm:$0xf]
  %v1161 = vld [vmem:[%s2 + $0x2c] sm:$0xf]
  %v1162 = vld [vmem:[%s2 + $0x30] sm:$0xf]
  %v1163 = vld [vmem:[%s2 + $0x34] sm:$0xf]
  %v1164 = vld [vmem:[%s2 + $0x38] sm:$0xf]
  %v1165 = vld [vmem:[%s2 + $0x3c] sm:$0xf]
  %v1166 = vld [vmem:[%s2 + $0x40] sm:$0xf]
  %v1167 = vld [vmem:[%s2 + $0x44] sm:$0xf]
  %v1168 = vld [vmem:[%s2 + $0x48] sm:$0xf]
  %v1169 = vld [vmem:[%s2 + $0x4c] sm:$0xf]
  %v1170 = vld [vmem:[%s2 + $0x50] sm:$0xf]
  %v1171 = vld [vmem:[%s2 + $0x54] sm:$0xf]
  %v1172 = vld [vmem:[%s2 + $0x58] sm:$0xf]
  %v1173 = vld [vmem:[%s2 + $0x5c] sm:$0xf]
  %v1174 = vld [vmem:[%s2 + $0x60] sm:$0xf]
  %v1175 = vld [vmem:[%s2 + $0x64] sm:$0xf]
  %v1176 = vld [vmem:[%s2 + $0x68] sm:$0xf]
  %v1177 = vld [vmem:[%s2 + $0x6c] sm:$0xf]
  %v1178 = vld [vmem:[%s2 + $0x70] sm:$0xf]
  %v1179 = vld [vmem:[%s2 + $0x74] sm:$0xf]
  %v1180 = vld [vmem:[%s2 + $0x78] sm:$0xf]
  %v1181 = vld [vmem:[%s2 + $0x7c] sm:$0xf]
  %v1214 = vunpack.c.l.b16 %v1150
  %v1215 = vunpack.c.l.b16 %v1151
  %v1216 = vunpack.c.l.b16 %v1152
  %v1217 = vunpack.c.l.b16 %v1153
  %v1218 = vunpack.c.l.b16 %v1154
  %v1219 = vunpack.c.l.b16 %v1155
  %v1220 = vunpack.c.l.b16 %v1156
  %v1221 = vunpack.c.l.b16 %v1157
  %v1222 = vunpack.c.l.b16 %v1158
  %v1223 = vunpack.c.l.b16 %v1159
  %v1224 = vunpack.c.l.b16 %v1160
  %v1225 = vunpack.c.l.b16 %v1161
  %v1226 = vunpack.c.l.b16 %v1162
  %v1227 = vunpack.c.l.b16 %v1163
  %v1228 = vunpack.c.l.b16 %v1164
  %v1229 = vunpack.c.l.b16 %v1165
  %v1230 = vunpack.c.l.b16 %v1166
  %v1231 = vunpack.c.l.b16 %v1167
  %v1232 = vunpack.c.l.b16 %v1168
  %v1233 = vunpack.c.l.b16 %v1169
  %v1234 = vunpack.c.l.b16 %v1170
  %v1235 = vunpack.c.l.b16 %v1171
  %v1236 = vunpack.c.l.b16 %v1172
  %v1237 = vunpack.c.l.b16 %v1173
  %v1238 = vunpack.c.l.b16 %v1174
  %v1239 = vunpack.c.l.b16 %v1175
  %v1240 = vunpack.c.l.b16 %v1176
  %v1241 = vunpack.c.l.b16 %v1177
  %v1242 = vunpack.c.l.b16 %v1178
  %v1243 = vunpack.c.l.b16 %v1179
  %v1244 = vunpack.c.l.b16 %v1180
  %v1245 = vunpack.c.l.b16 %v1181
  %v1246 = vpack.c.b16 %v1215, %v1214
  %v1247 = vpack.c.b16 %v1217, %v1216
  %v1248 = vpack.c.b16 %v1219, %v1218
  %v1249 = vpack.c.b16 %v1221, %v1220
  %v1250 = vpack.c.b16 %v1223, %v1222
  %v1251 = vpack.c.b16 %v1225, %v1224
  %v1252 = vpack.c.b16 %v1227, %v1226
  %v1253 = vpack.c.b16 %v1229, %v1228
  %v1254 = vpack.c.b16 %v1231, %v1230
  %v1255 = vpack.c.b16 %v1233, %v1232
  %v1256 = vpack.c.b16 %v1235, %v1234
  %v1257 = vpack.c.b16 %v1237, %v1236
  %v1258 = vpack.c.b16 %v1239, %v1238
  %v1259 = vpack.c.b16 %v1241, %v1240
  %v1260 = vpack.c.b16 %v1243, %v1242
  %v1261 = vpack.c.b16 %v1245, %v1244
  %1278 = vmatpush.bf16.msra.mxu0 %v1253
  %1279 = vmatpush.bf16.msra.mxu0 %v1252
  %1280 = vmatpush.bf16.msra.mxu0 %v1251
  %1281 = vmatpush.bf16.msra.mxu0 %v1250
  %1282 = vmatpush.bf16.msra.mxu0 %v1249
  %1283 = vmatpush.bf16.msra.mxu0 %v1248
  %1284 = vmatpush.bf16.msra.mxu0 %v1247
  %1285 = vmatpush.bf16.msra.mxu0 %v1246
  %1286 = vmatmul.bf16.gmra.mxu0 %v316
  %v1287 = vpop.f32.mrf.mxu0
  %v1288 = vadd.f32 0.0, %v1287
  %v1289 = vpop.f32.mrf.mxu0
  %v1290 = vadd.f32 0.0, %v1289
  %1291 = vmatmul.bf16.gmra.mxu0 %v318
  %v1292 = vpop.f32.mrf.mxu0
  %v1293 = vadd.f32 0.0, %v1292
  %v1294 = vpop.f32.mrf.mxu0
  %v1295 = vadd.f32 0.0, %v1294
  %1296 = vmatmul.bf16.gmra.mxu0 %v320
  %v1297 = vpop.f32.mrf.mxu0
  %v1298 = vadd.f32 0.0, %v1297
  %v1299 = vpop.f32.mrf.mxu0
  %v1300 = vadd.f32 0.0, %v1299
  %1301 = vmatmul.bf16.gmra.mxu0 %v322
  %v1302 = vpop.f32.mrf.mxu0
  %v1303 = vadd.f32 0.0, %v1302
  %v1304 = vpop.f32.mrf.mxu0
  %v1305 = vadd.f32 0.0, %v1304
  %1306 = vmatmul.bf16.gmra.mxu0 %v324
  %v1307 = vpop.f32.mrf.mxu0
  %v1308 = vadd.f32 0.0, %v1307
  %v1309 = vpop.f32.mrf.mxu0
  %v1310 = vadd.f32 0.0, %v1309
  %1311 = vmatmul.bf16.gmra.mxu0 %v326
  %v1312 = vpop.f32.mrf.mxu0
  %v1313 = vadd.f32 0.0, %v1312
  %v1314 = vpop.f32.mrf.mxu0
  %v1315 = vadd.f32 0.0, %v1314
  %1316 = vmatmul.bf16.gmra.mxu0 %v328
  %v1317 = vpop.f32.mrf.mxu0
  %v1318 = vadd.f32 0.0, %v1317
  %v1319 = vpop.f32.mrf.mxu0
  %v1320 = vadd.f32 0.0, %v1319
  %1321 = vmatmul.bf16.gmra.mxu0 %v330
  %v1322 = vpop.f32.mrf.mxu0
  %v1323 = vadd.f32 0.0, %v1322
  %v1324 = vpop.f32.mrf.mxu0
  %v1325 = vadd.f32 0.0, %v1324
  %1326 = vmatmul.bf16.gmra.mxu0 %v332
  %v1327 = vpop.f32.mrf.mxu0
  %v1328 = vadd.f32 0.0, %v1327
  %v1329 = vpop.f32.mrf.mxu0
  %v1330 = vadd.f32 0.0, %v1329
  %1331 = vmatmul.bf16.gmra.mxu0 %v334
  %v1332 = vpop.f32.mrf.mxu0
  %v1333 = vadd.f32 0.0, %v1332
  %v1334 = vpop.f32.mrf.mxu0
  %v1335 = vadd.f32 0.0, %v1334
  %1336 = vmatmul.bf16.gmra.mxu0 %v336
  %v1337 = vpop.f32.mrf.mxu0
  %v1338 = vadd.f32 0.0, %v1337
  %v1339 = vpop.f32.mrf.mxu0
  %v1340 = vadd.f32 0.0, %v1339
  %1341 = vmatmul.bf16.gmra.mxu0 %v338
  %v1342 = vpop.f32.mrf.mxu0
  %v1343 = vadd.f32 0.0, %v1342
  %v1344 = vpop.f32.mrf.mxu0
  %v1345 = vadd.f32 0.0, %v1344
  %1346 = vmatmul.bf16.gmra.mxu0 %v340
  %v1347 = vpop.f32.mrf.mxu0
  %v1348 = vadd.f32 0.0, %v1347
  %v1349 = vpop.f32.mrf.mxu0
  %v1350 = vadd.f32 0.0, %v1349
  %1351 = vmatmul.bf16.gmra.mxu0 %v342
  %v1352 = vpop.f32.mrf.mxu0
  %v1353 = vadd.f32 0.0, %v1352
  %v1354 = vpop.f32.mrf.mxu0
  %v1355 = vadd.f32 0.0, %v1354
  %1356 = vmatmul.bf16.gmra.mxu0 %v344
  %v1357 = vpop.f32.mrf.mxu0
  %v1358 = vadd.f32 0.0, %v1357
  %v1359 = vpop.f32.mrf.mxu0
  %v1360 = vadd.f32 0.0, %v1359
  %1361 = vmatmul.bf16.gmra.mxu0 %v346
  %v1362 = vpop.f32.mrf.mxu0
  %v1363 = vadd.f32 0.0, %v1362
  %v1364 = vpop.f32.mrf.mxu0
  %v1365 = vadd.f32 0.0, %v1364
  %1366 = vmatmul.bf16.gmra.mxu0 %v348
  %v1367 = vpop.f32.mrf.mxu0
  %v1368 = vadd.f32 0.0, %v1367
  %v1369 = vpop.f32.mrf.mxu0
  %v1370 = vadd.f32 0.0, %v1369
  %1371 = vmatmul.bf16.gmra.mxu0 %v350
  %v1372 = vpop.f32.mrf.mxu0
  %v1373 = vadd.f32 0.0, %v1372
  %v1374 = vpop.f32.mrf.mxu0
  %v1375 = vadd.f32 0.0, %v1374
  %1376 = vmatmul.bf16.gmra.mxu0 %v352
  %v1377 = vpop.f32.mrf.mxu0
  %v1378 = vadd.f32 0.0, %v1377
  %v1379 = vpop.f32.mrf.mxu0
  %v1380 = vadd.f32 0.0, %v1379
  %1381 = vmatmul.bf16.gmra.mxu0 %v354
  %v1382 = vpop.f32.mrf.mxu0
  %v1383 = vadd.f32 0.0, %v1382
  %v1384 = vpop.f32.mrf.mxu0
  %v1385 = vadd.f32 0.0, %v1384
  %1386 = vmatmul.bf16.gmra.mxu0 %v356
  %v1387 = vpop.f32.mrf.mxu0
  %v1388 = vadd.f32 0.0, %v1387
  %v1389 = vpop.f32.mrf.mxu0
  %v1390 = vadd.f32 0.0, %v1389
  %1391 = vmatmul.bf16.gmra.mxu0 %v358
  %v1392 = vpop.f32.mrf.mxu0
  %v1393 = vadd.f32 0.0, %v1392
  %v1394 = vpop.f32.mrf.mxu0
  %v1395 = vadd.f32 0.0, %v1394
  %1396 = vmatmul.bf16.gmra.mxu0 %v360
  %v1397 = vpop.f32.mrf.mxu0
  %v1398 = vadd.f32 0.0, %v1397
  %v1399 = vpop.f32.mrf.mxu0
  %v1400 = vadd.f32 0.0, %v1399
  %1401 = vmatmul.bf16.gmra.mxu0 %v362
  %v1402 = vpop.f32.mrf.mxu0
  %v1403 = vadd.f32 0.0, %v1402
  %v1404 = vpop.f32.mrf.mxu0
  %v1405 = vadd.f32 0.0, %v1404
  %1406 = vmatmul.bf16.gmra.mxu0 %v364
  %v1407 = vpop.f32.mrf.mxu0
  %v1408 = vadd.f32 0.0, %v1407
  %v1409 = vpop.f32.mrf.mxu0
  %v1410 = vadd.f32 0.0, %v1409
  %1411 = vmatmul.bf16.gmra.mxu0 %v366
  %v1412 = vpop.f32.mrf.mxu0
  %v1413 = vadd.f32 0.0, %v1412
  %v1414 = vpop.f32.mrf.mxu0
  %v1415 = vadd.f32 0.0, %v1414
  %1416 = vmatmul.bf16.gmra.mxu0 %v368
  %v1417 = vpop.f32.mrf.mxu0
  %v1418 = vadd.f32 0.0, %v1417
  %v1419 = vpop.f32.mrf.mxu0
  %v1420 = vadd.f32 0.0, %v1419
  %1421 = vmatmul.bf16.gmra.mxu0 %v370
  %v1422 = vpop.f32.mrf.mxu0
  %v1423 = vadd.f32 0.0, %v1422
  %v1424 = vpop.f32.mrf.mxu0
  %v1425 = vadd.f32 0.0, %v1424
  %1426 = vmatmul.bf16.gmra.mxu0 %v372
  %v1427 = vpop.f32.mrf.mxu0
  %v1428 = vadd.f32 0.0, %v1427
  %v1429 = vpop.f32.mrf.mxu0
  %v1430 = vadd.f32 0.0, %v1429
  %1431 = vmatmul.bf16.gmra.mxu0 %v374
  %v1432 = vpop.f32.mrf.mxu0
  %v1433 = vadd.f32 0.0, %v1432
  %v1434 = vpop.f32.mrf.mxu0
  %v1435 = vadd.f32 0.0, %v1434
  %1436 = vmatmul.bf16.gmra.mxu0 %v376
  %v1437 = vpop.f32.mrf.mxu0
  %v1438 = vadd.f32 0.0, %v1437
  %v1439 = vpop.f32.mrf.mxu0
  %v1440 = vadd.f32 0.0, %v1439
  %1441 = vmatmul.bf16.gmra.mxu0 %v378
  %v1442 = vpop.f32.mrf.mxu0
  %v1443 = vadd.f32 0.0, %v1442
  %v1444 = vpop.f32.mrf.mxu0
  %v1445 = vadd.f32 0.0, %v1444
  %1446 = vdwg.mxu0
  %1447 = vmatpush.bf16.msra.mxu0 %v1261
  %1448 = vmatpush.bf16.msra.mxu0 %v1260
  %1449 = vmatpush.bf16.msra.mxu0 %v1259
  %1450 = vmatpush.bf16.msra.mxu0 %v1258
  %1451 = vmatpush.bf16.msra.mxu0 %v1257
  %1452 = vmatpush.bf16.msra.mxu0 %v1256
  %1453 = vmatpush.bf16.msra.mxu0 %v1255
  %1454 = vmatpush.bf16.msra.mxu0 %v1254
  %1455 = vmatmul.bf16.gmra.mxu0 %v317
  %v1456 = vpop.f32.mrf.mxu0
  %v1457 = vadd.f32 %v1288, %v1456
  %v1458 = vpop.f32.mrf.mxu0
  %v1459 = vadd.f32 %v1290, %v1458
  %1460 = vmatmul.bf16.gmra.mxu0 %v319
  %v1461 = vpop.f32.mrf.mxu0
  %v1462 = vadd.f32 %v1293, %v1461
  %v1463 = vpop.f32.mrf.mxu0
  %v1464 = vadd.f32 %v1295, %v1463
  %1465 = vmatmul.bf16.gmra.mxu0 %v321
  %v1466 = vpop.f32.mrf.mxu0
  %v1467 = vadd.f32 %v1298, %v1466
  %v1468 = vpop.f32.mrf.mxu0
  %v1469 = vadd.f32 %v1300, %v1468
  %1470 = vmatmul.bf16.gmra.mxu0 %v323
  %v1471 = vpop.f32.mrf.mxu0
  %v1472 = vadd.f32 %v1303, %v1471
  %v1473 = vpop.f32.mrf.mxu0
  %v1474 = vadd.f32 %v1305, %v1473
  %1475 = vmatmul.bf16.gmra.mxu0 %v325
  %v1476 = vpop.f32.mrf.mxu0
  %v1477 = vadd.f32 %v1308, %v1476
  %v1478 = vpop.f32.mrf.mxu0
  %v1479 = vadd.f32 %v1310, %v1478
  %1480 = vmatmul.bf16.gmra.mxu0 %v327
  %v1481 = vpop.f32.mrf.mxu0
  %v1482 = vadd.f32 %v1313, %v1481
  %v1483 = vpop.f32.mrf.mxu0
  %v1484 = vadd.f32 %v1315, %v1483
  %1485 = vmatmul.bf16.gmra.mxu0 %v329
  %v1486 = vpop.f32.mrf.mxu0
  %v1487 = vadd.f32 %v1318, %v1486
  %v1488 = vpop.f32.mrf.mxu0
  %v1489 = vadd.f32 %v1320, %v1488
  %1490 = vmatmul.bf16.gmra.mxu0 %v331
  %v1491 = vpop.f32.mrf.mxu0
  %v1492 = vadd.f32 %v1323, %v1491
  %v1493 = vpop.f32.mrf.mxu0
  %v1494 = vadd.f32 %v1325, %v1493
  %1495 = vmatmul.bf16.gmra.mxu0 %v333
  %v1496 = vpop.f32.mrf.mxu0
  %v1497 = vadd.f32 %v1328, %v1496
  %v1498 = vpop.f32.mrf.mxu0
  %v1499 = vadd.f32 %v1330, %v1498
  %1500 = vmatmul.bf16.gmra.mxu0 %v335
  %v1501 = vpop.f32.mrf.mxu0
  %v1502 = vadd.f32 %v1333, %v1501
  %v1503 = vpop.f32.mrf.mxu0
  %v1504 = vadd.f32 %v1335, %v1503
  %1505 = vmatmul.bf16.gmra.mxu0 %v337
  %v1506 = vpop.f32.mrf.mxu0
  %v1507 = vadd.f32 %v1338, %v1506
  %v1508 = vpop.f32.mrf.mxu0
  %v1509 = vadd.f32 %v1340, %v1508
  %1510 = vmatmul.bf16.gmra.mxu0 %v339
  %v1511 = vpop.f32.mrf.mxu0
  %v1512 = vadd.f32 %v1343, %v1511
  %v1513 = vpop.f32.mrf.mxu0
  %v1514 = vadd.f32 %v1345, %v1513
  %1515 = vmatmul.bf16.gmra.mxu0 %v341
  %v1516 = vpop.f32.mrf.mxu0
  %v1517 = vadd.f32 %v1348, %v1516
  %v1518 = vpop.f32.mrf.mxu0
  %v1519 = vadd.f32 %v1350, %v1518
  %1520 = vmatmul.bf16.gmra.mxu0 %v343
  %v1521 = vpop.f32.mrf.mxu0
  %v1522 = vadd.f32 %v1353, %v1521
  %v1523 = vpop.f32.mrf.mxu0
  %v1524 = vadd.f32 %v1355, %v1523
  %1525 = vmatmul.bf16.gmra.mxu0 %v345
  %v1526 = vpop.f32.mrf.mxu0
  %v1527 = vadd.f32 %v1358, %v1526
  %v1528 = vpop.f32.mrf.mxu0
  %v1529 = vadd.f32 %v1360, %v1528
  %1530 = vmatmul.bf16.gmra.mxu0 %v347
  %v1531 = vpop.f32.mrf.mxu0
  %v1532 = vadd.f32 %v1363, %v1531
  %v1533 = vpop.f32.mrf.mxu0
  %v1534 = vadd.f32 %v1365, %v1533
  %1535 = vmatmul.bf16.gmra.mxu0 %v349
  %v1536 = vpop.f32.mrf.mxu0
  %v1537 = vadd.f32 %v1368, %v1536
  %v1538 = vpop.f32.mrf.mxu0
  %v1539 = vadd.f32 %v1370, %v1538
  %1540 = vmatmul.bf16.gmra.mxu0 %v351
  %v1541 = vpop.f32.mrf.mxu0
  %v1542 = vadd.f32 %v1373, %v1541
  %v1543 = vpop.f32.mrf.mxu0
  %v1544 = vadd.f32 %v1375, %v1543
  %1545 = vmatmul.bf16.gmra.mxu0 %v353
  %v1546 = vpop.f32.mrf.mxu0
  %v1547 = vadd.f32 %v1378, %v1546
  %v1548 = vpop.f32.mrf.mxu0
  %v1549 = vadd.f32 %v1380, %v1548
  %1550 = vmatmul.bf16.gmra.mxu0 %v355
  %v1551 = vpop.f32.mrf.mxu0
  %v1552 = vadd.f32 %v1383, %v1551
  %v1553 = vpop.f32.mrf.mxu0
  %v1554 = vadd.f32 %v1385, %v1553
  %1555 = vmatmul.bf16.gmra.mxu0 %v357
  %v1556 = vpop.f32.mrf.mxu0
  %v1557 = vadd.f32 %v1388, %v1556
  %v1558 = vpop.f32.mrf.mxu0
  %v1559 = vadd.f32 %v1390, %v1558
  %1560 = vmatmul.bf16.gmra.mxu0 %v359
  %v1561 = vpop.f32.mrf.mxu0
  %v1562 = vadd.f32 %v1393, %v1561
  %v1563 = vpop.f32.mrf.mxu0
  %v1564 = vadd.f32 %v1395, %v1563
  %1565 = vmatmul.bf16.gmra.mxu0 %v361
  %v1566 = vpop.f32.mrf.mxu0
  %v1567 = vadd.f32 %v1398, %v1566
  %v1568 = vpop.f32.mrf.mxu0
  %v1569 = vadd.f32 %v1400, %v1568
  %1570 = vmatmul.bf16.gmra.mxu0 %v363
  %v1571 = vpop.f32.mrf.mxu0
  %v1572 = vadd.f32 %v1403, %v1571
  %v1573 = vpop.f32.mrf.mxu0
  %v1574 = vadd.f32 %v1405, %v1573
  %1575 = vmatmul.bf16.gmra.mxu0 %v365
  %v1576 = vpop.f32.mrf.mxu0
  %v1577 = vadd.f32 %v1408, %v1576
  %v1578 = vpop.f32.mrf.mxu0
  %v1579 = vadd.f32 %v1410, %v1578
  %1580 = vmatmul.bf16.gmra.mxu0 %v367
  %v1581 = vpop.f32.mrf.mxu0
  %v1582 = vadd.f32 %v1413, %v1581
  %v1583 = vpop.f32.mrf.mxu0
  %v1584 = vadd.f32 %v1415, %v1583
  %1585 = vmatmul.bf16.gmra.mxu0 %v369
  %v1586 = vpop.f32.mrf.mxu0
  %v1587 = vadd.f32 %v1418, %v1586
  %v1588 = vpop.f32.mrf.mxu0
  %v1589 = vadd.f32 %v1420, %v1588
  %1590 = vmatmul.bf16.gmra.mxu0 %v371
  %v1591 = vpop.f32.mrf.mxu0
  %v1592 = vadd.f32 %v1423, %v1591
  %v1593 = vpop.f32.mrf.mxu0
  %v1594 = vadd.f32 %v1425, %v1593
  %1595 = vmatmul.bf16.gmra.mxu0 %v373
  %v1596 = vpop.f32.mrf.mxu0
  %v1597 = vadd.f32 %v1428, %v1596
  %v1598 = vpop.f32.mrf.mxu0
  %v1599 = vadd.f32 %v1430, %v1598
  %1600 = vmatmul.bf16.gmra.mxu0 %v375
  %v1601 = vpop.f32.mrf.mxu0
  %v1602 = vadd.f32 %v1433, %v1601
  %v1603 = vpop.f32.mrf.mxu0
  %v1604 = vadd.f32 %v1435, %v1603
  %1605 = vmatmul.bf16.gmra.mxu0 %v377
  %v1606 = vpop.f32.mrf.mxu0
  %v1607 = vadd.f32 %v1438, %v1606
  %v1608 = vpop.f32.mrf.mxu0
  %v1609 = vadd.f32 %v1440, %v1608
  %1610 = vmatmul.bf16.gmra.mxu0 %v379
  %v1611 = vpop.f32.mrf.mxu0
  %v1612 = vadd.f32 %v1443, %v1611
  %v1613 = vpop.f32.mrf.mxu0
  %v1614 = vadd.f32 %v1445, %v1613
  %1615 = vdwg.mxu0
  %1616 = vst [vmem:[%s4] sm:$0xff] %v1457
  %1617 = vst [vmem:[%s4 + $0x8] sm:$0xff] %v1459
  %1618 = vst [vmem:[%s4 + $0x10] sm:$0xff] %v1462
  %1619 = vst [vmem:[%s4 + $0x18] sm:$0xff] %v1464
  %1620 = vst [vmem:[%s4 + $0x20] sm:$0xff] %v1467
  %1621 = vst [vmem:[%s4 + $0x28] sm:$0xff] %v1469
  %1622 = vst [vmem:[%s4 + $0x30] sm:$0xff] %v1472
  %1623 = vst [vmem:[%s4 + $0x38] sm:$0xff] %v1474
  %1624 = vst [vmem:[%s4 + $0x40] sm:$0xff] %v1477
  %1625 = vst [vmem:[%s4 + $0x48] sm:$0xff] %v1479
  %1626 = vst [vmem:[%s4 + $0x50] sm:$0xff] %v1482
  %1627 = vst [vmem:[%s4 + $0x58] sm:$0xff] %v1484
  %1628 = vst [vmem:[%s4 + $0x60] sm:$0xff] %v1487
  %1629 = vst [vmem:[%s4 + $0x68] sm:$0xff] %v1489
  %1630 = vst [vmem:[%s4 + $0x70] sm:$0xff] %v1492
  %1631 = vst [vmem:[%s4 + $0x78] sm:$0xff] %v1494
  %1632 = vst [vmem:[%s4 + $0x80] sm:$0xff] %v1497
  %1633 = vst [vmem:[%s4 + $0x88] sm:$0xff] %v1499
  %1634 = vst [vmem:[%s4 + $0x90] sm:$0xff] %v1502
  %1635 = vst [vmem:[%s4 + $0x98] sm:$0xff] %v1504
  %1636 = vst [vmem:[%s4 + $0xa0] sm:$0xff] %v1507
  %1637 = vst [vmem:[%s4 + $0xa8] sm:$0xff] %v1509
  %1638 = vst [vmem:[%s4 + $0xb0] sm:$0xff] %v1512
  %1639 = vst [vmem:[%s4 + $0xb8] sm:$0xff] %v1514
  %1640 = vst [vmem:[%s4 + $0xc0] sm:$0xff] %v1517
  %1641 = vst [vmem:[%s4 + $0xc8] sm:$0xff] %v1519
  %1642 = vst [vmem:[%s4 + $0xd0] sm:$0xff] %v1522
  %1643 = vst [vmem:[%s4 + $0xd8] sm:$0xff] %v1524
  %1644 = vst [vmem:[%s4 + $0xe0] sm:$0xff] %v1527
  %1645 = vst [vmem:[%s4 + $0xe8] sm:$0xff] %v1529
  %1646 = vst [vmem:[%s4 + $0xf0] sm:$0xff] %v1532
  %1647 = vst [vmem:[%s4 + $0xf8] sm:$0xff] %v1534
  %1648 = vst [vmem:[%s4 + $0x100] sm:$0xff] %v1537
  %1649 = vst [vmem:[%s4 + $0x108] sm:$0xff] %v1539
  %1650 = vst [vmem:[%s4 + $0x110] sm:$0xff] %v1542
  %1651 = vst [vmem:[%s4 + $0x118] sm:$0xff] %v1544
  %1652 = vst [vmem:[%s4 + $0x120] sm:$0xff] %v1547
  %1653 = vst [vmem:[%s4 + $0x128] sm:$0xff] %v1549
  %1654 = vst [vmem:[%s4 + $0x130] sm:$0xff] %v1552
  %1655 = vst [vmem:[%s4 + $0x138] sm:$0xff] %v1554
  %1656 = vst [vmem:[%s4 + $0x140] sm:$0xff] %v1557
  %1657 = vst [vmem:[%s4 + $0x148] sm:$0xff] %v1559
  %1658 = vst [vmem:[%s4 + $0x150] sm:$0xff] %v1562
  %1659 = vst [vmem:[%s4 + $0x158] sm:$0xff] %v1564
  %1660 = vst [vmem:[%s4 + $0x160] sm:$0xff] %v1567
  %1661 = vst [vmem:[%s4 + $0x168] sm:$0xff] %v1569
  %1662 = vst [vmem:[%s4 + $0x170] sm:$0xff] %v1572
  %1663 = vst [vmem:[%s4 + $0x178] sm:$0xff] %v1574
  %1664 = vst [vmem:[%s4 + $0x180] sm:$0xff] %v1577
  %1665 = vst [vmem:[%s4 + $0x188] sm:$0xff] %v1579
  %1666 = vst [vmem:[%s4 + $0x190] sm:$0xff] %v1582
  %1667 = vst [vmem:[%s4 + $0x198] sm:$0xff] %v1584
  %1668 = vst [vmem:[%s4 + $0x1a0] sm:$0xff] %v1587
  %1669 = vst [vmem:[%s4 + $0x1a8] sm:$0xff] %v1589
  %1670 = vst [vmem:[%s4 + $0x1b0] sm:$0xff] %v1592
  %1671 = vst [vmem:[%s4 + $0x1b8] sm:$0xff] %v1594
  %1672 = vst [vmem:[%s4 + $0x1c0] sm:$0xff] %v1597
  %1673 = vst [vmem:[%s4 + $0x1c8] sm:$0xff] %v1599
  %1674 = vst [vmem:[%s4 + $0x1d0] sm:$0xff] %v1602
  %1675 = vst [vmem:[%s4 + $0x1d8] sm:$0xff] %v1604
  %1676 = vst [vmem:[%s4 + $0x1e0] sm:$0xff] %v1607
  %1677 = vst [vmem:[%s4 + $0x1e8] sm:$0xff] %v1609
  %1678 = vst [vmem:[%s4 + $0x1f0] sm:$0xff] %v1612
  %1679 = vst [vmem:[%s4 + $0x1f8] sm:$0xff] %v1614
  %v1680 = vld [vmem:[%s6] sm:$0x1]
  %v1681 = vadd.f32 %v1457, %v1459
  %v1682 = vadd.f32 %v1681, %v1462
  %v1683 = vadd.f32 %v1682, %v1464
  %v1684 = vadd.f32 %v1683, %v1467
  %v1685 = vadd.f32 %v1684, %v1469
  %v1686 = vadd.f32 %v1685, %v1472
  %v1687 = vadd.f32 %v1686, %v1474
  %v1688 = vadd.f32 %v1687, %v1477
  %v1689 = vadd.f32 %v1688, %v1479
  %v1690 = vadd.f32 %v1689, %v1482
  %v1691 = vadd.f32 %v1690, %v1484
  %v1692 = vadd.f32 %v1691, %v1487
  %v1693 = vadd.f32 %v1692, %v1489
  %v1694 = vadd.f32 %v1693, %v1492
  %v1695 = vadd.f32 %v1694, %v1494
  %v1696 = vadd.f32 %v1695, %v1497
  %v1697 = vadd.f32 %v1696, %v1499
  %v1698 = vadd.f32 %v1697, %v1502
  %v1699 = vadd.f32 %v1698, %v1504
  %v1700 = vadd.f32 %v1699, %v1507
  %v1701 = vadd.f32 %v1700, %v1509
  %v1702 = vadd.f32 %v1701, %v1512
  %v1703 = vadd.f32 %v1702, %v1514
  %v1704 = vadd.f32 %v1703, %v1517
  %v1705 = vadd.f32 %v1704, %v1519
  %v1706 = vadd.f32 %v1705, %v1522
  %v1707 = vadd.f32 %v1706, %v1524
  %v1708 = vadd.f32 %v1707, %v1527
  %v1709 = vadd.f32 %v1708, %v1529
  %v1710 = vadd.f32 %v1709, %v1532
  %v1711 = vadd.f32 %v1710, %v1534
  %v1712 = vadd.f32 %v1711, %v1537
  %v1713 = vadd.f32 %v1712, %v1539
  %v1714 = vadd.f32 %v1713, %v1542
  %v1715 = vadd.f32 %v1714, %v1544
  %v1716 = vadd.f32 %v1715, %v1547
  %v1717 = vadd.f32 %v1716, %v1549
  %v1718 = vadd.f32 %v1717, %v1552
  %v1719 = vadd.f32 %v1718, %v1554
  %v1720 = vadd.f32 %v1719, %v1557
  %v1721 = vadd.f32 %v1720, %v1559
  %v1722 = vadd.f32 %v1721, %v1562
  %v1723 = vadd.f32 %v1722, %v1564
  %v1724 = vadd.f32 %v1723, %v1567
  %v1725 = vadd.f32 %v1724, %v1569
  %v1726 = vadd.f32 %v1725, %v1572
  %v1727 = vadd.f32 %v1726, %v1574
  %v1728 = vadd.f32 %v1727, %v1577
  %v1729 = vadd.f32 %v1728, %v1579
  %v1730 = vadd.f32 %v1729, %v1582
  %v1731 = vadd.f32 %v1730, %v1584
  %v1732 = vadd.f32 %v1731, %v1587
  %v1733 = vadd.f32 %v1732, %v1589
  %v1734 = vadd.f32 %v1733, %v1592
  %v1735 = vadd.f32 %v1734, %v1594
  %v1736 = vadd.f32 %v1735, %v1597
  %v1737 = vadd.f32 %v1736, %v1599
  %v1738 = vadd.f32 %v1737, %v1602
  %v1739 = vadd.f32 %v1738, %v1604
  %v1740 = vadd.f32 %v1739, %v1607
  %v1741 = vadd.f32 %v1740, %v1609
  %v1742 = vadd.f32 %v1741, %v1612
  %v1743 = vadd.f32 %v1742, %v1614
  %v1744 = vrot.slane %v1743, 4
  %v1745 = vadd.f32 %v1743, %v1744
  %v1746 = vrot.slane %v1745, 2
  %v1747 = vadd.f32 %v1745, %v1746
  %v1748 = vrot.slane %v1747, 1
  %v1749 = vadd.f32 %v1747, %v1748
  %v1750 = vadd.f32 %v1680, %v1749
  %1751 = vst [vmem:[%s6] sm:$0x1] %v1750
  %v1752 = vld [vmem:[%s8] sm:$0x1]
  %v1753 = vmul.f32 %v1457, %v1457
  %v1754 = vmul.f32 %v1459, %v1459
  %v1755 = vmul.f32 %v1462, %v1462
  %v1756 = vmul.f32 %v1464, %v1464
  %v1757 = vmul.f32 %v1467, %v1467
  %v1758 = vmul.f32 %v1469, %v1469
  %v1759 = vmul.f32 %v1472, %v1472
  %v1760 = vmul.f32 %v1474, %v1474
  %v1761 = vmul.f32 %v1477, %v1477
  %v1762 = vmul.f32 %v1479, %v1479
  %v1763 = vmul.f32 %v1482, %v1482
  %v1764 = vmul.f32 %v1484, %v1484
  %v1765 = vmul.f32 %v1487, %v1487
  %v1766 = vmul.f32 %v1489, %v1489
  %v1767 = vmul.f32 %v1492, %v1492
  %v1768 = vmul.f32 %v1494, %v1494
  %v1769 = vmul.f32 %v1497, %v1497
  %v1770 = vmul.f32 %v1499, %v1499
  %v1771 = vmul.f32 %v1502, %v1502
  %v1772 = vmul.f32 %v1504, %v1504
  %v1773 = vmul.f32 %v1507, %v1507
  %v1774 = vmul.f32 %v1509, %v1509
  %v1775 = vmul.f32 %v1512, %v1512
  %v1776 = vmul.f32 %v1514, %v1514
  %v1777 = vmul.f32 %v1517, %v1517
  %v1778 = vmul.f32 %v1519, %v1519
  %v1779 = vmul.f32 %v1522, %v1522
  %v1780 = vmul.f32 %v1524, %v1524
  %v1781 = vmul.f32 %v1527, %v1527
  %v1782 = vmul.f32 %v1529, %v1529
  %v1783 = vmul.f32 %v1532, %v1532
  %v1784 = vmul.f32 %v1534, %v1534
  %v1785 = vmul.f32 %v1537, %v1537
  %v1786 = vmul.f32 %v1539, %v1539
  %v1787 = vmul.f32 %v1542, %v1542
  %v1788 = vmul.f32 %v1544, %v1544
  %v1789 = vmul.f32 %v1547, %v1547
  %v1790 = vmul.f32 %v1549, %v1549
  %v1791 = vmul.f32 %v1552, %v1552
  %v1792 = vmul.f32 %v1554, %v1554
  %v1793 = vmul.f32 %v1557, %v1557
  %v1794 = vmul.f32 %v1559, %v1559
  %v1795 = vmul.f32 %v1562, %v1562
  %v1796 = vmul.f32 %v1564, %v1564
  %v1797 = vmul.f32 %v1567, %v1567
  %v1798 = vmul.f32 %v1569, %v1569
  %v1799 = vmul.f32 %v1572, %v1572
  %v1800 = vmul.f32 %v1574, %v1574
  %v1801 = vmul.f32 %v1577, %v1577
  %v1802 = vmul.f32 %v1579, %v1579
  %v1803 = vmul.f32 %v1582, %v1582
  %v1804 = vmul.f32 %v1584, %v1584
  %v1805 = vmul.f32 %v1587, %v1587
  %v1806 = vmul.f32 %v1589, %v1589
  %v1807 = vmul.f32 %v1592, %v1592
  %v1808 = vmul.f32 %v1594, %v1594
  %v1809 = vmul.f32 %v1597, %v1597
  %v1810 = vmul.f32 %v1599, %v1599
  %v1811 = vmul.f32 %v1602, %v1602
  %v1812 = vmul.f32 %v1604, %v1604
  %v1813 = vmul.f32 %v1607, %v1607
  %v1814 = vmul.f32 %v1609, %v1609
  %v1815 = vmul.f32 %v1612, %v1612
  %v1816 = vmul.f32 %v1614, %v1614
  %v1817 = vadd.f32 %v1753, %v1754
  %v1818 = vadd.f32 %v1817, %v1755
  %v1819 = vadd.f32 %v1818, %v1756
  %v1820 = vadd.f32 %v1819, %v1757
  %v1821 = vadd.f32 %v1820, %v1758
  %v1822 = vadd.f32 %v1821, %v1759
  %v1823 = vadd.f32 %v1822, %v1760
  %v1824 = vadd.f32 %v1823, %v1761
  %v1825 = vadd.f32 %v1824, %v1762
  %v1826 = vadd.f32 %v1825, %v1763
  %v1827 = vadd.f32 %v1826, %v1764
  %v1828 = vadd.f32 %v1827, %v1765
  %v1829 = vadd.f32 %v1828, %v1766
  %v1830 = vadd.f32 %v1829, %v1767
  %v1831 = vadd.f32 %v1830, %v1768
  %v1832 = vadd.f32 %v1831, %v1769
  %v1833 = vadd.f32 %v1832, %v1770
  %v1834 = vadd.f32 %v1833, %v1771
  %v1835 = vadd.f32 %v1834, %v1772
  %v1836 = vadd.f32 %v1835, %v1773
  %v1837 = vadd.f32 %v1836, %v1774
  %v1838 = vadd.f32 %v1837, %v1775
  %v1839 = vadd.f32 %v1838, %v1776
  %v1840 = vadd.f32 %v1839, %v1777
  %v1841 = vadd.f32 %v1840, %v1778
  %v1842 = vadd.f32 %v1841, %v1779
  %v1843 = vadd.f32 %v1842, %v1780
  %v1844 = vadd.f32 %v1843, %v1781
  %v1845 = vadd.f32 %v1844, %v1782
  %v1846 = vadd.f32 %v1845, %v1783
  %v1847 = vadd.f32 %v1846, %v1784
  %v1848 = vadd.f32 %v1847, %v1785
  %v1849 = vadd.f32 %v1848, %v1786
  %v1850 = vadd.f32 %v1849, %v1787
  %v1851 = vadd.f32 %v1850, %v1788
  %v1852 = vadd.f32 %v1851, %v1789
  %v1853 = vadd.f32 %v1852, %v1790
  %v1854 = vadd.f32 %v1853, %v1791
  %v1855 = vadd.f32 %v1854, %v1792
  %v1856 = vadd.f32 %v1855, %v1793
  %v1857 = vadd.f32 %v1856, %v1794
  %v1858 = vadd.f32 %v1857, %v1795
  %v1859 = vadd.f32 %v1858, %v1796
  %v1860 = vadd.f32 %v1859, %v1797
  %v1861 = vadd.f32 %v1860, %v1798
  %v1862 = vadd.f32 %v1861, %v1799
  %v1863 = vadd.f32 %v1862, %v1800
  %v1864 = vadd.f32 %v1863, %v1801
  %v1865 = vadd.f32 %v1864, %v1802
  %v1866 = vadd.f32 %v1865, %v1803
  %v1867 = vadd.f32 %v1866, %v1804
  %v1868 = vadd.f32 %v1867, %v1805
  %v1869 = vadd.f32 %v1868, %v1806
  %v1870 = vadd.f32 %v1869, %v1807
  %v1871 = vadd.f32 %v1870, %v1808
  %v1872 = vadd.f32 %v1871, %v1809
  %v1873 = vadd.f32 %v1872, %v1810
  %v1874 = vadd.f32 %v1873, %v1811
  %v1875 = vadd.f32 %v1874, %v1812
  %v1876 = vadd.f32 %v1875, %v1813
  %v1877 = vadd.f32 %v1876, %v1814
  %v1878 = vadd.f32 %v1877, %v1815
  %v1879 = vadd.f32 %v1878, %v1816
  %v1880 = vrot.slane %v1879, 4
  %v1881 = vadd.f32 %v1879, %v1880
  %v1882 = vrot.slane %v1881, 2
  %v1883 = vadd.f32 %v1881, %v1882
  %v1884 = vrot.slane %v1883, 1
  %v1885 = vadd.f32 %v1883, %v1884
  %v1886 = vadd.f32 %v1752, %v1885
  %1887 = vst [vmem:[%s8] sm:$0x1] %v1886
  // Predicated region
  $region18: #{resnet_encoder_forward.20} parent=0 // pred_check
    _
  $region19: #{resnet_encoder_forward.20} parent=0 // pred_check_branch
    %1889 = sbr.rel (0) target = $region21
  $region20: #{resnet_encoder_forward.20} parent=0 // pred_region
    _
  $region21: #{resnet_encoder_forward.20} parent=0 // pred_fallthru
    _
  // Predicated region
  $region22: #{resnet_encoder_forward.20} parent=0 // pred_check
    _
  $region23: #{resnet_encoder_forward.20} parent=0 // pred_check_branch
    %1891 = sbr.rel (0) target = $region25
  $region24: #{resnet_encoder_forward.20} parent=0 // pred_region
    _
  $region25: #{resnet_encoder_forward.20} parent=0 // pred_fallthru
    _
  // Predicated region
  $region26: #{resnet_encoder_forward.20} parent=0 // pred_check
    _
  $region27: #{resnet_encoder_forward.20} parent=0 // pred_check_branch
    %1893 = sbr.rel (0) target = $region29
  $region28: #{resnet_encoder_forward.20} parent=0 // pred_region
    _
  $region29: #{resnet_encoder_forward.20} parent=0 // pred_fallthru
    _
  // Predicated region
  $region30: #{resnet_encoder_forward.20} parent=0 // pred_check
    _
  $region31: #{resnet_encoder_forward.20} parent=0 // pred_check_branch
    %1895 = sbr.rel (0) target = $region33
  $region32: #{resnet_encoder_forward.20} parent=0 // pred_region
    _
  $region33: #{resnet_encoder_forward.20} parent=0 // pred_fallthru
    _
  // Predicated region
  $region34: #{resnet_encoder_forward.20} parent=0 // pred_check
    _
  $region35: #{resnet_encoder_forward.20} parent=0 // pred_check_branch
    %1897 = sbr.rel (0) target = $region37
  $region36: #{resnet_encoder_forward.20} parent=0 // pred_region
    _
  $region37: #{resnet_encoder_forward.20} parent=0 // pred_fallthru
    _
  // Predicated region
  $region38: #{resnet_encoder_forward.20} parent=0 // pred_check
    _
  $region39: #{resnet_encoder_forward.20} parent=0 // pred_check_branch
    %1899 = sbr.rel (0) target = $region41
  $region40: #{resnet_encoder_forward.20} parent=0 // pred_region
    _
  $region41: #{resnet_encoder_forward.20} parent=0 // pred_fallthru
    _
  // Predicated region
  $region42: #{resnet_encoder_forward.20} parent=0 // pred_check
    _
  $region43: #{resnet_encoder_forward.20} parent=0 // pred_check_branch
    %1901 = sbr.rel (0) target = $region45
  $region44: #{resnet_encoder_forward.20} parent=0 // pred_region
    _
  $region45: #{resnet_encoder_forward.20} parent=0 // pred_fallthru
    _
  // Predicated region
  $region46: #{resnet_encoder_forward.20} parent=0 // pred_check
    _
  $region47: #{resnet_encoder_forward.20} parent=0 // pred_check_branch
    %1903 = sbr.rel (0) target = $region49
  $region48: #{resnet_encoder_forward.20} parent=0 // pred_region
    _
  $region49: #{resnet_encoder_forward.20} parent=0 // pred_fallthru
    _
  // Predicated region
  $region50: #{resnet_encoder_forward.20} parent=0 // pred_check
    _
  $region51: #{resnet_encoder_forward.20} parent=0 // pred_check_branch
    %1905 = sbr.rel (0) target = $region53
  $region52: #{resnet_encoder_forward.20} parent=0 // pred_region
    _
  $region53: #{resnet_encoder_forward.20} parent=0 // pred_fallthru
    _
  // Predicated region
  $region54: #{resnet_encoder_forward.20} parent=0 // pred_check
    _
  $region55: #{resnet_encoder_forward.20} parent=0 // pred_check_branch
    %1907 = sbr.rel (0) target = $region57
  $region56: #{resnet_encoder_forward.20} parent=0 // pred_region
    _
  $region57: #{resnet_encoder_forward.20} parent=0 // pred_fallthru
    _
  // Predicated region
  $region58: #{resnet_encoder_forward.20} parent=0 // pred_check
    _
  $region59: #{resnet_encoder_forward.20} parent=0 // pred_check_branch
    %1909 = sbr.rel (0) target = $region61
  $region60: #{resnet_encoder_forward.20} parent=0 // pred_region
    _
  $region61: #{resnet_encoder_forward.20} parent=0 // pred_fallthru
    _
  // Predicated region
  $region62: #{resnet_encoder_forward.20} parent=0 // pred_check
    _
  $region63: #{resnet_encoder_forward.20} parent=0 // pred_check_branch
    %1911 = sbr.rel (0) target = $region65
  $region64: #{resnet_encoder_forward.20} parent=0 // pred_region
    _
  $region65: #{resnet_encoder_forward.20} parent=0 // pred_fallthru
    _

// kernel: resnet_encoder_forward.23
$region0: #{resnet_encoder_forward.23}
  #allocation0 [shape = 'u32[]', space=smem, size = 0x4, offset = 0x4, fixed_abs, tag = 'smem constant byte address 0x4 - core index']
  #allocation1 [shape = 'u32[72,128]{1,0:T(1,128)}', space=vmem, size = 0x9000, scoped, tag = 'internal scratch']
  %s0 = inlined_call_operand.vmem [shape: f32[512,128], index: 0, kind: input, shape index: {}]
  %s1 = inlined_call_operand.vmem [shape: f32[1,128], index: 1, kind: input, shape index: {}]
  %s2 = inlined_call_operand.vmem [shape: f32[1,128], index: 2, kind: input, shape index: {}]
  %s3 = inlined_call_operand.vmem [shape: f32[512,128], index: 3, kind: input, shape index: {}]
  %s4 = inlined_call_operand.vmem [shape: f32[1,128], index: 4, kind: input, shape index: {}]
  %s5 = inlined_call_operand.vmem [shape: f32[1,128], index: 5, kind: input, shape index: {}]
  %s6 = inlined_call_operand.vmem [shape: bf16[512,128], index: 6, kind: output, shape index: {}]
  %s7 = sld [smem:[#allocation0]]
  $region34: #{resnet_encoder_forward.23} parent=0
    _
  %s9 = ssub.s32 1, %s7
  %s10 = scalar_select 0, %s9, %s7
  // Predicated region
  $region2: #{resnet_encoder_forward.23} parent=0 // pred_check
    _
  $region3: #{resnet_encoder_forward.23} parent=0 // pred_check_branch
    %12 = sbr.rel (0) target = $region5
  $region4: #{resnet_encoder_forward.23} parent=0 // pred_region
    _
  $region5: #{resnet_encoder_forward.23} parent=0 // pred_fallthru
    _
  // Predicated region
  $region6: #{resnet_encoder_forward.23} parent=0 // pred_check
    _
  $region7: #{resnet_encoder_forward.23} parent=0 // pred_check_branch
    %14 = sbr.rel (0) target = $region9
  $region8: #{resnet_encoder_forward.23} parent=0 // pred_region
    _
  $region9: #{resnet_encoder_forward.23} parent=0 // pred_fallthru
    _
  // Predicated region
  $region10: #{resnet_encoder_forward.23} parent=0 // pred_check
    _
  $region11: #{resnet_encoder_forward.23} parent=0 // pred_check_branch
    %16 = sbr.rel (0) target = $region13
  $region12: #{resnet_encoder_forward.23} parent=0 // pred_region
    _
  $region13: #{resnet_encoder_forward.23} parent=0 // pred_fallthru
    _
  // Predicated region
  $region14: #{resnet_encoder_forward.23} parent=0 // pred_check
    _
  $region15: #{resnet_encoder_forward.23} parent=0 // pred_check_branch
    %18 = sbr.rel (0) target = $region17
  $region16: #{resnet_encoder_forward.23} parent=0 // pred_region
    _
  $region17: #{resnet_encoder_forward.23} parent=0 // pred_fallthru
    _
  // Predicated region
  $region18: #{resnet_encoder_forward.23} parent=0 // pred_check
    _
  $region19: #{resnet_encoder_forward.23} parent=0 // pred_check_branch
    %20 = sbr.rel (0) target = $region21
  $region20: #{resnet_encoder_forward.23} parent=0 // pred_region
    _
  $region21: #{resnet_encoder_forward.23} parent=0 // pred_fallthru
    _
  // Predicated region
  $region22: #{resnet_encoder_forward.23} parent=0 // pred_check
    _
  $region23: #{resnet_encoder_forward.23} parent=0 // pred_check_branch
    %22 = sbr.rel (0) target = $region25
  $region24: #{resnet_encoder_forward.23} parent=0 // pred_region
    _
  $region25: #{resnet_encoder_forward.23} parent=0 // pred_fallthru
    _
  %v23 = vld [vmem:[%s0] sm:$0xff]
  %v24 = vld [vmem:[%s0 + $0x8] sm:$0xff]
  %v25 = vld [vmem:[%s0 + $0x10] sm:$0xff]
  %v26 = vld [vmem:[%s0 + $0x18] sm:$0xff]
  %v27 = vld [vmem:[%s0 + $0x20] sm:$0xff]
  %v28 = vld [vmem:[%s0 + $0x28] sm:$0xff]
  %v29 = vld [vmem:[%s0 + $0x30] sm:$0xff]
  %v30 = vld [vmem:[%s0 + $0x38] sm:$0xff]
  %v31 = vld [vmem:[%s0 + $0x40] sm:$0xff]
  %v32 = vld [vmem:[%s0 + $0x48] sm:$0xff]
  %v33 = vld [vmem:[%s0 + $0x50] sm:$0xff]
  %v34 = vld [vmem:[%s0 + $0x58] sm:$0xff]
  %v35 = vld [vmem:[%s0 + $0x60] sm:$0xff]
  %v36 = vld [vmem:[%s0 + $0x68] sm:$0xff]
  %v37 = vld [vmem:[%s0 + $0x70] sm:$0xff]
  %v38 = vld [vmem:[%s0 + $0x78] sm:$0xff]
  %v39 = vld [vmem:[%s0 + $0x80] sm:$0xff]
  %v40 = vld [vmem:[%s0 + $0x88] sm:$0xff]
  %v41 = vld [vmem:[%s0 + $0x90] sm:$0xff]
  %v42 = vld [vmem:[%s0 + $0x98] sm:$0xff]
  %v43 = vld [vmem:[%s0 + $0xa0] sm:$0xff]
  %v44 = vld [vmem:[%s0 + $0xa8] sm:$0xff]
  %v45 = vld [vmem:[%s0 + $0xb0] sm:$0xff]
  %v46 = vld [vmem:[%s0 + $0xb8] sm:$0xff]
  %v47 = vld [vmem:[%s0 + $0xc0] sm:$0xff]
  %v48 = vld [vmem:[%s0 + $0xc8] sm:$0xff]
  %v49 = vld [vmem:[%s0 + $0xd0] sm:$0xff]
  %v50 = vld [vmem:[%s0 + $0xd8] sm:$0xff]
  %v51 = vld [vmem:[%s0 + $0xe0] sm:$0xff]
  %v52 = vld [vmem:[%s0 + $0xe8] sm:$0xff]
  %v53 = vld [vmem:[%s0 + $0xf0] sm:$0xff]
  %v54 = vld [vmem:[%s0 + $0xf8] sm:$0xff]
  %v55 = vld [vmem:[%s0 + $0x100] sm:$0xff]
  %v56 = vld [vmem:[%s0 + $0x108] sm:$0xff]
  %v57 = vld [vmem:[%s0 + $0x110] sm:$0xff]
  %v58 = vld [vmem:[%s0 + $0x118] sm:$0xff]
  %v59 = vld [vmem:[%s0 + $0x120] sm:$0xff]
  %v60 = vld [vmem:[%s0 + $0x128] sm:$0xff]
  %v61 = vld [vmem:[%s0 + $0x130] sm:$0xff]
  %v62 = vld [vmem:[%s0 + $0x138] sm:$0xff]
  %v63 = vld [vmem:[%s0 + $0x140] sm:$0xff]
  %v64 = vld [vmem:[%s0 + $0x148] sm:$0xff]
  %v65 = vld [vmem:[%s0 + $0x150] sm:$0xff]
  %v66 = vld [vmem:[%s0 + $0x158] sm:$0xff]
  %v67 = vld [vmem:[%s0 + $0x160] sm:$0xff]
  %v68 = vld [vmem:[%s0 + $0x168] sm:$0xff]
  %v69 = vld [vmem:[%s0 + $0x170] sm:$0xff]
  %v70 = vld [vmem:[%s0 + $0x178] sm:$0xff]
  %v71 = vld [vmem:[%s0 + $0x180] sm:$0xff]
  %v72 = vld [vmem:[%s0 + $0x188] sm:$0xff]
  %v73 = vld [vmem:[%s0 + $0x190] sm:$0xff]
  %v74 = vld [vmem:[%s0 + $0x198] sm:$0xff]
  %v75 = vld [vmem:[%s0 + $0x1a0] sm:$0xff]
  %v76 = vld [vmem:[%s0 + $0x1a8] sm:$0xff]
  %v77 = vld [vmem:[%s0 + $0x1b0] sm:$0xff]
  %v78 = vld [vmem:[%s0 + $0x1b8] sm:$0xff]
  %v79 = vld [vmem:[%s0 + $0x1c0] sm:$0xff]
  %v80 = vld [vmem:[%s0 + $0x1c8] sm:$0xff]
  %v81 = vld [vmem:[%s0 + $0x1d0] sm:$0xff]
  %v82 = vld [vmem:[%s0 + $0x1d8] sm:$0xff]
  %v83 = vld [vmem:[%s0 + $0x1e0] sm:$0xff]
  %v84 = vld [vmem:[%s0 + $0x1e8] sm:$0xff]
  %v85 = vld [vmem:[%s0 + $0x1f0] sm:$0xff]
  %v86 = vld [vmem:[%s0 + $0x1f8] sm:$0xff]
  %v87 = vld [vmem:[%s1] sm:$0x1]
  %v88 = vld [vmem:[%s2] sm:$0x1]
  %v89 = vmul.f32 %v87, 0.001953125
  %v90 = vmul.f32 %v88, 0.001953125
  %v91 = vmul.f32 %v89, %v89
  %v92 = vsub.f32 %v90, %v91
  %v94 = vperm.slane %v89, 0
  %v96 = vsub.f32 %v23, %v94
  %v97 = vsub.f32 %v24, %v94
  %v98 = vsub.f32 %v25, %v94
  %v99 = vsub.f32 %v26, %v94
  %v100 = vsub.f32 %v27, %v94
  %v101 = vsub.f32 %v28, %v94
  %v102 = vsub.f32 %v29, %v94
  %v103 = vsub.f32 %v30, %v94
  %v104 = vsub.f32 %v31, %v94
  %v105 = vsub.f32 %v32, %v94
  %v106 = vsub.f32 %v33, %v94
  %v107 = vsub.f32 %v34, %v94
  %v108 = vsub.f32 %v35, %v94
  %v109 = vsub.f32 %v36, %v94
  %v110 = vsub.f32 %v37, %v94
  %v111 = vsub.f32 %v38, %v94
  %v112 = vsub.f32 %v39, %v94
  %v113 = vsub.f32 %v40, %v94
  %v114 = vsub.f32 %v41, %v94
  %v115 = vsub.f32 %v42, %v94
  %v116 = vsub.f32 %v43, %v94
  %v117 = vsub.f32 %v44, %v94
  %v118 = vsub.f32 %v45, %v94
  %v119 = vsub.f32 %v46, %v94
  %v120 = vsub.f32 %v47, %v94
  %v121 = vsub.f32 %v48, %v94
  %v122 = vsub.f32 %v49, %v94
  %v123 = vsub.f32 %v50, %v94
  %v124 = vsub.f32 %v51, %v94
  %v125 = vsub.f32 %v52, %v94
  %v126 = vsub.f32 %v53, %v94
  %v127 = vsub.f32 %v54, %v94
  %v128 = vsub.f32 %v55, %v94
  %v129 = vsub.f32 %v56, %v94
  %v130 = vsub.f32 %v57, %v94
  %v131 = vsub.f32 %v58, %v94
  %v132 = vsub.f32 %v59, %v94
  %v133 = vsub.f32 %v60, %v94
  %v134 = vsub.f32 %v61, %v94
  %v135 = vsub.f32 %v62, %v94
  %v136 = vsub.f32 %v63, %v94
  %v137 = vsub.f32 %v64, %v94
  %v138 = vsub.f32 %v65, %v94
  %v139 = vsub.f32 %v66, %v94
  %v140 = vsub.f32 %v67, %v94
  %v141 = vsub.f32 %v68, %v94
  %v142 = vsub.f32 %v69, %v94
  %v143 = vsub.f32 %v70, %v94
  %v144 = vsub.f32 %v71, %v94
  %v145 = vsub.f32 %v72, %v94
  %v146 = vsub.f32 %v73, %v94
  %v147 = vsub.f32 %v74, %v94
  %v148 = vsub.f32 %v75, %v94
  %v149 = vsub.f32 %v76, %v94
  %v150 = vsub.f32 %v77, %v94
  %v151 = vsub.f32 %v78, %v94
  %v152 = vsub.f32 %v79, %v94
  %v153 = vsub.f32 %v80, %v94
  %v154 = vsub.f32 %v81, %v94
  %v155 = vsub.f32 %v82, %v94
  %v156 = vsub.f32 %v83, %v94
  %v157 = vsub.f32 %v84, %v94
  %v158 = vsub.f32 %v85, %v94
  %v159 = vsub.f32 %v86, %v94
  %v160 = vadd.f32 %v92, 1e-05
  %v161 = vrsqrt.pop %v160
  %v162 = vmul.f32 %v161, %v160
  %v163 = vmul.f32 %v162, %v161
  %v164 = vmul.f32 0.5, %v163
  %v165 = vsub.f32 1.5, %v164
  %v166 = vmul.f32 %v161, %v165
  %vm167 = vweird.f32 %v160
  %vm168 = vweird.f32 %v161
  %vm169 = vmor %vm167, %vm168
  %v170 = vsel %vm169, %v161, %v166
  %v172 = vperm.slane %v170, 0
  %v174 = vmul.f32 %v96, %v172
  %v175 = vmul.f32 %v97, %v172
  %v176 = vmul.f32 %v98, %v172
  %v177 = vmul.f32 %v99, %v172
  %v178 = vmul.f32 %v100, %v172
  %v179 = vmul.f32 %v101, %v172
  %v180 = vmul.f32 %v102, %v172
  %v181 = vmul.f32 %v103, %v172
  %v182 = vmul.f32 %v104, %v172
  %v183 = vmul.f32 %v105, %v172
  %v184 = vmul.f32 %v106, %v172
  %v185 = vmul.f32 %v107, %v172
  %v186 = vmul.f32 %v108, %v172
  %v187 = vmul.f32 %v109, %v172
  %v188 = vmul.f32 %v110, %v172
  %v189 = vmul.f32 %v111, %v172
  %v190 = vmul.f32 %v112, %v172
  %v191 = vmul.f32 %v113, %v172
  %v192 = vmul.f32 %v114, %v172
  %v193 = vmul.f32 %v115, %v172
  %v194 = vmul.f32 %v116, %v172
  %v195 = vmul.f32 %v117, %v172
  %v196 = vmul.f32 %v118, %v172
  %v197 = vmul.f32 %v119, %v172
  %v198 = vmul.f32 %v120, %v172
  %v199 = vmul.f32 %v121, %v172
  %v200 = vmul.f32 %v122, %v172
  %v201 = vmul.f32 %v123, %v172
  %v202 = vmul.f32 %v124, %v172
  %v203 = vmul.f32 %v125, %v172
  %v204 = vmul.f32 %v126, %v172
  %v205 = vmul.f32 %v127, %v172
  %v206 = vmul.f32 %v128, %v172
  %v207 = vmul.f32 %v129, %v172
  %v208 = vmul.f32 %v130, %v172
  %v209 = vmul.f32 %v131, %v172
  %v210 = vmul.f32 %v132, %v172
  %v211 = vmul.f32 %v133, %v172
  %v212 = vmul.f32 %v134, %v172
  %v213 = vmul.f32 %v135, %v172
  %v214 = vmul.f32 %v136, %v172
  %v215 = vmul.f32 %v137, %v172
  %v216 = vmul.f32 %v138, %v172
  %v217 = vmul.f32 %v139, %v172
  %v218 = vmul.f32 %v140, %v172
  %v219 = vmul.f32 %v141, %v172
  %v220 = vmul.f32 %v142, %v172
  %v221 = vmul.f32 %v143, %v172
  %v222 = vmul.f32 %v144, %v172
  %v223 = vmul.f32 %v145, %v172
  %v224 = vmul.f32 %v146, %v172
  %v225 = vmul.f32 %v147, %v172
  %v226 = vmul.f32 %v148, %v172
  %v227 = vmul.f32 %v149, %v172
  %v228 = vmul.f32 %v150, %v172
  %v229 = vmul.f32 %v151, %v172
  %v230 = vmul.f32 %v152, %v172
  %v231 = vmul.f32 %v153, %v172
  %v232 = vmul.f32 %v154, %v172
  %v233 = vmul.f32 %v155, %v172
  %v234 = vmul.f32 %v156, %v172
  %v235 = vmul.f32 %v157, %v172
  %v236 = vmul.f32 %v158, %v172
  %v237 = vmul.f32 %v159, %v172
  %v238 = vld [vmem:[%s3] sm:$0xff]
  %v239 = vld [vmem:[%s3 + $0x8] sm:$0xff]
  %v240 = vld [vmem:[%s3 + $0x10] sm:$0xff]
  %v241 = vld [vmem:[%s3 + $0x18] sm:$0xff]
  %v242 = vld [vmem:[%s3 + $0x20] sm:$0xff]
  %v243 = vld [vmem:[%s3 + $0x28] sm:$0xff]
  %v244 = vld [vmem:[%s3 + $0x30] sm:$0xff]
  %v245 = vld [vmem:[%s3 + $0x38] sm:$0xff]
  %v246 = vld [vmem:[%s3 + $0x40] sm:$0xff]
  %v247 = vld [vmem:[%s3 + $0x48] sm:$0xff]
  %v248 = vld [vmem:[%s3 + $0x50] sm:$0xff]
  %v249 = vld [vmem:[%s3 + $0x58] sm:$0xff]
  %v250 = vld [vmem:[%s3 + $0x60] sm:$0xff]
  %v251 = vld [vmem:[%s3 + $0x68] sm:$0xff]
  %v252 = vld [vmem:[%s3 + $0x70] sm:$0xff]
  %v253 = vld [vmem:[%s3 + $0x78] sm:$0xff]
  %v254 = vld [vmem:[%s3 + $0x80] sm:$0xff]
  %v255 = vld [vmem:[%s3 + $0x88] sm:$0xff]
  %v256 = vld [vmem:[%s3 + $0x90] sm:$0xff]
  %v257 = vld [vmem:[%s3 + $0x98] sm:$0xff]
  %v258 = vld [vmem:[%s3 + $0xa0] sm:$0xff]
  %v259 = vld [vmem:[%s3 + $0xa8] sm:$0xff]
  %v260 = vld [vmem:[%s3 + $0xb0] sm:$0xff]
  %v261 = vld [vmem:[%s3 + $0xb8] sm:$0xff]
  %v262 = vld [vmem:[%s3 + $0xc0] sm:$0xff]
  %v263 = vld [vmem:[%s3 + $0xc8] sm:$0xff]
  %v264 = vld [vmem:[%s3 + $0xd0] sm:$0xff]
  %v265 = vld [vmem:[%s3 + $0xd8] sm:$0xff]
  %v266 = vld [vmem:[%s3 + $0xe0] sm:$0xff]
  %v267 = vld [vmem:[%s3 + $0xe8] sm:$0xff]
  %v268 = vld [vmem:[%s3 + $0xf0] sm:$0xff]
  %v269 = vld [vmem:[%s3 + $0xf8] sm:$0xff]
  %v270 = vld [vmem:[%s3 + $0x100] sm:$0xff]
  %v271 = vld [vmem:[%s3 + $0x108] sm:$0xff]
  %v272 = vld [vmem:[%s3 + $0x110] sm:$0xff]
  %v273 = vld [vmem:[%s3 + $0x118] sm:$0xff]
  %v274 = vld [vmem:[%s3 + $0x120] sm:$0xff]
  %v275 = vld [vmem:[%s3 + $0x128] sm:$0xff]
  %v276 = vld [vmem:[%s3 + $0x130] sm:$0xff]
  %v277 = vld [vmem:[%s3 + $0x138] sm:$0xff]
  %v278 = vld [vmem:[%s3 + $0x140] sm:$0xff]
  %v279 = vld [vmem:[%s3 + $0x148] sm:$0xff]
  %v280 = vld [vmem:[%s3 + $0x150] sm:$0xff]
  %v281 = vld [vmem:[%s3 + $0x158] sm:$0xff]
  %v282 = vld [vmem:[%s3 + $0x160] sm:$0xff]
  %v283 = vld [vmem:[%s3 + $0x168] sm:$0xff]
  %v284 = vld [vmem:[%s3 + $0x170] sm:$0xff]
  %v285 = vld [vmem:[%s3 + $0x178] sm:$0xff]
  %v286 = vld [vmem:[%s3 + $0x180] sm:$0xff]
  %v287 = vld [vmem:[%s3 + $0x188] sm:$0xff]
  %v288 = vld [vmem:[%s3 + $0x190] sm:$0xff]
  %v289 = vld [vmem:[%s3 + $0x198] sm:$0xff]
  %v290 = vld [vmem:[%s3 + $0x1a0] sm:$0xff]
  %v291 = vld [vmem:[%s3 + $0x1a8] sm:$0xff]
  %v292 = vld [vmem:[%s3 + $0x1b0] sm:$0xff]
  %v293 = vld [vmem:[%s3 + $0x1b8] sm:$0xff]
  %v294 = vld [vmem:[%s3 + $0x1c0] sm:$0xff]
  %v295 = vld [vmem:[%s3 + $0x1c8] sm:$0xff]
  %v296 = vld [vmem:[%s3 + $0x1d0] sm:$0xff]
  %v297 = vld [vmem:[%s3 + $0x1d8] sm:$0xff]
  %v298 = vld [vmem:[%s3 + $0x1e0] sm:$0xff]
  %v299 = vld [vmem:[%s3 + $0x1e8] sm:$0xff]
  %v300 = vld [vmem:[%s3 + $0x1f0] sm:$0xff]
  %v301 = vld [vmem:[%s3 + $0x1f8] sm:$0xff]
  %v302 = vld [vmem:[%s4] sm:$0x1]
  %v303 = vld [vmem:[%s5] sm:$0x1]
  %v304 = vmul.f32 %v302, 0.001953125
  %v305 = vmul.f32 %v303, 0.001953125
  %v306 = vmul.f32 %v304, %v304
  %v307 = vsub.f32 %v305, %v306
  %v309 = vperm.slane %v304, 0
  %v311 = vsub.f32 %v238, %v309
  %v312 = vsub.f32 %v239, %v309
  %v313 = vsub.f32 %v240, %v309
  %v314 = vsub.f32 %v241, %v309
  %v315 = vsub.f32 %v242, %v309
  %v316 = vsub.f32 %v243, %v309
  %v317 = vsub.f32 %v244, %v309
  %v318 = vsub.f32 %v245, %v309
  %v319 = vsub.f32 %v246, %v309
  %v320 = vsub.f32 %v247, %v309
  %v321 = vsub.f32 %v248, %v309
  %v322 = vsub.f32 %v249, %v309
  %v323 = vsub.f32 %v250, %v309
  %v324 = vsub.f32 %v251, %v309
  %v325 = vsub.f32 %v252, %v309
  %v326 = vsub.f32 %v253, %v309
  %v327 = vsub.f32 %v254, %v309
  %v328 = vsub.f32 %v255, %v309
  %v329 = vsub.f32 %v256, %v309
  %v330 = vsub.f32 %v257, %v309
  %v331 = vsub.f32 %v258, %v309
  %v332 = vsub.f32 %v259, %v309
  %v333 = vsub.f32 %v260, %v309
  %v334 = vsub.f32 %v261, %v309
  %v335 = vsub.f32 %v262, %v309
  %v336 = vsub.f32 %v263, %v309
  %v337 = vsub.f32 %v264, %v309
  %v338 = vsub.f32 %v265, %v309
  %v339 = vsub.f32 %v266, %v309
  %v340 = vsub.f32 %v267, %v309
  %v341 = vsub.f32 %v268, %v309
  %v342 = vsub.f32 %v269, %v309
  %v343 = vsub.f32 %v270, %v309
  %v344 = vsub.f32 %v271, %v309
  %v345 = vsub.f32 %v272, %v309
  %v346 = vsub.f32 %v273, %v309
  %v347 = vsub.f32 %v274, %v309
  %v348 = vsub.f32 %v275, %v309
  %v349 = vsub.f32 %v276, %v309
  %v350 = vsub.f32 %v277, %v309
  %v351 = vsub.f32 %v278, %v309
  %v352 = vsub.f32 %v279, %v309
  %v353 = vsub.f32 %v280, %v309
  %v354 = vsub.f32 %v281, %v309
  %v355 = vsub.f32 %v282, %v309
  %v356 = vsub.f32 %v283, %v309
  %v357 = vsub.f32 %v284, %v309
  %v358 = vsub.f32 %v285, %v309
  %v359 = vsub.f32 %v286, %v309
  %v360 = vsub.f32 %v287, %v309
  %v361 = vsub.f32 %v288, %v309
  %v362 = vsub.f32 %v289, %v309
  %v363 = vsub.f32 %v290, %v309
  %v364 = vsub.f32 %v291, %v309
  %v365 = vsub.f32 %v292, %v309
  %v366 = vsub.f32 %v293, %v309
  %v367 = vsub.f32 %v294, %v309
  %v368 = vsub.f32 %v295, %v309
  %v369 = vsub.f32 %v296, %v309
  %v370 = vsub.f32 %v297, %v309
  %v371 = vsub.f32 %v298, %v309
  %v372 = vsub.f32 %v299, %v309
  %v373 = vsub.f32 %v300, %v309
  %v374 = vsub.f32 %v301, %v309
  %v375 = vadd.f32 %v307, 1e-05
  %v376 = vrsqrt.pop %v375
  %v377 = vmul.f32 %v376, %v375
  %v378 = vmul.f32 %v377, %v376
  %v379 = vmul.f32 0.5, %v378
  %v380 = vsub.f32 1.5, %v379
  %v381 = vmul.f32 %v376, %v380
  %vm382 = vweird.f32 %v375
  %vm383 = vweird.f32 %v376
  %vm384 = vmor %vm382, %vm383
  %v385 = vsel %vm384, %v376, %v381
  %v387 = vperm.slane %v385, 0
  %v389 = vmul.f32 %v311, %v387
  %v390 = vmul.f32 %v312, %v387
  %v391 = vmul.f32 %v313, %v387
  %v392 = vmul.f32 %v314, %v387
  %v393 = vmul.f32 %v315, %v387
  %v394 = vmul.f32 %v316, %v387
  %v395 = vmul.f32 %v317, %v387
  %v396 = vmul.f32 %v318, %v387
  %v397 = vmul.f32 %v319, %v387
  %v398 = vmul.f32 %v320, %v387
  %v399 = vmul.f32 %v321, %v387
  %v400 = vmul.f32 %v322, %v387
  %v401 = vmul.f32 %v323, %v387
  %v402 = vmul.f32 %v324, %v387
  %v403 = vmul.f32 %v325, %v387
  %v404 = vmul.f32 %v326, %v387
  %v405 = vmul.f32 %v327, %v387
  %v406 = vmul.f32 %v328, %v387
  %v407 = vmul.f32 %v329, %v387
  %v408 = vmul.f32 %v330, %v387
  %v409 = vmul.f32 %v331, %v387
  %v410 = vmul.f32 %v332, %v387
  %v411 = vmul.f32 %v333, %v387
  %v412 = vmul.f32 %v334, %v387
  %v413 = vmul.f32 %v335, %v387
  %v414 = vmul.f32 %v336, %v387
  %v415 = vmul.f32 %v337, %v387
  %v416 = vmul.f32 %v338, %v387
  %v417 = vmul.f32 %v339, %v387
  %v418 = vmul.f32 %v340, %v387
  %v419 = vmul.f32 %v341, %v387
  %v420 = vmul.f32 %v342, %v387
  %v421 = vmul.f32 %v343, %v387
  %v422 = vmul.f32 %v344, %v387
  %v423 = vmul.f32 %v345, %v387
  %v424 = vmul.f32 %v346, %v387
  %v425 = vmul.f32 %v347, %v387
  %v426 = vmul.f32 %v348, %v387
  %v427 = vmul.f32 %v349, %v387
  %v428 = vmul.f32 %v350, %v387
  %v429 = vmul.f32 %v351, %v387
  %v430 = vmul.f32 %v352, %v387
  %v431 = vmul.f32 %v353, %v387
  %v432 = vmul.f32 %v354, %v387
  %v433 = vmul.f32 %v355, %v387
  %v434 = vmul.f32 %v356, %v387
  %v435 = vmul.f32 %v357, %v387
  %v436 = vmul.f32 %v358, %v387
  %v437 = vmul.f32 %v359, %v387
  %v438 = vmul.f32 %v360, %v387
  %v439 = vmul.f32 %v361, %v387
  %v440 = vmul.f32 %v362, %v387
  %v441 = vmul.f32 %v363, %v387
  %v442 = vmul.f32 %v364, %v387
  %v443 = vmul.f32 %v365, %v387
  %v444 = vmul.f32 %v366, %v387
  %v445 = vmul.f32 %v367, %v387
  %v446 = vmul.f32 %v368, %v387
  %v447 = vmul.f32 %v369, %v387
  %v448 = vmul.f32 %v370, %v387
  %v449 = vmul.f32 %v371, %v387
  %v450 = vmul.f32 %v372, %v387
  %v451 = vmul.f32 %v373, %v387
  %v452 = vmul.f32 %v374, %v387
  %v453 = vadd.f32 %v174, %v389
  %v454 = vadd.f32 %v175, %v390
  %v455 = vadd.f32 %v176, %v391
  %v456 = vadd.f32 %v177, %v392
  %v457 = vadd.f32 %v178, %v393
  %v458 = vadd.f32 %v179, %v394
  %v459 = vadd.f32 %v180, %v395
  %v460 = vadd.f32 %v181, %v396
  %v461 = vadd.f32 %v182, %v397
  %v462 = vadd.f32 %v183, %v398
  %v463 = vadd.f32 %v184, %v399
  %v464 = vadd.f32 %v185, %v400
  %v465 = vadd.f32 %v186, %v401
  %v466 = vadd.f32 %v187, %v402
  %v467 = vadd.f32 %v188, %v403
  %v468 = vadd.f32 %v189, %v404
  %v469 = vadd.f32 %v190, %v405
  %v470 = vadd.f32 %v191, %v406
  %v471 = vadd.f32 %v192, %v407
  %v472 = vadd.f32 %v193, %v408
  %v473 = vadd.f32 %v194, %v409
  %v474 = vadd.f32 %v195, %v410
  %v475 = vadd.f32 %v196, %v411
  %v476 = vadd.f32 %v197, %v412
  %v477 = vadd.f32 %v198, %v413
  %v478 = vadd.f32 %v199, %v414
  %v479 = vadd.f32 %v200, %v415
  %v480 = vadd.f32 %v201, %v416
  %v481 = vadd.f32 %v202, %v417
  %v482 = vadd.f32 %v203, %v418
  %v483 = vadd.f32 %v204, %v419
  %v484 = vadd.f32 %v205, %v420
  %v485 = vadd.f32 %v206, %v421
  %v486 = vadd.f32 %v207, %v422
  %v487 = vadd.f32 %v208, %v423
  %v488 = vadd.f32 %v209, %v424
  %v489 = vadd.f32 %v210, %v425
  %v490 = vadd.f32 %v211, %v426
  %v491 = vadd.f32 %v212, %v427
  %v492 = vadd.f32 %v213, %v428
  %v493 = vadd.f32 %v214, %v429
  %v494 = vadd.f32 %v215, %v430
  %v495 = vadd.f32 %v216, %v431
  %v496 = vadd.f32 %v217, %v432
  %v497 = vadd.f32 %v218, %v433
  %v498 = vadd.f32 %v219, %v434
  %v499 = vadd.f32 %v220, %v435
  %v500 = vadd.f32 %v221, %v436
  %v501 = vadd.f32 %v222, %v437
  %v502 = vadd.f32 %v223, %v438
  %v503 = vadd.f32 %v224, %v439
  %v504 = vadd.f32 %v225, %v440
  %v505 = vadd.f32 %v226, %v441
  %v506 = vadd.f32 %v227, %v442
  %v507 = vadd.f32 %v228, %v443
  %v508 = vadd.f32 %v229, %v444
  %v509 = vadd.f32 %v230, %v445
  %v510 = vadd.f32 %v231, %v446
  %v511 = vadd.f32 %v232, %v447
  %v512 = vadd.f32 %v233, %v448
  %v513 = vadd.f32 %v234, %v449
  %v514 = vadd.f32 %v235, %v450
  %v515 = vadd.f32 %v236, %v451
  %v516 = vadd.f32 %v237, %v452
  %v517 = vmax.f32 %v453, 0.0
  %v518 = vmax.f32 %v454, 0.0
  %v519 = vmax.f32 %v455, 0.0
  %v520 = vmax.f32 %v456, 0.0
  %v521 = vmax.f32 %v457, 0.0
  %v522 = vmax.f32 %v458, 0.0
  %v523 = vmax.f32 %v459, 0.0
  %v524 = vmax.f32 %v460, 0.0
  %v525 = vmax.f32 %v461, 0.0
  %v526 = vmax.f32 %v462, 0.0
  %v527 = vmax.f32 %v463, 0.0
  %v528 = vmax.f32 %v464, 0.0
  %v529 = vmax.f32 %v465, 0.0
  %v530 = vmax.f32 %v466, 0.0
  %v531 = vmax.f32 %v467, 0.0
  %v532 = vmax.f32 %v468, 0.0
  %v533 = vmax.f32 %v469, 0.0
  %v534 = vmax.f32 %v470, 0.0
  %v535 = vmax.f32 %v471, 0.0
  %v536 = vmax.f32 %v472, 0.0
  %v537 = vmax.f32 %v473, 0.0
  %v538 = vmax.f32 %v474, 0.0
  %v539 = vmax.f32 %v475, 0.0
  %v540 = vmax.f32 %v476, 0.0
  %v541 = vmax.f32 %v477, 0.0
  %v542 = vmax.f32 %v478, 0.0
  %v543 = vmax.f32 %v479, 0.0
  %v544 = vmax.f32 %v480, 0.0
  %v545 = vmax.f32 %v481, 0.0
  %v546 = vmax.f32 %v482, 0.0
  %v547 = vmax.f32 %v483, 0.0
  %v548 = vmax.f32 %v484, 0.0
  %v549 = vmax.f32 %v485, 0.0
  %v550 = vmax.f32 %v486, 0.0
  %v551 = vmax.f32 %v487, 0.0
  %v552 = vmax.f32 %v488, 0.0
  %v553 = vmax.f32 %v489, 0.0
  %v554 = vmax.f32 %v490, 0.0
  %v555 = vmax.f32 %v491, 0.0
  %v556 = vmax.f32 %v492, 0.0
  %v557 = vmax.f32 %v493, 0.0
  %v558 = vmax.f32 %v494, 0.0
  %v559 = vmax.f32 %v495, 0.0
  %v560 = vmax.f32 %v496, 0.0
  %v561 = vmax.f32 %v497, 0.0
  %v562 = vmax.f32 %v498, 0.0
  %v563 = vmax.f32 %v499, 0.0
  %v564 = vmax.f32 %v500, 0.0
  %v565 = vmax.f32 %v501, 0.0
  %v566 = vmax.f32 %v502, 0.0
  %v567 = vmax.f32 %v503, 0.0
  %v568 = vmax.f32 %v504, 0.0
  %v569 = vmax.f32 %v505, 0.0
  %v570 = vmax.f32 %v506, 0.0
  %v571 = vmax.f32 %v507, 0.0
  %v572 = vmax.f32 %v508, 0.0
  %v573 = vmax.f32 %v509, 0.0
  %v574 = vmax.f32 %v510, 0.0
  %v575 = vmax.f32 %v511, 0.0
  %v576 = vmax.f32 %v512, 0.0
  %v577 = vmax.f32 %v513, 0.0
  %v578 = vmax.f32 %v514, 0.0
  %v579 = vmax.f32 %v515, 0.0
  %v580 = vmax.f32 %v516, 0.0
  %v581 = vpack.c.bf16 %v517, %v517
  %v582 = vpack.c.bf16 %v518, %v518
  %v583 = vpack.c.bf16 %v519, %v519
  %v584 = vpack.c.bf16 %v520, %v520
  %v585 = vpack.c.bf16 %v521, %v521
  %v586 = vpack.c.bf16 %v522, %v522
  %v587 = vpack.c.bf16 %v523, %v523
  %v588 = vpack.c.bf16 %v524, %v524
  %v589 = vpack.c.bf16 %v525, %v525
  %v590 = vpack.c.bf16 %v526, %v526
  %v591 = vpack.c.bf16 %v527, %v527
  %v592 = vpack.c.bf16 %v528, %v528
  %v593 = vpack.c.bf16 %v529, %v529
  %v594 = vpack.c.bf16 %v530, %v530
  %v595 = vpack.c.bf16 %v531, %v531
  %v596 = vpack.c.bf16 %v532, %v532
  %v597 = vpack.c.bf16 %v533, %v533
  %v598 = vpack.c.bf16 %v534, %v534
  %v599 = vpack.c.bf16 %v535, %v535
  %v600 = vpack.c.bf16 %v536, %v536
  %v601 = vpack.c.bf16 %v537, %v537
  %v602 = vpack.c.bf16 %v538, %v538
  %v603 = vpack.c.bf16 %v539, %v539
  %v604 = vpack.c.bf16 %v540, %v540
  %v605 = vpack.c.bf16 %v541, %v541
  %v606 = vpack.c.bf16 %v542, %v542
  %v607 = vpack.c.bf16 %v543, %v543
  %v608 = vpack.c.bf16 %v544, %v544
  %v609 = vpack.c.bf16 %v545, %v545
  %v610 = vpack.c.bf16 %v546, %v546
  %v611 = vpack.c.bf16 %v547, %v547
  %v612 = vpack.c.bf16 %v548, %v548
  %v613 = vpack.c.bf16 %v549, %v549
  %v614 = vpack.c.bf16 %v550, %v550
  %v615 = vpack.c.bf16 %v551, %v551
  %v616 = vpack.c.bf16 %v552, %v552
  %v617 = vpack.c.bf16 %v553, %v553
  %v618 = vpack.c.bf16 %v554, %v554
  %v619 = vpack.c.bf16 %v555, %v555
  %v620 = vpack.c.bf16 %v556, %v556
  %v621 = vpack.c.bf16 %v557, %v557
  %v622 = vpack.c.bf16 %v558, %v558
  %v623 = vpack.c.bf16 %v559, %v559
  %v624 = vpack.c.bf16 %v560, %v560
  %v625 = vpack.c.bf16 %v561, %v561
  %v626 = vpack.c.bf16 %v562, %v562
  %v627 = vpack.c.bf16 %v563, %v563
  %v628 = vpack.c.bf16 %v564, %v564
  %v629 = vpack.c.bf16 %v565, %v565
  %v630 = vpack.c.bf16 %v566, %v566
  %v631 = vpack.c.bf16 %v567, %v567
  %v632 = vpack.c.bf16 %v568, %v568
  %v633 = vpack.c.bf16 %v569, %v569
  %v634 = vpack.c.bf16 %v570, %v570
  %v635 = vpack.c.bf16 %v571, %v571
  %v636 = vpack.c.bf16 %v572, %v572
  %v637 = vpack.c.bf16 %v573, %v573
  %v638 = vpack.c.bf16 %v574, %v574
  %v639 = vpack.c.bf16 %v575, %v575
  %v640 = vpack.c.bf16 %v576, %v576
  %v641 = vpack.c.bf16 %v577, %v577
  %v642 = vpack.c.bf16 %v578, %v578
  %v643 = vpack.c.bf16 %v579, %v579
  %v644 = vpack.c.bf16 %v580, %v580
  %645 = vst [vmem:[%s6] sm:$0xf] %v581
  %646 = vst [vmem:[%s6 + $0x4] sm:$0xf] %v582
  %647 = vst [vmem:[%s6 + $0x8] sm:$0xf] %v583
  %648 = vst [vmem:[%s6 + $0xc] sm:$0xf] %v584
  %649 = vst [vmem:[%s6 + $0x10] sm:$0xf] %v585
  %650 = vst [vmem:[%s6 + $0x14] sm:$0xf] %v586
  %651 = vst [vmem:[%s6 + $0x18] sm:$0xf] %v587
  %652 = vst [vmem:[%s6 + $0x1c] sm:$0xf] %v588
  %653 = vst [vmem:[%s6 + $0x20] sm:$0xf] %v589
  %654 = vst [vmem:[%s6 + $0x24] sm:$0xf] %v590
  %655 = vst [vmem:[%s6 + $0x28] sm:$0xf] %v591
  %656 = vst [vmem:[%s6 + $0x2c] sm:$0xf] %v592
  %657 = vst [vmem:[%s6 + $0x30] sm:$0xf] %v593
  %658 = vst [vmem:[%s6 + $0x34] sm:$0xf] %v594
  %659 = vst [vmem:[%s6 + $0x38] sm:$0xf] %v595
  %660 = vst [vmem:[%s6 + $0x3c] sm:$0xf] %v596
  %661 = vst [vmem:[%s6 + $0x40] sm:$0xf] %v597
  %662 = vst [vmem:[%s6 + $0x44] sm:$0xf] %v598
  %663 = vst [vmem:[%s6 + $0x48] sm:$0xf] %v599
  %664 = vst [vmem:[%s6 + $0x4c] sm:$0xf] %v600
  %665 = vst [vmem:[%s6 + $0x50] sm:$0xf] %v601
  %666 = vst [vmem:[%s6 + $0x54] sm:$0xf] %v602
  %667 = vst [vmem:[%s6 + $0x58] sm:$0xf] %v603
  %668 = vst [vmem:[%s6 + $0x5c] sm:$0xf] %v604
  %669 = vst [vmem:[%s6 + $0x60] sm:$0xf] %v605
  %670 = vst [vmem:[%s6 + $0x64] sm:$0xf] %v606
  %671 = vst [vmem:[%s6 + $0x68] sm:$0xf] %v607
  %672 = vst [vmem:[%s6 + $0x6c] sm:$0xf] %v608
  %673 = vst [vmem:[%s6 + $0x70] sm:$0xf] %v609
  %674 = vst [vmem:[%s6 + $0x74] sm:$0xf] %v610
  %675 = vst [vmem:[%s6 + $0x78] sm:$0xf] %v611
  %676 = vst [vmem:[%s6 + $0x7c] sm:$0xf] %v612
  %677 = vst [vmem:[%s6 + $0x80] sm:$0xf] %v613
  %678 = vst [vmem:[%s6 + $0x84] sm:$0xf] %v614
  %679 = vst [vmem:[%s6 + $0x88] sm:$0xf] %v615
  %680 = vst [vmem:[%s6 + $0x8c] sm:$0xf] %v616
  %681 = vst [vmem:[%s6 + $0x90] sm:$0xf] %v617
  %682 = vst [vmem:[%s6 + $0x94] sm:$0xf] %v618
  %683 = vst [vmem:[%s6 + $0x98] sm:$0xf] %v619
  %684 = vst [vmem:[%s6 + $0x9c] sm:$0xf] %v620
  %685 = vst [vmem:[%s6 + $0xa0] sm:$0xf] %v621
  %686 = vst [vmem:[%s6 + $0xa4] sm:$0xf] %v622
  %687 = vst [vmem:[%s6 + $0xa8] sm:$0xf] %v623
  %688 = vst [vmem:[%s6 + $0xac] sm:$0xf] %v624
  %689 = vst [vmem:[%s6 + $0xb0] sm:$0xf] %v625
  %690 = vst [vmem:[%s6 + $0xb4] sm:$0xf] %v626
  %691 = vst [vmem:[%s6 + $0xb8] sm:$0xf] %v627
  %692 = vst [vmem:[%s6 + $0xbc] sm:$0xf] %v628
  %693 = vst [vmem:[%s6 + $0xc0] sm:$0xf] %v629
  %694 = vst [vmem:[%s6 + $0xc4] sm:$0xf] %v630
  %695 = vst [vmem:[%s6 + $0xc8] sm:$0xf] %v631
  %696 = vst [vmem:[%s6 + $0xcc] sm:$0xf] %v632
  %697 = vst [vmem:[%s6 + $0xd0] sm:$0xf] %v633
  %698 = vst [vmem:[%s6 + $0xd4] sm:$0xf] %v634
  %699 = vst [vmem:[%s6 + $0xd8] sm:$0xf] %v635
  %700 = vst [vmem:[%s6 + $0xdc] sm:$0xf] %v636
  %701 = vst [vmem:[%s6 + $0xe0] sm:$0xf] %v637
  %702 = vst [vmem:[%s6 + $0xe4] sm:$0xf] %v638
  %703 = vst [vmem:[%s6 + $0xe8] sm:$0xf] %v639
  %704 = vst [vmem:[%s6 + $0xec] sm:$0xf] %v640
  %705 = vst [vmem:[%s6 + $0xf0] sm:$0xf] %v641
  %706 = vst [vmem:[%s6 + $0xf4] sm:$0xf] %v642
  %707 = vst [vmem:[%s6 + $0xf8] sm:$0xf] %v643
  %708 = vst [vmem:[%s6 + $0xfc] sm:$0xf] %v644
  // Predicated region
  $region26: #{resnet_encoder_forward.23} parent=0 // pred_check
    _
  $region27: #{resnet_encoder_forward.23} parent=0 // pred_check_branch
    %710 = sbr.rel (0) target = $region29
  $region28: #{resnet_encoder_forward.23} parent=0 // pred_region
    _
  $region29: #{resnet_encoder_forward.23} parent=0 // pred_fallthru
    _
  // Predicated region
  $region30: #{resnet_encoder_forward.23} parent=0 // pred_check
    _
  $region31: #{resnet_encoder_forward.23} parent=0 // pred_check_branch
    %712 = sbr.rel (0) target = $region33
  $region32: #{resnet_encoder_forward.23} parent=0 // pred_region
    _
  $region33: #{resnet_encoder_forward.23} parent=0 // pred_fallthru
    _

// kernel: resnet_encoder_forward.25
$region0: #{resnet_encoder_forward.25}
  #allocation0 [shape = 'u32[]', space=smem, size = 0x4, offset = 0x4, fixed_abs, tag = 'smem constant byte address 0x4 - core index']
  #allocation1 [shape = 'u32[72,128]{1,0:T(1,128)}', space=vmem, size = 0x9000, scoped, tag = 'internal scratch']
  %s0 = inlined_call_operand.vmem [shape: f32[128,128], index: 0, kind: input, shape index: {}]
  %s1 = inlined_call_operand.vmem [shape: f32[1,128], index: 1, kind: input, shape index: {}]
  %s2 = inlined_call_operand.vmem [shape: f32[1,128], index: 2, kind: input, shape index: {}]
  %s3 = inlined_call_operand.vmem [shape: bf16[128,128], index: 3, kind: output, shape index: {}]
  %s4 = sld [smem:[#allocation0]]
  $region22: #{resnet_encoder_forward.25} parent=0
    _
  %s6 = ssub.s32 1, %s4
  %s7 = scalar_select 0, %s6, %s4
  // Predicated region
  $region2: #{resnet_encoder_forward.25} parent=0 // pred_check
    _
  $region3: #{resnet_encoder_forward.25} parent=0 // pred_check_branch
    %9 = sbr.rel (0) target = $region5
  $region4: #{resnet_encoder_forward.25} parent=0 // pred_region
    _
  $region5: #{resnet_encoder_forward.25} parent=0 // pred_fallthru
    _
  // Predicated region
  $region6: #{resnet_encoder_forward.25} parent=0 // pred_check
    _
  $region7: #{resnet_encoder_forward.25} parent=0 // pred_check_branch
    %11 = sbr.rel (0) target = $region9
  $region8: #{resnet_encoder_forward.25} parent=0 // pred_region
    _
  $region9: #{resnet_encoder_forward.25} parent=0 // pred_fallthru
    _
  // Predicated region
  $region10: #{resnet_encoder_forward.25} parent=0 // pred_check
    _
  $region11: #{resnet_encoder_forward.25} parent=0 // pred_check_branch
    %13 = sbr.rel (0) target = $region13
  $region12: #{resnet_encoder_forward.25} parent=0 // pred_region
    _
  $region13: #{resnet_encoder_forward.25} parent=0 // pred_fallthru
    _
  %v14 = vld [vmem:[%s0] sm:$0xff]
  %v15 = vld [vmem:[%s0 + $0x8] sm:$0xff]
  %v16 = vld [vmem:[%s0 + $0x10] sm:$0xff]
  %v17 = vld [vmem:[%s0 + $0x18] sm:$0xff]
  %v18 = vld [vmem:[%s0 + $0x20] sm:$0xff]
  %v19 = vld [vmem:[%s0 + $0x28] sm:$0xff]
  %v20 = vld [vmem:[%s0 + $0x30] sm:$0xff]
  %v21 = vld [vmem:[%s0 + $0x38] sm:$0xff]
  %v22 = vld [vmem:[%s0 + $0x40] sm:$0xff]
  %v23 = vld [vmem:[%s0 + $0x48] sm:$0xff]
  %v24 = vld [vmem:[%s0 + $0x50] sm:$0xff]
  %v25 = vld [vmem:[%s0 + $0x58] sm:$0xff]
  %v26 = vld [vmem:[%s0 + $0x60] sm:$0xff]
  %v27 = vld [vmem:[%s0 + $0x68] sm:$0xff]
  %v28 = vld [vmem:[%s0 + $0x70] sm:$0xff]
  %v29 = vld [vmem:[%s0 + $0x78] sm:$0xff]
  %v30 = vld [vmem:[%s1] sm:$0x1]
  %v31 = vld [vmem:[%s2] sm:$0x1]
  %v32 = vmul.f32 %v30, 0.0078125
  %v33 = vmul.f32 %v31, 0.0078125
  %v34 = vmul.f32 %v32, %v32
  %v35 = vsub.f32 %v33, %v34
  %v37 = vperm.slane %v32, 0
  %v39 = vsub.f32 %v14, %v37
  %v40 = vsub.f32 %v15, %v37
  %v41 = vsub.f32 %v16, %v37
  %v42 = vsub.f32 %v17, %v37
  %v43 = vsub.f32 %v18, %v37
  %v44 = vsub.f32 %v19, %v37
  %v45 = vsub.f32 %v20, %v37
  %v46 = vsub.f32 %v21, %v37
  %v47 = vsub.f32 %v22, %v37
  %v48 = vsub.f32 %v23, %v37
  %v49 = vsub.f32 %v24, %v37
  %v50 = vsub.f32 %v25, %v37
  %v51 = vsub.f32 %v26, %v37
  %v52 = vsub.f32 %v27, %v37
  %v53 = vsub.f32 %v28, %v37
  %v54 = vsub.f32 %v29, %v37
  %v55 = vadd.f32 %v35, 1e-05
  %v56 = vrsqrt.pop %v55
  %v57 = vmul.f32 %v56, %v55
  %v58 = vmul.f32 %v57, %v56
  %v59 = vmul.f32 0.5, %v58
  %v60 = vsub.f32 1.5, %v59
  %v61 = vmul.f32 %v56, %v60
  %vm62 = vweird.f32 %v55
  %vm63 = vweird.f32 %v56
  %vm64 = vmor %vm62, %vm63
  %v65 = vsel %vm64, %v56, %v61
  %v67 = vperm.slane %v65, 0
  %v69 = vmul.f32 %v39, %v67
  %v70 = vmul.f32 %v40, %v67
  %v71 = vmul.f32 %v41, %v67
  %v72 = vmul.f32 %v42, %v67
  %v73 = vmul.f32 %v43, %v67
  %v74 = vmul.f32 %v44, %v67
  %v75 = vmul.f32 %v45, %v67
  %v76 = vmul.f32 %v46, %v67
  %v77 = vmul.f32 %v47, %v67
  %v78 = vmul.f32 %v48, %v67
  %v79 = vmul.f32 %v49, %v67
  %v80 = vmul.f32 %v50, %v67
  %v81 = vmul.f32 %v51, %v67
  %v82 = vmul.f32 %v52, %v67
  %v83 = vmul.f32 %v53, %v67
  %v84 = vmul.f32 %v54, %v67
  %v85 = vmax.f32 %v69, 0.0
  %v86 = vmax.f32 %v70, 0.0
  %v87 = vmax.f32 %v71, 0.0
  %v88 = vmax.f32 %v72, 0.0
  %v89 = vmax.f32 %v73, 0.0
  %v90 = vmax.f32 %v74, 0.0
  %v91 = vmax.f32 %v75, 0.0
  %v92 = vmax.f32 %v76, 0.0
  %v93 = vmax.f32 %v77, 0.0
  %v94 = vmax.f32 %v78, 0.0
  %v95 = vmax.f32 %v79, 0.0
  %v96 = vmax.f32 %v80, 0.0
  %v97 = vmax.f32 %v81, 0.0
  %v98 = vmax.f32 %v82, 0.0
  %v99 = vmax.f32 %v83, 0.0
  %v100 = vmax.f32 %v84, 0.0
  %v101 = vpack.c.bf16 %v85, %v85
  %v102 = vpack.c.bf16 %v86, %v86
  %v103 = vpack.c.bf16 %v87, %v87
  %v104 = vpack.c.bf16 %v88, %v88
  %v105 = vpack.c.bf16 %v89, %v89
  %v106 = vpack.c.bf16 %v90, %v90
  %v107 = vpack.c.bf16 %v91, %v91
  %v108 = vpack.c.bf16 %v92, %v92
  %v109 = vpack.c.bf16 %v93, %v93
  %v110 = vpack.c.bf16 %v94, %v94
  %v111 = vpack.c.bf16 %v95, %v95
  %v112 = vpack.c.bf16 %v96, %v96
  %v113 = vpack.c.bf16 %v97, %v97
  %v114 = vpack.c.bf16 %v98, %v98
  %v115 = vpack.c.bf16 %v99, %v99
  %v116 = vpack.c.bf16 %v100, %v100
  %117 = vst [vmem:[%s3] sm:$0xf] %v101
  %118 = vst [vmem:[%s3 + $0x4] sm:$0xf] %v102
  %119 = vst [vmem:[%s3 + $0x8] sm:$0xf] %v103
  %120 = vst [vmem:[%s3 + $0xc] sm:$0xf] %v104
  %121 = vst [vmem:[%s3 + $0x10] sm:$0xf] %v105
  %122 = vst [vmem:[%s3 + $0x14] sm:$0xf] %v106
  %123 = vst [vmem:[%s3 + $0x18] sm:$0xf] %v107
  %124 = vst [vmem:[%s3 + $0x1c] sm:$0xf] %v108
  %125 = vst [vmem:[%s3 + $0x20] sm:$0xf] %v109
  %126 = vst [vmem:[%s3 + $0x24] sm:$0xf] %v110
  %127 = vst [vmem:[%s3 + $0x28] sm:$0xf] %v111
  %128 = vst [vmem:[%s3 + $0x2c] sm:$0xf] %v112
  %129 = vst [vmem:[%s3 + $0x30] sm:$0xf] %v113
  %130 = vst [vmem:[%s3 + $0x34] sm:$0xf] %v114
  %131 = vst [vmem:[%s3 + $0x38] sm:$0xf] %v115
  %132 = vst [vmem:[%s3 + $0x3c] sm:$0xf] %v116
  // Predicated region
  $region14: #{resnet_encoder_forward.25} parent=0 // pred_check
    _
  $region15: #{resnet_encoder_forward.25} parent=0 // pred_check_branch
    %134 = sbr.rel (0) target = $region17
  $region16: #{resnet_encoder_forward.25} parent=0 // pred_region
    _
  $region17: #{resnet_encoder_forward.25} parent=0 // pred_fallthru
    _
  // Predicated region
  $region18: #{resnet_encoder_forward.25} parent=0 // pred_check
    _
  $region19: #{resnet_encoder_forward.25} parent=0 // pred_check_branch
    %136 = sbr.rel (0) target = $region21
  $region20: #{resnet_encoder_forward.25} parent=0 // pred_region
    _
  $region21: #{resnet_encoder_forward.25} parent=0 // pred_fallthru
    _

// kernel: resnet_encoder_forward.24
$region0: #{resnet_encoder_forward.24}
  #allocation0 [shape = 'u32[]', space=smem, size = 0x4, offset = 0x4, fixed_abs, tag = 'smem constant byte address 0x4 - core index']
  #allocation1 [shape = 'u32[72,128]{1,0:T(1,128)}', space=vmem, size = 0x9000, scoped, tag = 'internal scratch']
  %s0 = inlined_call_operand.vmem [shape: bf16[128,256], index: 0, kind: input, shape index: {}]
  %s1 = inlined_call_operand.vmem [shape: bf16[256,128], index: 1, kind: input, shape index: {}]
  %s2 = inlined_call_operand.vmem [shape: bf16[256,128], index: 2, kind: input, shape index: {}]
  %s3 = inlined_call_operand.vmem [shape: f32[128,128], index: 3, kind: output, shape index: {0}]
  %s4 = inlined_call_operand.vmem [shape: f32[128,128], index: 4, kind: output, shape index: {1}]
  %s5 = inlined_call_operand.vmem [shape: f32[1,128], index: 5, kind: output, shape index: {2}]
  %s6 = inlined_call_operand.vmem [shape: f32[1,128], index: 6, kind: output, shape index: {3}]
  %s7 = inlined_call_operand.vmem [shape: f32[1,128], index: 7, kind: output, shape index: {4}]
  %s8 = inlined_call_operand.vmem [shape: f32[1,128], index: 8, kind: output, shape index: {5}]
  %9 = xla_tuple %s3, %s4, %s5, %s6, %s7, %s8
  %s10 = sld [smem:[#allocation0]]
  $region66: #{resnet_encoder_forward.24} parent=0
    _
  %s12 = ssub.s32 1, %s10
  %s13 = scalar_select 0, %s12, %s10
  // Predicated region
  $region2: #{resnet_encoder_forward.24} parent=0 // pred_check
    _
  $region3: #{resnet_encoder_forward.24} parent=0 // pred_check_branch
    %15 = sbr.rel (0) target = $region5
  $region4: #{resnet_encoder_forward.24} parent=0 // pred_region
    _
  $region5: #{resnet_encoder_forward.24} parent=0 // pred_fallthru
    _
  // Predicated region
  $region6: #{resnet_encoder_forward.24} parent=0 // pred_check
    _
  $region7: #{resnet_encoder_forward.24} parent=0 // pred_check_branch
    %17 = sbr.rel (0) target = $region9
  $region8: #{resnet_encoder_forward.24} parent=0 // pred_region
    _
  $region9: #{resnet_encoder_forward.24} parent=0 // pred_fallthru
    _
  // Predicated region
  $region10: #{resnet_encoder_forward.24} parent=0 // pred_check
    _
  $region11: #{resnet_encoder_forward.24} parent=0 // pred_check_branch
    %19 = sbr.rel (0) target = $region13
  $region12: #{resnet_encoder_forward.24} parent=0 // pred_region
    _
  $region13: #{resnet_encoder_forward.24} parent=0 // pred_fallthru
    _
  %p20 = scmp.eq.s32.totalorder 0, 0
  // Predicated region
  $region14: #{resnet_encoder_forward.24} parent=0 // pred_check
    %p21 = pneg %p20
  $region15: #{resnet_encoder_forward.24} parent=0 // pred_check_branch
    %23 = sbr.rel (%p21) target = $region17
  $region16: #{resnet_encoder_forward.24} parent=0 // pred_region
    %24 = vst [vmem:[%s5] sm:$0x1] 0.0
    %25 = vst [vmem:[%s6] sm:$0x1] 0.0
    %26 = vst [vmem:[%s7] sm:$0x1] 0.0
    %27 = vst [vmem:[%s8] sm:$0x1] 0.0
  $region17: #{resnet_encoder_forward.24} parent=0 // pred_fallthru
    _
  %v28 = vld [vmem:[%s0] sm:$0xff]
  %v29 = vld [vmem:[%s0 + $0x8] sm:$0xff]
  %v30 = vld [vmem:[%s0 + $0x10] sm:$0xff]
  %v31 = vld [vmem:[%s0 + $0x18] sm:$0xff]
  %v32 = vld [vmem:[%s0 + $0x20] sm:$0xff]
  %v33 = vld [vmem:[%s0 + $0x28] sm:$0xff]
  %v34 = vld [vmem:[%s0 + $0x30] sm:$0xff]
  %v35 = vld [vmem:[%s0 + $0x38] sm:$0xff]
  %v36 = vld [vmem:[%s0 + $0x40] sm:$0xff]
  %v37 = vld [vmem:[%s0 + $0x48] sm:$0xff]
  %v38 = vld [vmem:[%s0 + $0x50] sm:$0xff]
  %v39 = vld [vmem:[%s0 + $0x58] sm:$0xff]
  %v40 = vld [vmem:[%s0 + $0x60] sm:$0xff]
  %v41 = vld [vmem:[%s0 + $0x68] sm:$0xff]
  %v42 = vld [vmem:[%s0 + $0x70] sm:$0xff]
  %v43 = vld [vmem:[%s0 + $0x78] sm:$0xff]
  %v44 = vld [vmem:[%s1] sm:$0xf]
  %v45 = vld [vmem:[%s1 + $0x4] sm:$0xf]
  %v46 = vld [vmem:[%s1 + $0x8] sm:$0xf]
  %v47 = vld [vmem:[%s1 + $0xc] sm:$0xf]
  %v48 = vld [vmem:[%s1 + $0x10] sm:$0xf]
  %v49 = vld [vmem:[%s1 + $0x14] sm:$0xf]
  %v50 = vld [vmem:[%s1 + $0x18] sm:$0xf]
  %v51 = vld [vmem:[%s1 + $0x1c] sm:$0xf]
  %v52 = vld [vmem:[%s1 + $0x20] sm:$0xf]
  %v53 = vld [vmem:[%s1 + $0x24] sm:$0xf]
  %v54 = vld [vmem:[%s1 + $0x28] sm:$0xf]
  %v55 = vld [vmem:[%s1 + $0x2c] sm:$0xf]
  %v56 = vld [vmem:[%s1 + $0x30] sm:$0xf]
  %v57 = vld [vmem:[%s1 + $0x34] sm:$0xf]
  %v58 = vld [vmem:[%s1 + $0x38] sm:$0xf]
  %v59 = vld [vmem:[%s1 + $0x3c] sm:$0xf]
  %v60 = vld [vmem:[%s1 + $0x40] sm:$0xf]
  %v61 = vld [vmem:[%s1 + $0x44] sm:$0xf]
  %v62 = vld [vmem:[%s1 + $0x48] sm:$0xf]
  %v63 = vld [vmem:[%s1 + $0x4c] sm:$0xf]
  %v64 = vld [vmem:[%s1 + $0x50] sm:$0xf]
  %v65 = vld [vmem:[%s1 + $0x54] sm:$0xf]
  %v66 = vld [vmem:[%s1 + $0x58] sm:$0xf]
  %v67 = vld [vmem:[%s1 + $0x5c] sm:$0xf]
  %v68 = vld [vmem:[%s1 + $0x60] sm:$0xf]
  %v69 = vld [vmem:[%s1 + $0x64] sm:$0xf]
  %v70 = vld [vmem:[%s1 + $0x68] sm:$0xf]
  %v71 = vld [vmem:[%s1 + $0x6c] sm:$0xf]
  %v72 = vld [vmem:[%s1 + $0x70] sm:$0xf]
  %v73 = vld [vmem:[%s1 + $0x74] sm:$0xf]
  %v74 = vld [vmem:[%s1 + $0x78] sm:$0xf]
  %v75 = vld [vmem:[%s1 + $0x7c] sm:$0xf]
  %v92 = vunpack.c.l.b16 %v28
  %v93 = vunpack.c.h.b16 %v28
  %v94 = vunpack.c.l.b16 %v29
  %v95 = vunpack.c.h.b16 %v29
  %v96 = vunpack.c.l.b16 %v30
  %v97 = vunpack.c.h.b16 %v30
  %v98 = vunpack.c.l.b16 %v31
  %v99 = vunpack.c.h.b16 %v31
  %v100 = vunpack.c.l.b16 %v32
  %v101 = vunpack.c.h.b16 %v32
  %v102 = vunpack.c.l.b16 %v33
  %v103 = vunpack.c.h.b16 %v33
  %v104 = vunpack.c.l.b16 %v34
  %v105 = vunpack.c.h.b16 %v34
  %v106 = vunpack.c.l.b16 %v35
  %v107 = vunpack.c.h.b16 %v35
  %v108 = vunpack.c.l.b16 %v36
  %v109 = vunpack.c.h.b16 %v36
  %v110 = vunpack.c.l.b16 %v37
  %v111 = vunpack.c.h.b16 %v37
  %v112 = vunpack.c.l.b16 %v38
  %v113 = vunpack.c.h.b16 %v38
  %v114 = vunpack.c.l.b16 %v39
  %v115 = vunpack.c.h.b16 %v39
  %v116 = vunpack.c.l.b16 %v40
  %v117 = vunpack.c.h.b16 %v40
  %v118 = vunpack.c.l.b16 %v41
  %v119 = vunpack.c.h.b16 %v41
  %v120 = vunpack.c.l.b16 %v42
  %v121 = vunpack.c.h.b16 %v42
  %v122 = vunpack.c.l.b16 %v43
  %v123 = vunpack.c.h.b16 %v43
  %v124 = vpack.c.b16 %v94, %v92
  %v125 = vpack.c.b16 %v95, %v93
  %v126 = vpack.c.b16 %v98, %v96
  %v127 = vpack.c.b16 %v99, %v97
  %v128 = vpack.c.b16 %v102, %v100
  %v129 = vpack.c.b16 %v103, %v101
  %v130 = vpack.c.b16 %v106, %v104
  %v131 = vpack.c.b16 %v107, %v105
  %v132 = vpack.c.b16 %v110, %v108
  %v133 = vpack.c.b16 %v111, %v109
  %v134 = vpack.c.b16 %v114, %v112
  %v135 = vpack.c.b16 %v115, %v113
  %v136 = vpack.c.b16 %v118, %v116
  %v137 = vpack.c.b16 %v119, %v117
  %v138 = vpack.c.b16 %v122, %v120
  %v139 = vpack.c.b16 %v123, %v121
  %v188 = vunpack.c.l.b16 %v44
  %v189 = vunpack.c.l.b16 %v45
  %v190 = vunpack.c.l.b16 %v46
  %v191 = vunpack.c.l.b16 %v47
  %v192 = vunpack.c.l.b16 %v48
  %v193 = vunpack.c.l.b16 %v49
  %v194 = vunpack.c.l.b16 %v50
  %v195 = vunpack.c.l.b16 %v51
  %v196 = vunpack.c.l.b16 %v52
  %v197 = vunpack.c.l.b16 %v53
  %v198 = vunpack.c.l.b16 %v54
  %v199 = vunpack.c.l.b16 %v55
  %v200 = vunpack.c.l.b16 %v56
  %v201 = vunpack.c.l.b16 %v57
  %v202 = vunpack.c.l.b16 %v58
  %v203 = vunpack.c.l.b16 %v59
  %v204 = vunpack.c.l.b16 %v60
  %v205 = vunpack.c.l.b16 %v61
  %v206 = vunpack.c.l.b16 %v62
  %v207 = vunpack.c.l.b16 %v63
  %v208 = vunpack.c.l.b16 %v64
  %v209 = vunpack.c.l.b16 %v65
  %v210 = vunpack.c.l.b16 %v66
  %v211 = vunpack.c.l.b16 %v67
  %v212 = vunpack.c.l.b16 %v68
  %v213 = vunpack.c.l.b16 %v69
  %v214 = vunpack.c.l.b16 %v70
  %v215 = vunpack.c.l.b16 %v71
  %v216 = vunpack.c.l.b16 %v72
  %v217 = vunpack.c.l.b16 %v73
  %v218 = vunpack.c.l.b16 %v74
  %v219 = vunpack.c.l.b16 %v75
  %v220 = vpack.c.b16 %v189, %v188
  %v221 = vpack.c.b16 %v191, %v190
  %v222 = vpack.c.b16 %v193, %v192
  %v223 = vpack.c.b16 %v195, %v194
  %v224 = vpack.c.b16 %v197, %v196
  %v225 = vpack.c.b16 %v199, %v198
  %v226 = vpack.c.b16 %v201, %v200
  %v227 = vpack.c.b16 %v203, %v202
  %v228 = vpack.c.b16 %v205, %v204
  %v229 = vpack.c.b16 %v207, %v206
  %v230 = vpack.c.b16 %v209, %v208
  %v231 = vpack.c.b16 %v211, %v210
  %v232 = vpack.c.b16 %v213, %v212
  %v233 = vpack.c.b16 %v215, %v214
  %v234 = vpack.c.b16 %v217, %v216
  %v235 = vpack.c.b16 %v219, %v218
  %252 = vmatpush.bf16.msra.mxu0 %v227
  %253 = vmatpush.bf16.msra.mxu0 %v226
  %254 = vmatpush.bf16.msra.mxu0 %v225
  %255 = vmatpush.bf16.msra.mxu0 %v224
  %256 = vmatpush.bf16.msra.mxu0 %v223
  %257 = vmatpush.bf16.msra.mxu0 %v222
  %258 = vmatpush.bf16.msra.mxu0 %v221
  %259 = vmatpush.bf16.msra.mxu0 %v220
  %260 = vmatmul.bf16.gmra.mxu0 %v124
  %v261 = vpop.f32.mrf.mxu0
  %v262 = vadd.f32 0.0, %v261
  %v263 = vpop.f32.mrf.mxu0
  %v264 = vadd.f32 0.0, %v263
  %265 = vmatmul.bf16.gmra.mxu0 %v126
  %v266 = vpop.f32.mrf.mxu0
  %v267 = vadd.f32 0.0, %v266
  %v268 = vpop.f32.mrf.mxu0
  %v269 = vadd.f32 0.0, %v268
  %270 = vmatmul.bf16.gmra.mxu0 %v128
  %v271 = vpop.f32.mrf.mxu0
  %v272 = vadd.f32 0.0, %v271
  %v273 = vpop.f32.mrf.mxu0
  %v274 = vadd.f32 0.0, %v273
  %275 = vmatmul.bf16.gmra.mxu0 %v130
  %v276 = vpop.f32.mrf.mxu0
  %v277 = vadd.f32 0.0, %v276
  %v278 = vpop.f32.mrf.mxu0
  %v279 = vadd.f32 0.0, %v278
  %280 = vmatmul.bf16.gmra.mxu0 %v132
  %v281 = vpop.f32.mrf.mxu0
  %v282 = vadd.f32 0.0, %v281
  %v283 = vpop.f32.mrf.mxu0
  %v284 = vadd.f32 0.0, %v283
  %285 = vmatmul.bf16.gmra.mxu0 %v134
  %v286 = vpop.f32.mrf.mxu0
  %v287 = vadd.f32 0.0, %v286
  %v288 = vpop.f32.mrf.mxu0
  %v289 = vadd.f32 0.0, %v288
  %290 = vmatmul.bf16.gmra.mxu0 %v136
  %v291 = vpop.f32.mrf.mxu0
  %v292 = vadd.f32 0.0, %v291
  %v293 = vpop.f32.mrf.mxu0
  %v294 = vadd.f32 0.0, %v293
  %295 = vmatmul.bf16.gmra.mxu0 %v138
  %v296 = vpop.f32.mrf.mxu0
  %v297 = vadd.f32 0.0, %v296
  %v298 = vpop.f32.mrf.mxu0
  %v299 = vadd.f32 0.0, %v298
  %300 = vdwg.mxu0
  %301 = vmatpush.bf16.msra.mxu0 %v235
  %302 = vmatpush.bf16.msra.mxu0 %v234
  %303 = vmatpush.bf16.msra.mxu0 %v233
  %304 = vmatpush.bf16.msra.mxu0 %v232
  %305 = vmatpush.bf16.msra.mxu0 %v231
  %306 = vmatpush.bf16.msra.mxu0 %v230
  %307 = vmatpush.bf16.msra.mxu0 %v229
  %308 = vmatpush.bf16.msra.mxu0 %v228
  %309 = vmatmul.bf16.gmra.mxu0 %v125
  %v310 = vpop.f32.mrf.mxu0
  %v311 = vadd.f32 %v262, %v310
  %v312 = vpop.f32.mrf.mxu0
  %v313 = vadd.f32 %v264, %v312
  %314 = vmatmul.bf16.gmra.mxu0 %v127
  %v315 = vpop.f32.mrf.mxu0
  %v316 = vadd.f32 %v267, %v315
  %v317 = vpop.f32.mrf.mxu0
  %v318 = vadd.f32 %v269, %v317
  %319 = vmatmul.bf16.gmra.mxu0 %v129
  %v320 = vpop.f32.mrf.mxu0
  %v321 = vadd.f32 %v272, %v320
  %v322 = vpop.f32.mrf.mxu0
  %v323 = vadd.f32 %v274, %v322
  %324 = vmatmul.bf16.gmra.mxu0 %v131
  %v325 = vpop.f32.mrf.mxu0
  %v326 = vadd.f32 %v277, %v325
  %v327 = vpop.f32.mrf.mxu0
  %v328 = vadd.f32 %v279, %v327
  %329 = vmatmul.bf16.gmra.mxu0 %v133
  %v330 = vpop.f32.mrf.mxu0
  %v331 = vadd.f32 %v282, %v330
  %v332 = vpop.f32.mrf.mxu0
  %v333 = vadd.f32 %v284, %v332
  %334 = vmatmul.bf16.gmra.mxu0 %v135
  %v335 = vpop.f32.mrf.mxu0
  %v336 = vadd.f32 %v287, %v335
  %v337 = vpop.f32.mrf.mxu0
  %v338 = vadd.f32 %v289, %v337
  %339 = vmatmul.bf16.gmra.mxu0 %v137
  %v340 = vpop.f32.mrf.mxu0
  %v341 = vadd.f32 %v292, %v340
  %v342 = vpop.f32.mrf.mxu0
  %v343 = vadd.f32 %v294, %v342
  %344 = vmatmul.bf16.gmra.mxu0 %v139
  %v345 = vpop.f32.mrf.mxu0
  %v346 = vadd.f32 %v297, %v345
  %v347 = vpop.f32.mrf.mxu0
  %v348 = vadd.f32 %v299, %v347
  %349 = vdwg.mxu0
  %350 = vst [vmem:[%s3] sm:$0xff] %v311
  %351 = vst [vmem:[%s3 + $0x8] sm:$0xff] %v313
  %352 = vst [vmem:[%s3 + $0x10] sm:$0xff] %v316
  %353 = vst [vmem:[%s3 + $0x18] sm:$0xff] %v318
  %354 = vst [vmem:[%s3 + $0x20] sm:$0xff] %v321
  %355 = vst [vmem:[%s3 + $0x28] sm:$0xff] %v323
  %356 = vst [vmem:[%s3 + $0x30] sm:$0xff] %v326
  %357 = vst [vmem:[%s3 + $0x38] sm:$0xff] %v328
  %358 = vst [vmem:[%s3 + $0x40] sm:$0xff] %v331
  %359 = vst [vmem:[%s3 + $0x48] sm:$0xff] %v333
  %360 = vst [vmem:[%s3 + $0x50] sm:$0xff] %v336
  %361 = vst [vmem:[%s3 + $0x58] sm:$0xff] %v338
  %362 = vst [vmem:[%s3 + $0x60] sm:$0xff] %v341
  %363 = vst [vmem:[%s3 + $0x68] sm:$0xff] %v343
  %364 = vst [vmem:[%s3 + $0x70] sm:$0xff] %v346
  %365 = vst [vmem:[%s3 + $0x78] sm:$0xff] %v348
  %v366 = vld [vmem:[%s5] sm:$0x1]
  %v367 = vadd.f32 %v311, %v313
  %v368 = vadd.f32 %v367, %v316
  %v369 = vadd.f32 %v368, %v318
  %v370 = vadd.f32 %v369, %v321
  %v371 = vadd.f32 %v370, %v323
  %v372 = vadd.f32 %v371, %v326
  %v373 = vadd.f32 %v372, %v328
  %v374 = vadd.f32 %v373, %v331
  %v375 = vadd.f32 %v374, %v333
  %v376 = vadd.f32 %v375, %v336
  %v377 = vadd.f32 %v376, %v338
  %v378 = vadd.f32 %v377, %v341
  %v379 = vadd.f32 %v378, %v343
  %v380 = vadd.f32 %v379, %v346
  %v381 = vadd.f32 %v380, %v348
  %v382 = vrot.slane %v381, 4
  %v383 = vadd.f32 %v381, %v382
  %v384 = vrot.slane %v383, 2
  %v385 = vadd.f32 %v383, %v384
  %v386 = vrot.slane %v385, 1
  %v387 = vadd.f32 %v385, %v386
  %v388 = vadd.f32 %v366, %v387
  %389 = vst [vmem:[%s5] sm:$0x1] %v388
  %v390 = vld [vmem:[%s7] sm:$0x1]
  %v391 = vmul.f32 %v311, %v311
  %v392 = vmul.f32 %v313, %v313
  %v393 = vmul.f32 %v316, %v316
  %v394 = vmul.f32 %v318, %v318
  %v395 = vmul.f32 %v321, %v321
  %v396 = vmul.f32 %v323, %v323
  %v397 = vmul.f32 %v326, %v326
  %v398 = vmul.f32 %v328, %v328
  %v399 = vmul.f32 %v331, %v331
  %v400 = vmul.f32 %v333, %v333
  %v401 = vmul.f32 %v336, %v336
  %v402 = vmul.f32 %v338, %v338
  %v403 = vmul.f32 %v341, %v341
  %v404 = vmul.f32 %v343, %v343
  %v405 = vmul.f32 %v346, %v346
  %v406 = vmul.f32 %v348, %v348
  %v407 = vadd.f32 %v391, %v392
  %v408 = vadd.f32 %v407, %v393
  %v409 = vadd.f32 %v408, %v394
  %v410 = vadd.f32 %v409, %v395
  %v411 = vadd.f32 %v410, %v396
  %v412 = vadd.f32 %v411, %v397
  %v413 = vadd.f32 %v412, %v398
  %v414 = vadd.f32 %v413, %v399
  %v415 = vadd.f32 %v414, %v400
  %v416 = vadd.f32 %v415, %v401
  %v417 = vadd.f32 %v416, %v402
  %v418 = vadd.f32 %v417, %v403
  %v419 = vadd.f32 %v418, %v404
  %v420 = vadd.f32 %v419, %v405
  %v421 = vadd.f32 %v420, %v406
  %v422 = vrot.slane %v421, 4
  %v423 = vadd.f32 %v421, %v422
  %v424 = vrot.slane %v423, 2
  %v425 = vadd.f32 %v423, %v424
  %v426 = vrot.slane %v425, 1
  %v427 = vadd.f32 %v425, %v426
  %v428 = vadd.f32 %v390, %v427
  %429 = vst [vmem:[%s7] sm:$0x1] %v428
  %v430 = vld [vmem:[%s2] sm:$0xf]
  %v431 = vld [vmem:[%s2 + $0x4] sm:$0xf]
  %v432 = vld [vmem:[%s2 + $0x8] sm:$0xf]
  %v433 = vld [vmem:[%s2 + $0xc] sm:$0xf]
  %v434 = vld [vmem:[%s2 + $0x10] sm:$0xf]
  %v435 = vld [vmem:[%s2 + $0x14] sm:$0xf]
  %v436 = vld [vmem:[%s2 + $0x18] sm:$0xf]
  %v437 = vld [vmem:[%s2 + $0x1c] sm:$0xf]
  %v438 = vld [vmem:[%s2 + $0x20] sm:$0xf]
  %v439 = vld [vmem:[%s2 + $0x24] sm:$0xf]
  %v440 = vld [vmem:[%s2 + $0x28] sm:$0xf]
  %v441 = vld [vmem:[%s2 + $0x2c] sm:$0xf]
  %v442 = vld [vmem:[%s2 + $0x30] sm:$0xf]
  %v443 = vld [vmem:[%s2 + $0x34] sm:$0xf]
  %v444 = vld [vmem:[%s2 + $0x38] sm:$0xf]
  %v445 = vld [vmem:[%s2 + $0x3c] sm:$0xf]
  %v446 = vld [vmem:[%s2 + $0x40] sm:$0xf]
  %v447 = vld [vmem:[%s2 + $0x44] sm:$0xf]
  %v448 = vld [vmem:[%s2 + $0x48] sm:$0xf]
  %v449 = vld [vmem:[%s2 + $0x4c] sm:$0xf]
  %v450 = vld [vmem:[%s2 + $0x50] sm:$0xf]
  %v451 = vld [vmem:[%s2 + $0x54] sm:$0xf]
  %v452 = vld [vmem:[%s2 + $0x58] sm:$0xf]
  %v453 = vld [vmem:[%s2 + $0x5c] sm:$0xf]
  %v454 = vld [vmem:[%s2 + $0x60] sm:$0xf]
  %v455 = vld [vmem:[%s2 + $0x64] sm:$0xf]
  %v456 = vld [vmem:[%s2 + $0x68] sm:$0xf]
  %v457 = vld [vmem:[%s2 + $0x6c] sm:$0xf]
  %v458 = vld [vmem:[%s2 + $0x70] sm:$0xf]
  %v459 = vld [vmem:[%s2 + $0x74] sm:$0xf]
  %v460 = vld [vmem:[%s2 + $0x78] sm:$0xf]
  %v461 = vld [vmem:[%s2 + $0x7c] sm:$0xf]
  %v494 = vunpack.c.l.b16 %v430
  %v495 = vunpack.c.l.b16 %v431
  %v496 = vunpack.c.l.b16 %v432
  %v497 = vunpack.c.l.b16 %v433
  %v498 = vunpack.c.l.b16 %v434
  %v499 = vunpack.c.l.b16 %v435
  %v500 = vunpack.c.l.b16 %v436
  %v501 = vunpack.c.l.b16 %v437
  %v502 = vunpack.c.l.b16 %v438
  %v503 = vunpack.c.l.b16 %v439
  %v504 = vunpack.c.l.b16 %v440
  %v505 = vunpack.c.l.b16 %v441
  %v506 = vunpack.c.l.b16 %v442
  %v507 = vunpack.c.l.b16 %v443
  %v508 = vunpack.c.l.b16 %v444
  %v509 = vunpack.c.l.b16 %v445
  %v510 = vunpack.c.l.b16 %v446
  %v511 = vunpack.c.l.b16 %v447
  %v512 = vunpack.c.l.b16 %v448
  %v513 = vunpack.c.l.b16 %v449
  %v514 = vunpack.c.l.b16 %v450
  %v515 = vunpack.c.l.b16 %v451
  %v516 = vunpack.c.l.b16 %v452
  %v517 = vunpack.c.l.b16 %v453
  %v518 = vunpack.c.l.b16 %v454
  %v519 = vunpack.c.l.b16 %v455
  %v520 = vunpack.c.l.b16 %v456
  %v521 = vunpack.c.l.b16 %v457
  %v522 = vunpack.c.l.b16 %v458
  %v523 = vunpack.c.l.b16 %v459
  %v524 = vunpack.c.l.b16 %v460
  %v525 = vunpack.c.l.b16 %v461
  %v526 = vpack.c.b16 %v495, %v494
  %v527 = vpack.c.b16 %v497, %v496
  %v528 = vpack.c.b16 %v499, %v498
  %v529 = vpack.c.b16 %v501, %v500
  %v530 = vpack.c.b16 %v503, %v502
  %v531 = vpack.c.b16 %v505, %v504
  %v532 = vpack.c.b16 %v507, %v506
  %v533 = vpack.c.b16 %v509, %v508
  %v534 = vpack.c.b16 %v511, %v510
  %v535 = vpack.c.b16 %v513, %v512
  %v536 = vpack.c.b16 %v515, %v514
  %v537 = vpack.c.b16 %v517, %v516
  %v538 = vpack.c.b16 %v519, %v518
  %v539 = vpack.c.b16 %v521, %v520
  %v540 = vpack.c.b16 %v523, %v522
  %v541 = vpack.c.b16 %v525, %v524
  %558 = vmatpush.bf16.msra.mxu0 %v533
  %559 = vmatpush.bf16.msra.mxu0 %v532
  %560 = vmatpush.bf16.msra.mxu0 %v531
  %561 = vmatpush.bf16.msra.mxu0 %v530
  %562 = vmatpush.bf16.msra.mxu0 %v529
  %563 = vmatpush.bf16.msra.mxu0 %v528
  %564 = vmatpush.bf16.msra.mxu0 %v527
  %565 = vmatpush.bf16.msra.mxu0 %v526
  %566 = vmatmul.bf16.gmra.mxu0 %v124
  %v567 = vpop.f32.mrf.mxu0
  %v568 = vadd.f32 0.0, %v567
  %v569 = vpop.f32.mrf.mxu0
  %v570 = vadd.f32 0.0, %v569
  %571 = vmatmul.bf16.gmra.mxu0 %v126
  %v572 = vpop.f32.mrf.mxu0
  %v573 = vadd.f32 0.0, %v572
  %v574 = vpop.f32.mrf.mxu0
  %v575 = vadd.f32 0.0, %v574
  %576 = vmatmul.bf16.gmra.mxu0 %v128
  %v577 = vpop.f32.mrf.mxu0
  %v578 = vadd.f32 0.0, %v577
  %v579 = vpop.f32.mrf.mxu0
  %v580 = vadd.f32 0.0, %v579
  %581 = vmatmul.bf16.gmra.mxu0 %v130
  %v582 = vpop.f32.mrf.mxu0
  %v583 = vadd.f32 0.0, %v582
  %v584 = vpop.f32.mrf.mxu0
  %v585 = vadd.f32 0.0, %v584
  %586 = vmatmul.bf16.gmra.mxu0 %v132
  %v587 = vpop.f32.mrf.mxu0
  %v588 = vadd.f32 0.0, %v587
  %v589 = vpop.f32.mrf.mxu0
  %v590 = vadd.f32 0.0, %v589
  %591 = vmatmul.bf16.gmra.mxu0 %v134
  %v592 = vpop.f32.mrf.mxu0
  %v593 = vadd.f32 0.0, %v592
  %v594 = vpop.f32.mrf.mxu0
  %v595 = vadd.f32 0.0, %v594
  %596 = vmatmul.bf16.gmra.mxu0 %v136
  %v597 = vpop.f32.mrf.mxu0
  %v598 = vadd.f32 0.0, %v597
  %v599 = vpop.f32.mrf.mxu0
  %v600 = vadd.f32 0.0, %v599
  %601 = vmatmul.bf16.gmra.mxu0 %v138
  %v602 = vpop.f32.mrf.mxu0
  %v603 = vadd.f32 0.0, %v602
  %v604 = vpop.f32.mrf.mxu0
  %v605 = vadd.f32 0.0, %v604
  %606 = vdwg.mxu0
  %607 = vmatpush.bf16.msra.mxu0 %v541
  %608 = vmatpush.bf16.msra.mxu0 %v540
  %609 = vmatpush.bf16.msra.mxu0 %v539
  %610 = vmatpush.bf16.msra.mxu0 %v538
  %611 = vmatpush.bf16.msra.mxu0 %v537
  %612 = vmatpush.bf16.msra.mxu0 %v536
  %613 = vmatpush.bf16.msra.mxu0 %v535
  %614 = vmatpush.bf16.msra.mxu0 %v534
  %615 = vmatmul.bf16.gmra.mxu0 %v125
  %v616 = vpop.f32.mrf.mxu0
  %v617 = vadd.f32 %v568, %v616
  %v618 = vpop.f32.mrf.mxu0
  %v619 = vadd.f32 %v570, %v618
  %620 = vmatmul.bf16.gmra.mxu0 %v127
  %v621 = vpop.f32.mrf.mxu0
  %v622 = vadd.f32 %v573, %v621
  %v623 = vpop.f32.mrf.mxu0
  %v624 = vadd.f32 %v575, %v623
  %625 = vmatmul.bf16.gmra.mxu0 %v129
  %v626 = vpop.f32.mrf.mxu0
  %v627 = vadd.f32 %v578, %v626
  %v628 = vpop.f32.mrf.mxu0
  %v629 = vadd.f32 %v580, %v628
  %630 = vmatmul.bf16.gmra.mxu0 %v131
  %v631 = vpop.f32.mrf.mxu0
  %v632 = vadd.f32 %v583, %v631
  %v633 = vpop.f32.mrf.mxu0
  %v634 = vadd.f32 %v585, %v633
  %635 = vmatmul.bf16.gmra.mxu0 %v133
  %v636 = vpop.f32.mrf.mxu0
  %v637 = vadd.f32 %v588, %v636
  %v638 = vpop.f32.mrf.mxu0
  %v639 = vadd.f32 %v590, %v638
  %640 = vmatmul.bf16.gmra.mxu0 %v135
  %v641 = vpop.f32.mrf.mxu0
  %v642 = vadd.f32 %v593, %v641
  %v643 = vpop.f32.mrf.mxu0
  %v644 = vadd.f32 %v595, %v643
  %645 = vmatmul.bf16.gmra.mxu0 %v137
  %v646 = vpop.f32.mrf.mxu0
  %v647 = vadd.f32 %v598, %v646
  %v648 = vpop.f32.mrf.mxu0
  %v649 = vadd.f32 %v600, %v648
  %650 = vmatmul.bf16.gmra.mxu0 %v139
  %v651 = vpop.f32.mrf.mxu0
  %v652 = vadd.f32 %v603, %v651
  %v653 = vpop.f32.mrf.mxu0
  %v654 = vadd.f32 %v605, %v653
  %655 = vdwg.mxu0
  %656 = vst [vmem:[%s4] sm:$0xff] %v617
  %657 = vst [vmem:[%s4 + $0x8] sm:$0xff] %v619
  %658 = vst [vmem:[%s4 + $0x10] sm:$0xff] %v622
  %659 = vst [vmem:[%s4 + $0x18] sm:$0xff] %v624
  %660 = vst [vmem:[%s4 + $0x20] sm:$0xff] %v627
  %661 = vst [vmem:[%s4 + $0x28] sm:$0xff] %v629
  %662 = vst [vmem:[%s4 + $0x30] sm:$0xff] %v632
  %663 = vst [vmem:[%s4 + $0x38] sm:$0xff] %v634
  %664 = vst [vmem:[%s4 + $0x40] sm:$0xff] %v637
  %665 = vst [vmem:[%s4 + $0x48] sm:$0xff] %v639
  %666 = vst [vmem:[%s4 + $0x50] sm:$0xff] %v642
  %667 = vst [vmem:[%s4 + $0x58] sm:$0xff] %v644
  %668 = vst [vmem:[%s4 + $0x60] sm:$0xff] %v647
  %669 = vst [vmem:[%s4 + $0x68] sm:$0xff] %v649
  %670 = vst [vmem:[%s4 + $0x70] sm:$0xff] %v652
  %671 = vst [vmem:[%s4 + $0x78] sm:$0xff] %v654
  %v672 = vld [vmem:[%s6] sm:$0x1]
  %v673 = vadd.f32 %v617, %v619
  %v674 = vadd.f32 %v673, %v622
  %v675 = vadd.f32 %v674, %v624
  %v676 = vadd.f32 %v675, %v627
  %v677 = vadd.f32 %v676, %v629
  %v678 = vadd.f32 %v677, %v632
  %v679 = vadd.f32 %v678, %v634
  %v680 = vadd.f32 %v679, %v637
  %v681 = vadd.f32 %v680, %v639
  %v682 = vadd.f32 %v681, %v642
  %v683 = vadd.f32 %v682, %v644
  %v684 = vadd.f32 %v683, %v647
  %v685 = vadd.f32 %v684, %v649
  %v686 = vadd.f32 %v685, %v652
  %v687 = vadd.f32 %v686, %v654
  %v688 = vrot.slane %v687, 4
  %v689 = vadd.f32 %v687, %v688
  %v690 = vrot.slane %v689, 2
  %v691 = vadd.f32 %v689, %v690
  %v692 = vrot.slane %v691, 1
  %v693 = vadd.f32 %v691, %v692
  %v694 = vadd.f32 %v672, %v693
  %695 = vst [vmem:[%s6] sm:$0x1] %v694
  %v696 = vld [vmem:[%s8] sm:$0x1]
  %v697 = vmul.f32 %v617, %v617
  %v698 = vmul.f32 %v619, %v619
  %v699 = vmul.f32 %v622, %v622
  %v700 = vmul.f32 %v624, %v624
  %v701 = vmul.f32 %v627, %v627
  %v702 = vmul.f32 %v629, %v629
  %v703 = vmul.f32 %v632, %v632
  %v704 = vmul.f32 %v634, %v634
  %v705 = vmul.f32 %v637, %v637
  %v706 = vmul.f32 %v639, %v639
  %v707 = vmul.f32 %v642, %v642
  %v708 = vmul.f32 %v644, %v644
  %v709 = vmul.f32 %v647, %v647
  %v710 = vmul.f32 %v649, %v649
  %v711 = vmul.f32 %v652, %v652
  %v712 = vmul.f32 %v654, %v654
  %v713 = vadd.f32 %v697, %v698
  %v714 = vadd.f32 %v713, %v699
  %v715 = vadd.f32 %v714, %v700
  %v716 = vadd.f32 %v715, %v701
  %v717 = vadd.f32 %v716, %v702
  %v718 = vadd.f32 %v717, %v703
  %v719 = vadd.f32 %v718, %v704
  %v720 = vadd.f32 %v719, %v705
  %v721 = vadd.f32 %v720, %v706
  %v722 = vadd.f32 %v721, %v707
  %v723 = vadd.f32 %v722, %v708
  %v724 = vadd.f32 %v723, %v709
  %v725 = vadd.f32 %v724, %v710
  %v726 = vadd.f32 %v725, %v711
  %v727 = vadd.f32 %v726, %v712
  %v728 = vrot.slane %v727, 4
  %v729 = vadd.f32 %v727, %v728
  %v730 = vrot.slane %v729, 2
  %v731 = vadd.f32 %v729, %v730
  %v732 = vrot.slane %v731, 1
  %v733 = vadd.f32 %v731, %v732
  %v734 = vadd.f32 %v696, %v733
  %735 = vst [vmem:[%s8] sm:$0x1] %v734
  // Predicated region
  $region18: #{resnet_encoder_forward.24} parent=0 // pred_check
    _
  $region19: #{resnet_encoder_forward.24} parent=0 // pred_check_branch
    %737 = sbr.rel (0) target = $region21
  $region20: #{resnet_encoder_forward.24} parent=0 // pred_region
    _
  $region21: #{resnet_encoder_forward.24} parent=0 // pred_fallthru
    _
  // Predicated region
  $region22: #{resnet_encoder_forward.24} parent=0 // pred_check
    _
  $region23: #{resnet_encoder_forward.24} parent=0 // pred_check_branch
    %739 = sbr.rel (0) target = $region25
  $region24: #{resnet_encoder_forward.24} parent=0 // pred_region
    _
  $region25: #{resnet_encoder_forward.24} parent=0 // pred_fallthru
    _
  // Predicated region
  $region26: #{resnet_encoder_forward.24} parent=0 // pred_check
    _
  $region27: #{resnet_encoder_forward.24} parent=0 // pred_check_branch
    %741 = sbr.rel (0) target = $region29
  $region28: #{resnet_encoder_forward.24} parent=0 // pred_region
    _
  $region29: #{resnet_encoder_forward.24} parent=0 // pred_fallthru
    _
  // Predicated region
  $region30: #{resnet_encoder_forward.24} parent=0 // pred_check
    _
  $region31: #{resnet_encoder_forward.24} parent=0 // pred_check_branch
    %743 = sbr.rel (0) target = $region33
  $region32: #{resnet_encoder_forward.24} parent=0 // pred_region
    _
  $region33: #{resnet_encoder_forward.24} parent=0 // pred_fallthru
    _
  // Predicated region
  $region34: #{resnet_encoder_forward.24} parent=0 // pred_check
    _
  $region35: #{resnet_encoder_forward.24} parent=0 // pred_check_branch
    %745 = sbr.rel (0) target = $region37
  $region36: #{resnet_encoder_forward.24} parent=0 // pred_region
    _
  $region37: #{resnet_encoder_forward.24} parent=0 // pred_fallthru
    _
  // Predicated region
  $region38: #{resnet_encoder_forward.24} parent=0 // pred_check
    _
  $region39: #{resnet_encoder_forward.24} parent=0 // pred_check_branch
    %747 = sbr.rel (0) target = $region41
  $region40: #{resnet_encoder_forward.24} parent=0 // pred_region
    _
  $region41: #{resnet_encoder_forward.24} parent=0 // pred_fallthru
    _
  // Predicated region
  $region42: #{resnet_encoder_forward.24} parent=0 // pred_check
    _
  $region43: #{resnet_encoder_forward.24} parent=0 // pred_check_branch
    %749 = sbr.rel (0) target = $region45
  $region44: #{resnet_encoder_forward.24} parent=0 // pred_region
    _
  $region45: #{resnet_encoder_forward.24} parent=0 // pred_fallthru
    _
  // Predicated region
  $region46: #{resnet_encoder_forward.24} parent=0 // pred_check
    _
  $region47: #{resnet_encoder_forward.24} parent=0 // pred_check_branch
    %751 = sbr.rel (0) target = $region49
  $region48: #{resnet_encoder_forward.24} parent=0 // pred_region
    _
  $region49: #{resnet_encoder_forward.24} parent=0 // pred_fallthru
    _
  // Predicated region
  $region50: #{resnet_encoder_forward.24} parent=0 // pred_check
    _
  $region51: #{resnet_encoder_forward.24} parent=0 // pred_check_branch
    %753 = sbr.rel (0) target = $region53
  $region52: #{resnet_encoder_forward.24} parent=0 // pred_region
    _
  $region53: #{resnet_encoder_forward.24} parent=0 // pred_fallthru
    _
  // Predicated region
  $region54: #{resnet_encoder_forward.24} parent=0 // pred_check
    _
  $region55: #{resnet_encoder_forward.24} parent=0 // pred_check_branch
    %755 = sbr.rel (0) target = $region57
  $region56: #{resnet_encoder_forward.24} parent=0 // pred_region
    _
  $region57: #{resnet_encoder_forward.24} parent=0 // pred_fallthru
    _
  // Predicated region
  $region58: #{resnet_encoder_forward.24} parent=0 // pred_check
    _
  $region59: #{resnet_encoder_forward.24} parent=0 // pred_check_branch
    %757 = sbr.rel (0) target = $region61
  $region60: #{resnet_encoder_forward.24} parent=0 // pred_region
    _
  $region61: #{resnet_encoder_forward.24} parent=0 // pred_fallthru
    _
  // Predicated region
  $region62: #{resnet_encoder_forward.24} parent=0 // pred_check
    _
  $region63: #{resnet_encoder_forward.24} parent=0 // pred_check_branch
    %759 = sbr.rel (0) target = $region65
  $region64: #{resnet_encoder_forward.24} parent=0 // pred_region
    _
  $region65: #{resnet_encoder_forward.24} parent=0 // pred_fallthru
    _

// kernel: resnet_encoder_forward.27
$region0: #{resnet_encoder_forward.27}
  #allocation0 [shape = 'u32[]', space=smem, size = 0x4, offset = 0x4, fixed_abs, tag = 'smem constant byte address 0x4 - core index']
  #allocation1 [shape = 'u32[72,128]{1,0:T(1,128)}', space=vmem, size = 0x9000, scoped, tag = 'internal scratch']
  %s0 = inlined_call_operand.vmem [shape: f32[128,128], index: 0, kind: input, shape index: {}]
  %s1 = inlined_call_operand.vmem [shape: f32[1,128], index: 1, kind: input, shape index: {}]
  %s2 = inlined_call_operand.vmem [shape: f32[1,128], index: 2, kind: input, shape index: {}]
  %s3 = inlined_call_operand.vmem [shape: f32[128,128], index: 3, kind: input, shape index: {}]
  %s4 = inlined_call_operand.vmem [shape: f32[1,128], index: 4, kind: input, shape index: {}]
  %s5 = inlined_call_operand.vmem [shape: f32[1,128], index: 5, kind: input, shape index: {}]
  %s6 = inlined_call_operand.vmem [shape: bf16[128,128], index: 6, kind: output, shape index: {}]
  %s7 = sld [smem:[#allocation0]]
  $region34: #{resnet_encoder_forward.27} parent=0
    _
  %s9 = ssub.s32 1, %s7
  %s10 = scalar_select 0, %s9, %s7
  // Predicated region
  $region2: #{resnet_encoder_forward.27} parent=0 // pred_check
    _
  $region3: #{resnet_encoder_forward.27} parent=0 // pred_check_branch
    %12 = sbr.rel (0) target = $region5
  $region4: #{resnet_encoder_forward.27} parent=0 // pred_region
    _
  $region5: #{resnet_encoder_forward.27} parent=0 // pred_fallthru
    _
  // Predicated region
  $region6: #{resnet_encoder_forward.27} parent=0 // pred_check
    _
  $region7: #{resnet_encoder_forward.27} parent=0 // pred_check_branch
    %14 = sbr.rel (0) target = $region9
  $region8: #{resnet_encoder_forward.27} parent=0 // pred_region
    _
  $region9: #{resnet_encoder_forward.27} parent=0 // pred_fallthru
    _
  // Predicated region
  $region10: #{resnet_encoder_forward.27} parent=0 // pred_check
    _
  $region11: #{resnet_encoder_forward.27} parent=0 // pred_check_branch
    %16 = sbr.rel (0) target = $region13
  $region12: #{resnet_encoder_forward.27} parent=0 // pred_region
    _
  $region13: #{resnet_encoder_forward.27} parent=0 // pred_fallthru
    _
  // Predicated region
  $region14: #{resnet_encoder_forward.27} parent=0 // pred_check
    _
  $region15: #{resnet_encoder_forward.27} parent=0 // pred_check_branch
    %18 = sbr.rel (0) target = $region17
  $region16: #{resnet_encoder_forward.27} parent=0 // pred_region
    _
  $region17: #{resnet_encoder_forward.27} parent=0 // pred_fallthru
    _
  // Predicated region
  $region18: #{resnet_encoder_forward.27} parent=0 // pred_check
    _
  $region19: #{resnet_encoder_forward.27} parent=0 // pred_check_branch
    %20 = sbr.rel (0) target = $region21
  $region20: #{resnet_encoder_forward.27} parent=0 // pred_region
    _
  $region21: #{resnet_encoder_forward.27} parent=0 // pred_fallthru
    _
  // Predicated region
  $region22: #{resnet_encoder_forward.27} parent=0 // pred_check
    _
  $region23: #{resnet_encoder_forward.27} parent=0 // pred_check_branch
    %22 = sbr.rel (0) target = $region25
  $region24: #{resnet_encoder_forward.27} parent=0 // pred_region
    _
  $region25: #{resnet_encoder_forward.27} parent=0 // pred_fallthru
    _
  %v23 = vld [vmem:[%s0] sm:$0xff]
  %v24 = vld [vmem:[%s0 + $0x8] sm:$0xff]
  %v25 = vld [vmem:[%s0 + $0x10] sm:$0xff]
  %v26 = vld [vmem:[%s0 + $0x18] sm:$0xff]
  %v27 = vld [vmem:[%s0 + $0x20] sm:$0xff]
  %v28 = vld [vmem:[%s0 + $0x28] sm:$0xff]
  %v29 = vld [vmem:[%s0 + $0x30] sm:$0xff]
  %v30 = vld [vmem:[%s0 + $0x38] sm:$0xff]
  %v31 = vld [vmem:[%s0 + $0x40] sm:$0xff]
  %v32 = vld [vmem:[%s0 + $0x48] sm:$0xff]
  %v33 = vld [vmem:[%s0 + $0x50] sm:$0xff]
  %v34 = vld [vmem:[%s0 + $0x58] sm:$0xff]
  %v35 = vld [vmem:[%s0 + $0x60] sm:$0xff]
  %v36 = vld [vmem:[%s0 + $0x68] sm:$0xff]
  %v37 = vld [vmem:[%s0 + $0x70] sm:$0xff]
  %v38 = vld [vmem:[%s0 + $0x78] sm:$0xff]
  %v39 = vld [vmem:[%s1] sm:$0x1]
  %v40 = vld [vmem:[%s2] sm:$0x1]
  %v41 = vmul.f32 %v39, 0.0078125
  %v42 = vmul.f32 %v40, 0.0078125
  %v43 = vmul.f32 %v41, %v41
  %v44 = vsub.f32 %v42, %v43
  %v46 = vperm.slane %v41, 0
  %v48 = vsub.f32 %v23, %v46
  %v49 = vsub.f32 %v24, %v46
  %v50 = vsub.f32 %v25, %v46
  %v51 = vsub.f32 %v26, %v46
  %v52 = vsub.f32 %v27, %v46
  %v53 = vsub.f32 %v28, %v46
  %v54 = vsub.f32 %v29, %v46
  %v55 = vsub.f32 %v30, %v46
  %v56 = vsub.f32 %v31, %v46
  %v57 = vsub.f32 %v32, %v46
  %v58 = vsub.f32 %v33, %v46
  %v59 = vsub.f32 %v34, %v46
  %v60 = vsub.f32 %v35, %v46
  %v61 = vsub.f32 %v36, %v46
  %v62 = vsub.f32 %v37, %v46
  %v63 = vsub.f32 %v38, %v46
  %v64 = vadd.f32 %v44, 1e-05
  %v65 = vrsqrt.pop %v64
  %v66 = vmul.f32 %v65, %v64
  %v67 = vmul.f32 %v66, %v65
  %v68 = vmul.f32 0.5, %v67
  %v69 = vsub.f32 1.5, %v68
  %v70 = vmul.f32 %v65, %v69
  %vm71 = vweird.f32 %v64
  %vm72 = vweird.f32 %v65
  %vm73 = vmor %vm71, %vm72
  %v74 = vsel %vm73, %v65, %v70
  %v76 = vperm.slane %v74, 0
  %v78 = vmul.f32 %v48, %v76
  %v79 = vmul.f32 %v49, %v76
  %v80 = vmul.f32 %v50, %v76
  %v81 = vmul.f32 %v51, %v76
  %v82 = vmul.f32 %v52, %v76
  %v83 = vmul.f32 %v53, %v76
  %v84 = vmul.f32 %v54, %v76
  %v85 = vmul.f32 %v55, %v76
  %v86 = vmul.f32 %v56, %v76
  %v87 = vmul.f32 %v57, %v76
  %v88 = vmul.f32 %v58, %v76
  %v89 = vmul.f32 %v59, %v76
  %v90 = vmul.f32 %v60, %v76
  %v91 = vmul.f32 %v61, %v76
  %v92 = vmul.f32 %v62, %v76
  %v93 = vmul.f32 %v63, %v76
  %v94 = vld [vmem:[%s3] sm:$0xff]
  %v95 = vld [vmem:[%s3 + $0x8] sm:$0xff]
  %v96 = vld [vmem:[%s3 + $0x10] sm:$0xff]
  %v97 = vld [vmem:[%s3 + $0x18] sm:$0xff]
  %v98 = vld [vmem:[%s3 + $0x20] sm:$0xff]
  %v99 = vld [vmem:[%s3 + $0x28] sm:$0xff]
  %v100 = vld [vmem:[%s3 + $0x30] sm:$0xff]
  %v101 = vld [vmem:[%s3 + $0x38] sm:$0xff]
  %v102 = vld [vmem:[%s3 + $0x40] sm:$0xff]
  %v103 = vld [vmem:[%s3 + $0x48] sm:$0xff]
  %v104 = vld [vmem:[%s3 + $0x50] sm:$0xff]
  %v105 = vld [vmem:[%s3 + $0x58] sm:$0xff]
  %v106 = vld [vmem:[%s3 + $0x60] sm:$0xff]
  %v107 = vld [vmem:[%s3 + $0x68] sm:$0xff]
  %v108 = vld [vmem:[%s3 + $0x70] sm:$0xff]
  %v109 = vld [vmem:[%s3 + $0x78] sm:$0xff]
  %v110 = vld [vmem:[%s4] sm:$0x1]
  %v111 = vld [vmem:[%s5] sm:$0x1]
  %v112 = vmul.f32 %v110, 0.0078125
  %v113 = vmul.f32 %v111, 0.0078125
  %v114 = vmul.f32 %v112, %v112
  %v115 = vsub.f32 %v113, %v114
  %v117 = vperm.slane %v112, 0
  %v119 = vsub.f32 %v94, %v117
  %v120 = vsub.f32 %v95, %v117
  %v121 = vsub.f32 %v96, %v117
  %v122 = vsub.f32 %v97, %v117
  %v123 = vsub.f32 %v98, %v117
  %v124 = vsub.f32 %v99, %v117
  %v125 = vsub.f32 %v100, %v117
  %v126 = vsub.f32 %v101, %v117
  %v127 = vsub.f32 %v102, %v117
  %v128 = vsub.f32 %v103, %v117
  %v129 = vsub.f32 %v104, %v117
  %v130 = vsub.f32 %v105, %v117
  %v131 = vsub.f32 %v106, %v117
  %v132 = vsub.f32 %v107, %v117
  %v133 = vsub.f32 %v108, %v117
  %v134 = vsub.f32 %v109, %v117
  %v135 = vadd.f32 %v115, 1e-05
  %v136 = vrsqrt.pop %v135
  %v137 = vmul.f32 %v136, %v135
  %v138 = vmul.f32 %v137, %v136
  %v139 = vmul.f32 0.5, %v138
  %v140 = vsub.f32 1.5, %v139
  %v141 = vmul.f32 %v136, %v140
  %vm142 = vweird.f32 %v135
  %vm143 = vweird.f32 %v136
  %vm144 = vmor %vm142, %vm143
  %v145 = vsel %vm144, %v136, %v141
  %v147 = vperm.slane %v145, 0
  %v149 = vmul.f32 %v119, %v147
  %v150 = vmul.f32 %v120, %v147
  %v151 = vmul.f32 %v121, %v147
  %v152 = vmul.f32 %v122, %v147
  %v153 = vmul.f32 %v123, %v147
  %v154 = vmul.f32 %v124, %v147
  %v155 = vmul.f32 %v125, %v147
  %v156 = vmul.f32 %v126, %v147
  %v157 = vmul.f32 %v127, %v147
  %v158 = vmul.f32 %v128, %v147
  %v159 = vmul.f32 %v129, %v147
  %v160 = vmul.f32 %v130, %v147
  %v161 = vmul.f32 %v131, %v147
  %v162 = vmul.f32 %v132, %v147
  %v163 = vmul.f32 %v133, %v147
  %v164 = vmul.f32 %v134, %v147
  %v165 = vadd.f32 %v78, %v149
  %v166 = vadd.f32 %v79, %v150
  %v167 = vadd.f32 %v80, %v151
  %v168 = vadd.f32 %v81, %v152
  %v169 = vadd.f32 %v82, %v153
  %v170 = vadd.f32 %v83, %v154
  %v171 = vadd.f32 %v84, %v155
  %v172 = vadd.f32 %v85, %v156
  %v173 = vadd.f32 %v86, %v157
  %v174 = vadd.f32 %v87, %v158
  %v175 = vadd.f32 %v88, %v159
  %v176 = vadd.f32 %v89, %v160
  %v177 = vadd.f32 %v90, %v161
  %v178 = vadd.f32 %v91, %v162
  %v179 = vadd.f32 %v92, %v163
  %v180 = vadd.f32 %v93, %v164
  %v181 = vmax.f32 %v165, 0.0
  %v182 = vmax.f32 %v166, 0.0
  %v183 = vmax.f32 %v167, 0.0
  %v184 = vmax.f32 %v168, 0.0
  %v185 = vmax.f32 %v169, 0.0
  %v186 = vmax.f32 %v170, 0.0
  %v187 = vmax.f32 %v171, 0.0
  %v188 = vmax.f32 %v172, 0.0
  %v189 = vmax.f32 %v173, 0.0
  %v190 = vmax.f32 %v174, 0.0
  %v191 = vmax.f32 %v175, 0.0
  %v192 = vmax.f32 %v176, 0.0
  %v193 = vmax.f32 %v177, 0.0
  %v194 = vmax.f32 %v178, 0.0
  %v195 = vmax.f32 %v179, 0.0
  %v196 = vmax.f32 %v180, 0.0
  %v197 = vpack.c.bf16 %v181, %v181
  %v198 = vpack.c.bf16 %v182, %v182
  %v199 = vpack.c.bf16 %v183, %v183
  %v200 = vpack.c.bf16 %v184, %v184
  %v201 = vpack.c.bf16 %v185, %v185
  %v202 = vpack.c.bf16 %v186, %v186
  %v203 = vpack.c.bf16 %v187, %v187
  %v204 = vpack.c.bf16 %v188, %v188
  %v205 = vpack.c.bf16 %v189, %v189
  %v206 = vpack.c.bf16 %v190, %v190
  %v207 = vpack.c.bf16 %v191, %v191
  %v208 = vpack.c.bf16 %v192, %v192
  %v209 = vpack.c.bf16 %v193, %v193
  %v210 = vpack.c.bf16 %v194, %v194
  %v211 = vpack.c.bf16 %v195, %v195
  %v212 = vpack.c.bf16 %v196, %v196
  %213 = vst [vmem:[%s6] sm:$0xf] %v197
  %214 = vst [vmem:[%s6 + $0x4] sm:$0xf] %v198
  %215 = vst [vmem:[%s6 + $0x8] sm:$0xf] %v199
  %216 = vst [vmem:[%s6 + $0xc] sm:$0xf] %v200
  %217 = vst [vmem:[%s6 + $0x10] sm:$0xf] %v201
  %218 = vst [vmem:[%s6 + $0x14] sm:$0xf] %v202
  %219 = vst [vmem:[%s6 + $0x18] sm:$0xf] %v203
  %220 = vst [vmem:[%s6 + $0x1c] sm:$0xf] %v204
  %221 = vst [vmem:[%s6 + $0x20] sm:$0xf] %v205
  %222 = vst [vmem:[%s6 + $0x24] sm:$0xf] %v206
  %223 = vst [vmem:[%s6 + $0x28] sm:$0xf] %v207
  %224 = vst [vmem:[%s6 + $0x2c] sm:$0xf] %v208
  %225 = vst [vmem:[%s6 + $0x30] sm:$0xf] %v209
  %226 = vst [vmem:[%s6 + $0x34] sm:$0xf] %v210
  %227 = vst [vmem:[%s6 + $0x38] sm:$0xf] %v211
  %228 = vst [vmem:[%s6 + $0x3c] sm:$0xf] %v212
  // Predicated region
  $region26: #{resnet_encoder_forward.27} parent=0 // pred_check
    _
  $region27: #{resnet_encoder_forward.27} parent=0 // pred_check_branch
    %230 = sbr.rel (0) target = $region29
  $region28: #{resnet_encoder_forward.27} parent=0 // pred_region
    _
  $region29: #{resnet_encoder_forward.27} parent=0 // pred_fallthru
    _
  // Predicated region
  $region30: #{resnet_encoder_forward.27} parent=0 // pred_check
    _
  $region31: #{resnet_encoder_forward.27} parent=0 // pred_check_branch
    %232 = sbr.rel (0) target = $region33
  $region32: #{resnet_encoder_forward.27} parent=0 // pred_region
    _
  $region33: #{resnet_encoder_forward.27} parent=0 // pred_fallthru
    _

// kernel: resnet_encoder_forward.26
$region0: #{resnet_encoder_forward.26}
  #allocation0 [shape = 'u32[]', space=smem, size = 0x4, offset = 0x4, fixed_abs, tag = 'smem constant byte address 0x4 - core index']
  #allocation1 [shape = 'u32[72,128]{1,0:T(1,128)}', space=vmem, size = 0x9000, scoped, tag = 'internal scratch']
  %s0 = inlined_call_operand.vmem [shape: bf16[128,384], index: 0, kind: input, shape index: {}]
  %s1 = inlined_call_operand.vmem [shape: bf16[384,128], index: 1, kind: input, shape index: {}]
  %s2 = inlined_call_operand.vmem [shape: f32[128,128], index: 2, kind: output, shape index: {0}]
  %s3 = inlined_call_operand.vmem [shape: f32[1,128], index: 3, kind: output, shape index: {1}]
  %s4 = inlined_call_operand.vmem [shape: f32[1,128], index: 4, kind: output, shape index: {2}]
  %5 = xla_tuple %s2, %s3, %s4
  %s6 = sld [smem:[#allocation0]]
  $region38: #{resnet_encoder_forward.26} parent=0
    _
  %s8 = ssub.s32 1, %s6
  %s9 = scalar_select 0, %s8, %s6
  // Predicated region
  $region2: #{resnet_encoder_forward.26} parent=0 // pred_check
    _
  $region3: #{resnet_encoder_forward.26} parent=0 // pred_check_branch
    %11 = sbr.rel (0) target = $region5
  $region4: #{resnet_encoder_forward.26} parent=0 // pred_region
    _
  $region5: #{resnet_encoder_forward.26} parent=0 // pred_fallthru
    _
  // Predicated region
  $region6: #{resnet_encoder_forward.26} parent=0 // pred_check
    _
  $region7: #{resnet_encoder_forward.26} parent=0 // pred_check_branch
    %13 = sbr.rel (0) target = $region9
  $region8: #{resnet_encoder_forward.26} parent=0 // pred_region
    _
  $region9: #{resnet_encoder_forward.26} parent=0 // pred_fallthru
    _
  %p14 = scmp.eq.s32.totalorder 0, 0
  // Predicated region
  $region10: #{resnet_encoder_forward.26} parent=0 // pred_check
    %p15 = pneg %p14
  $region11: #{resnet_encoder_forward.26} parent=0 // pred_check_branch
    %17 = sbr.rel (%p15) target = $region13
  $region12: #{resnet_encoder_forward.26} parent=0 // pred_region
    %18 = vst [vmem:[%s3] sm:$0x1] 0.0
    %19 = vst [vmem:[%s4] sm:$0x1] 0.0
  $region13: #{resnet_encoder_forward.26} parent=0 // pred_fallthru
    _
  %v20 = vld [vmem:[%s0] sm:$0xff]
  %v21 = vld [vmem:[%s0 + $0x8] sm:$0xf]
  %v22 = vld [vmem:[%s0 + $0xc] sm:$0xff]
  %v23 = vld [vmem:[%s0 + $0x14] sm:$0xf]
  %v24 = vld [vmem:[%s0 + $0x18] sm:$0xff]
  %v25 = vld [vmem:[%s0 + $0x20] sm:$0xf]
  %v26 = vld [vmem:[%s0 + $0x24] sm:$0xff]
  %v27 = vld [vmem:[%s0 + $0x2c] sm:$0xf]
  %v28 = vld [vmem:[%s0 + $0x30] sm:$0xff]
  %v29 = vld [vmem:[%s0 + $0x38] sm:$0xf]
  %v30 = vld [vmem:[%s0 + $0x3c] sm:$0xff]
  %v31 = vld [vmem:[%s0 + $0x44] sm:$0xf]
  %v32 = vld [vmem:[%s0 + $0x48] sm:$0xff]
  %v33 = vld [vmem:[%s0 + $0x50] sm:$0xf]
  %v34 = vld [vmem:[%s0 + $0x54] sm:$0xff]
  %v35 = vld [vmem:[%s0 + $0x5c] sm:$0xf]
  %v36 = vld [vmem:[%s0 + $0x60] sm:$0xff]
  %v37 = vld [vmem:[%s0 + $0x68] sm:$0xf]
  %v38 = vld [vmem:[%s0 + $0x6c] sm:$0xff]
  %v39 = vld [vmem:[%s0 + $0x74] sm:$0xf]
  %v40 = vld [vmem:[%s0 + $0x78] sm:$0xff]
  %v41 = vld [vmem:[%s0 + $0x80] sm:$0xf]
  %v42 = vld [vmem:[%s0 + $0x84] sm:$0xff]
  %v43 = vld [vmem:[%s0 + $0x8c] sm:$0xf]
  %v44 = vld [vmem:[%s0 + $0x90] sm:$0xff]
  %v45 = vld [vmem:[%s0 + $0x98] sm:$0xf]
  %v46 = vld [vmem:[%s0 + $0x9c] sm:$0xff]
  %v47 = vld [vmem:[%s0 + $0xa4] sm:$0xf]
  %v48 = vld [vmem:[%s0 + $0xa8] sm:$0xff]
  %v49 = vld [vmem:[%s0 + $0xb0] sm:$0xf]
  %v50 = vld [vmem:[%s0 + $0xb4] sm:$0xff]
  %v51 = vld [vmem:[%s0 + $0xbc] sm:$0xf]
  %v52 = vld [vmem:[%s1] sm:$0xf]
  %v53 = vld [vmem:[%s1 + $0x4] sm:$0xf]
  %v54 = vld [vmem:[%s1 + $0x8] sm:$0xf]
  %v55 = vld [vmem:[%s1 + $0xc] sm:$0xf]
  %v56 = vld [vmem:[%s1 + $0x10] sm:$0xf]
  %v57 = vld [vmem:[%s1 + $0x14] sm:$0xf]
  %v58 = vld [vmem:[%s1 + $0x18] sm:$0xf]
  %v59 = vld [vmem:[%s1 + $0x1c] sm:$0xf]
  %v60 = vld [vmem:[%s1 + $0x20] sm:$0xf]
  %v61 = vld [vmem:[%s1 + $0x24] sm:$0xf]
  %v62 = vld [vmem:[%s1 + $0x28] sm:$0xf]
  %v63 = vld [vmem:[%s1 + $0x2c] sm:$0xf]
  %v64 = vld [vmem:[%s1 + $0x30] sm:$0xf]
  %v65 = vld [vmem:[%s1 + $0x34] sm:$0xf]
  %v66 = vld [vmem:[%s1 + $0x38] sm:$0xf]
  %v67 = vld [vmem:[%s1 + $0x3c] sm:$0xf]
  %v68 = vld [vmem:[%s1 + $0x40] sm:$0xf]
  %v69 = vld [vmem:[%s1 + $0x44] sm:$0xf]
  %v70 = vld [vmem:[%s1 + $0x48] sm:$0xf]
  %v71 = vld [vmem:[%s1 + $0x4c] sm:$0xf]
  %v72 = vld [vmem:[%s1 + $0x50] sm:$0xf]
  %v73 = vld [vmem:[%s1 + $0x54] sm:$0xf]
  %v74 = vld [vmem:[%s1 + $0x58] sm:$0xf]
  %v75 = vld [vmem:[%s1 + $0x5c] sm:$0xf]
  %v76 = vld [vmem:[%s1 + $0x60] sm:$0xf]
  %v77 = vld [vmem:[%s1 + $0x64] sm:$0xf]
  %v78 = vld [vmem:[%s1 + $0x68] sm:$0xf]
  %v79 = vld [vmem:[%s1 + $0x6c] sm:$0xf]
  %v80 = vld [vmem:[%s1 + $0x70] sm:$0xf]
  %v81 = vld [vmem:[%s1 + $0x74] sm:$0xf]
  %v82 = vld [vmem:[%s1 + $0x78] sm:$0xf]
  %v83 = vld [vmem:[%s1 + $0x7c] sm:$0xf]
  %v84 = vld [vmem:[%s1 + $0x80] sm:$0xf]
  %v85 = vld [vmem:[%s1 + $0x84] sm:$0xf]
  %v86 = vld [vmem:[%s1 + $0x88] sm:$0xf]
  %v87 = vld [vmem:[%s1 + $0x8c] sm:$0xf]
  %v88 = vld [vmem:[%s1 + $0x90] sm:$0xf]
  %v89 = vld [vmem:[%s1 + $0x94] sm:$0xf]
  %v90 = vld [vmem:[%s1 + $0x98] sm:$0xf]
  %v91 = vld [vmem:[%s1 + $0x9c] sm:$0xf]
  %v92 = vld [vmem:[%s1 + $0xa0] sm:$0xf]
  %v93 = vld [vmem:[%s1 + $0xa4] sm:$0xf]
  %v94 = vld [vmem:[%s1 + $0xa8] sm:$0xf]
  %v95 = vld [vmem:[%s1 + $0xac] sm:$0xf]
  %v96 = vld [vmem:[%s1 + $0xb0] sm:$0xf]
  %v97 = vld [vmem:[%s1 + $0xb4] sm:$0xf]
  %v98 = vld [vmem:[%s1 + $0xb8] sm:$0xf]
  %v99 = vld [vmem:[%s1 + $0xbc] sm:$0xf]
  %v132 = vunpack.c.l.b16 %v20
  %v133 = vunpack.c.h.b16 %v20
  %v134 = vunpack.c.l.b16 %v21
  %v135 = vunpack.c.l.b16 %v22
  %v136 = vunpack.c.h.b16 %v22
  %v137 = vunpack.c.l.b16 %v23
  %v138 = vunpack.c.l.b16 %v24
  %v139 = vunpack.c.h.b16 %v24
  %v140 = vunpack.c.l.b16 %v25
  %v141 = vunpack.c.l.b16 %v26
  %v142 = vunpack.c.h.b16 %v26
  %v143 = vunpack.c.l.b16 %v27
  %v144 = vunpack.c.l.b16 %v28
  %v145 = vunpack.c.h.b16 %v28
  %v146 = vunpack.c.l.b16 %v29
  %v147 = vunpack.c.l.b16 %v30
  %v148 = vunpack.c.h.b16 %v30
  %v149 = vunpack.c.l.b16 %v31
  %v150 = vunpack.c.l.b16 %v32
  %v151 = vunpack.c.h.b16 %v32
  %v152 = vunpack.c.l.b16 %v33
  %v153 = vunpack.c.l.b16 %v34
  %v154 = vunpack.c.h.b16 %v34
  %v155 = vunpack.c.l.b16 %v35
  %v156 = vunpack.c.l.b16 %v36
  %v157 = vunpack.c.h.b16 %v36
  %v158 = vunpack.c.l.b16 %v37
  %v159 = vunpack.c.l.b16 %v38
  %v160 = vunpack.c.h.b16 %v38
  %v161 = vunpack.c.l.b16 %v39
  %v162 = vunpack.c.l.b16 %v40
  %v163 = vunpack.c.h.b16 %v40
  %v164 = vunpack.c.l.b16 %v41
  %v165 = vunpack.c.l.b16 %v42
  %v166 = vunpack.c.h.b16 %v42
  %v167 = vunpack.c.l.b16 %v43
  %v168 = vunpack.c.l.b16 %v44
  %v169 = vunpack.c.h.b16 %v44
  %v170 = vunpack.c.l.b16 %v45
  %v171 = vunpack.c.l.b16 %v46
  %v172 = vunpack.c.h.b16 %v46
  %v173 = vunpack.c.l.b16 %v47
  %v174 = vunpack.c.l.b16 %v48
  %v175 = vunpack.c.h.b16 %v48
  %v176 = vunpack.c.l.b16 %v49
  %v177 = vunpack.c.l.b16 %v50
  %v178 = vunpack.c.h.b16 %v50
  %v179 = vunpack.c.l.b16 %v51
  %v180 = vpack.c.b16 %v135, %v132
  %v181 = vpack.c.b16 %v136, %v133
  %v182 = vpack.c.b16 %v137, %v134
  %v183 = vpack.c.b16 %v141, %v138
  %v184 = vpack.c.b16 %v142, %v139
  %v185 = vpack.c.b16 %v143, %v140
  %v186 = vpack.c.b16 %v147, %v144
  %v187 = vpack.c.b16 %v148, %v145
  %v188 = vpack.c.b16 %v149, %v146
  %v189 = vpack.c.b16 %v153, %v150
  %v190 = vpack.c.b16 %v154, %v151
  %v191 = vpack.c.b16 %v155, %v152
  %v192 = vpack.c.b16 %v159, %v156
  %v193 = vpack.c.b16 %v160, %v157
  %v194 = vpack.c.b16 %v161, %v158
  %v195 = vpack.c.b16 %v165, %v162
  %v196 = vpack.c.b16 %v166, %v163
  %v197 = vpack.c.b16 %v167, %v164
  %v198 = vpack.c.b16 %v171, %v168
  %v199 = vpack.c.b16 %v172, %v169
  %v200 = vpack.c.b16 %v173, %v170
  %v201 = vpack.c.b16 %v177, %v174
  %v202 = vpack.c.b16 %v178, %v175
  %v203 = vpack.c.b16 %v179, %v176
  %v276 = vunpack.c.l.b16 %v52
  %v277 = vunpack.c.l.b16 %v53
  %v278 = vunpack.c.l.b16 %v54
  %v279 = vunpack.c.l.b16 %v55
  %v280 = vunpack.c.l.b16 %v56
  %v281 = vunpack.c.l.b16 %v57
  %v282 = vunpack.c.l.b16 %v58
  %v283 = vunpack.c.l.b16 %v59
  %v284 = vunpack.c.l.b16 %v60
  %v285 = vunpack.c.l.b16 %v61
  %v286 = vunpack.c.l.b16 %v62
  %v287 = vunpack.c.l.b16 %v63
  %v288 = vunpack.c.l.b16 %v64
  %v289 = vunpack.c.l.b16 %v65
  %v290 = vunpack.c.l.b16 %v66
  %v291 = vunpack.c.l.b16 %v67
  %v292 = vunpack.c.l.b16 %v68
  %v293 = vunpack.c.l.b16 %v69
  %v294 = vunpack.c.l.b16 %v70
  %v295 = vunpack.c.l.b16 %v71
  %v296 = vunpack.c.l.b16 %v72
  %v297 = vunpack.c.l.b16 %v73
  %v298 = vunpack.c.l.b16 %v74
  %v299 = vunpack.c.l.b16 %v75
  %v300 = vunpack.c.l.b16 %v76
  %v301 = vunpack.c.l.b16 %v77
  %v302 = vunpack.c.l.b16 %v78
  %v303 = vunpack.c.l.b16 %v79
  %v304 = vunpack.c.l.b16 %v80
  %v305 = vunpack.c.l.b16 %v81
  %v306 = vunpack.c.l.b16 %v82
  %v307 = vunpack.c.l.b16 %v83
  %v308 = vunpack.c.l.b16 %v84
  %v309 = vunpack.c.l.b16 %v85
  %v310 = vunpack.c.l.b16 %v86
  %v311 = vunpack.c.l.b16 %v87
  %v312 = vunpack.c.l.b16 %v88
  %v313 = vunpack.c.l.b16 %v89
  %v314 = vunpack.c.l.b16 %v90
  %v315 = vunpack.c.l.b16 %v91
  %v316 = vunpack.c.l.b16 %v92
  %v317 = vunpack.c.l.b16 %v93
  %v318 = vunpack.c.l.b16 %v94
  %v319 = vunpack.c.l.b16 %v95
  %v320 = vunpack.c.l.b16 %v96
  %v321 = vunpack.c.l.b16 %v97
  %v322 = vunpack.c.l.b16 %v98
  %v323 = vunpack.c.l.b16 %v99
  %v324 = vpack.c.b16 %v277, %v276
  %v325 = vpack.c.b16 %v279, %v278
  %v326 = vpack.c.b16 %v281, %v280
  %v327 = vpack.c.b16 %v283, %v282
  %v328 = vpack.c.b16 %v285, %v284
  %v329 = vpack.c.b16 %v287, %v286
  %v330 = vpack.c.b16 %v289, %v288
  %v331 = vpack.c.b16 %v291, %v290
  %v332 = vpack.c.b16 %v293, %v292
  %v333 = vpack.c.b16 %v295, %v294
  %v334 = vpack.c.b16 %v297, %v296
  %v335 = vpack.c.b16 %v299, %v298
  %v336 = vpack.c.b16 %v301, %v300
  %v337 = vpack.c.b16 %v303, %v302
  %v338 = vpack.c.b16 %v305, %v304
  %v339 = vpack.c.b16 %v307, %v306
  %v340 = vpack.c.b16 %v309, %v308
  %v341 = vpack.c.b16 %v311, %v310
  %v342 = vpack.c.b16 %v313, %v312
  %v343 = vpack.c.b16 %v315, %v314
  %v344 = vpack.c.b16 %v317, %v316
  %v345 = vpack.c.b16 %v319, %v318
  %v346 = vpack.c.b16 %v321, %v320
  %v347 = vpack.c.b16 %v323, %v322
  %372 = vmatpush.bf16.msra.mxu0 %v331
  %373 = vmatpush.bf16.msra.mxu0 %v330
  %374 = vmatpush.bf16.msra.mxu0 %v329
  %375 = vmatpush.bf16.msra.mxu0 %v328
  %376 = vmatpush.bf16.msra.mxu0 %v327
  %377 = vmatpush.bf16.msra.mxu0 %v326
  %378 = vmatpush.bf16.msra.mxu0 %v325
  %379 = vmatpush.bf16.msra.mxu0 %v324
  %380 = vmatmul.bf16.gmra.mxu0 %v180
  %v381 = vpop.f32.mrf.mxu0
  %v382 = vadd.f32 0.0, %v381
  %v383 = vpop.f32.mrf.mxu0
  %v384 = vadd.f32 0.0, %v383
  %385 = vmatmul.bf16.gmra.mxu0 %v183
  %v386 = vpop.f32.mrf.mxu0
  %v387 = vadd.f32 0.0, %v386
  %v388 = vpop.f32.mrf.mxu0
  %v389 = vadd.f32 0.0, %v388
  %390 = vmatmul.bf16.gmra.mxu0 %v186
  %v391 = vpop.f32.mrf.mxu0
  %v392 = vadd.f32 0.0, %v391
  %v393 = vpop.f32.mrf.mxu0
  %v394 = vadd.f32 0.0, %v393
  %395 = vmatmul.bf16.gmra.mxu0 %v189
  %v396 = vpop.f32.mrf.mxu0
  %v397 = vadd.f32 0.0, %v396
  %v398 = vpop.f32.mrf.mxu0
  %v399 = vadd.f32 0.0, %v398
  %400 = vmatmul.bf16.gmra.mxu0 %v192
  %v401 = vpop.f32.mrf.mxu0
  %v402 = vadd.f32 0.0, %v401
  %v403 = vpop.f32.mrf.mxu0
  %v404 = vadd.f32 0.0, %v403
  %405 = vmatmul.bf16.gmra.mxu0 %v195
  %v406 = vpop.f32.mrf.mxu0
  %v407 = vadd.f32 0.0, %v406
  %v408 = vpop.f32.mrf.mxu0
  %v409 = vadd.f32 0.0, %v408
  %410 = vmatmul.bf16.gmra.mxu0 %v198
  %v411 = vpop.f32.mrf.mxu0
  %v412 = vadd.f32 0.0, %v411
  %v413 = vpop.f32.mrf.mxu0
  %v414 = vadd.f32 0.0, %v413
  %415 = vmatmul.bf16.gmra.mxu0 %v201
  %v416 = vpop.f32.mrf.mxu0
  %v417 = vadd.f32 0.0, %v416
  %v418 = vpop.f32.mrf.mxu0
  %v419 = vadd.f32 0.0, %v418
  %420 = vdwg.mxu0
  %421 = vmatpush.bf16.msra.mxu0 %v339
  %422 = vmatpush.bf16.msra.mxu0 %v338
  %423 = vmatpush.bf16.msra.mxu0 %v337
  %424 = vmatpush.bf16.msra.mxu0 %v336
  %425 = vmatpush.bf16.msra.mxu0 %v335
  %426 = vmatpush.bf16.msra.mxu0 %v334
  %427 = vmatpush.bf16.msra.mxu0 %v333
  %428 = vmatpush.bf16.msra.mxu0 %v332
  %429 = vmatmul.bf16.gmra.mxu0 %v181
  %v430 = vpop.f32.mrf.mxu0
  %v431 = vadd.f32 %v382, %v430
  %v432 = vpop.f32.mrf.mxu0
  %v433 = vadd.f32 %v384, %v432
  %434 = vmatmul.bf16.gmra.mxu0 %v184
  %v435 = vpop.f32.mrf.mxu0
  %v436 = vadd.f32 %v387, %v435
  %v437 = vpop.f32.mrf.mxu0
  %v438 = vadd.f32 %v389, %v437
  %439 = vmatmul.bf16.gmra.mxu0 %v187
  %v440 = vpop.f32.mrf.mxu0
  %v441 = vadd.f32 %v392, %v440
  %v442 = vpop.f32.mrf.mxu0
  %v443 = vadd.f32 %v394, %v442
  %444 = vmatmul.bf16.gmra.mxu0 %v190
  %v445 = vpop.f32.mrf.mxu0
  %v446 = vadd.f32 %v397, %v445
  %v447 = vpop.f32.mrf.mxu0
  %v448 = vadd.f32 %v399, %v447
  %449 = vmatmul.bf16.gmra.mxu0 %v193
  %v450 = vpop.f32.mrf.mxu0
  %v451 = vadd.f32 %v402, %v450
  %v452 = vpop.f32.mrf.mxu0
  %v453 = vadd.f32 %v404, %v452
  %454 = vmatmul.bf16.gmra.mxu0 %v196
  %v455 = vpop.f32.mrf.mxu0
  %v456 = vadd.f32 %v407, %v455
  %v457 = vpop.f32.mrf.mxu0
  %v458 = vadd.f32 %v409, %v457
  %459 = vmatmul.bf16.gmra.mxu0 %v199
  %v460 = vpop.f32.mrf.mxu0
  %v461 = vadd.f32 %v412, %v460
  %v462 = vpop.f32.mrf.mxu0
  %v463 = vadd.f32 %v414, %v462
  %464 = vmatmul.bf16.gmra.mxu0 %v202
  %v465 = vpop.f32.mrf.mxu0
  %v466 = vadd.f32 %v417, %v465
  %v467 = vpop.f32.mrf.mxu0
  %v468 = vadd.f32 %v419, %v467
  %469 = vdwg.mxu0
  %470 = vmatpush.bf16.msra.mxu0 %v347
  %471 = vmatpush.bf16.msra.mxu0 %v346
  %472 = vmatpush.bf16.msra.mxu0 %v345
  %473 = vmatpush.bf16.msra.mxu0 %v344
  %474 = vmatpush.bf16.msra.mxu0 %v343
  %475 = vmatpush.bf16.msra.mxu0 %v342
  %476 = vmatpush.bf16.msra.mxu0 %v341
  %477 = vmatpush.bf16.msra.mxu0 %v340
  %478 = vmatmul.bf16.gmra.mxu0 %v182
  %v479 = vpop.f32.mrf.mxu0
  %v480 = vadd.f32 %v431, %v479
  %v481 = vpop.f32.mrf.mxu0
  %v482 = vadd.f32 %v433, %v481
  %483 = vmatmul.bf16.gmra.mxu0 %v185
  %v484 = vpop.f32.mrf.mxu0
  %v485 = vadd.f32 %v436, %v484
  %v486 = vpop.f32.mrf.mxu0
  %v487 = vadd.f32 %v438, %v486
  %488 = vmatmul.bf16.gmra.mxu0 %v188
  %v489 = vpop.f32.mrf.mxu0
  %v490 = vadd.f32 %v441, %v489
  %v491 = vpop.f32.mrf.mxu0
  %v492 = vadd.f32 %v443, %v491
  %493 = vmatmul.bf16.gmra.mxu0 %v191
  %v494 = vpop.f32.mrf.mxu0
  %v495 = vadd.f32 %v446, %v494
  %v496 = vpop.f32.mrf.mxu0
  %v497 = vadd.f32 %v448, %v496
  %498 = vmatmul.bf16.gmra.mxu0 %v194
  %v499 = vpop.f32.mrf.mxu0
  %v500 = vadd.f32 %v451, %v499
  %v501 = vpop.f32.mrf.mxu0
  %v502 = vadd.f32 %v453, %v501
  %503 = vmatmul.bf16.gmra.mxu0 %v197
  %v504 = vpop.f32.mrf.mxu0
  %v505 = vadd.f32 %v456, %v504
  %v506 = vpop.f32.mrf.mxu0
  %v507 = vadd.f32 %v458, %v506
  %508 = vmatmul.bf16.gmra.mxu0 %v200
  %v509 = vpop.f32.mrf.mxu0
  %v510 = vadd.f32 %v461, %v509
  %v511 = vpop.f32.mrf.mxu0
  %v512 = vadd.f32 %v463, %v511
  %513 = vmatmul.bf16.gmra.mxu0 %v203
  %v514 = vpop.f32.mrf.mxu0
  %v515 = vadd.f32 %v466, %v514
  %v516 = vpop.f32.mrf.mxu0
  %v517 = vadd.f32 %v468, %v516
  %518 = vdwg.mxu0
  %519 = vst [vmem:[%s2] sm:$0xff] %v480
  %520 = vst [vmem:[%s2 + $0x8] sm:$0xff] %v482
  %521 = vst [vmem:[%s2 + $0x10] sm:$0xff] %v485
  %522 = vst [vmem:[%s2 + $0x18] sm:$0xff] %v487
  %523 = vst [vmem:[%s2 + $0x20] sm:$0xff] %v490
  %524 = vst [vmem:[%s2 + $0x28] sm:$0xff] %v492
  %525 = vst [vmem:[%s2 + $0x30] sm:$0xff] %v495
  %526 = vst [vmem:[%s2 + $0x38] sm:$0xff] %v497
  %527 = vst [vmem:[%s2 + $0x40] sm:$0xff] %v500
  %528 = vst [vmem:[%s2 + $0x48] sm:$0xff] %v502
  %529 = vst [vmem:[%s2 + $0x50] sm:$0xff] %v505
  %530 = vst [vmem:[%s2 + $0x58] sm:$0xff] %v507
  %531 = vst [vmem:[%s2 + $0x60] sm:$0xff] %v510
  %532 = vst [vmem:[%s2 + $0x68] sm:$0xff] %v512
  %533 = vst [vmem:[%s2 + $0x70] sm:$0xff] %v515
  %534 = vst [vmem:[%s2 + $0x78] sm:$0xff] %v517
  %v535 = vld [vmem:[%s3] sm:$0x1]
  %v536 = vadd.f32 %v480, %v482
  %v537 = vadd.f32 %v536, %v485
  %v538 = vadd.f32 %v537, %v487
  %v539 = vadd.f32 %v538, %v490
  %v540 = vadd.f32 %v539, %v492
  %v541 = vadd.f32 %v540, %v495
  %v542 = vadd.f32 %v541, %v497
  %v543 = vadd.f32 %v542, %v500
  %v544 = vadd.f32 %v543, %v502
  %v545 = vadd.f32 %v544, %v505
  %v546 = vadd.f32 %v545, %v507
  %v547 = vadd.f32 %v546, %v510
  %v548 = vadd.f32 %v547, %v512
  %v549 = vadd.f32 %v548, %v515
  %v550 = vadd.f32 %v549, %v517
  %v551 = vrot.slane %v550, 4
  %v552 = vadd.f32 %v550, %v551
  %v553 = vrot.slane %v552, 2
  %v554 = vadd.f32 %v552, %v553
  %v555 = vrot.slane %v554, 1
  %v556 = vadd.f32 %v554, %v555
  %v557 = vadd.f32 %v535, %v556
  %558 = vst [vmem:[%s3] sm:$0x1] %v557
  %v559 = vld [vmem:[%s4] sm:$0x1]
  %v560 = vmul.f32 %v480, %v480
  %v561 = vmul.f32 %v482, %v482
  %v562 = vmul.f32 %v485, %v485
  %v563 = vmul.f32 %v487, %v487
  %v564 = vmul.f32 %v490, %v490
  %v565 = vmul.f32 %v492, %v492
  %v566 = vmul.f32 %v495, %v495
  %v567 = vmul.f32 %v497, %v497
  %v568 = vmul.f32 %v500, %v500
  %v569 = vmul.f32 %v502, %v502
  %v570 = vmul.f32 %v505, %v505
  %v571 = vmul.f32 %v507, %v507
  %v572 = vmul.f32 %v510, %v510
  %v573 = vmul.f32 %v512, %v512
  %v574 = vmul.f32 %v515, %v515
  %v575 = vmul.f32 %v517, %v517
  %v576 = vadd.f32 %v560, %v561
  %v577 = vadd.f32 %v576, %v562
  %v578 = vadd.f32 %v577, %v563
  %v579 = vadd.f32 %v578, %v564
  %v580 = vadd.f32 %v579, %v565
  %v581 = vadd.f32 %v580, %v566
  %v582 = vadd.f32 %v581, %v567
  %v583 = vadd.f32 %v582, %v568
  %v584 = vadd.f32 %v583, %v569
  %v585 = vadd.f32 %v584, %v570
  %v586 = vadd.f32 %v585, %v571
  %v587 = vadd.f32 %v586, %v572
  %v588 = vadd.f32 %v587, %v573
  %v589 = vadd.f32 %v588, %v574
  %v590 = vadd.f32 %v589, %v575
  %v591 = vrot.slane %v590, 4
  %v592 = vadd.f32 %v590, %v591
  %v593 = vrot.slane %v592, 2
  %v594 = vadd.f32 %v592, %v593
  %v595 = vrot.slane %v594, 1
  %v596 = vadd.f32 %v594, %v595
  %v597 = vadd.f32 %v559, %v596
  %598 = vst [vmem:[%s4] sm:$0x1] %v597
  // Predicated region
  $region14: #{resnet_encoder_forward.26} parent=0 // pred_check
    _
  $region15: #{resnet_encoder_forward.26} parent=0 // pred_check_branch
    %600 = sbr.rel (0) target = $region17
  $region16: #{resnet_encoder_forward.26} parent=0 // pred_region
    _
  $region17: #{resnet_encoder_forward.26} parent=0 // pred_fallthru
    _
  // Predicated region
  $region18: #{resnet_encoder_forward.26} parent=0 // pred_check
    _
  $region19: #{resnet_encoder_forward.26} parent=0 // pred_check_branch
    %602 = sbr.rel (0) target = $region21
  $region20: #{resnet_encoder_forward.26} parent=0 // pred_region
    _
  $region21: #{resnet_encoder_forward.26} parent=0 // pred_fallthru
    _
  // Predicated region
  $region22: #{resnet_encoder_forward.26} parent=0 // pred_check
    _
  $region23: #{resnet_encoder_forward.26} parent=0 // pred_check_branch
    %604 = sbr.rel (0) target = $region25
  $region24: #{resnet_encoder_forward.26} parent=0 // pred_region
    _
  $region25: #{resnet_encoder_forward.26} parent=0 // pred_fallthru
    _
  // Predicated region
  $region26: #{resnet_encoder_forward.26} parent=0 // pred_check
    _
  $region27: #{resnet_encoder_forward.26} parent=0 // pred_check_branch
    %606 = sbr.rel (0) target = $region29
  $region28: #{resnet_encoder_forward.26} parent=0 // pred_region
    _
  $region29: #{resnet_encoder_forward.26} parent=0 // pred_fallthru
    _
  // Predicated region
  $region30: #{resnet_encoder_forward.26} parent=0 // pred_check
    _
  $region31: #{resnet_encoder_forward.26} parent=0 // pred_check_branch
    %608 = sbr.rel (0) target = $region33
  $region32: #{resnet_encoder_forward.26} parent=0 // pred_region
    _
  $region33: #{resnet_encoder_forward.26} parent=0 // pred_fallthru
    _
  // Predicated region
  $region34: #{resnet_encoder_forward.26} parent=0 // pred_check
    _
  $region35: #{resnet_encoder_forward.26} parent=0 // pred_check_branch
    %610 = sbr.rel (0) target = $region37
  $region36: #{resnet_encoder_forward.26} parent=0 // pred_region
    _
  $region37: #{resnet_encoder_forward.26} parent=0 // pred_fallthru
    _

// kernel: resnet_encoder_forward.29
$region0: #{resnet_encoder_forward.29}
  #allocation0 [shape = 'u32[]', space=smem, size = 0x4, offset = 0x4, fixed_abs, tag = 'smem constant byte address 0x4 - core index']
  #allocation1 [shape = 'u32[72,128]{1,0:T(1,128)}', space=vmem, size = 0x9000, scoped, tag = 'internal scratch']
  %s0 = inlined_call_operand.vmem [shape: f32[32,128], index: 0, kind: input, shape index: {}]
  %s1 = inlined_call_operand.vmem [shape: f32[1,128], index: 1, kind: input, shape index: {}]
  %s2 = inlined_call_operand.vmem [shape: f32[1,128], index: 2, kind: input, shape index: {}]
  %s3 = inlined_call_operand.vmem [shape: bf16[32,128], index: 3, kind: output, shape index: {}]
  %s4 = sld [smem:[#allocation0]]
  $region22: #{resnet_encoder_forward.29} parent=0
    _
  %s6 = ssub.s32 1, %s4
  %s7 = scalar_select 0, %s6, %s4
  // Predicated region
  $region2: #{resnet_encoder_forward.29} parent=0 // pred_check
    _
  $region3: #{resnet_encoder_forward.29} parent=0 // pred_check_branch
    %9 = sbr.rel (0) target = $region5
  $region4: #{resnet_encoder_forward.29} parent=0 // pred_region
    _
  $region5: #{resnet_encoder_forward.29} parent=0 // pred_fallthru
    _
  // Predicated region
  $region6: #{resnet_encoder_forward.29} parent=0 // pred_check
    _
  $region7: #{resnet_encoder_forward.29} parent=0 // pred_check_branch
    %11 = sbr.rel (0) target = $region9
  $region8: #{resnet_encoder_forward.29} parent=0 // pred_region
    _
  $region9: #{resnet_encoder_forward.29} parent=0 // pred_fallthru
    _
  // Predicated region
  $region10: #{resnet_encoder_forward.29} parent=0 // pred_check
    _
  $region11: #{resnet_encoder_forward.29} parent=0 // pred_check_branch
    %13 = sbr.rel (0) target = $region13
  $region12: #{resnet_encoder_forward.29} parent=0 // pred_region
    _
  $region13: #{resnet_encoder_forward.29} parent=0 // pred_fallthru
    _
  %v14 = vld [vmem:[%s0] sm:$0xff]
  %v15 = vld [vmem:[%s0 + $0x8] sm:$0xff]
  %v16 = vld [vmem:[%s0 + $0x10] sm:$0xff]
  %v17 = vld [vmem:[%s0 + $0x18] sm:$0xff]
  %v18 = vld [vmem:[%s1] sm:$0x1]
  %v19 = vld [vmem:[%s2] sm:$0x1]
  %v20 = vmul.f32 %v18, 0.03125
  %v21 = vmul.f32 %v19, 0.03125
  %v22 = vmul.f32 %v20, %v20
  %v23 = vsub.f32 %v21, %v22
  %v25 = vperm.slane %v20, 0
  %v27 = vsub.f32 %v14, %v25
  %v28 = vsub.f32 %v15, %v25
  %v29 = vsub.f32 %v16, %v25
  %v30 = vsub.f32 %v17, %v25
  %v31 = vadd.f32 %v23, 1e-05
  %v32 = vrsqrt.pop %v31
  %v33 = vmul.f32 %v32, %v31
  %v34 = vmul.f32 %v33, %v32
  %v35 = vmul.f32 0.5, %v34
  %v36 = vsub.f32 1.5, %v35
  %v37 = vmul.f32 %v32, %v36
  %vm38 = vweird.f32 %v31
  %vm39 = vweird.f32 %v32
  %vm40 = vmor %vm38, %vm39
  %v41 = vsel %vm40, %v32, %v37
  %v43 = vperm.slane %v41, 0
  %v45 = vmul.f32 %v27, %v43
  %v46 = vmul.f32 %v28, %v43
  %v47 = vmul.f32 %v29, %v43
  %v48 = vmul.f32 %v30, %v43
  %v49 = vmax.f32 %v45, 0.0
  %v50 = vmax.f32 %v46, 0.0
  %v51 = vmax.f32 %v47, 0.0
  %v52 = vmax.f32 %v48, 0.0
  %v53 = vpack.c.bf16 %v49, %v49
  %v54 = vpack.c.bf16 %v50, %v50
  %v55 = vpack.c.bf16 %v51, %v51
  %v56 = vpack.c.bf16 %v52, %v52
  %57 = vst [vmem:[%s3] sm:$0xf] %v53
  %58 = vst [vmem:[%s3 + $0x4] sm:$0xf] %v54
  %59 = vst [vmem:[%s3 + $0x8] sm:$0xf] %v55
  %60 = vst [vmem:[%s3 + $0xc] sm:$0xf] %v56
  // Predicated region
  $region14: #{resnet_encoder_forward.29} parent=0 // pred_check
    _
  $region15: #{resnet_encoder_forward.29} parent=0 // pred_check_branch
    %62 = sbr.rel (0) target = $region17
  $region16: #{resnet_encoder_forward.29} parent=0 // pred_region
    _
  $region17: #{resnet_encoder_forward.29} parent=0 // pred_fallthru
    _
  // Predicated region
  $region18: #{resnet_encoder_forward.29} parent=0 // pred_check
    _
  $region19: #{resnet_encoder_forward.29} parent=0 // pred_check_branch
    %64 = sbr.rel (0) target = $region21
  $region20: #{resnet_encoder_forward.29} parent=0 // pred_region
    _
  $region21: #{resnet_encoder_forward.29} parent=0 // pred_fallthru
    _

// kernel: resnet_encoder_forward.28
$region0: #{resnet_encoder_forward.28}
  #allocation0 [shape = 'u32[]', space=smem, size = 0x4, offset = 0x4, fixed_abs, tag = 'smem constant byte address 0x4 - core index']
  #allocation1 [shape = 'u32[72,128]{1,0:T(1,128)}', space=vmem, size = 0x9000, scoped, tag = 'internal scratch']
  %s0 = inlined_call_operand.vmem [shape: bf16[32,384], index: 0, kind: input, shape index: {}]
  %s1 = inlined_call_operand.vmem [shape: bf16[384,128], index: 1, kind: input, shape index: {}]
  %s2 = inlined_call_operand.vmem [shape: bf16[384,128], index: 2, kind: input, shape index: {}]
  %s3 = inlined_call_operand.vmem [shape: f32[32,128], index: 3, kind: output, shape index: {0}]
  %s4 = inlined_call_operand.vmem [shape: f32[32,128], index: 4, kind: output, shape index: {1}]
  %s5 = inlined_call_operand.vmem [shape: f32[1,128], index: 5, kind: output, shape index: {2}]
  %s6 = inlined_call_operand.vmem [shape: f32[1,128], index: 6, kind: output, shape index: {3}]
  %s7 = inlined_call_operand.vmem [shape: f32[1,128], index: 7, kind: output, shape index: {4}]
  %s8 = inlined_call_operand.vmem [shape: f32[1,128], index: 8, kind: output, shape index: {5}]
  %9 = xla_tuple %s3, %s4, %s5, %s6, %s7, %s8
  %s10 = sld [smem:[#allocation0]]
  $region66: #{resnet_encoder_forward.28} parent=0
    _
  %s12 = ssub.s32 1, %s10
  %s13 = scalar_select 0, %s12, %s10
  // Predicated region
  $region2: #{resnet_encoder_forward.28} parent=0 // pred_check
    _
  $region3: #{resnet_encoder_forward.28} parent=0 // pred_check_branch
    %15 = sbr.rel (0) target = $region5
  $region4: #{resnet_encoder_forward.28} parent=0 // pred_region
    _
  $region5: #{resnet_encoder_forward.28} parent=0 // pred_fallthru
    _
  // Predicated region
  $region6: #{resnet_encoder_forward.28} parent=0 // pred_check
    _
  $region7: #{resnet_encoder_forward.28} parent=0 // pred_check_branch
    %17 = sbr.rel (0) target = $region9
  $region8: #{resnet_encoder_forward.28} parent=0 // pred_region
    _
  $region9: #{resnet_encoder_forward.28} parent=0 // pred_fallthru
    _
  // Predicated region
  $region10: #{resnet_encoder_forward.28} parent=0 // pred_check
    _
  $region11: #{resnet_encoder_forward.28} parent=0 // pred_check_branch
    %19 = sbr.rel (0) target = $region13
  $region12: #{resnet_encoder_forward.28} parent=0 // pred_region
    _
  $region13: #{resnet_encoder_forward.28} parent=0 // pred_fallthru
    _
  %p20 = scmp.eq.s32.totalorder 0, 0
  // Predicated region
  $region14: #{resnet_encoder_forward.28} parent=0 // pred_check
    %p21 = pneg %p20
  $region15: #{resnet_encoder_forward.28} parent=0 // pred_check_branch
    %23 = sbr.rel (%p21) target = $region17
  $region16: #{resnet_encoder_forward.28} parent=0 // pred_region
    %24 = vst [vmem:[%s5] sm:$0x1] 0.0
    %25 = vst [vmem:[%s6] sm:$0x1] 0.0
    %26 = vst [vmem:[%s7] sm:$0x1] 0.0
    %27 = vst [vmem:[%s8] sm:$0x1] 0.0
  $region17: #{resnet_encoder_forward.28} parent=0 // pred_fallthru
    _
  %v28 = vld [vmem:[%s0] sm:$0xff]
  %v29 = vld [vmem:[%s0 + $0x8] sm:$0xf]
  %v30 = vld [vmem:[%s0 + $0xc] sm:$0xff]
  %v31 = vld [vmem:[%s0 + $0x14] sm:$0xf]
  %v32 = vld [vmem:[%s0 + $0x18] sm:$0xff]
  %v33 = vld [vmem:[%s0 + $0x20] sm:$0xf]
  %v34 = vld [vmem:[%s0 + $0x24] sm:$0xff]
  %v35 = vld [vmem:[%s0 + $0x2c] sm:$0xf]
  %v36 = vld [vmem:[%s1] sm:$0xf]
  %v37 = vld [vmem:[%s1 + $0x4] sm:$0xf]
  %v38 = vld [vmem:[%s1 + $0x8] sm:$0xf]
  %v39 = vld [vmem:[%s1 + $0xc] sm:$0xf]
  %v40 = vld [vmem:[%s1 + $0x10] sm:$0xf]
  %v41 = vld [vmem:[%s1 + $0x14] sm:$0xf]
  %v42 = vld [vmem:[%s1 + $0x18] sm:$0xf]
  %v43 = vld [vmem:[%s1 + $0x1c] sm:$0xf]
  %v44 = vld [vmem:[%s1 + $0x20] sm:$0xf]
  %v45 = vld [vmem:[%s1 + $0x24] sm:$0xf]
  %v46 = vld [vmem:[%s1 + $0x28] sm:$0xf]
  %v47 = vld [vmem:[%s1 + $0x2c] sm:$0xf]
  %v48 = vld [vmem:[%s1 + $0x30] sm:$0xf]
  %v49 = vld [vmem:[%s1 + $0x34] sm:$0xf]
  %v50 = vld [vmem:[%s1 + $0x38] sm:$0xf]
  %v51 = vld [vmem:[%s1 + $0x3c] sm:$0xf]
  %v52 = vld [vmem:[%s1 + $0x40] sm:$0xf]
  %v53 = vld [vmem:[%s1 + $0x44] sm:$0xf]
  %v54 = vld [vmem:[%s1 + $0x48] sm:$0xf]
  %v55 = vld [vmem:[%s1 + $0x4c] sm:$0xf]
  %v56 = vld [vmem:[%s1 + $0x50] sm:$0xf]
  %v57 = vld [vmem:[%s1 + $0x54] sm:$0xf]
  %v58 = vld [vmem:[%s1 + $0x58] sm:$0xf]
  %v59 = vld [vmem:[%s1 + $0x5c] sm:$0xf]
  %v60 = vld [vmem:[%s1 + $0x60] sm:$0xf]
  %v61 = vld [vmem:[%s1 + $0x64] sm:$0xf]
  %v62 = vld [vmem:[%s1 + $0x68] sm:$0xf]
  %v63 = vld [vmem:[%s1 + $0x6c] sm:$0xf]
  %v64 = vld [vmem:[%s1 + $0x70] sm:$0xf]
  %v65 = vld [vmem:[%s1 + $0x74] sm:$0xf]
  %v66 = vld [vmem:[%s1 + $0x78] sm:$0xf]
  %v67 = vld [vmem:[%s1 + $0x7c] sm:$0xf]
  %v68 = vld [vmem:[%s1 + $0x80] sm:$0xf]
  %v69 = vld [vmem:[%s1 + $0x84] sm:$0xf]
  %v70 = vld [vmem:[%s1 + $0x88] sm:$0xf]
  %v71 = vld [vmem:[%s1 + $0x8c] sm:$0xf]
  %v72 = vld [vmem:[%s1 + $0x90] sm:$0xf]
  %v73 = vld [vmem:[%s1 + $0x94] sm:$0xf]
  %v74 = vld [vmem:[%s1 + $0x98] sm:$0xf]
  %v75 = vld [vmem:[%s1 + $0x9c] sm:$0xf]
  %v76 = vld [vmem:[%s1 + $0xa0] sm:$0xf]
  %v77 = vld [vmem:[%s1 + $0xa4] sm:$0xf]
  %v78 = vld [vmem:[%s1 + $0xa8] sm:$0xf]
  %v79 = vld [vmem:[%s1 + $0xac] sm:$0xf]
  %v80 = vld [vmem:[%s1 + $0xb0] sm:$0xf]
  %v81 = vld [vmem:[%s1 + $0xb4] sm:$0xf]
  %v82 = vld [vmem:[%s1 + $0xb8] sm:$0xf]
  %v83 = vld [vmem:[%s1 + $0xbc] sm:$0xf]
  %v92 = vunpack.c.l.b16 %v28
  %v93 = vunpack.c.h.b16 %v28
  %v94 = vunpack.c.l.b16 %v29
  %v95 = vunpack.c.l.b16 %v30
  %v96 = vunpack.c.h.b16 %v30
  %v97 = vunpack.c.l.b16 %v31
  %v98 = vunpack.c.l.b16 %v32
  %v99 = vunpack.c.h.b16 %v32
  %v100 = vunpack.c.l.b16 %v33
  %v101 = vunpack.c.l.b16 %v34
  %v102 = vunpack.c.h.b16 %v34
  %v103 = vunpack.c.l.b16 %v35
  %v104 = vpack.c.b16 %v95, %v92
  %v105 = vpack.c.b16 %v96, %v93
  %v106 = vpack.c.b16 %v97, %v94
  %v107 = vpack.c.b16 %v101, %v98
  %v108 = vpack.c.b16 %v102, %v99
  %v109 = vpack.c.b16 %v103, %v100
  %v164 = vunpack.c.l.b16 %v36
  %v165 = vunpack.c.l.b16 %v37
  %v166 = vunpack.c.l.b16 %v38
  %v167 = vunpack.c.l.b16 %v39
  %v168 = vunpack.c.l.b16 %v40
  %v169 = vunpack.c.l.b16 %v41
  %v170 = vunpack.c.l.b16 %v42
  %v171 = vunpack.c.l.b16 %v43
  %v172 = vunpack.c.l.b16 %v44
  %v173 = vunpack.c.l.b16 %v45
  %v174 = vunpack.c.l.b16 %v46
  %v175 = vunpack.c.l.b16 %v47
  %v176 = vunpack.c.l.b16 %v48
  %v177 = vunpack.c.l.b16 %v49
  %v178 = vunpack.c.l.b16 %v50
  %v179 = vunpack.c.l.b16 %v51
  %v180 = vunpack.c.l.b16 %v52
  %v181 = vunpack.c.l.b16 %v53
  %v182 = vunpack.c.l.b16 %v54
  %v183 = vunpack.c.l.b16 %v55
  %v184 = vunpack.c.l.b16 %v56
  %v185 = vunpack.c.l.b16 %v57
  %v186 = vunpack.c.l.b16 %v58
  %v187 = vunpack.c.l.b16 %v59
  %v188 = vunpack.c.l.b16 %v60
  %v189 = vunpack.c.l.b16 %v61
  %v190 = vunpack.c.l.b16 %v62
  %v191 = vunpack.c.l.b16 %v63
  %v192 = vunpack.c.l.b16 %v64
  %v193 = vunpack.c.l.b16 %v65
  %v194 = vunpack.c.l.b16 %v66
  %v195 = vunpack.c.l.b16 %v67
  %v196 = vunpack.c.l.b16 %v68
  %v197 = vunpack.c.l.b16 %v69
  %v198 = vunpack.c.l.b16 %v70
  %v199 = vunpack.c.l.b16 %v71
  %v200 = vunpack.c.l.b16 %v72
  %v201 = vunpack.c.l.b16 %v73
  %v202 = vunpack.c.l.b16 %v74
  %v203 = vunpack.c.l.b16 %v75
  %v204 = vunpack.c.l.b16 %v76
  %v205 = vunpack.c.l.b16 %v77
  %v206 = vunpack.c.l.b16 %v78
  %v207 = vunpack.c.l.b16 %v79
  %v208 = vunpack.c.l.b16 %v80
  %v209 = vunpack.c.l.b16 %v81
  %v210 = vunpack.c.l.b16 %v82
  %v211 = vunpack.c.l.b16 %v83
  %v212 = vpack.c.b16 %v165, %v164
  %v213 = vpack.c.b16 %v167, %v166
  %v214 = vpack.c.b16 %v169, %v168
  %v215 = vpack.c.b16 %v171, %v170
  %v216 = vpack.c.b16 %v173, %v172
  %v217 = vpack.c.b16 %v175, %v174
  %v218 = vpack.c.b16 %v177, %v176
  %v219 = vpack.c.b16 %v179, %v178
  %v220 = vpack.c.b16 %v181, %v180
  %v221 = vpack.c.b16 %v183, %v182
  %v222 = vpack.c.b16 %v185, %v184
  %v223 = vpack.c.b16 %v187, %v186
  %v224 = vpack.c.b16 %v189, %v188
  %v225 = vpack.c.b16 %v191, %v190
  %v226 = vpack.c.b16 %v193, %v192
  %v227 = vpack.c.b16 %v195, %v194
  %v228 = vpack.c.b16 %v197, %v196
  %v229 = vpack.c.b16 %v199, %v198
  %v230 = vpack.c.b16 %v201, %v200
  %v231 = vpack.c.b16 %v203, %v202
  %v232 = vpack.c.b16 %v205, %v204
  %v233 = vpack.c.b16 %v207, %v206
  %v234 = vpack.c.b16 %v209, %v208
  %v235 = vpack.c.b16 %v211, %v210
  %260 = vmatpush.bf16.msra.mxu0 %v219
  %261 = vmatpush.bf16.msra.mxu0 %v218
  %262 = vmatpush.bf16.msra.mxu0 %v217
  %263 = vmatpush.bf16.msra.mxu0 %v216
  %264 = vmatpush.bf16.msra.mxu0 %v215
  %265 = vmatpush.bf16.msra.mxu0 %v214
  %266 = vmatpush.bf16.msra.mxu0 %v213
  %267 = vmatpush.bf16.msra.mxu0 %v212
  %268 = vmatmul.bf16.gmra.mxu0 %v104
  %v269 = vpop.f32.mrf.mxu0
  %v270 = vadd.f32 0.0, %v269
  %v271 = vpop.f32.mrf.mxu0
  %v272 = vadd.f32 0.0, %v271
  %273 = vmatmul.bf16.gmra.mxu0 %v107
  %v274 = vpop.f32.mrf.mxu0
  %v275 = vadd.f32 0.0, %v274
  %v276 = vpop.f32.mrf.mxu0
  %v277 = vadd.f32 0.0, %v276
  %278 = vdwg.mxu0
  %279 = vmatpush.bf16.msra.mxu0 %v227
  %280 = vmatpush.bf16.msra.mxu0 %v226
  %281 = vmatpush.bf16.msra.mxu0 %v225
  %282 = vmatpush.bf16.msra.mxu0 %v224
  %283 = vmatpush.bf16.msra.mxu0 %v223
  %284 = vmatpush.bf16.msra.mxu0 %v222
  %285 = vmatpush.bf16.msra.mxu0 %v221
  %286 = vmatpush.bf16.msra.mxu0 %v220
  %287 = vmatmul.bf16.gmra.mxu0 %v105
  %v288 = vpop.f32.mrf.mxu0
  %v289 = vadd.f32 %v270, %v288
  %v290 = vpop.f32.mrf.mxu0
  %v291 = vadd.f32 %v272, %v290
  %292 = vmatmul.bf16.gmra.mxu0 %v108
  %v293 = vpop.f32.mrf.mxu0
  %v294 = vadd.f32 %v275, %v293
  %v295 = vpop.f32.mrf.mxu0
  %v296 = vadd.f32 %v277, %v295
  %297 = vdwg.mxu0
  %298 = vmatpush.bf16.msra.mxu0 %v235
  %299 = vmatpush.bf16.msra.mxu0 %v234
  %300 = vmatpush.bf16.msra.mxu0 %v233
  %301 = vmatpush.bf16.msra.mxu0 %v232
  %302 = vmatpush.bf16.msra.mxu0 %v231
  %303 = vmatpush.bf16.msra.mxu0 %v230
  %304 = vmatpush.bf16.msra.mxu0 %v229
  %305 = vmatpush.bf16.msra.mxu0 %v228
  %306 = vmatmul.bf16.gmra.mxu0 %v106
  %v307 = vpop.f32.mrf.mxu0
  %v308 = vadd.f32 %v289, %v307
  %v309 = vpop.f32.mrf.mxu0
  %v310 = vadd.f32 %v291, %v309
  %311 = vmatmul.bf16.gmra.mxu0 %v109
  %v312 = vpop.f32.mrf.mxu0
  %v313 = vadd.f32 %v294, %v312
  %v314 = vpop.f32.mrf.mxu0
  %v315 = vadd.f32 %v296, %v314
  %316 = vdwg.mxu0
  %317 = vst [vmem:[%s3] sm:$0xff] %v308
  %318 = vst [vmem:[%s3 + $0x8] sm:$0xff] %v310
  %319 = vst [vmem:[%s3 + $0x10] sm:$0xff] %v313
  %320 = vst [vmem:[%s3 + $0x18] sm:$0xff] %v315
  %v321 = vld [vmem:[%s5] sm:$0x1]
  %v322 = vadd.f32 %v308, %v310
  %v323 = vadd.f32 %v322, %v313
  %v324 = vadd.f32 %v323, %v315
  %v325 = vrot.slane %v324, 4
  %v326 = vadd.f32 %v324, %v325
  %v327 = vrot.slane %v326, 2
  %v328 = vadd.f32 %v326, %v327
  %v329 = vrot.slane %v328, 1
  %v330 = vadd.f32 %v328, %v329
  %v331 = vadd.f32 %v321, %v330
  %332 = vst [vmem:[%s5] sm:$0x1] %v331
  %v333 = vld [vmem:[%s7] sm:$0x1]
  %v334 = vmul.f32 %v308, %v308
  %v335 = vmul.f32 %v310, %v310
  %v336 = vmul.f32 %v313, %v313
  %v337 = vmul.f32 %v315, %v315
  %v338 = vadd.f32 %v334, %v335
  %v339 = vadd.f32 %v338, %v336
  %v340 = vadd.f32 %v339, %v337
  %v341 = vrot.slane %v340, 4
  %v342 = vadd.f32 %v340, %v341
  %v343 = vrot.slane %v342, 2
  %v344 = vadd.f32 %v342, %v343
  %v345 = vrot.slane %v344, 1
  %v346 = vadd.f32 %v344, %v345
  %v347 = vadd.f32 %v333, %v346
  %348 = vst [vmem:[%s7] sm:$0x1] %v347
  %v349 = vld [vmem:[%s2] sm:$0xf]
  %v350 = vld [vmem:[%s2 + $0x4] sm:$0xf]
  %v351 = vld [vmem:[%s2 + $0x8] sm:$0xf]
  %v352 = vld [vmem:[%s2 + $0xc] sm:$0xf]
  %v353 = vld [vmem:[%s2 + $0x10] sm:$0xf]
  %v354 = vld [vmem:[%s2 + $0x14] sm:$0xf]
  %v355 = vld [vmem:[%s2 + $0x18] sm:$0xf]
  %v356 = vld [vmem:[%s2 + $0x1c] sm:$0xf]
  %v357 = vld [vmem:[%s2 + $0x20] sm:$0xf]
  %v358 = vld [vmem:[%s2 + $0x24] sm:$0xf]
  %v359 = vld [vmem:[%s2 + $0x28] sm:$0xf]
  %v360 = vld [vmem:[%s2 + $0x2c] sm:$0xf]
  %v361 = vld [vmem:[%s2 + $0x30] sm:$0xf]
  %v362 = vld [vmem:[%s2 + $0x34] sm:$0xf]
  %v363 = vld [vmem:[%s2 + $0x38] sm:$0xf]
  %v364 = vld [vmem:[%s2 + $0x3c] sm:$0xf]
  %v365 = vld [vmem:[%s2 + $0x40] sm:$0xf]
  %v366 = vld [vmem:[%s2 + $0x44] sm:$0xf]
  %v367 = vld [vmem:[%s2 + $0x48] sm:$0xf]
  %v368 = vld [vmem:[%s2 + $0x4c] sm:$0xf]
  %v369 = vld [vmem:[%s2 + $0x50] sm:$0xf]
  %v370 = vld [vmem:[%s2 + $0x54] sm:$0xf]
  %v371 = vld [vmem:[%s2 + $0x58] sm:$0xf]
  %v372 = vld [vmem:[%s2 + $0x5c] sm:$0xf]
  %v373 = vld [vmem:[%s2 + $0x60] sm:$0xf]
  %v374 = vld [vmem:[%s2 + $0x64] sm:$0xf]
  %v375 = vld [vmem:[%s2 + $0x68] sm:$0xf]
  %v376 = vld [vmem:[%s2 + $0x6c] sm:$0xf]
  %v377 = vld [vmem:[%s2 + $0x70] sm:$0xf]
  %v378 = vld [vmem:[%s2 + $0x74] sm:$0xf]
  %v379 = vld [vmem:[%s2 + $0x78] sm:$0xf]
  %v380 = vld [vmem:[%s2 + $0x7c] sm:$0xf]
  %v381 = vld [vmem:[%s2 + $0x80] sm:$0xf]
  %v382 = vld [vmem:[%s2 + $0x84] sm:$0xf]
  %v383 = vld [vmem:[%s2 + $0x88] sm:$0xf]
  %v384 = vld [vmem:[%s2 + $0x8c] sm:$0xf]
  %v385 = vld [vmem:[%s2 + $0x90] sm:$0xf]
  %v386 = vld [vmem:[%s2 + $0x94] sm:$0xf]
  %v387 = vld [vmem:[%s2 + $0x98] sm:$0xf]
  %v388 = vld [vmem:[%s2 + $0x9c] sm:$0xf]
  %v389 = vld [vmem:[%s2 + $0xa0] sm:$0xf]
  %v390 = vld [vmem:[%s2 + $0xa4] sm:$0xf]
  %v391 = vld [vmem:[%s2 + $0xa8] sm:$0xf]
  %v392 = vld [vmem:[%s2 + $0xac] sm:$0xf]
  %v393 = vld [vmem:[%s2 + $0xb0] sm:$0xf]
  %v394 = vld [vmem:[%s2 + $0xb4] sm:$0xf]
  %v395 = vld [vmem:[%s2 + $0xb8] sm:$0xf]
  %v396 = vld [vmem:[%s2 + $0xbc] sm:$0xf]
  %v445 = vunpack.c.l.b16 %v349
  %v446 = vunpack.c.l.b16 %v350
  %v447 = vunpack.c.l.b16 %v351
  %v448 = vunpack.c.l.b16 %v352
  %v449 = vunpack.c.l.b16 %v353
  %v450 = vunpack.c.l.b16 %v354
  %v451 = vunpack.c.l.b16 %v355
  %v452 = vunpack.c.l.b16 %v356
  %v453 = vunpack.c.l.b16 %v357
  %v454 = vunpack.c.l.b16 %v358
  %v455 = vunpack.c.l.b16 %v359
  %v456 = vunpack.c.l.b16 %v360
  %v457 = vunpack.c.l.b16 %v361
  %v458 = vunpack.c.l.b16 %v362
  %v459 = vunpack.c.l.b16 %v363
  %v460 = vunpack.c.l.b16 %v364
  %v461 = vunpack.c.l.b16 %v365
  %v462 = vunpack.c.l.b16 %v366
  %v463 = vunpack.c.l.b16 %v367
  %v464 = vunpack.c.l.b16 %v368
  %v465 = vunpack.c.l.b16 %v369
  %v466 = vunpack.c.l.b16 %v370
  %v467 = vunpack.c.l.b16 %v371
  %v468 = vunpack.c.l.b16 %v372
  %v469 = vunpack.c.l.b16 %v373
  %v470 = vunpack.c.l.b16 %v374
  %v471 = vunpack.c.l.b16 %v375
  %v472 = vunpack.c.l.b16 %v376
  %v473 = vunpack.c.l.b16 %v377
  %v474 = vunpack.c.l.b16 %v378
  %v475 = vunpack.c.l.b16 %v379
  %v476 = vunpack.c.l.b16 %v380
  %v477 = vunpack.c.l.b16 %v381
  %v478 = vunpack.c.l.b16 %v382
  %v479 = vunpack.c.l.b16 %v383
  %v480 = vunpack.c.l.b16 %v384
  %v481 = vunpack.c.l.b16 %v385
  %v482 = vunpack.c.l.b16 %v386
  %v483 = vunpack.c.l.b16 %v387
  %v484 = vunpack.c.l.b16 %v388
  %v485 = vunpack.c.l.b16 %v389
  %v486 = vunpack.c.l.b16 %v390
  %v487 = vunpack.c.l.b16 %v391
  %v488 = vunpack.c.l.b16 %v392
  %v489 = vunpack.c.l.b16 %v393
  %v490 = vunpack.c.l.b16 %v394
  %v491 = vunpack.c.l.b16 %v395
  %v492 = vunpack.c.l.b16 %v396
  %v493 = vpack.c.b16 %v446, %v445
  %v494 = vpack.c.b16 %v448, %v447
  %v495 = vpack.c.b16 %v450, %v449
  %v496 = vpack.c.b16 %v452, %v451
  %v497 = vpack.c.b16 %v454, %v453
  %v498 = vpack.c.b16 %v456, %v455
  %v499 = vpack.c.b16 %v458, %v457
  %v500 = vpack.c.b16 %v460, %v459
  %v501 = vpack.c.b16 %v462, %v461
  %v502 = vpack.c.b16 %v464, %v463
  %v503 = vpack.c.b16 %v466, %v465
  %v504 = vpack.c.b16 %v468, %v467
  %v505 = vpack.c.b16 %v470, %v469
  %v506 = vpack.c.b16 %v472, %v471
  %v507 = vpack.c.b16 %v474, %v473
  %v508 = vpack.c.b16 %v476, %v475
  %v509 = vpack.c.b16 %v478, %v477
  %v510 = vpack.c.b16 %v480, %v479
  %v511 = vpack.c.b16 %v482, %v481
  %v512 = vpack.c.b16 %v484, %v483
  %v513 = vpack.c.b16 %v486, %v485
  %v514 = vpack.c.b16 %v488, %v487
  %v515 = vpack.c.b16 %v490, %v489
  %v516 = vpack.c.b16 %v492, %v491
  %541 = vmatpush.bf16.msra.mxu0 %v500
  %542 = vmatpush.bf16.msra.mxu0 %v499
  %543 = vmatpush.bf16.msra.mxu0 %v498
  %544 = vmatpush.bf16.msra.mxu0 %v497
  %545 = vmatpush.bf16.msra.mxu0 %v496
  %546 = vmatpush.bf16.msra.mxu0 %v495
  %547 = vmatpush.bf16.msra.mxu0 %v494
  %548 = vmatpush.bf16.msra.mxu0 %v493
  %549 = vmatmul.bf16.gmra.mxu0 %v104
  %v550 = vpop.f32.mrf.mxu0
  %v551 = vadd.f32 0.0, %v550
  %v552 = vpop.f32.mrf.mxu0
  %v553 = vadd.f32 0.0, %v552
  %554 = vmatmul.bf16.gmra.mxu0 %v107
  %v555 = vpop.f32.mrf.mxu0
  %v556 = vadd.f32 0.0, %v555
  %v557 = vpop.f32.mrf.mxu0
  %v558 = vadd.f32 0.0, %v557
  %559 = vdwg.mxu0
  %560 = vmatpush.bf16.msra.mxu0 %v508
  %561 = vmatpush.bf16.msra.mxu0 %v507
  %562 = vmatpush.bf16.msra.mxu0 %v506
  %563 = vmatpush.bf16.msra.mxu0 %v505
  %564 = vmatpush.bf16.msra.mxu0 %v504
  %565 = vmatpush.bf16.msra.mxu0 %v503
  %566 = vmatpush.bf16.msra.mxu0 %v502
  %567 = vmatpush.bf16.msra.mxu0 %v501
  %568 = vmatmul.bf16.gmra.mxu0 %v105
  %v569 = vpop.f32.mrf.mxu0
  %v570 = vadd.f32 %v551, %v569
  %v571 = vpop.f32.mrf.mxu0
  %v572 = vadd.f32 %v553, %v571
  %573 = vmatmul.bf16.gmra.mxu0 %v108
  %v574 = vpop.f32.mrf.mxu0
  %v575 = vadd.f32 %v556, %v574
  %v576 = vpop.f32.mrf.mxu0
  %v577 = vadd.f32 %v558, %v576
  %578 = vdwg.mxu0
  %579 = vmatpush.bf16.msra.mxu0 %v516
  %580 = vmatpush.bf16.msra.mxu0 %v515
  %581 = vmatpush.bf16.msra.mxu0 %v514
  %582 = vmatpush.bf16.msra.mxu0 %v513
  %583 = vmatpush.bf16.msra.mxu0 %v512
  %584 = vmatpush.bf16.msra.mxu0 %v511
  %585 = vmatpush.bf16.msra.mxu0 %v510
  %586 = vmatpush.bf16.msra.mxu0 %v509
  %587 = vmatmul.bf16.gmra.mxu0 %v106
  %v588 = vpop.f32.mrf.mxu0
  %v589 = vadd.f32 %v570, %v588
  %v590 = vpop.f32.mrf.mxu0
  %v591 = vadd.f32 %v572, %v590
  %592 = vmatmul.bf16.gmra.mxu0 %v109
  %v593 = vpop.f32.mrf.mxu0
  %v594 = vadd.f32 %v575, %v593
  %v595 = vpop.f32.mrf.mxu0
  %v596 = vadd.f32 %v577, %v595
  %597 = vdwg.mxu0
  %598 = vst [vmem:[%s4] sm:$0xff] %v589
  %599 = vst [vmem:[%s4 + $0x8] sm:$0xff] %v591
  %600 = vst [vmem:[%s4 + $0x10] sm:$0xff] %v594
  %601 = vst [vmem:[%s4 + $0x18] sm:$0xff] %v596
  %v602 = vld [vmem:[%s6] sm:$0x1]
  %v603 = vadd.f32 %v589, %v591
  %v604 = vadd.f32 %v603, %v594
  %v605 = vadd.f32 %v604, %v596
  %v606 = vrot.slane %v605, 4
  %v607 = vadd.f32 %v605, %v606
  %v608 = vrot.slane %v607, 2
  %v609 = vadd.f32 %v607, %v608
  %v610 = vrot.slane %v609, 1
  %v611 = vadd.f32 %v609, %v610
  %v612 = vadd.f32 %v602, %v611
  %613 = vst [vmem:[%s6] sm:$0x1] %v612
  %v614 = vld [vmem:[%s8] sm:$0x1]
  %v615 = vmul.f32 %v589, %v589
  %v616 = vmul.f32 %v591, %v591
  %v617 = vmul.f32 %v594, %v594
  %v618 = vmul.f32 %v596, %v596
  %v619 = vadd.f32 %v615, %v616
  %v620 = vadd.f32 %v619, %v617
  %v621 = vadd.f32 %v620, %v618
  %v622 = vrot.slane %v621, 4
  %v623 = vadd.f32 %v621, %v622
  %v624 = vrot.slane %v623, 2
  %v625 = vadd.f32 %v623, %v624
  %v626 = vrot.slane %v625, 1
  %v627 = vadd.f32 %v625, %v626
  %v628 = vadd.f32 %v614, %v627
  %629 = vst [vmem:[%s8] sm:$0x1] %v628
  // Predicated region
  $region18: #{resnet_encoder_forward.28} parent=0 // pred_check
    _
  $region19: #{resnet_encoder_forward.28} parent=0 // pred_check_branch
    %631 = sbr.rel (0) target = $region21
  $region20: #{resnet_encoder_forward.28} parent=0 // pred_region
    _
  $region21: #{resnet_encoder_forward.28} parent=0 // pred_fallthru
    _
  // Predicated region
  $region22: #{resnet_encoder_forward.28} parent=0 // pred_check
    _
  $region23: #{resnet_encoder_forward.28} parent=0 // pred_check_branch
    %633 = sbr.rel (0) target = $region25
  $region24: #{resnet_encoder_forward.28} parent=0 // pred_region
    _
  $region25: #{resnet_encoder_forward.28} parent=0 // pred_fallthru
    _
  // Predicated region
  $region26: #{resnet_encoder_forward.28} parent=0 // pred_check
    _
  $region27: #{resnet_encoder_forward.28} parent=0 // pred_check_branch
    %635 = sbr.rel (0) target = $region29
  $region28: #{resnet_encoder_forward.28} parent=0 // pred_region
    _
  $region29: #{resnet_encoder_forward.28} parent=0 // pred_fallthru
    _
  // Predicated region
  $region30: #{resnet_encoder_forward.28} parent=0 // pred_check
    _
  $region31: #{resnet_encoder_forward.28} parent=0 // pred_check_branch
    %637 = sbr.rel (0) target = $region33
  $region32: #{resnet_encoder_forward.28} parent=0 // pred_region
    _
  $region33: #{resnet_encoder_forward.28} parent=0 // pred_fallthru
    _
  // Predicated region
  $region34: #{resnet_encoder_forward.28} parent=0 // pred_check
    _
  $region35: #{resnet_encoder_forward.28} parent=0 // pred_check_branch
    %639 = sbr.rel (0) target = $region37
  $region36: #{resnet_encoder_forward.28} parent=0 // pred_region
    _
  $region37: #{resnet_encoder_forward.28} parent=0 // pred_fallthru
    _
  // Predicated region
  $region38: #{resnet_encoder_forward.28} parent=0 // pred_check
    _
  $region39: #{resnet_encoder_forward.28} parent=0 // pred_check_branch
    %641 = sbr.rel (0) target = $region41
  $region40: #{resnet_encoder_forward.28} parent=0 // pred_region
    _
  $region41: #{resnet_encoder_forward.28} parent=0 // pred_fallthru
    _
  // Predicated region
  $region42: #{resnet_encoder_forward.28} parent=0 // pred_check
    _
  $region43: #{resnet_encoder_forward.28} parent=0 // pred_check_branch
    %643 = sbr.rel (0) target = $region45
  $region44: #{resnet_encoder_forward.28} parent=0 // pred_region
    _
  $region45: #{resnet_encoder_forward.28} parent=0 // pred_fallthru
    _
  // Predicated region
  $region46: #{resnet_encoder_forward.28} parent=0 // pred_check
    _
  $region47: #{resnet_encoder_forward.28} parent=0 // pred_check_branch
    %645 = sbr.rel (0) target = $region49
  $region48: #{resnet_encoder_forward.28} parent=0 // pred_region
    _
  $region49: #{resnet_encoder_forward.28} parent=0 // pred_fallthru
    _
  // Predicated region
  $region50: #{resnet_encoder_forward.28} parent=0 // pred_check
    _
  $region51: #{resnet_encoder_forward.28} parent=0 // pred_check_branch
    %647 = sbr.rel (0) target = $region53
  $region52: #{resnet_encoder_forward.28} parent=0 // pred_region
    _
  $region53: #{resnet_encoder_forward.28} parent=0 // pred_fallthru
    _
  // Predicated region
  $region54: #{resnet_encoder_forward.28} parent=0 // pred_check
    _
  $region55: #{resnet_encoder_forward.28} parent=0 // pred_check_branch
    %649 = sbr.rel (0) target = $region57
  $region56: #{resnet_encoder_forward.28} parent=0 // pred_region
    _
  $region57: #{resnet_encoder_forward.28} parent=0 // pred_fallthru
    _
  // Predicated region
  $region58: #{resnet_encoder_forward.28} parent=0 // pred_check
    _
  $region59: #{resnet_encoder_forward.28} parent=0 // pred_check_branch
    %651 = sbr.rel (0) target = $region61
  $region60: #{resnet_encoder_forward.28} parent=0 // pred_region
    _
  $region61: #{resnet_encoder_forward.28} parent=0 // pred_fallthru
    _
  // Predicated region
  $region62: #{resnet_encoder_forward.28} parent=0 // pred_check
    _
  $region63: #{resnet_encoder_forward.28} parent=0 // pred_check_branch
    %653 = sbr.rel (0) target = $region65
  $region64: #{resnet_encoder_forward.28} parent=0 // pred_region
    _
  $region65: #{resnet_encoder_forward.28} parent=0 // pred_fallthru
    _

// kernel: resnet_encoder_forward.31
$region0: #{resnet_encoder_forward.31}
  #allocation0 [shape = 'u32[]', space=smem, size = 0x4, offset = 0x4, fixed_abs, tag = 'smem constant byte address 0x4 - core index']
  #allocation1 [shape = 'u32[72,128]{1,0:T(1,128)}', space=vmem, size = 0x9000, scoped, tag = 'internal scratch']
  %s0 = inlined_call_operand.vmem [shape: f32[32,128], index: 0, kind: input, shape index: {}]
  %s1 = inlined_call_operand.vmem [shape: f32[1,128], index: 1, kind: input, shape index: {}]
  %s2 = inlined_call_operand.vmem [shape: f32[1,128], index: 2, kind: input, shape index: {}]
  %s3 = inlined_call_operand.vmem [shape: f32[32,128], index: 3, kind: input, shape index: {}]
  %s4 = inlined_call_operand.vmem [shape: f32[1,128], index: 4, kind: input, shape index: {}]
  %s5 = inlined_call_operand.vmem [shape: f32[1,128], index: 5, kind: input, shape index: {}]
  %s6 = inlined_call_operand.vmem [shape: bf16[32,128], index: 6, kind: output, shape index: {}]
  %s7 = sld [smem:[#allocation0]]
  $region34: #{resnet_encoder_forward.31} parent=0
    _
  %s9 = ssub.s32 1, %s7
  %s10 = scalar_select 0, %s9, %s7
  // Predicated region
  $region2: #{resnet_encoder_forward.31} parent=0 // pred_check
    _
  $region3: #{resnet_encoder_forward.31} parent=0 // pred_check_branch
    %12 = sbr.rel (0) target = $region5
  $region4: #{resnet_encoder_forward.31} parent=0 // pred_region
    _
  $region5: #{resnet_encoder_forward.31} parent=0 // pred_fallthru
    _
  // Predicated region
  $region6: #{resnet_encoder_forward.31} parent=0 // pred_check
    _
  $region7: #{resnet_encoder_forward.31} parent=0 // pred_check_branch
    %14 = sbr.rel (0) target = $region9
  $region8: #{resnet_encoder_forward.31} parent=0 // pred_region
    _
  $region9: #{resnet_encoder_forward.31} parent=0 // pred_fallthru
    _
  // Predicated region
  $region10: #{resnet_encoder_forward.31} parent=0 // pred_check
    _
  $region11: #{resnet_encoder_forward.31} parent=0 // pred_check_branch
    %16 = sbr.rel (0) target = $region13
  $region12: #{resnet_encoder_forward.31} parent=0 // pred_region
    _
  $region13: #{resnet_encoder_forward.31} parent=0 // pred_fallthru
    _
  // Predicated region
  $region14: #{resnet_encoder_forward.31} parent=0 // pred_check
    _
  $region15: #{resnet_encoder_forward.31} parent=0 // pred_check_branch
    %18 = sbr.rel (0) target = $region17
  $region16: #{resnet_encoder_forward.31} parent=0 // pred_region
    _
  $region17: #{resnet_encoder_forward.31} parent=0 // pred_fallthru
    _
  // Predicated region
  $region18: #{resnet_encoder_forward.31} parent=0 // pred_check
    _
  $region19: #{resnet_encoder_forward.31} parent=0 // pred_check_branch
    %20 = sbr.rel (0) target = $region21
  $region20: #{resnet_encoder_forward.31} parent=0 // pred_region
    _
  $region21: #{resnet_encoder_forward.31} parent=0 // pred_fallthru
    _
  // Predicated region
  $region22: #{resnet_encoder_forward.31} parent=0 // pred_check
    _
  $region23: #{resnet_encoder_forward.31} parent=0 // pred_check_branch
    %22 = sbr.rel (0) target = $region25
  $region24: #{resnet_encoder_forward.31} parent=0 // pred_region
    _
  $region25: #{resnet_encoder_forward.31} parent=0 // pred_fallthru
    _
  %v23 = vld [vmem:[%s0] sm:$0xff]
  %v24 = vld [vmem:[%s0 + $0x8] sm:$0xff]
  %v25 = vld [vmem:[%s0 + $0x10] sm:$0xff]
  %v26 = vld [vmem:[%s0 + $0x18] sm:$0xff]
  %v27 = vld [vmem:[%s1] sm:$0x1]
  %v28 = vld [vmem:[%s2] sm:$0x1]
  %v29 = vmul.f32 %v27, 0.03125
  %v30 = vmul.f32 %v28, 0.03125
  %v31 = vmul.f32 %v29, %v29
  %v32 = vsub.f32 %v30, %v31
  %v34 = vperm.slane %v29, 0
  %v36 = vsub.f32 %v23, %v34
  %v37 = vsub.f32 %v24, %v34
  %v38 = vsub.f32 %v25, %v34
  %v39 = vsub.f32 %v26, %v34
  %v40 = vadd.f32 %v32, 1e-05
  %v41 = vrsqrt.pop %v40
  %v42 = vmul.f32 %v41, %v40
  %v43 = vmul.f32 %v42, %v41
  %v44 = vmul.f32 0.5, %v43
  %v45 = vsub.f32 1.5, %v44
  %v46 = vmul.f32 %v41, %v45
  %vm47 = vweird.f32 %v40
  %vm48 = vweird.f32 %v41
  %vm49 = vmor %vm47, %vm48
  %v50 = vsel %vm49, %v41, %v46
  %v52 = vperm.slane %v50, 0
  %v54 = vmul.f32 %v36, %v52
  %v55 = vmul.f32 %v37, %v52
  %v56 = vmul.f32 %v38, %v52
  %v57 = vmul.f32 %v39, %v52
  %v58 = vld [vmem:[%s3] sm:$0xff]
  %v59 = vld [vmem:[%s3 + $0x8] sm:$0xff]
  %v60 = vld [vmem:[%s3 + $0x10] sm:$0xff]
  %v61 = vld [vmem:[%s3 + $0x18] sm:$0xff]
  %v62 = vld [vmem:[%s4] sm:$0x1]
  %v63 = vld [vmem:[%s5] sm:$0x1]
  %v64 = vmul.f32 %v62, 0.03125
  %v65 = vmul.f32 %v63, 0.03125
  %v66 = vmul.f32 %v64, %v64
  %v67 = vsub.f32 %v65, %v66
  %v69 = vperm.slane %v64, 0
  %v71 = vsub.f32 %v58, %v69
  %v72 = vsub.f32 %v59, %v69
  %v73 = vsub.f32 %v60, %v69
  %v74 = vsub.f32 %v61, %v69
  %v75 = vadd.f32 %v67, 1e-05
  %v76 = vrsqrt.pop %v75
  %v77 = vmul.f32 %v76, %v75
  %v78 = vmul.f32 %v77, %v76
  %v79 = vmul.f32 0.5, %v78
  %v80 = vsub.f32 1.5, %v79
  %v81 = vmul.f32 %v76, %v80
  %vm82 = vweird.f32 %v75
  %vm83 = vweird.f32 %v76
  %vm84 = vmor %vm82, %vm83
  %v85 = vsel %vm84, %v76, %v81
  %v87 = vperm.slane %v85, 0
  %v89 = vmul.f32 %v71, %v87
  %v90 = vmul.f32 %v72, %v87
  %v91 = vmul.f32 %v73, %v87
  %v92 = vmul.f32 %v74, %v87
  %v93 = vadd.f32 %v54, %v89
  %v94 = vadd.f32 %v55, %v90
  %v95 = vadd.f32 %v56, %v91
  %v96 = vadd.f32 %v57, %v92
  %v97 = vmax.f32 %v93, 0.0
  %v98 = vmax.f32 %v94, 0.0
  %v99 = vmax.f32 %v95, 0.0
  %v100 = vmax.f32 %v96, 0.0
  %v101 = vpack.c.bf16 %v97, %v97
  %v102 = vpack.c.bf16 %v98, %v98
  %v103 = vpack.c.bf16 %v99, %v99
  %v104 = vpack.c.bf16 %v100, %v100
  %105 = vst [vmem:[%s6] sm:$0xf] %v101
  %106 = vst [vmem:[%s6 + $0x4] sm:$0xf] %v102
  %107 = vst [vmem:[%s6 + $0x8] sm:$0xf] %v103
  %108 = vst [vmem:[%s6 + $0xc] sm:$0xf] %v104
  // Predicated region
  $region26: #{resnet_encoder_forward.31} parent=0 // pred_check
    _
  $region27: #{resnet_encoder_forward.31} parent=0 // pred_check_branch
    %110 = sbr.rel (0) target = $region29
  $region28: #{resnet_encoder_forward.31} parent=0 // pred_region
    _
  $region29: #{resnet_encoder_forward.31} parent=0 // pred_fallthru
    _
  // Predicated region
  $region30: #{resnet_encoder_forward.31} parent=0 // pred_check
    _
  $region31: #{resnet_encoder_forward.31} parent=0 // pred_check_branch
    %112 = sbr.rel (0) target = $region33
  $region32: #{resnet_encoder_forward.31} parent=0 // pred_region
    _
  $region33: #{resnet_encoder_forward.31} parent=0 // pred_fallthru
    _

// kernel: resnet_encoder_forward.30
$region0: #{resnet_encoder_forward.30}
  #allocation0 [shape = 'u32[]', space=smem, size = 0x4, offset = 0x4, fixed_abs, tag = 'smem constant byte address 0x4 - core index']
  #allocation1 [shape = 'u32[72,128]{1,0:T(1,128)}', space=vmem, size = 0x9000, scoped, tag = 'internal scratch']
  %s0 = inlined_call_operand.vmem [shape: bf16[32,640], index: 0, kind: input, shape index: {}]
  %s1 = inlined_call_operand.vmem [shape: bf16[640,128], index: 1, kind: input, shape index: {}]
  %s2 = inlined_call_operand.vmem [shape: f32[32,128], index: 2, kind: output, shape index: {0}]
  %s3 = inlined_call_operand.vmem [shape: f32[1,128], index: 3, kind: output, shape index: {1}]
  %s4 = inlined_call_operand.vmem [shape: f32[1,128], index: 4, kind: output, shape index: {2}]
  %5 = xla_tuple %s2, %s3, %s4
  %s6 = sld [smem:[#allocation0]]
  $region38: #{resnet_encoder_forward.30} parent=0
    _
  %s8 = ssub.s32 1, %s6
  %s9 = scalar_select 0, %s8, %s6
  // Predicated region
  $region2: #{resnet_encoder_forward.30} parent=0 // pred_check
    _
  $region3: #{resnet_encoder_forward.30} parent=0 // pred_check_branch
    %11 = sbr.rel (0) target = $region5
  $region4: #{resnet_encoder_forward.30} parent=0 // pred_region
    _
  $region5: #{resnet_encoder_forward.30} parent=0 // pred_fallthru
    _
  // Predicated region
  $region6: #{resnet_encoder_forward.30} parent=0 // pred_check
    _
  $region7: #{resnet_encoder_forward.30} parent=0 // pred_check_branch
    %13 = sbr.rel (0) target = $region9
  $region8: #{resnet_encoder_forward.30} parent=0 // pred_region
    _
  $region9: #{resnet_encoder_forward.30} parent=0 // pred_fallthru
    _
  %p14 = scmp.eq.s32.totalorder 0, 0
  // Predicated region
  $region10: #{resnet_encoder_forward.30} parent=0 // pred_check
    %p15 = pneg %p14
  $region11: #{resnet_encoder_forward.30} parent=0 // pred_check_branch
    %17 = sbr.rel (%p15) target = $region13
  $region12: #{resnet_encoder_forward.30} parent=0 // pred_region
    %18 = vst [vmem:[%s3] sm:$0x1] 0.0
    %19 = vst [vmem:[%s4] sm:$0x1] 0.0
  $region13: #{resnet_encoder_forward.30} parent=0 // pred_fallthru
    _
  %v20 = vld [vmem:[%s0] sm:$0xff]
  %v21 = vld [vmem:[%s0 + $0x8] sm:$0xff]
  %v22 = vld [vmem:[%s0 + $0x10] sm:$0xf]
  %v23 = vld [vmem:[%s0 + $0x14] sm:$0xff]
  %v24 = vld [vmem:[%s0 + $0x1c] sm:$0xff]
  %v25 = vld [vmem:[%s0 + $0x24] sm:$0xf]
  %v26 = vld [vmem:[%s0 + $0x28] sm:$0xff]
  %v27 = vld [vmem:[%s0 + $0x30] sm:$0xff]
  %v28 = vld [vmem:[%s0 + $0x38] sm:$0xf]
  %v29 = vld [vmem:[%s0 + $0x3c] sm:$0xff]
  %v30 = vld [vmem:[%s0 + $0x44] sm:$0xff]
  %v31 = vld [vmem:[%s0 + $0x4c] sm:$0xf]
  %v32 = vld [vmem:[%s1] sm:$0xf]
  %v33 = vld [vmem:[%s1 + $0x4] sm:$0xf]
  %v34 = vld [vmem:[%s1 + $0x8] sm:$0xf]
  %v35 = vld [vmem:[%s1 + $0xc] sm:$0xf]
  %v36 = vld [vmem:[%s1 + $0x10] sm:$0xf]
  %v37 = vld [vmem:[%s1 + $0x14] sm:$0xf]
  %v38 = vld [vmem:[%s1 + $0x18] sm:$0xf]
  %v39 = vld [vmem:[%s1 + $0x1c] sm:$0xf]
  %v40 = vld [vmem:[%s1 + $0x20] sm:$0xf]
  %v41 = vld [vmem:[%s1 + $0x24] sm:$0xf]
  %v42 = vld [vmem:[%s1 + $0x28] sm:$0xf]
  %v43 = vld [vmem:[%s1 + $0x2c] sm:$0xf]
  %v44 = vld [vmem:[%s1 + $0x30] sm:$0xf]
  %v45 = vld [vmem:[%s1 + $0x34] sm:$0xf]
  %v46 = vld [vmem:[%s1 + $0x38] sm:$0xf]
  %v47 = vld [vmem:[%s1 + $0x3c] sm:$0xf]
  %v48 = vld [vmem:[%s1 + $0x40] sm:$0xf]
  %v49 = vld [vmem:[%s1 + $0x44] sm:$0xf]
  %v50 = vld [vmem:[%s1 + $0x48] sm:$0xf]
  %v51 = vld [vmem:[%s1 + $0x4c] sm:$0xf]
  %v52 = vld [vmem:[%s1 + $0x50] sm:$0xf]
  %v53 = vld [vmem:[%s1 + $0x54] sm:$0xf]
  %v54 = vld [vmem:[%s1 + $0x58] sm:$0xf]
  %v55 = vld [vmem:[%s1 + $0x5c] sm:$0xf]
  %v56 = vld [vmem:[%s1 + $0x60] sm:$0xf]
  %v57 = vld [vmem:[%s1 + $0x64] sm:$0xf]
  %v58 = vld [vmem:[%s1 + $0x68] sm:$0xf]
  %v59 = vld [vmem:[%s1 + $0x6c] sm:$0xf]
  %v60 = vld [vmem:[%s1 + $0x70] sm:$0xf]
  %v61 = vld [vmem:[%s1 + $0x74] sm:$0xf]
  %v62 = vld [vmem:[%s1 + $0x78] sm:$0xf]
  %v63 = vld [vmem:[%s1 + $0x7c] sm:$0xf]
  %v64 = vld [vmem:[%s1 + $0x80] sm:$0xf]
  %v65 = vld [vmem:[%s1 + $0x84] sm:$0xf]
  %v66 = vld [vmem:[%s1 + $0x88] sm:$0xf]
  %v67 = vld [vmem:[%s1 + $0x8c] sm:$0xf]
  %v68 = vld [vmem:[%s1 + $0x90] sm:$0xf]
  %v69 = vld [vmem:[%s1 + $0x94] sm:$0xf]
  %v70 = vld [vmem:[%s1 + $0x98] sm:$0xf]
  %v71 = vld [vmem:[%s1 + $0x9c] sm:$0xf]
  %v72 = vld [vmem:[%s1 + $0xa0] sm:$0xf]
  %v73 = vld [vmem:[%s1 + $0xa4] sm:$0xf]
  %v74 = vld [vmem:[%s1 + $0xa8] sm:$0xf]
  %v75 = vld [vmem:[%s1 + $0xac] sm:$0xf]
  %v76 = vld [vmem:[%s1 + $0xb0] sm:$0xf]
  %v77 = vld [vmem:[%s1 + $0xb4] sm:$0xf]
  %v78 = vld [vmem:[%s1 + $0xb8] sm:$0xf]
  %v79 = vld [vmem:[%s1 + $0xbc] sm:$0xf]
  %v80 = vld [vmem:[%s1 + $0xc0] sm:$0xf]
  %v81 = vld [vmem:[%s1 + $0xc4] sm:$0xf]
  %v82 = vld [vmem:[%s1 + $0xc8] sm:$0xf]
  %v83 = vld [vmem:[%s1 + $0xcc] sm:$0xf]
  %v84 = vld [vmem:[%s1 + $0xd0] sm:$0xf]
  %v85 = vld [vmem:[%s1 + $0xd4] sm:$0xf]
  %v86 = vld [vmem:[%s1 + $0xd8] sm:$0xf]
  %v87 = vld [vmem:[%s1 + $0xdc] sm:$0xf]
  %v88 = vld [vmem:[%s1 + $0xe0] sm:$0xf]
  %v89 = vld [vmem:[%s1 + $0xe4] sm:$0xf]
  %v90 = vld [vmem:[%s1 + $0xe8] sm:$0xf]
  %v91 = vld [vmem:[%s1 + $0xec] sm:$0xf]
  %v92 = vld [vmem:[%s1 + $0xf0] sm:$0xf]
  %v93 = vld [vmem:[%s1 + $0xf4] sm:$0xf]
  %v94 = vld [vmem:[%s1 + $0xf8] sm:$0xf]
  %v95 = vld [vmem:[%s1 + $0xfc] sm:$0xf]
  %v96 = vld [vmem:[%s1 + $0x100] sm:$0xf]
  %v97 = vld [vmem:[%s1 + $0x104] sm:$0xf]
  %v98 = vld [vmem:[%s1 + $0x108] sm:$0xf]
  %v99 = vld [vmem:[%s1 + $0x10c] sm:$0xf]
  %v100 = vld [vmem:[%s1 + $0x110] sm:$0xf]
  %v101 = vld [vmem:[%s1 + $0x114] sm:$0xf]
  %v102 = vld [vmem:[%s1 + $0x118] sm:$0xf]
  %v103 = vld [vmem:[%s1 + $0x11c] sm:$0xf]
  %v104 = vld [vmem:[%s1 + $0x120] sm:$0xf]
  %v105 = vld [vmem:[%s1 + $0x124] sm:$0xf]
  %v106 = vld [vmem:[%s1 + $0x128] sm:$0xf]
  %v107 = vld [vmem:[%s1 + $0x12c] sm:$0xf]
  %v108 = vld [vmem:[%s1 + $0x130] sm:$0xf]
  %v109 = vld [vmem:[%s1 + $0x134] sm:$0xf]
  %v110 = vld [vmem:[%s1 + $0x138] sm:$0xf]
  %v111 = vld [vmem:[%s1 + $0x13c] sm:$0xf]
  %v124 = vunpack.c.l.b16 %v20
  %v125 = vunpack.c.h.b16 %v20
  %v126 = vunpack.c.l.b16 %v21
  %v127 = vunpack.c.h.b16 %v21
  %v128 = vunpack.c.l.b16 %v22
  %v129 = vunpack.c.l.b16 %v23
  %v130 = vunpack.c.h.b16 %v23
  %v131 = vunpack.c.l.b16 %v24
  %v132 = vunpack.c.h.b16 %v24
  %v133 = vunpack.c.l.b16 %v25
  %v134 = vunpack.c.l.b16 %v26
  %v135 = vunpack.c.h.b16 %v26
  %v136 = vunpack.c.l.b16 %v27
  %v137 = vunpack.c.h.b16 %v27
  %v138 = vunpack.c.l.b16 %v28
  %v139 = vunpack.c.l.b16 %v29
  %v140 = vunpack.c.h.b16 %v29
  %v141 = vunpack.c.l.b16 %v30
  %v142 = vunpack.c.h.b16 %v30
  %v143 = vunpack.c.l.b16 %v31
  %v144 = vpack.c.b16 %v129, %v124
  %v145 = vpack.c.b16 %v130, %v125
  %v146 = vpack.c.b16 %v131, %v126
  %v147 = vpack.c.b16 %v132, %v127
  %v148 = vpack.c.b16 %v133, %v128
  %v149 = vpack.c.b16 %v139, %v134
  %v150 = vpack.c.b16 %v140, %v135
  %v151 = vpack.c.b16 %v141, %v136
  %v152 = vpack.c.b16 %v142, %v137
  %v153 = vpack.c.b16 %v143, %v138
  %v244 = vunpack.c.l.b16 %v32
  %v245 = vunpack.c.l.b16 %v33
  %v246 = vunpack.c.l.b16 %v34
  %v247 = vunpack.c.l.b16 %v35
  %v248 = vunpack.c.l.b16 %v36
  %v249 = vunpack.c.l.b16 %v37
  %v250 = vunpack.c.l.b16 %v38
  %v251 = vunpack.c.l.b16 %v39
  %v252 = vunpack.c.l.b16 %v40
  %v253 = vunpack.c.l.b16 %v41
  %v254 = vunpack.c.l.b16 %v42
  %v255 = vunpack.c.l.b16 %v43
  %v256 = vunpack.c.l.b16 %v44
  %v257 = vunpack.c.l.b16 %v45
  %v258 = vunpack.c.l.b16 %v46
  %v259 = vunpack.c.l.b16 %v47
  %v260 = vunpack.c.l.b16 %v48
  %v261 = vunpack.c.l.b16 %v49
  %v262 = vunpack.c.l.b16 %v50
  %v263 = vunpack.c.l.b16 %v51
  %v264 = vunpack.c.l.b16 %v52
  %v265 = vunpack.c.l.b16 %v53
  %v266 = vunpack.c.l.b16 %v54
  %v267 = vunpack.c.l.b16 %v55
  %v268 = vunpack.c.l.b16 %v56
  %v269 = vunpack.c.l.b16 %v57
  %v270 = vunpack.c.l.b16 %v58
  %v271 = vunpack.c.l.b16 %v59
  %v272 = vunpack.c.l.b16 %v60
  %v273 = vunpack.c.l.b16 %v61
  %v274 = vunpack.c.l.b16 %v62
  %v275 = vunpack.c.l.b16 %v63
  %v276 = vunpack.c.l.b16 %v64
  %v277 = vunpack.c.l.b16 %v65
  %v278 = vunpack.c.l.b16 %v66
  %v279 = vunpack.c.l.b16 %v67
  %v280 = vunpack.c.l.b16 %v68
  %v281 = vunpack.c.l.b16 %v69
  %v282 = vunpack.c.l.b16 %v70
  %v283 = vunpack.c.l.b16 %v71
  %v284 = vunpack.c.l.b16 %v72
  %v285 = vunpack.c.l.b16 %v73
  %v286 = vunpack.c.l.b16 %v74
  %v287 = vunpack.c.l.b16 %v75
  %v288 = vunpack.c.l.b16 %v76
  %v289 = vunpack.c.l.b16 %v77
  %v290 = vunpack.c.l.b16 %v78
  %v291 = vunpack.c.l.b16 %v79
  %v292 = vunpack.c.l.b16 %v80
  %v293 = vunpack.c.l.b16 %v81
  %v294 = vunpack.c.l.b16 %v82
  %v295 = vunpack.c.l.b16 %v83
  %v296 = vunpack.c.l.b16 %v84
  %v297 = vunpack.c.l.b16 %v85
  %v298 = vunpack.c.l.b16 %v86
  %v299 = vunpack.c.l.b16 %v87
  %v300 = vunpack.c.l.b16 %v88
  %v301 = vunpack.c.l.b16 %v89
  %v302 = vunpack.c.l.b16 %v90
  %v303 = vunpack.c.l.b16 %v91
  %v304 = vunpack.c.l.b16 %v92
  %v305 = vunpack.c.l.b16 %v93
  %v306 = vunpack.c.l.b16 %v94
  %v307 = vunpack.c.l.b16 %v95
  %v308 = vunpack.c.l.b16 %v96
  %v309 = vunpack.c.l.b16 %v97
  %v310 = vunpack.c.l.b16 %v98
  %v311 = vunpack.c.l.b16 %v99
  %v312 = vunpack.c.l.b16 %v100
  %v313 = vunpack.c.l.b16 %v101
  %v314 = vunpack.c.l.b16 %v102
  %v315 = vunpack.c.l.b16 %v103
  %v316 = vunpack.c.l.b16 %v104
  %v317 = vunpack.c.l.b16 %v105
  %v318 = vunpack.c.l.b16 %v106
  %v319 = vunpack.c.l.b16 %v107
  %v320 = vunpack.c.l.b16 %v108
  %v321 = vunpack.c.l.b16 %v109
  %v322 = vunpack.c.l.b16 %v110
  %v323 = vunpack.c.l.b16 %v111
  %v324 = vpack.c.b16 %v245, %v244
  %v325 = vpack.c.b16 %v247, %v246
  %v326 = vpack.c.b16 %v249, %v248
  %v327 = vpack.c.b16 %v251, %v250
  %v328 = vpack.c.b16 %v253, %v252
  %v329 = vpack.c.b16 %v255, %v254
  %v330 = vpack.c.b16 %v257, %v256
  %v331 = vpack.c.b16 %v259, %v258
  %v332 = vpack.c.b16 %v261, %v260
  %v333 = vpack.c.b16 %v263, %v262
  %v334 = vpack.c.b16 %v265, %v264
  %v335 = vpack.c.b16 %v267, %v266
  %v336 = vpack.c.b16 %v269, %v268
  %v337 = vpack.c.b16 %v271, %v270
  %v338 = vpack.c.b16 %v273, %v272
  %v339 = vpack.c.b16 %v275, %v274
  %v340 = vpack.c.b16 %v277, %v276
  %v341 = vpack.c.b16 %v279, %v278
  %v342 = vpack.c.b16 %v281, %v280
  %v343 = vpack.c.b16 %v283, %v282
  %v344 = vpack.c.b16 %v285, %v284
  %v345 = vpack.c.b16 %v287, %v286
  %v346 = vpack.c.b16 %v289, %v288
  %v347 = vpack.c.b16 %v291, %v290
  %v348 = vpack.c.b16 %v293, %v292
  %v349 = vpack.c.b16 %v295, %v294
  %v350 = vpack.c.b16 %v297, %v296
  %v351 = vpack.c.b16 %v299, %v298
  %v352 = vpack.c.b16 %v301, %v300
  %v353 = vpack.c.b16 %v303, %v302
  %v354 = vpack.c.b16 %v305, %v304
  %v355 = vpack.c.b16 %v307, %v306
  %v356 = vpack.c.b16 %v309, %v308
  %v357 = vpack.c.b16 %v311, %v310
  %v358 = vpack.c.b16 %v313, %v312
  %v359 = vpack.c.b16 %v315, %v314
  %v360 = vpack.c.b16 %v317, %v316
  %v361 = vpack.c.b16 %v319, %v318
  %v362 = vpack.c.b16 %v321, %v320
  %v363 = vpack.c.b16 %v323, %v322
  %404 = vmatpush.bf16.msra.mxu0 %v331
  %405 = vmatpush.bf16.msra.mxu0 %v330
  %406 = vmatpush.bf16.msra.mxu0 %v329
  %407 = vmatpush.bf16.msra.mxu0 %v328
  %408 = vmatpush.bf16.msra.mxu0 %v327
  %409 = vmatpush.bf16.msra.mxu0 %v326
  %410 = vmatpush.bf16.msra.mxu0 %v325
  %411 = vmatpush.bf16.msra.mxu0 %v324
  %412 = vmatmul.bf16.gmra.mxu0 %v144
  %v413 = vpop.f32.mrf.mxu0
  %v414 = vadd.f32 0.0, %v413
  %v415 = vpop.f32.mrf.mxu0
  %v416 = vadd.f32 0.0, %v415
  %417 = vmatmul.bf16.gmra.mxu0 %v149
  %v418 = vpop.f32.mrf.mxu0
  %v419 = vadd.f32 0.0, %v418
  %v420 = vpop.f32.mrf.mxu0
  %v421 = vadd.f32 0.0, %v420
  %422 = vdwg.mxu0
  %423 = vmatpush.bf16.msra.mxu0 %v339
  %424 = vmatpush.bf16.msra.mxu0 %v338
  %425 = vmatpush.bf16.msra.mxu0 %v337
  %426 = vmatpush.bf16.msra.mxu0 %v336
  %427 = vmatpush.bf16.msra.mxu0 %v335
  %428 = vmatpush.bf16.msra.mxu0 %v334
  %429 = vmatpush.bf16.msra.mxu0 %v333
  %430 = vmatpush.bf16.msra.mxu0 %v332
  %431 = vmatmul.bf16.gmra.mxu0 %v145
  %v432 = vpop.f32.mrf.mxu0
  %v433 = vadd.f32 %v414, %v432
  %v434 = vpop.f32.mrf.mxu0
  %v435 = vadd.f32 %v416, %v434
  %436 = vmatmul.bf16.gmra.mxu0 %v150
  %v437 = vpop.f32.mrf.mxu0
  %v438 = vadd.f32 %v419, %v437
  %v439 = vpop.f32.mrf.mxu0
  %v440 = vadd.f32 %v421, %v439
  %441 = vdwg.mxu0
  %442 = vmatpush.bf16.msra.mxu0 %v347
  %443 = vmatpush.bf16.msra.mxu0 %v346
  %444 = vmatpush.bf16.msra.mxu0 %v345
  %445 = vmatpush.bf16.msra.mxu0 %v344
  %446 = vmatpush.bf16.msra.mxu0 %v343
  %447 = vmatpush.bf16.msra.mxu0 %v342
  %448 = vmatpush.bf16.msra.mxu0 %v341
  %449 = vmatpush.bf16.msra.mxu0 %v340
  %450 = vmatmul.bf16.gmra.mxu0 %v146
  %v451 = vpop.f32.mrf.mxu0
  %v452 = vadd.f32 %v433, %v451
  %v453 = vpop.f32.mrf.mxu0
  %v454 = vadd.f32 %v435, %v453
  %455 = vmatmul.bf16.gmra.mxu0 %v151
  %v456 = vpop.f32.mrf.mxu0
  %v457 = vadd.f32 %v438, %v456
  %v458 = vpop.f32.mrf.mxu0
  %v459 = vadd.f32 %v440, %v458
  %460 = vdwg.mxu0
  %461 = vmatpush.bf16.msra.mxu0 %v355
  %462 = vmatpush.bf16.msra.mxu0 %v354
  %463 = vmatpush.bf16.msra.mxu0 %v353
  %464 = vmatpush.bf16.msra.mxu0 %v352
  %465 = vmatpush.bf16.msra.mxu0 %v351
  %466 = vmatpush.bf16.msra.mxu0 %v350
  %467 = vmatpush.bf16.msra.mxu0 %v349
  %468 = vmatpush.bf16.msra.mxu0 %v348
  %469 = vmatmul.bf16.gmra.mxu0 %v147
  %v470 = vpop.f32.mrf.mxu0
  %v471 = vadd.f32 %v452, %v470
  %v472 = vpop.f32.mrf.mxu0
  %v473 = vadd.f32 %v454, %v472
  %474 = vmatmul.bf16.gmra.mxu0 %v152
  %v475 = vpop.f32.mrf.mxu0
  %v476 = vadd.f32 %v457, %v475
  %v477 = vpop.f32.mrf.mxu0
  %v478 = vadd.f32 %v459, %v477
  %479 = vdwg.mxu0
  %480 = vmatpush.bf16.msra.mxu0 %v363
  %481 = vmatpush.bf16.msra.mxu0 %v362
  %482 = vmatpush.bf16.msra.mxu0 %v361
  %483 = vmatpush.bf16.msra.mxu0 %v360
  %484 = vmatpush.bf16.msra.mxu0 %v359
  %485 = vmatpush.bf16.msra.mxu0 %v358
  %486 = vmatpush.bf16.msra.mxu0 %v357
  %487 = vmatpush.bf16.msra.mxu0 %v356
  %488 = vmatmul.bf16.gmra.mxu0 %v148
  %v489 = vpop.f32.mrf.mxu0
  %v490 = vadd.f32 %v471, %v489
  %v491 = vpop.f32.mrf.mxu0
  %v492 = vadd.f32 %v473, %v491
  %493 = vmatmul.bf16.gmra.mxu0 %v153
  %v494 = vpop.f32.mrf.mxu0
  %v495 = vadd.f32 %v476, %v494
  %v496 = vpop.f32.mrf.mxu0
  %v497 = vadd.f32 %v478, %v496
  %498 = vdwg.mxu0
  %499 = vst [vmem:[%s2] sm:$0xff] %v490
  %500 = vst [vmem:[%s2 + $0x8] sm:$0xff] %v492
  %501 = vst [vmem:[%s2 + $0x10] sm:$0xff] %v495
  %502 = vst [vmem:[%s2 + $0x18] sm:$0xff] %v497
  %v503 = vld [vmem:[%s3] sm:$0x1]
  %v504 = vadd.f32 %v490, %v492
  %v505 = vadd.f32 %v504, %v495
  %v506 = vadd.f32 %v505, %v497
  %v507 = vrot.slane %v506, 4
  %v508 = vadd.f32 %v506, %v507
  %v509 = vrot.slane %v508, 2
  %v510 = vadd.f32 %v508, %v509
  %v511 = vrot.slane %v510, 1
  %v512 = vadd.f32 %v510, %v511
  %v513 = vadd.f32 %v503, %v512
  %514 = vst [vmem:[%s3] sm:$0x1] %v513
  %v515 = vld [vmem:[%s4] sm:$0x1]
  %v516 = vmul.f32 %v490, %v490
  %v517 = vmul.f32 %v492, %v492
  %v518 = vmul.f32 %v495, %v495
  %v519 = vmul.f32 %v497, %v497
  %v520 = vadd.f32 %v516, %v517
  %v521 = vadd.f32 %v520, %v518
  %v522 = vadd.f32 %v521, %v519
  %v523 = vrot.slane %v522, 4
  %v524 = vadd.f32 %v522, %v523
  %v525 = vrot.slane %v524, 2
  %v526 = vadd.f32 %v524, %v525
  %v527 = vrot.slane %v526, 1
  %v528 = vadd.f32 %v526, %v527
  %v529 = vadd.f32 %v515, %v528
  %530 = vst [vmem:[%s4] sm:$0x1] %v529
  // Predicated region
  $region14: #{resnet_encoder_forward.30} parent=0 // pred_check
    _
  $region15: #{resnet_encoder_forward.30} parent=0 // pred_check_branch
    %532 = sbr.rel (0) target = $region17
  $region16: #{resnet_encoder_forward.30} parent=0 // pred_region
    _
  $region17: #{resnet_encoder_forward.30} parent=0 // pred_fallthru
    _
  // Predicated region
  $region18: #{resnet_encoder_forward.30} parent=0 // pred_check
    _
  $region19: #{resnet_encoder_forward.30} parent=0 // pred_check_branch
    %534 = sbr.rel (0) target = $region21
  $region20: #{resnet_encoder_forward.30} parent=0 // pred_region
    _
  $region21: #{resnet_encoder_forward.30} parent=0 // pred_fallthru
    _
  // Predicated region
  $region22: #{resnet_encoder_forward.30} parent=0 // pred_check
    _
  $region23: #{resnet_encoder_forward.30} parent=0 // pred_check_branch
    %536 = sbr.rel (0) target = $region25
  $region24: #{resnet_encoder_forward.30} parent=0 // pred_region
    _
  $region25: #{resnet_encoder_forward.30} parent=0 // pred_fallthru
    _
  // Predicated region
  $region26: #{resnet_encoder_forward.30} parent=0 // pred_check
    _
  $region27: #{resnet_encoder_forward.30} parent=0 // pred_check_branch
    %538 = sbr.rel (0) target = $region29
  $region28: #{resnet_encoder_forward.30} parent=0 // pred_region
    _
  $region29: #{resnet_encoder_forward.30} parent=0 // pred_fallthru
    _
  // Predicated region
  $region30: #{resnet_encoder_forward.30} parent=0 // pred_check
    _
  $region31: #{resnet_encoder_forward.30} parent=0 // pred_check_branch
    %540 = sbr.rel (0) target = $region33
  $region32: #{resnet_encoder_forward.30} parent=0 // pred_region
    _
  $region33: #{resnet_encoder_forward.30} parent=0 // pred_fallthru
    _
  // Predicated region
  $region34: #{resnet_encoder_forward.30} parent=0 // pred_check
    _
  $region35: #{resnet_encoder_forward.30} parent=0 // pred_check_branch
    %542 = sbr.rel (0) target = $region37
  $region36: #{resnet_encoder_forward.30} parent=0 // pred_region
    _
  $region37: #{resnet_encoder_forward.30} parent=0 // pred_fallthru
    _

// kernel: resnet_encoder_forward.33
$region0: #{resnet_encoder_forward.33}
  #allocation0 [shape = 'u32[]', space=smem, size = 0x4, offset = 0x4, fixed_abs, tag = 'smem constant byte address 0x4 - core index']
  #allocation1 [shape = 'u32[72,128]{1,0:T(1,128)}', space=vmem, size = 0x9000, scoped, tag = 'internal scratch']
  %s0 = inlined_call_operand.vmem [shape: f32[8,128], index: 0, kind: input, shape index: {}]
  %s1 = inlined_call_operand.vmem [shape: f32[1,128], index: 1, kind: input, shape index: {}]
  %s2 = inlined_call_operand.vmem [shape: f32[1,128], index: 2, kind: input, shape index: {}]
  %s3 = inlined_call_operand.vmem [shape: bf16[8,128], index: 3, kind: output, shape index: {}]
  %s4 = sld [smem:[#allocation0]]
  $region22: #{resnet_encoder_forward.33} parent=0
    _
  %s6 = ssub.s32 1, %s4
  %s7 = scalar_select 0, %s6, %s4
  // Predicated region
  $region2: #{resnet_encoder_forward.33} parent=0 // pred_check
    _
  $region3: #{resnet_encoder_forward.33} parent=0 // pred_check_branch
    %9 = sbr.rel (0) target = $region5
  $region4: #{resnet_encoder_forward.33} parent=0 // pred_region
    _
  $region5: #{resnet_encoder_forward.33} parent=0 // pred_fallthru
    _
  // Predicated region
  $region6: #{resnet_encoder_forward.33} parent=0 // pred_check
    _
  $region7: #{resnet_encoder_forward.33} parent=0 // pred_check_branch
    %11 = sbr.rel (0) target = $region9
  $region8: #{resnet_encoder_forward.33} parent=0 // pred_region
    _
  $region9: #{resnet_encoder_forward.33} parent=0 // pred_fallthru
    _
  // Predicated region
  $region10: #{resnet_encoder_forward.33} parent=0 // pred_check
    _
  $region11: #{resnet_encoder_forward.33} parent=0 // pred_check_branch
    %13 = sbr.rel (0) target = $region13
  $region12: #{resnet_encoder_forward.33} parent=0 // pred_region
    _
  $region13: #{resnet_encoder_forward.33} parent=0 // pred_fallthru
    _
  %v14 = vld [vmem:[%s0] sm:$0xff]
  %v15 = vld [vmem:[%s1] sm:$0x1]
  %v16 = vld [vmem:[%s2] sm:$0x1]
  %v17 = vmul.f32 %v15, 0.125
  %v18 = vmul.f32 %v16, 0.125
  %v19 = vmul.f32 %v17, %v17
  %v20 = vsub.f32 %v18, %v19
  %v22 = vperm.slane %v17, 0
  %v24 = vsub.f32 %v14, %v22
  %v25 = vadd.f32 %v20, 1e-05
  %v26 = vrsqrt.pop %v25
  %v27 = vmul.f32 %v26, %v25
  %v28 = vmul.f32 %v27, %v26
  %v29 = vmul.f32 0.5, %v28
  %v30 = vsub.f32 1.5, %v29
  %v31 = vmul.f32 %v26, %v30
  %vm32 = vweird.f32 %v25
  %vm33 = vweird.f32 %v26
  %vm34 = vmor %vm32, %vm33
  %v35 = vsel %vm34, %v26, %v31
  %v37 = vperm.slane %v35, 0
  %v39 = vmul.f32 %v24, %v37
  %v40 = vmax.f32 %v39, 0.0
  %v41 = vpack.c.bf16 %v40, %v40
  %42 = vst [vmem:[%s3] sm:$0xf] %v41
  // Predicated region
  $region14: #{resnet_encoder_forward.33} parent=0 // pred_check
    _
  $region15: #{resnet_encoder_forward.33} parent=0 // pred_check_branch
    %44 = sbr.rel (0) target = $region17
  $region16: #{resnet_encoder_forward.33} parent=0 // pred_region
    _
  $region17: #{resnet_encoder_forward.33} parent=0 // pred_fallthru
    _
  // Predicated region
  $region18: #{resnet_encoder_forward.33} parent=0 // pred_check
    _
  $region19: #{resnet_encoder_forward.33} parent=0 // pred_check_branch
    %46 = sbr.rel (0) target = $region21
  $region20: #{resnet_encoder_forward.33} parent=0 // pred_region
    _
  $region21: #{resnet_encoder_forward.33} parent=0 // pred_fallthru
    _

// kernel: resnet_encoder_forward.35
$region0: #{resnet_encoder_forward.35}
  #allocation0 [shape = 'u32[]', space=smem, size = 0x4, offset = 0x4, fixed_abs, tag = 'smem constant byte address 0x4 - core index']
  #allocation1 [shape = 'u32[72,128]{1,0:T(1,128)}', space=vmem, size = 0x9000, scoped, tag = 'internal scratch']
  %s0 = inlined_call_operand.vmem [shape: f32[8,128], index: 0, kind: input, shape index: {}]
  %s1 = inlined_call_operand.vmem [shape: f32[1,128], index: 1, kind: input, shape index: {}]
  %s2 = inlined_call_operand.vmem [shape: f32[1,128], index: 2, kind: input, shape index: {}]
  %s3 = inlined_call_operand.vmem [shape: f32[8,128], index: 3, kind: input, shape index: {}]
  %s4 = inlined_call_operand.vmem [shape: f32[1,128], index: 4, kind: input, shape index: {}]
  %s5 = inlined_call_operand.vmem [shape: f32[1,128], index: 5, kind: input, shape index: {}]
  %s6 = inlined_call_operand.vmem [shape: bf16[8,128], index: 6, kind: output, shape index: {}]
  %s7 = sld [smem:[#allocation0]]
  $region34: #{resnet_encoder_forward.35} parent=0
    _
  %s9 = ssub.s32 1, %s7
  %s10 = scalar_select 0, %s9, %s7
  // Predicated region
  $region2: #{resnet_encoder_forward.35} parent=0 // pred_check
    _
  $region3: #{resnet_encoder_forward.35} parent=0 // pred_check_branch
    %12 = sbr.rel (0) target = $region5
  $region4: #{resnet_encoder_forward.35} parent=0 // pred_region
    _
  $region5: #{resnet_encoder_forward.35} parent=0 // pred_fallthru
    _
  // Predicated region
  $region6: #{resnet_encoder_forward.35} parent=0 // pred_check
    _
  $region7: #{resnet_encoder_forward.35} parent=0 // pred_check_branch
    %14 = sbr.rel (0) target = $region9
  $region8: #{resnet_encoder_forward.35} parent=0 // pred_region
    _
  $region9: #{resnet_encoder_forward.35} parent=0 // pred_fallthru
    _
  // Predicated region
  $region10: #{resnet_encoder_forward.35} parent=0 // pred_check
    _
  $region11: #{resnet_encoder_forward.35} parent=0 // pred_check_branch
    %16 = sbr.rel (0) target = $region13
  $region12: #{resnet_encoder_forward.35} parent=0 // pred_region
    _
  $region13: #{resnet_encoder_forward.35} parent=0 // pred_fallthru
    _
  // Predicated region
  $region14: #{resnet_encoder_forward.35} parent=0 // pred_check
    _
  $region15: #{resnet_encoder_forward.35} parent=0 // pred_check_branch
    %18 = sbr.rel (0) target = $region17
  $region16: #{resnet_encoder_forward.35} parent=0 // pred_region
    _
  $region17: #{resnet_encoder_forward.35} parent=0 // pred_fallthru
    _
  // Predicated region
  $region18: #{resnet_encoder_forward.35} parent=0 // pred_check
    _
  $region19: #{resnet_encoder_forward.35} parent=0 // pred_check_branch
    %20 = sbr.rel (0) target = $region21
  $region20: #{resnet_encoder_forward.35} parent=0 // pred_region
    _
  $region21: #{resnet_encoder_forward.35} parent=0 // pred_fallthru
    _
  // Predicated region
  $region22: #{resnet_encoder_forward.35} parent=0 // pred_check
    _
  $region23: #{resnet_encoder_forward.35} parent=0 // pred_check_branch
    %22 = sbr.rel (0) target = $region25
  $region24: #{resnet_encoder_forward.35} parent=0 // pred_region
    _
  $region25: #{resnet_encoder_forward.35} parent=0 // pred_fallthru
    _
  %v23 = vld [vmem:[%s0] sm:$0xff]
  %v24 = vld [vmem:[%s1] sm:$0x1]
  %v25 = vld [vmem:[%s2] sm:$0x1]
  %v26 = vmul.f32 %v24, 0.125
  %v27 = vmul.f32 %v25, 0.125
  %v28 = vmul.f32 %v26, %v26
  %v29 = vsub.f32 %v27, %v28
  %v31 = vperm.slane %v26, 0
  %v33 = vsub.f32 %v23, %v31
  %v34 = vadd.f32 %v29, 1e-05
  %v35 = vrsqrt.pop %v34
  %v36 = vmul.f32 %v35, %v34
  %v37 = vmul.f32 %v36, %v35
  %v38 = vmul.f32 0.5, %v37
  %v39 = vsub.f32 1.5, %v38
  %v40 = vmul.f32 %v35, %v39
  %vm41 = vweird.f32 %v34
  %vm42 = vweird.f32 %v35
  %vm43 = vmor %vm41, %vm42
  %v44 = vsel %vm43, %v35, %v40
  %v46 = vperm.slane %v44, 0
  %v48 = vmul.f32 %v33, %v46
  %v49 = vld [vmem:[%s3] sm:$0xff]
  %v50 = vld [vmem:[%s4] sm:$0x1]
  %v51 = vld [vmem:[%s5] sm:$0x1]
  %v52 = vmul.f32 %v50, 0.125
  %v53 = vmul.f32 %v51, 0.125
  %v54 = vmul.f32 %v52, %v52
  %v55 = vsub.f32 %v53, %v54
  %v57 = vperm.slane %v52, 0
  %v59 = vsub.f32 %v49, %v57
  %v60 = vadd.f32 %v55, 1e-05
  %v61 = vrsqrt.pop %v60
  %v62 = vmul.f32 %v61, %v60
  %v63 = vmul.f32 %v62, %v61
  %v64 = vmul.f32 0.5, %v63
  %v65 = vsub.f32 1.5, %v64
  %v66 = vmul.f32 %v61, %v65
  %vm67 = vweird.f32 %v60
  %vm68 = vweird.f32 %v61
  %vm69 = vmor %vm67, %vm68
  %v70 = vsel %vm69, %v61, %v66
  %v72 = vperm.slane %v70, 0
  %v74 = vmul.f32 %v59, %v72
  %v75 = vadd.f32 %v48, %v74
  %v76 = vmax.f32 %v75, 0.0
  %v77 = vpack.c.bf16 %v76, %v76
  %78 = vst [vmem:[%s6] sm:$0xf] %v77
  // Predicated region
  $region26: #{resnet_encoder_forward.35} parent=0 // pred_check
    _
  $region27: #{resnet_encoder_forward.35} parent=0 // pred_check_branch
    %80 = sbr.rel (0) target = $region29
  $region28: #{resnet_encoder_forward.35} parent=0 // pred_region
    _
  $region29: #{resnet_encoder_forward.35} parent=0 // pred_fallthru
    _
  // Predicated region
  $region30: #{resnet_encoder_forward.35} parent=0 // pred_check
    _
  $region31: #{resnet_encoder_forward.35} parent=0 // pred_check_branch
    %82 = sbr.rel (0) target = $region33
  $region32: #{resnet_encoder_forward.35} parent=0 // pred_region
    _
  $region33: #{resnet_encoder_forward.35} parent=0 // pred_fallthru
    _

// kernel: resnet_encoder_forward.32
$region0: #{resnet_encoder_forward.32}
  #allocation0 [shape = 'u32[]', space=smem, size = 0x4, offset = 0x4, fixed_abs, tag = 'smem constant byte address 0x4 - core index']
  #allocation1 [shape = 'u32[72,128]{1,0:T(1,128)}', space=vmem, size = 0x9000, scoped, tag = 'internal scratch']
  %s0 = inlined_call_operand.vmem [shape: bf16[8,640], index: 0, kind: input, shape index: {}]
  %s1 = inlined_call_operand.vmem [shape: bf16[640,128], index: 1, kind: input, shape index: {}]
  %s2 = inlined_call_operand.vmem [shape: bf16[640,128], index: 2, kind: input, shape index: {}]
  %s3 = inlined_call_operand.vmem [shape: f32[8,128], index: 3, kind: output, shape index: {0}]
  %s4 = inlined_call_operand.vmem [shape: f32[8,128], index: 4, kind: output, shape index: {1}]
  %s5 = inlined_call_operand.vmem [shape: f32[1,128], index: 5, kind: output, shape index: {2}]
  %s6 = inlined_call_operand.vmem [shape: f32[1,128], index: 6, kind: output, shape index: {3}]
  %s7 = inlined_call_operand.vmem [shape: f32[1,128], index: 7, kind: output, shape index: {4}]
  %s8 = inlined_call_operand.vmem [shape: f32[1,128], index: 8, kind: output, shape index: {5}]
  %9 = xla_tuple %s3, %s4, %s5, %s6, %s7, %s8
  %s10 = sld [smem:[#allocation0]]
  $region66: #{resnet_encoder_forward.32} parent=0
    _
  %s12 = ssub.s32 1, %s10
  %s13 = scalar_select 0, %s12, %s10
  // Predicated region
  $region2: #{resnet_encoder_forward.32} parent=0 // pred_check
    _
  $region3: #{resnet_encoder_forward.32} parent=0 // pred_check_branch
    %15 = sbr.rel (0) target = $region5
  $region4: #{resnet_encoder_forward.32} parent=0 // pred_region
    _
  $region5: #{resnet_encoder_forward.32} parent=0 // pred_fallthru
    _
  // Predicated region
  $region6: #{resnet_encoder_forward.32} parent=0 // pred_check
    _
  $region7: #{resnet_encoder_forward.32} parent=0 // pred_check_branch
    %17 = sbr.rel (0) target = $region9
  $region8: #{resnet_encoder_forward.32} parent=0 // pred_region
    _
  $region9: #{resnet_encoder_forward.32} parent=0 // pred_fallthru
    _
  // Predicated region
  $region10: #{resnet_encoder_forward.32} parent=0 // pred_check
    _
  $region11: #{resnet_encoder_forward.32} parent=0 // pred_check_branch
    %19 = sbr.rel (0) target = $region13
  $region12: #{resnet_encoder_forward.32} parent=0 // pred_region
    _
  $region13: #{resnet_encoder_forward.32} parent=0 // pred_fallthru
    _
  %p20 = scmp.eq.s32.totalorder 0, 0
  // Predicated region
  $region14: #{resnet_encoder_forward.32} parent=0 // pred_check
    %p21 = pneg %p20
  $region15: #{resnet_encoder_forward.32} parent=0 // pred_check_branch
    %23 = sbr.rel (%p21) target = $region17
  $region16: #{resnet_encoder_forward.32} parent=0 // pred_region
    %24 = vst [vmem:[%s5] sm:$0x1] 0.0
    %25 = vst [vmem:[%s6] sm:$0x1] 0.0
    %26 = vst [vmem:[%s7] sm:$0x1] 0.0
    %27 = vst [vmem:[%s8] sm:$0x1] 0.0
  $region17: #{resnet_encoder_forward.32} parent=0 // pred_fallthru
    _
  %v28 = vld [vmem:[%s0] sm:$0xff]
  %v29 = vld [vmem:[%s0 + $0x8] sm:$0xff]
  %v30 = vld [vmem:[%s0 + $0x10] sm:$0xf]
  %v31 = vld [vmem:[%s1] sm:$0xf]
  %v32 = vld [vmem:[%s1 + $0x4] sm:$0xf]
  %v33 = vld [vmem:[%s1 + $0x8] sm:$0xf]
  %v34 = vld [vmem:[%s1 + $0xc] sm:$0xf]
  %v35 = vld [vmem:[%s1 + $0x10] sm:$0xf]
  %v36 = vld [vmem:[%s1 + $0x14] sm:$0xf]
  %v37 = vld [vmem:[%s1 + $0x18] sm:$0xf]
  %v38 = vld [vmem:[%s1 + $0x1c] sm:$0xf]
  %v39 = vld [vmem:[%s1 + $0x20] sm:$0xf]
  %v40 = vld [vmem:[%s1 + $0x24] sm:$0xf]
  %v41 = vld [vmem:[%s1 + $0x28] sm:$0xf]
  %v42 = vld [vmem:[%s1 + $0x2c] sm:$0xf]
  %v43 = vld [vmem:[%s1 + $0x30] sm:$0xf]
  %v44 = vld [vmem:[%s1 + $0x34] sm:$0xf]
  %v45 = vld [vmem:[%s1 + $0x38] sm:$0xf]
  %v46 = vld [vmem:[%s1 + $0x3c] sm:$0xf]
  %v47 = vld [vmem:[%s1 + $0x40] sm:$0xf]
  %v48 = vld [vmem:[%s1 + $0x44] sm:$0xf]
  %v49 = vld [vmem:[%s1 + $0x48] sm:$0xf]
  %v50 = vld [vmem:[%s1 + $0x4c] sm:$0xf]
  %v51 = vld [vmem:[%s1 + $0x50] sm:$0xf]
  %v52 = vld [vmem:[%s1 + $0x54] sm:$0xf]
  %v53 = vld [vmem:[%s1 + $0x58] sm:$0xf]
  %v54 = vld [vmem:[%s1 + $0x5c] sm:$0xf]
  %v55 = vld [vmem:[%s1 + $0x60] sm:$0xf]
  %v56 = vld [vmem:[%s1 + $0x64] sm:$0xf]
  %v57 = vld [vmem:[%s1 + $0x68] sm:$0xf]
  %v58 = vld [vmem:[%s1 + $0x6c] sm:$0xf]
  %v59 = vld [vmem:[%s1 + $0x70] sm:$0xf]
  %v60 = vld [vmem:[%s1 + $0x74] sm:$0xf]
  %v61 = vld [vmem:[%s1 + $0x78] sm:$0xf]
  %v62 = vld [vmem:[%s1 + $0x7c] sm:$0xf]
  %v63 = vld [vmem:[%s1 + $0x80] sm:$0xf]
  %v64 = vld [vmem:[%s1 + $0x84] sm:$0xf]
  %v65 = vld [vmem:[%s1 + $0x88] sm:$0xf]
  %v66 = vld [vmem:[%s1 + $0x8c] sm:$0xf]
  %v67 = vld [vmem:[%s1 + $0x90] sm:$0xf]
  %v68 = vld [vmem:[%s1 + $0x94] sm:$0xf]
  %v69 = vld [vmem:[%s1 + $0x98] sm:$0xf]
  %v70 = vld [vmem:[%s1 + $0x9c] sm:$0xf]
  %v71 = vld [vmem:[%s1 + $0xa0] sm:$0xf]
  %v72 = vld [vmem:[%s1 + $0xa4] sm:$0xf]
  %v73 = vld [vmem:[%s1 + $0xa8] sm:$0xf]
  %v74 = vld [vmem:[%s1 + $0xac] sm:$0xf]
  %v75 = vld [vmem:[%s1 + $0xb0] sm:$0xf]
  %v76 = vld [vmem:[%s1 + $0xb4] sm:$0xf]
  %v77 = vld [vmem:[%s1 + $0xb8] sm:$0xf]
  %v78 = vld [vmem:[%s1 + $0xbc] sm:$0xf]
  %v79 = vld [vmem:[%s1 + $0xc0] sm:$0xf]
  %v80 = vld [vmem:[%s1 + $0xc4] sm:$0xf]
  %v81 = vld [vmem:[%s1 + $0xc8] sm:$0xf]
  %v82 = vld [vmem:[%s1 + $0xcc] sm:$0xf]
  %v83 = vld [vmem:[%s1 + $0xd0] sm:$0xf]
  %v84 = vld [vmem:[%s1 + $0xd4] sm:$0xf]
  %v85 = vld [vmem:[%s1 + $0xd8] sm:$0xf]
  %v86 = vld [vmem:[%s1 + $0xdc] sm:$0xf]
  %v87 = vld [vmem:[%s1 + $0xe0] sm:$0xf]
  %v88 = vld [vmem:[%s1 + $0xe4] sm:$0xf]
  %v89 = vld [vmem:[%s1 + $0xe8] sm:$0xf]
  %v90 = vld [vmem:[%s1 + $0xec] sm:$0xf]
  %v91 = vld [vmem:[%s1 + $0xf0] sm:$0xf]
  %v92 = vld [vmem:[%s1 + $0xf4] sm:$0xf]
  %v93 = vld [vmem:[%s1 + $0xf8] sm:$0xf]
  %v94 = vld [vmem:[%s1 + $0xfc] sm:$0xf]
  %v95 = vld [vmem:[%s1 + $0x100] sm:$0xf]
  %v96 = vld [vmem:[%s1 + $0x104] sm:$0xf]
  %v97 = vld [vmem:[%s1 + $0x108] sm:$0xf]
  %v98 = vld [vmem:[%s1 + $0x10c] sm:$0xf]
  %v99 = vld [vmem:[%s1 + $0x110] sm:$0xf]
  %v100 = vld [vmem:[%s1 + $0x114] sm:$0xf]
  %v101 = vld [vmem:[%s1 + $0x118] sm:$0xf]
  %v102 = vld [vmem:[%s1 + $0x11c] sm:$0xf]
  %v103 = vld [vmem:[%s1 + $0x120] sm:$0xf]
  %v104 = vld [vmem:[%s1 + $0x124] sm:$0xf]
  %v105 = vld [vmem:[%s1 + $0x128] sm:$0xf]
  %v106 = vld [vmem:[%s1 + $0x12c] sm:$0xf]
  %v107 = vld [vmem:[%s1 + $0x130] sm:$0xf]
  %v108 = vld [vmem:[%s1 + $0x134] sm:$0xf]
  %v109 = vld [vmem:[%s1 + $0x138] sm:$0xf]
  %v110 = vld [vmem:[%s1 + $0x13c] sm:$0xf]
  %v114 = vunpack.c.l.b16 %v28
  %v115 = vunpack.c.h.b16 %v28
  %v116 = vunpack.c.l.b16 %v29
  %v117 = vunpack.c.h.b16 %v29
  %v118 = vunpack.c.l.b16 %v30
  %v119 = vpack.c.b16 %v114, %v114
  %v120 = vpack.c.b16 %v115, %v115
  %v121 = vpack.c.b16 %v116, %v116
  %v122 = vpack.c.b16 %v117, %v117
  %v123 = vpack.c.b16 %v118, %v118
  %v209 = vunpack.c.l.b16 %v31
  %v210 = vunpack.c.l.b16 %v32
  %v211 = vunpack.c.l.b16 %v33
  %v212 = vunpack.c.l.b16 %v34
  %v213 = vunpack.c.l.b16 %v35
  %v214 = vunpack.c.l.b16 %v36
  %v215 = vunpack.c.l.b16 %v37
  %v216 = vunpack.c.l.b16 %v38
  %v217 = vunpack.c.l.b16 %v39
  %v218 = vunpack.c.l.b16 %v40
  %v219 = vunpack.c.l.b16 %v41
  %v220 = vunpack.c.l.b16 %v42
  %v221 = vunpack.c.l.b16 %v43
  %v222 = vunpack.c.l.b16 %v44
  %v223 = vunpack.c.l.b16 %v45
  %v224 = vunpack.c.l.b16 %v46
  %v225 = vunpack.c.l.b16 %v47
  %v226 = vunpack.c.l.b16 %v48
  %v227 = vunpack.c.l.b16 %v49
  %v228 = vunpack.c.l.b16 %v50
  %v229 = vunpack.c.l.b16 %v51
  %v230 = vunpack.c.l.b16 %v52
  %v231 = vunpack.c.l.b16 %v53
  %v232 = vunpack.c.l.b16 %v54
  %v233 = vunpack.c.l.b16 %v55
  %v234 = vunpack.c.l.b16 %v56
  %v235 = vunpack.c.l.b16 %v57
  %v236 = vunpack.c.l.b16 %v58
  %v237 = vunpack.c.l.b16 %v59
  %v238 = vunpack.c.l.b16 %v60
  %v239 = vunpack.c.l.b16 %v61
  %v240 = vunpack.c.l.b16 %v62
  %v241 = vunpack.c.l.b16 %v63
  %v242 = vunpack.c.l.b16 %v64
  %v243 = vunpack.c.l.b16 %v65
  %v244 = vunpack.c.l.b16 %v66
  %v245 = vunpack.c.l.b16 %v67
  %v246 = vunpack.c.l.b16 %v68
  %v247 = vunpack.c.l.b16 %v69
  %v248 = vunpack.c.l.b16 %v70
  %v249 = vunpack.c.l.b16 %v71
  %v250 = vunpack.c.l.b16 %v72
  %v251 = vunpack.c.l.b16 %v73
  %v252 = vunpack.c.l.b16 %v74
  %v253 = vunpack.c.l.b16 %v75
  %v254 = vunpack.c.l.b16 %v76
  %v255 = vunpack.c.l.b16 %v77
  %v256 = vunpack.c.l.b16 %v78
  %v257 = vunpack.c.l.b16 %v79
  %v258 = vunpack.c.l.b16 %v80
  %v259 = vunpack.c.l.b16 %v81
  %v260 = vunpack.c.l.b16 %v82
  %v261 = vunpack.c.l.b16 %v83
  %v262 = vunpack.c.l.b16 %v84
  %v263 = vunpack.c.l.b16 %v85
  %v264 = vunpack.c.l.b16 %v86
  %v265 = vunpack.c.l.b16 %v87
  %v266 = vunpack.c.l.b16 %v88
  %v267 = vunpack.c.l.b16 %v89
  %v268 = vunpack.c.l.b16 %v90
  %v269 = vunpack.c.l.b16 %v91
  %v270 = vunpack.c.l.b16 %v92
  %v271 = vunpack.c.l.b16 %v93
  %v272 = vunpack.c.l.b16 %v94
  %v273 = vunpack.c.l.b16 %v95
  %v274 = vunpack.c.l.b16 %v96
  %v275 = vunpack.c.l.b16 %v97
  %v276 = vunpack.c.l.b16 %v98
  %v277 = vunpack.c.l.b16 %v99
  %v278 = vunpack.c.l.b16 %v100
  %v279 = vunpack.c.l.b16 %v101
  %v280 = vunpack.c.l.b16 %v102
  %v281 = vunpack.c.l.b16 %v103
  %v282 = vunpack.c.l.b16 %v104
  %v283 = vunpack.c.l.b16 %v105
  %v284 = vunpack.c.l.b16 %v106
  %v285 = vunpack.c.l.b16 %v107
  %v286 = vunpack.c.l.b16 %v108
  %v287 = vunpack.c.l.b16 %v109
  %v288 = vunpack.c.l.b16 %v110
  %v289 = vpack.c.b16 %v210, %v209
  %v290 = vpack.c.b16 %v212, %v211
  %v291 = vpack.c.b16 %v214, %v213
  %v292 = vpack.c.b16 %v216, %v215
  %v293 = vpack.c.b16 %v218, %v217
  %v294 = vpack.c.b16 %v220, %v219
  %v295 = vpack.c.b16 %v222, %v221
  %v296 = vpack.c.b16 %v224, %v223
  %v297 = vpack.c.b16 %v226, %v225
  %v298 = vpack.c.b16 %v228, %v227
  %v299 = vpack.c.b16 %v230, %v229
  %v300 = vpack.c.b16 %v232, %v231
  %v301 = vpack.c.b16 %v234, %v233
  %v302 = vpack.c.b16 %v236, %v235
  %v303 = vpack.c.b16 %v238, %v237
  %v304 = vpack.c.b16 %v240, %v239
  %v305 = vpack.c.b16 %v242, %v241
  %v306 = vpack.c.b16 %v244, %v243
  %v307 = vpack.c.b16 %v246, %v245
  %v308 = vpack.c.b16 %v248, %v247
  %v309 = vpack.c.b16 %v250, %v249
  %v310 = vpack.c.b16 %v252, %v251
  %v311 = vpack.c.b16 %v254, %v253
  %v312 = vpack.c.b16 %v256, %v255
  %v313 = vpack.c.b16 %v258, %v257
  %v314 = vpack.c.b16 %v260, %v259
  %v315 = vpack.c.b16 %v262, %v261
  %v316 = vpack.c.b16 %v264, %v263
  %v317 = vpack.c.b16 %v266, %v265
  %v318 = vpack.c.b16 %v268, %v267
  %v319 = vpack.c.b16 %v270, %v269
  %v320 = vpack.c.b16 %v272, %v271
  %v321 = vpack.c.b16 %v274, %v273
  %v322 = vpack.c.b16 %v276, %v275
  %v323 = vpack.c.b16 %v278, %v277
  %v324 = vpack.c.b16 %v280, %v279
  %v325 = vpack.c.b16 %v282, %v281
  %v326 = vpack.c.b16 %v284, %v283
  %v327 = vpack.c.b16 %v286, %v285
  %v328 = vpack.c.b16 %v288, %v287
  %369 = vmatpush.bf16.msra.mxu0 %v296
  %370 = vmatpush.bf16.msra.mxu0 %v295
  %371 = vmatpush.bf16.msra.mxu0 %v294
  %372 = vmatpush.bf16.msra.mxu0 %v293
  %373 = vmatpush.bf16.msra.mxu0 %v292
  %374 = vmatpush.bf16.msra.mxu0 %v291
  %375 = vmatpush.bf16.msra.mxu0 %v290
  %376 = vmatpush.bf16.msra.mxu0 %v289
  %377 = vmatmul.bf16.gmra.mxu0 %v119
  %v378 = vpop.f32.mrf.mxu0
  %v379 = vadd.f32 0.0, %v378
  %v380 = vpop.f32.mrf.mxu0
  %381 = vdwg.mxu0
  %382 = vmatpush.bf16.msra.mxu0 %v304
  %383 = vmatpush.bf16.msra.mxu0 %v303
  %384 = vmatpush.bf16.msra.mxu0 %v302
  %385 = vmatpush.bf16.msra.mxu0 %v301
  %386 = vmatpush.bf16.msra.mxu0 %v300
  %387 = vmatpush.bf16.msra.mxu0 %v299
  %388 = vmatpush.bf16.msra.mxu0 %v298
  %389 = vmatpush.bf16.msra.mxu0 %v297
  %390 = vmatmul.bf16.gmra.mxu0 %v120
  %v391 = vpop.f32.mrf.mxu0
  %v392 = vadd.f32 %v379, %v391
  %v393 = vpop.f32.mrf.mxu0
  %394 = vdwg.mxu0
  %395 = vmatpush.bf16.msra.mxu0 %v312
  %396 = vmatpush.bf16.msra.mxu0 %v311
  %397 = vmatpush.bf16.msra.mxu0 %v310
  %398 = vmatpush.bf16.msra.mxu0 %v309
  %399 = vmatpush.bf16.msra.mxu0 %v308
  %400 = vmatpush.bf16.msra.mxu0 %v307
  %401 = vmatpush.bf16.msra.mxu0 %v306
  %402 = vmatpush.bf16.msra.mxu0 %v305
  %403 = vmatmul.bf16.gmra.mxu0 %v121
  %v404 = vpop.f32.mrf.mxu0
  %v405 = vadd.f32 %v392, %v404
  %v406 = vpop.f32.mrf.mxu0
  %407 = vdwg.mxu0
  %408 = vmatpush.bf16.msra.mxu0 %v320
  %409 = vmatpush.bf16.msra.mxu0 %v319
  %410 = vmatpush.bf16.msra.mxu0 %v318
  %411 = vmatpush.bf16.msra.mxu0 %v317
  %412 = vmatpush.bf16.msra.mxu0 %v316
  %413 = vmatpush.bf16.msra.mxu0 %v315
  %414 = vmatpush.bf16.msra.mxu0 %v314
  %415 = vmatpush.bf16.msra.mxu0 %v313
  %416 = vmatmul.bf16.gmra.mxu0 %v122
  %v417 = vpop.f32.mrf.mxu0
  %v418 = vadd.f32 %v405, %v417
  %v419 = vpop.f32.mrf.mxu0
  %420 = vdwg.mxu0
  %421 = vmatpush.bf16.msra.mxu0 %v328
  %422 = vmatpush.bf16.msra.mxu0 %v327
  %423 = vmatpush.bf16.msra.mxu0 %v326
  %424 = vmatpush.bf16.msra.mxu0 %v325
  %425 = vmatpush.bf16.msra.mxu0 %v324
  %426 = vmatpush.bf16.msra.mxu0 %v323
  %427 = vmatpush.bf16.msra.mxu0 %v322
  %428 = vmatpush.bf16.msra.mxu0 %v321
  %429 = vmatmul.bf16.gmra.mxu0 %v123
  %v430 = vpop.f32.mrf.mxu0
  %v431 = vadd.f32 %v418, %v430
  %v432 = vpop.f32.mrf.mxu0
  %433 = vdwg.mxu0
  %434 = vst [vmem:[%s3] sm:$0xff] %v431
  %v435 = vld [vmem:[%s5] sm:$0x1]
  %v436 = vrot.slane %v431, 4
  %v437 = vadd.f32 %v431, %v436
  %v438 = vrot.slane %v437, 2
  %v439 = vadd.f32 %v437, %v438
  %v440 = vrot.slane %v439, 1
  %v441 = vadd.f32 %v439, %v440
  %v442 = vadd.f32 %v435, %v441
  %443 = vst [vmem:[%s5] sm:$0x1] %v442
  %v444 = vld [vmem:[%s7] sm:$0x1]
  %v445 = vmul.f32 %v431, %v431
  %v446 = vrot.slane %v445, 4
  %v447 = vadd.f32 %v445, %v446
  %v448 = vrot.slane %v447, 2
  %v449 = vadd.f32 %v447, %v448
  %v450 = vrot.slane %v449, 1
  %v451 = vadd.f32 %v449, %v450
  %v452 = vadd.f32 %v444, %v451
  %453 = vst [vmem:[%s7] sm:$0x1] %v452
  %v454 = vld [vmem:[%s2] sm:$0xf]
  %v455 = vld [vmem:[%s2 + $0x4] sm:$0xf]
  %v456 = vld [vmem:[%s2 + $0x8] sm:$0xf]
  %v457 = vld [vmem:[%s2 + $0xc] sm:$0xf]
  %v458 = vld [vmem:[%s2 + $0x10] sm:$0xf]
  %v459 = vld [vmem:[%s2 + $0x14] sm:$0xf]
  %v460 = vld [vmem:[%s2 + $0x18] sm:$0xf]
  %v461 = vld [vmem:[%s2 + $0x1c] sm:$0xf]
  %v462 = vld [vmem:[%s2 + $0x20] sm:$0xf]
  %v463 = vld [vmem:[%s2 + $0x24] sm:$0xf]
  %v464 = vld [vmem:[%s2 + $0x28] sm:$0xf]
  %v465 = vld [vmem:[%s2 + $0x2c] sm:$0xf]
  %v466 = vld [vmem:[%s2 + $0x30] sm:$0xf]
  %v467 = vld [vmem:[%s2 + $0x34] sm:$0xf]
  %v468 = vld [vmem:[%s2 + $0x38] sm:$0xf]
  %v469 = vld [vmem:[%s2 + $0x3c] sm:$0xf]
  %v470 = vld [vmem:[%s2 + $0x40] sm:$0xf]
  %v471 = vld [vmem:[%s2 + $0x44] sm:$0xf]
  %v472 = vld [vmem:[%s2 + $0x48] sm:$0xf]
  %v473 = vld [vmem:[%s2 + $0x4c] sm:$0xf]
  %v474 = vld [vmem:[%s2 + $0x50] sm:$0xf]
  %v475 = vld [vmem:[%s2 + $0x54] sm:$0xf]
  %v476 = vld [vmem:[%s2 + $0x58] sm:$0xf]
  %v477 = vld [vmem:[%s2 + $0x5c] sm:$0xf]
  %v478 = vld [vmem:[%s2 + $0x60] sm:$0xf]
  %v479 = vld [vmem:[%s2 + $0x64] sm:$0xf]
  %v480 = vld [vmem:[%s2 + $0x68] sm:$0xf]
  %v481 = vld [vmem:[%s2 + $0x6c] sm:$0xf]
  %v482 = vld [vmem:[%s2 + $0x70] sm:$0xf]
  %v483 = vld [vmem:[%s2 + $0x74] sm:$0xf]
  %v484 = vld [vmem:[%s2 + $0x78] sm:$0xf]
  %v485 = vld [vmem:[%s2 + $0x7c] sm:$0xf]
  %v486 = vld [vmem:[%s2 + $0x80] sm:$0xf]
  %v487 = vld [vmem:[%s2 + $0x84] sm:$0xf]
  %v488 = vld [vmem:[%s2 + $0x88] sm:$0xf]
  %v489 = vld [vmem:[%s2 + $0x8c] sm:$0xf]
  %v490 = vld [vmem:[%s2 + $0x90] sm:$0xf]
  %v491 = vld [vmem:[%s2 + $0x94] sm:$0xf]
  %v492 = vld [vmem:[%s2 + $0x98] sm:$0xf]
  %v493 = vld [vmem:[%s2 + $0x9c] sm:$0xf]
  %v494 = vld [vmem:[%s2 + $0xa0] sm:$0xf]
  %v495 = vld [vmem:[%s2 + $0xa4] sm:$0xf]
  %v496 = vld [vmem:[%s2 + $0xa8] sm:$0xf]
  %v497 = vld [vmem:[%s2 + $0xac] sm:$0xf]
  %v498 = vld [vmem:[%s2 + $0xb0] sm:$0xf]
  %v499 = vld [vmem:[%s2 + $0xb4] sm:$0xf]
  %v500 = vld [vmem:[%s2 + $0xb8] sm:$0xf]
  %v501 = vld [vmem:[%s2 + $0xbc] sm:$0xf]
  %v502 = vld [vmem:[%s2 + $0xc0] sm:$0xf]
  %v503 = vld [vmem:[%s2 + $0xc4] sm:$0xf]
  %v504 = vld [vmem:[%s2 + $0xc8] sm:$0xf]
  %v505 = vld [vmem:[%s2 + $0xcc] sm:$0xf]
  %v506 = vld [vmem:[%s2 + $0xd0] sm:$0xf]
  %v507 = vld [vmem:[%s2 + $0xd4] sm:$0xf]
  %v508 = vld [vmem:[%s2 + $0xd8] sm:$0xf]
  %v509 = vld [vmem:[%s2 + $0xdc] sm:$0xf]
  %v510 = vld [vmem:[%s2 + $0xe0] sm:$0xf]
  %v511 = vld [vmem:[%s2 + $0xe4] sm:$0xf]
  %v512 = vld [vmem:[%s2 + $0xe8] sm:$0xf]
  %v513 = vld [vmem:[%s2 + $0xec] sm:$0xf]
  %v514 = vld [vmem:[%s2 + $0xf0] sm:$0xf]
  %v515 = vld [vmem:[%s2 + $0xf4] sm:$0xf]
  %v516 = vld [vmem:[%s2 + $0xf8] sm:$0xf]
  %v517 = vld [vmem:[%s2 + $0xfc] sm:$0xf]
  %v518 = vld [vmem:[%s2 + $0x100] sm:$0xf]
  %v519 = vld [vmem:[%s2 + $0x104] sm:$0xf]
  %v520 = vld [vmem:[%s2 + $0x108] sm:$0xf]
  %v521 = vld [vmem:[%s2 + $0x10c] sm:$0xf]
  %v522 = vld [vmem:[%s2 + $0x110] sm:$0xf]
  %v523 = vld [vmem:[%s2 + $0x114] sm:$0xf]
  %v524 = vld [vmem:[%s2 + $0x118] sm:$0xf]
  %v525 = vld [vmem:[%s2 + $0x11c] sm:$0xf]
  %v526 = vld [vmem:[%s2 + $0x120] sm:$0xf]
  %v527 = vld [vmem:[%s2 + $0x124] sm:$0xf]
  %v528 = vld [vmem:[%s2 + $0x128] sm:$0xf]
  %v529 = vld [vmem:[%s2 + $0x12c] sm:$0xf]
  %v530 = vld [vmem:[%s2 + $0x130] sm:$0xf]
  %v531 = vld [vmem:[%s2 + $0x134] sm:$0xf]
  %v532 = vld [vmem:[%s2 + $0x138] sm:$0xf]
  %v533 = vld [vmem:[%s2 + $0x13c] sm:$0xf]
  %v614 = vunpack.c.l.b16 %v454
  %v615 = vunpack.c.l.b16 %v455
  %v616 = vunpack.c.l.b16 %v456
  %v617 = vunpack.c.l.b16 %v457
  %v618 = vunpack.c.l.b16 %v458
  %v619 = vunpack.c.l.b16 %v459
  %v620 = vunpack.c.l.b16 %v460
  %v621 = vunpack.c.l.b16 %v461
  %v622 = vunpack.c.l.b16 %v462
  %v623 = vunpack.c.l.b16 %v463
  %v624 = vunpack.c.l.b16 %v464
  %v625 = vunpack.c.l.b16 %v465
  %v626 = vunpack.c.l.b16 %v466
  %v627 = vunpack.c.l.b16 %v467
  %v628 = vunpack.c.l.b16 %v468
  %v629 = vunpack.c.l.b16 %v469
  %v630 = vunpack.c.l.b16 %v470
  %v631 = vunpack.c.l.b16 %v471
  %v632 = vunpack.c.l.b16 %v472
  %v633 = vunpack.c.l.b16 %v473
  %v634 = vunpack.c.l.b16 %v474
  %v635 = vunpack.c.l.b16 %v475
  %v636 = vunpack.c.l.b16 %v476
  %v637 = vunpack.c.l.b16 %v477
  %v638 = vunpack.c.l.b16 %v478
  %v639 = vunpack.c.l.b16 %v479
  %v640 = vunpack.c.l.b16 %v480
  %v641 = vunpack.c.l.b16 %v481
  %v642 = vunpack.c.l.b16 %v482
  %v643 = vunpack.c.l.b16 %v483
  %v644 = vunpack.c.l.b16 %v484
  %v645 = vunpack.c.l.b16 %v485
  %v646 = vunpack.c.l.b16 %v486
  %v647 = vunpack.c.l.b16 %v487
  %v648 = vunpack.c.l.b16 %v488
  %v649 = vunpack.c.l.b16 %v489
  %v650 = vunpack.c.l.b16 %v490
  %v651 = vunpack.c.l.b16 %v491
  %v652 = vunpack.c.l.b16 %v492
  %v653 = vunpack.c.l.b16 %v493
  %v654 = vunpack.c.l.b16 %v494
  %v655 = vunpack.c.l.b16 %v495
  %v656 = vunpack.c.l.b16 %v496
  %v657 = vunpack.c.l.b16 %v497
  %v658 = vunpack.c.l.b16 %v498
  %v659 = vunpack.c.l.b16 %v499
  %v660 = vunpack.c.l.b16 %v500
  %v661 = vunpack.c.l.b16 %v501
  %v662 = vunpack.c.l.b16 %v502
  %v663 = vunpack.c.l.b16 %v503
  %v664 = vunpack.c.l.b16 %v504
  %v665 = vunpack.c.l.b16 %v505
  %v666 = vunpack.c.l.b16 %v506
  %v667 = vunpack.c.l.b16 %v507
  %v668 = vunpack.c.l.b16 %v508
  %v669 = vunpack.c.l.b16 %v509
  %v670 = vunpack.c.l.b16 %v510
  %v671 = vunpack.c.l.b16 %v511
  %v672 = vunpack.c.l.b16 %v512
  %v673 = vunpack.c.l.b16 %v513
  %v674 = vunpack.c.l.b16 %v514
  %v675 = vunpack.c.l.b16 %v515
  %v676 = vunpack.c.l.b16 %v516
  %v677 = vunpack.c.l.b16 %v517
  %v678 = vunpack.c.l.b16 %v518
  %v679 = vunpack.c.l.b16 %v519
  %v680 = vunpack.c.l.b16 %v520
  %v681 = vunpack.c.l.b16 %v521
  %v682 = vunpack.c.l.b16 %v522
  %v683 = vunpack.c.l.b16 %v523
  %v684 = vunpack.c.l.b16 %v524
  %v685 = vunpack.c.l.b16 %v525
  %v686 = vunpack.c.l.b16 %v526
  %v687 = vunpack.c.l.b16 %v527
  %v688 = vunpack.c.l.b16 %v528
  %v689 = vunpack.c.l.b16 %v529
  %v690 = vunpack.c.l.b16 %v530
  %v691 = vunpack.c.l.b16 %v531
  %v692 = vunpack.c.l.b16 %v532
  %v693 = vunpack.c.l.b16 %v533
  %v694 = vpack.c.b16 %v615, %v614
  %v695 = vpack.c.b16 %v617, %v616
  %v696 = vpack.c.b16 %v619, %v618
  %v697 = vpack.c.b16 %v621, %v620
  %v698 = vpack.c.b16 %v623, %v622
  %v699 = vpack.c.b16 %v625, %v624
  %v700 = vpack.c.b16 %v627, %v626
  %v701 = vpack.c.b16 %v629, %v628
  %v702 = vpack.c.b16 %v631, %v630
  %v703 = vpack.c.b16 %v633, %v632
  %v704 = vpack.c.b16 %v635, %v634
  %v705 = vpack.c.b16 %v637, %v636
  %v706 = vpack.c.b16 %v639, %v638
  %v707 = vpack.c.b16 %v641, %v640
  %v708 = vpack.c.b16 %v643, %v642
  %v709 = vpack.c.b16 %v645, %v644
  %v710 = vpack.c.b16 %v647, %v646
  %v711 = vpack.c.b16 %v649, %v648
  %v712 = vpack.c.b16 %v651, %v650
  %v713 = vpack.c.b16 %v653, %v652
  %v714 = vpack.c.b16 %v655, %v654
  %v715 = vpack.c.b16 %v657, %v656
  %v716 = vpack.c.b16 %v659, %v658
  %v717 = vpack.c.b16 %v661, %v660
  %v718 = vpack.c.b16 %v663, %v662
  %v719 = vpack.c.b16 %v665, %v664
  %v720 = vpack.c.b16 %v667, %v666
  %v721 = vpack.c.b16 %v669, %v668
  %v722 = vpack.c.b16 %v671, %v670
  %v723 = vpack.c.b16 %v673, %v672
  %v724 = vpack.c.b16 %v675, %v674
  %v725 = vpack.c.b16 %v677, %v676
  %v726 = vpack.c.b16 %v679, %v678
  %v727 = vpack.c.b16 %v681, %v680
  %v728 = vpack.c.b16 %v683, %v682
  %v729 = vpack.c.b16 %v685, %v684
  %v730 = vpack.c.b16 %v687, %v686
  %v731 = vpack.c.b16 %v689, %v688
  %v732 = vpack.c.b16 %v691, %v690
  %v733 = vpack.c.b16 %v693, %v692
  %774 = vmatpush.bf16.msra.mxu0 %v701
  %775 = vmatpush.bf16.msra.mxu0 %v700
  %776 = vmatpush.bf16.msra.mxu0 %v699
  %777 = vmatpush.bf16.msra.mxu0 %v698
  %778 = vmatpush.bf16.msra.mxu0 %v697
  %779 = vmatpush.bf16.msra.mxu0 %v696
  %780 = vmatpush.bf16.msra.mxu0 %v695
  %781 = vmatpush.bf16.msra.mxu0 %v694
  %782 = vmatmul.bf16.gmra.mxu0 %v119
  %v783 = vpop.f32.mrf.mxu0
  %v784 = vadd.f32 0.0, %v783
  %v785 = vpop.f32.mrf.mxu0
  %786 = vdwg.mxu0
  %787 = vmatpush.bf16.msra.mxu0 %v709
  %788 = vmatpush.bf16.msra.mxu0 %v708
  %789 = vmatpush.bf16.msra.mxu0 %v707
  %790 = vmatpush.bf16.msra.mxu0 %v706
  %791 = vmatpush.bf16.msra.mxu0 %v705
  %792 = vmatpush.bf16.msra.mxu0 %v704
  %793 = vmatpush.bf16.msra.mxu0 %v703
  %794 = vmatpush.bf16.msra.mxu0 %v702
  %795 = vmatmul.bf16.gmra.mxu0 %v120
  %v796 = vpop.f32.mrf.mxu0
  %v797 = vadd.f32 %v784, %v796
  %v798 = vpop.f32.mrf.mxu0
  %799 = vdwg.mxu0
  %800 = vmatpush.bf16.msra.mxu0 %v717
  %801 = vmatpush.bf16.msra.mxu0 %v716
  %802 = vmatpush.bf16.msra.mxu0 %v715
  %803 = vmatpush.bf16.msra.mxu0 %v714
  %804 = vmatpush.bf16.msra.mxu0 %v713
  %805 = vmatpush.bf16.msra.mxu0 %v712
  %806 = vmatpush.bf16.msra.mxu0 %v711
  %807 = vmatpush.bf16.msra.mxu0 %v710
  %808 = vmatmul.bf16.gmra.mxu0 %v121
  %v809 = vpop.f32.mrf.mxu0
  %v810 = vadd.f32 %v797, %v809
  %v811 = vpop.f32.mrf.mxu0
  %812 = vdwg.mxu0
  %813 = vmatpush.bf16.msra.mxu0 %v725
  %814 = vmatpush.bf16.msra.mxu0 %v724
  %815 = vmatpush.bf16.msra.mxu0 %v723
  %816 = vmatpush.bf16.msra.mxu0 %v722
  %817 = vmatpush.bf16.msra.mxu0 %v721
  %818 = vmatpush.bf16.msra.mxu0 %v720
  %819 = vmatpush.bf16.msra.mxu0 %v719
  %820 = vmatpush.bf16.msra.mxu0 %v718
  %821 = vmatmul.bf16.gmra.mxu0 %v122
  %v822 = vpop.f32.mrf.mxu0
  %v823 = vadd.f32 %v810, %v822
  %v824 = vpop.f32.mrf.mxu0
  %825 = vdwg.mxu0
  %826 = vmatpush.bf16.msra.mxu0 %v733
  %827 = vmatpush.bf16.msra.mxu0 %v732
  %828 = vmatpush.bf16.msra.mxu0 %v731
  %829 = vmatpush.bf16.msra.mxu0 %v730
  %830 = vmatpush.bf16.msra.mxu0 %v729
  %831 = vmatpush.bf16.msra.mxu0 %v728
  %832 = vmatpush.bf16.msra.mxu0 %v727
  %833 = vmatpush.bf16.msra.mxu0 %v726
  %834 = vmatmul.bf16.gmra.mxu0 %v123
  %v835 = vpop.f32.mrf.mxu0
  %v836 = vadd.f32 %v823, %v835
  %v837 = vpop.f32.mrf.mxu0
  %838 = vdwg.mxu0
  %839 = vst [vmem:[%s4] sm:$0xff] %v836
  %v840 = vld [vmem:[%s6] sm:$0x1]
  %v841 = vrot.slane %v836, 4
  %v842 = vadd.f32 %v836, %v841
  %v843 = vrot.slane %v842, 2
  %v844 = vadd.f32 %v842, %v843
  %v845 = vrot.slane %v844, 1
  %v846 = vadd.f32 %v844, %v845
  %v847 = vadd.f32 %v840, %v846
  %848 = vst [vmem:[%s6] sm:$0x1] %v847
  %v849 = vld [vmem:[%s8] sm:$0x1]
  %v850 = vmul.f32 %v836, %v836
  %v851 = vrot.slane %v850, 4
  %v852 = vadd.f32 %v850, %v851
  %v853 = vrot.slane %v852, 2
  %v854 = vadd.f32 %v852, %v853
  %v855 = vrot.slane %v854, 1
  %v856 = vadd.f32 %v854, %v855
  %v857 = vadd.f32 %v849, %v856
  %858 = vst [vmem:[%s8] sm:$0x1] %v857
  // Predicated region
  $region18: #{resnet_encoder_forward.32} parent=0 // pred_check
    _
  $region19: #{resnet_encoder_forward.32} parent=0 // pred_check_branch
    %860 = sbr.rel (0) target = $region21
  $region20: #{resnet_encoder_forward.32} parent=0 // pred_region
    _
  $region21: #{resnet_encoder_forward.32} parent=0 // pred_fallthru
    _
  // Predicated region
  $region22: #{resnet_encoder_forward.32} parent=0 // pred_check
    _
  $region23: #{resnet_encoder_forward.32} parent=0 // pred_check_branch
    %862 = sbr.rel (0) target = $region25
  $region24: #{resnet_encoder_forward.32} parent=0 // pred_region
    _
  $region25: #{resnet_encoder_forward.32} parent=0 // pred_fallthru
    _
  // Predicated region
  $region26: #{resnet_encoder_forward.32} parent=0 // pred_check
    _
  $region27: #{resnet_encoder_forward.32} parent=0 // pred_check_branch
    %864 = sbr.rel (0) target = $region29
  $region28: #{resnet_encoder_forward.32} parent=0 // pred_region
    _
  $region29: #{resnet_encoder_forward.32} parent=0 // pred_fallthru
    _
  // Predicated region
  $region30: #{resnet_encoder_forward.32} parent=0 // pred_check
    _
  $region31: #{resnet_encoder_forward.32} parent=0 // pred_check_branch
    %866 = sbr.rel (0) target = $region33
  $region32: #{resnet_encoder_forward.32} parent=0 // pred_region
    _
  $region33: #{resnet_encoder_forward.32} parent=0 // pred_fallthru
    _
  // Predicated region
  $region34: #{resnet_encoder_forward.32} parent=0 // pred_check
    _
  $region35: #{resnet_encoder_forward.32} parent=0 // pred_check_branch
    %868 = sbr.rel (0) target = $region37
  $region36: #{resnet_encoder_forward.32} parent=0 // pred_region
    _
  $region37: #{resnet_encoder_forward.32} parent=0 // pred_fallthru
    _
  // Predicated region
  $region38: #{resnet_encoder_forward.32} parent=0 // pred_check
    _
  $region39: #{resnet_encoder_forward.32} parent=0 // pred_check_branch
    %870 = sbr.rel (0) target = $region41
  $region40: #{resnet_encoder_forward.32} parent=0 // pred_region
    _
  $region41: #{resnet_encoder_forward.32} parent=0 // pred_fallthru
    _
  // Predicated region
  $region42: #{resnet_encoder_forward.32} parent=0 // pred_check
    _
  $region43: #{resnet_encoder_forward.32} parent=0 // pred_check_branch
    %872 = sbr.rel (0) target = $region45
  $region44: #{resnet_encoder_forward.32} parent=0 // pred_region
    _
  $region45: #{resnet_encoder_forward.32} parent=0 // pred_fallthru
    _
  // Predicated region
  $region46: #{resnet_encoder_forward.32} parent=0 // pred_check
    _
  $region47: #{resnet_encoder_forward.32} parent=0 // pred_check_branch
    %874 = sbr.rel (0) target = $region49
  $region48: #{resnet_encoder_forward.32} parent=0 // pred_region
    _
  $region49: #{resnet_encoder_forward.32} parent=0 // pred_fallthru
    _
  // Predicated region
  $region50: #{resnet_encoder_forward.32} parent=0 // pred_check
    _
  $region51: #{resnet_encoder_forward.32} parent=0 // pred_check_branch
    %876 = sbr.rel (0) target = $region53
  $region52: #{resnet_encoder_forward.32} parent=0 // pred_region
    _
  $region53: #{resnet_encoder_forward.32} parent=0 // pred_fallthru
    _
  // Predicated region
  $region54: #{resnet_encoder_forward.32} parent=0 // pred_check
    _
  $region55: #{resnet_encoder_forward.32} parent=0 // pred_check_branch
    %878 = sbr.rel (0) target = $region57
  $region56: #{resnet_encoder_forward.32} parent=0 // pred_region
    _
  $region57: #{resnet_encoder_forward.32} parent=0 // pred_fallthru
    _
  // Predicated region
  $region58: #{resnet_encoder_forward.32} parent=0 // pred_check
    _
  $region59: #{resnet_encoder_forward.32} parent=0 // pred_check_branch
    %880 = sbr.rel (0) target = $region61
  $region60: #{resnet_encoder_forward.32} parent=0 // pred_region
    _
  $region61: #{resnet_encoder_forward.32} parent=0 // pred_fallthru
    _
  // Predicated region
  $region62: #{resnet_encoder_forward.32} parent=0 // pred_check
    _
  $region63: #{resnet_encoder_forward.32} parent=0 // pred_check_branch
    %882 = sbr.rel (0) target = $region65
  $region64: #{resnet_encoder_forward.32} parent=0 // pred_region
    _
  $region65: #{resnet_encoder_forward.32} parent=0 // pred_fallthru
    _

// kernel: resnet_encoder_forward.34
$region0: #{resnet_encoder_forward.34}
  #allocation0 [shape = 'u32[]', space=smem, size = 0x4, offset = 0x4, fixed_abs, tag = 'smem constant byte address 0x4 - core index']
  #allocation1 [shape = 'u32[72,128]{1,0:T(1,128)}', space=vmem, size = 0x9000, scoped, tag = 'internal scratch']
  %s0 = inlined_call_operand.vmem [shape: bf16[8,1152], index: 0, kind: input, shape index: {}]
  %s1 = inlined_call_operand.vmem [shape: bf16[1152,128], index: 1, kind: input, shape index: {}]
  %s2 = inlined_call_operand.vmem [shape: f32[8,128], index: 2, kind: output, shape index: {0}]
  %s3 = inlined_call_operand.vmem [shape: f32[1,128], index: 3, kind: output, shape index: {1}]
  %s4 = inlined_call_operand.vmem [shape: f32[1,128], index: 4, kind: output, shape index: {2}]
  %5 = xla_tuple %s2, %s3, %s4
  %s6 = sld [smem:[#allocation0]]
  $region38: #{resnet_encoder_forward.34} parent=0
    _
  %s8 = ssub.s32 1, %s6
  %s9 = scalar_select 0, %s8, %s6
  // Predicated region
  $region2: #{resnet_encoder_forward.34} parent=0 // pred_check
    _
  $region3: #{resnet_encoder_forward.34} parent=0 // pred_check_branch
    %11 = sbr.rel (0) target = $region5
  $region4: #{resnet_encoder_forward.34} parent=0 // pred_region
    _
  $region5: #{resnet_encoder_forward.34} parent=0 // pred_fallthru
    _
  // Predicated region
  $region6: #{resnet_encoder_forward.34} parent=0 // pred_check
    _
  $region7: #{resnet_encoder_forward.34} parent=0 // pred_check_branch
    %13 = sbr.rel (0) target = $region9
  $region8: #{resnet_encoder_forward.34} parent=0 // pred_region
    _
  $region9: #{resnet_encoder_forward.34} parent=0 // pred_fallthru
    _
  %p14 = scmp.eq.s32.totalorder 0, 0
  // Predicated region
  $region10: #{resnet_encoder_forward.34} parent=0 // pred_check
    %p15 = pneg %p14
  $region11: #{resnet_encoder_forward.34} parent=0 // pred_check_branch
    %17 = sbr.rel (%p15) target = $region13
  $region12: #{resnet_encoder_forward.34} parent=0 // pred_region
    %18 = vst [vmem:[%s3] sm:$0x1] 0.0
    %19 = vst [vmem:[%s4] sm:$0x1] 0.0
  $region13: #{resnet_encoder_forward.34} parent=0 // pred_fallthru
    _
  %v20 = vld [vmem:[%s0] sm:$0xff]
  %v21 = vld [vmem:[%s0 + $0x8] sm:$0xff]
  %v22 = vld [vmem:[%s0 + $0x10] sm:$0xff]
  %v23 = vld [vmem:[%s0 + $0x18] sm:$0xff]
  %v24 = vld [vmem:[%s0 + $0x20] sm:$0xf]
  %v25 = vld [vmem:[%s1] sm:$0xf]
  %v26 = vld [vmem:[%s1 + $0x4] sm:$0xf]
  %v27 = vld [vmem:[%s1 + $0x8] sm:$0xf]
  %v28 = vld [vmem:[%s1 + $0xc] sm:$0xf]
  %v29 = vld [vmem:[%s1 + $0x10] sm:$0xf]
  %v30 = vld [vmem:[%s1 + $0x14] sm:$0xf]
  %v31 = vld [vmem:[%s1 + $0x18] sm:$0xf]
  %v32 = vld [vmem:[%s1 + $0x1c] sm:$0xf]
  %v33 = vld [vmem:[%s1 + $0x20] sm:$0xf]
  %v34 = vld [vmem:[%s1 + $0x24] sm:$0xf]
  %v35 = vld [vmem:[%s1 + $0x28] sm:$0xf]
  %v36 = vld [vmem:[%s1 + $0x2c] sm:$0xf]
  %v37 = vld [vmem:[%s1 + $0x30] sm:$0xf]
  %v38 = vld [vmem:[%s1 + $0x34] sm:$0xf]
  %v39 = vld [vmem:[%s1 + $0x38] sm:$0xf]
  %v40 = vld [vmem:[%s1 + $0x3c] sm:$0xf]
  %v41 = vld [vmem:[%s1 + $0x40] sm:$0xf]
  %v42 = vld [vmem:[%s1 + $0x44] sm:$0xf]
  %v43 = vld [vmem:[%s1 + $0x48] sm:$0xf]
  %v44 = vld [vmem:[%s1 + $0x4c] sm:$0xf]
  %v45 = vld [vmem:[%s1 + $0x50] sm:$0xf]
  %v46 = vld [vmem:[%s1 + $0x54] sm:$0xf]
  %v47 = vld [vmem:[%s1 + $0x58] sm:$0xf]
  %v48 = vld [vmem:[%s1 + $0x5c] sm:$0xf]
  %v49 = vld [vmem:[%s1 + $0x60] sm:$0xf]
  %v50 = vld [vmem:[%s1 + $0x64] sm:$0xf]
  %v51 = vld [vmem:[%s1 + $0x68] sm:$0xf]
  %v52 = vld [vmem:[%s1 + $0x6c] sm:$0xf]
  %v53 = vld [vmem:[%s1 + $0x70] sm:$0xf]
  %v54 = vld [vmem:[%s1 + $0x74] sm:$0xf]
  %v55 = vld [vmem:[%s1 + $0x78] sm:$0xf]
  %v56 = vld [vmem:[%s1 + $0x7c] sm:$0xf]
  %v57 = vld [vmem:[%s1 + $0x80] sm:$0xf]
  %v58 = vld [vmem:[%s1 + $0x84] sm:$0xf]
  %v59 = vld [vmem:[%s1 + $0x88] sm:$0xf]
  %v60 = vld [vmem:[%s1 + $0x8c] sm:$0xf]
  %v61 = vld [vmem:[%s1 + $0x90] sm:$0xf]
  %v62 = vld [vmem:[%s1 + $0x94] sm:$0xf]
  %v63 = vld [vmem:[%s1 + $0x98] sm:$0xf]
  %v64 = vld [vmem:[%s1 + $0x9c] sm:$0xf]
  %v65 = vld [vmem:[%s1 + $0xa0] sm:$0xf]
  %v66 = vld [vmem:[%s1 + $0xa4] sm:$0xf]
  %v67 = vld [vmem:[%s1 + $0xa8] sm:$0xf]
  %v68 = vld [vmem:[%s1 + $0xac] sm:$0xf]
  %v69 = vld [vmem:[%s1 + $0xb0] sm:$0xf]
  %v70 = vld [vmem:[%s1 + $0xb4] sm:$0xf]
  %v71 = vld [vmem:[%s1 + $0xb8] sm:$0xf]
  %v72 = vld [vmem:[%s1 + $0xbc] sm:$0xf]
  %v73 = vld [vmem:[%s1 + $0xc0] sm:$0xf]
  %v74 = vld [vmem:[%s1 + $0xc4] sm:$0xf]
  %v75 = vld [vmem:[%s1 + $0xc8] sm:$0xf]
  %v76 = vld [vmem:[%s1 + $0xcc] sm:$0xf]
  %v77 = vld [vmem:[%s1 + $0xd0] sm:$0xf]
  %v78 = vld [vmem:[%s1 + $0xd4] sm:$0xf]
  %v79 = vld [vmem:[%s1 + $0xd8] sm:$0xf]
  %v80 = vld [vmem:[%s1 + $0xdc] sm:$0xf]
  %v81 = vld [vmem:[%s1 + $0xe0] sm:$0xf]
  %v82 = vld [vmem:[%s1 + $0xe4] sm:$0xf]
  %v83 = vld [vmem:[%s1 + $0xe8] sm:$0xf]
  %v84 = vld [vmem:[%s1 + $0xec] sm:$0xf]
  %v85 = vld [vmem:[%s1 + $0xf0] sm:$0xf]
  %v86 = vld [vmem:[%s1 + $0xf4] sm:$0xf]
  %v87 = vld [vmem:[%s1 + $0xf8] sm:$0xf]
  %v88 = vld [vmem:[%s1 + $0xfc] sm:$0xf]
  %v89 = vld [vmem:[%s1 + $0x100] sm:$0xf]
  %v90 = vld [vmem:[%s1 + $0x104] sm:$0xf]
  %v91 = vld [vmem:[%s1 + $0x108] sm:$0xf]
  %v92 = vld [vmem:[%s1 + $0x10c] sm:$0xf]
  %v93 = vld [vmem:[%s1 + $0x110] sm:$0xf]
  %v94 = vld [vmem:[%s1 + $0x114] sm:$0xf]
  %v95 = vld [vmem:[%s1 + $0x118] sm:$0xf]
  %v96 = vld [vmem:[%s1 + $0x11c] sm:$0xf]
  %v97 = vld [vmem:[%s1 + $0x120] sm:$0xf]
  %v98 = vld [vmem:[%s1 + $0x124] sm:$0xf]
  %v99 = vld [vmem:[%s1 + $0x128] sm:$0xf]
  %v100 = vld [vmem:[%s1 + $0x12c] sm:$0xf]
  %v101 = vld [vmem:[%s1 + $0x130] sm:$0xf]
  %v102 = vld [vmem:[%s1 + $0x134] sm:$0xf]
  %v103 = vld [vmem:[%s1 + $0x138] sm:$0xf]
  %v104 = vld [vmem:[%s1 + $0x13c] sm:$0xf]
  %v105 = vld [vmem:[%s1 + $0x140] sm:$0xf]
  %v106 = vld [vmem:[%s1 + $0x144] sm:$0xf]
  %v107 = vld [vmem:[%s1 + $0x148] sm:$0xf]
  %v108 = vld [vmem:[%s1 + $0x14c] sm:$0xf]
  %v109 = vld [vmem:[%s1 + $0x150] sm:$0xf]
  %v110 = vld [vmem:[%s1 + $0x154] sm:$0xf]
  %v111 = vld [vmem:[%s1 + $0x158] sm:$0xf]
  %v112 = vld [vmem:[%s1 + $0x15c] sm:$0xf]
  %v113 = vld [vmem:[%s1 + $0x160] sm:$0xf]
  %v114 = vld [vmem:[%s1 + $0x164] sm:$0xf]
  %v115 = vld [vmem:[%s1 + $0x168] sm:$0xf]
  %v116 = vld [vmem:[%s1 + $0x16c] sm:$0xf]
  %v117 = vld [vmem:[%s1 + $0x170] sm:$0xf]
  %v118 = vld [vmem:[%s1 + $0x174] sm:$0xf]
  %v119 = vld [vmem:[%s1 + $0x178] sm:$0xf]
  %v120 = vld [vmem:[%s1 + $0x17c] sm:$0xf]
  %v121 = vld [vmem:[%s1 + $0x180] sm:$0xf]
  %v122 = vld [vmem:[%s1 + $0x184] sm:$0xf]
  %v123 = vld [vmem:[%s1 + $0x188] sm:$0xf]
  %v124 = vld [vmem:[%s1 + $0x18c] sm:$0xf]
  %v125 = vld [vmem:[%s1 + $0x190] sm:$0xf]
  %v126 = vld [vmem:[%s1 + $0x194] sm:$0xf]
  %v127 = vld [vmem:[%s1 + $0x198] sm:$0xf]
  %v128 = vld [vmem:[%s1 + $0x19c] sm:$0xf]
  %v129 = vld [vmem:[%s1 + $0x1a0] sm:$0xf]
  %v130 = vld [vmem:[%s1 + $0x1a4] sm:$0xf]
  %v131 = vld [vmem:[%s1 + $0x1a8] sm:$0xf]
  %v132 = vld [vmem:[%s1 + $0x1ac] sm:$0xf]
  %v133 = vld [vmem:[%s1 + $0x1b0] sm:$0xf]
  %v134 = vld [vmem:[%s1 + $0x1b4] sm:$0xf]
  %v135 = vld [vmem:[%s1 + $0x1b8] sm:$0xf]
  %v136 = vld [vmem:[%s1 + $0x1bc] sm:$0xf]
  %v137 = vld [vmem:[%s1 + $0x1c0] sm:$0xf]
  %v138 = vld [vmem:[%s1 + $0x1c4] sm:$0xf]
  %v139 = vld [vmem:[%s1 + $0x1c8] sm:$0xf]
  %v140 = vld [vmem:[%s1 + $0x1cc] sm:$0xf]
  %v141 = vld [vmem:[%s1 + $0x1d0] sm:$0xf]
  %v142 = vld [vmem:[%s1 + $0x1d4] sm:$0xf]
  %v143 = vld [vmem:[%s1 + $0x1d8] sm:$0xf]
  %v144 = vld [vmem:[%s1 + $0x1dc] sm:$0xf]
  %v145 = vld [vmem:[%s1 + $0x1e0] sm:$0xf]
  %v146 = vld [vmem:[%s1 + $0x1e4] sm:$0xf]
  %v147 = vld [vmem:[%s1 + $0x1e8] sm:$0xf]
  %v148 = vld [vmem:[%s1 + $0x1ec] sm:$0xf]
  %v149 = vld [vmem:[%s1 + $0x1f0] sm:$0xf]
  %v150 = vld [vmem:[%s1 + $0x1f4] sm:$0xf]
  %v151 = vld [vmem:[%s1 + $0x1f8] sm:$0xf]
  %v152 = vld [vmem:[%s1 + $0x1fc] sm:$0xf]
  %v153 = vld [vmem:[%s1 + $0x200] sm:$0xf]
  %v154 = vld [vmem:[%s1 + $0x204] sm:$0xf]
  %v155 = vld [vmem:[%s1 + $0x208] sm:$0xf]
  %v156 = vld [vmem:[%s1 + $0x20c] sm:$0xf]
  %v157 = vld [vmem:[%s1 + $0x210] sm:$0xf]
  %v158 = vld [vmem:[%s1 + $0x214] sm:$0xf]
  %v159 = vld [vmem:[%s1 + $0x218] sm:$0xf]
  %v160 = vld [vmem:[%s1 + $0x21c] sm:$0xf]
  %v161 = vld [vmem:[%s1 + $0x220] sm:$0xf]
  %v162 = vld [vmem:[%s1 + $0x224] sm:$0xf]
  %v163 = vld [vmem:[%s1 + $0x228] sm:$0xf]
  %v164 = vld [vmem:[%s1 + $0x22c] sm:$0xf]
  %v165 = vld [vmem:[%s1 + $0x230] sm:$0xf]
  %v166 = vld [vmem:[%s1 + $0x234] sm:$0xf]
  %v167 = vld [vmem:[%s1 + $0x238] sm:$0xf]
  %v168 = vld [vmem:[%s1 + $0x23c] sm:$0xf]
  %v174 = vunpack.c.l.b16 %v20
  %v175 = vunpack.c.h.b16 %v20
  %v176 = vunpack.c.l.b16 %v21
  %v177 = vunpack.c.h.b16 %v21
  %v178 = vunpack.c.l.b16 %v22
  %v179 = vunpack.c.h.b16 %v22
  %v180 = vunpack.c.l.b16 %v23
  %v181 = vunpack.c.h.b16 %v23
  %v182 = vunpack.c.l.b16 %v24
  %v183 = vpack.c.b16 %v174, %v174
  %v184 = vpack.c.b16 %v175, %v175
  %v185 = vpack.c.b16 %v176, %v176
  %v186 = vpack.c.b16 %v177, %v177
  %v187 = vpack.c.b16 %v178, %v178
  %v188 = vpack.c.b16 %v179, %v179
  %v189 = vpack.c.b16 %v180, %v180
  %v190 = vpack.c.b16 %v181, %v181
  %v191 = vpack.c.b16 %v182, %v182
  %v345 = vunpack.c.l.b16 %v25
  %v346 = vunpack.c.l.b16 %v26
  %v347 = vunpack.c.l.b16 %v27
  %v348 = vunpack.c.l.b16 %v28
  %v349 = vunpack.c.l.b16 %v29
  %v350 = vunpack.c.l.b16 %v30
  %v351 = vunpack.c.l.b16 %v31
  %v352 = vunpack.c.l.b16 %v32
  %v353 = vunpack.c.l.b16 %v33
  %v354 = vunpack.c.l.b16 %v34
  %v355 = vunpack.c.l.b16 %v35
  %v356 = vunpack.c.l.b16 %v36
  %v357 = vunpack.c.l.b16 %v37
  %v358 = vunpack.c.l.b16 %v38
  %v359 = vunpack.c.l.b16 %v39
  %v360 = vunpack.c.l.b16 %v40
  %v361 = vunpack.c.l.b16 %v41
  %v362 = vunpack.c.l.b16 %v42
  %v363 = vunpack.c.l.b16 %v43
  %v364 = vunpack.c.l.b16 %v44
  %v365 = vunpack.c.l.b16 %v45
  %v366 = vunpack.c.l.b16 %v46
  %v367 = vunpack.c.l.b16 %v47
  %v368 = vunpack.c.l.b16 %v48
  %v369 = vunpack.c.l.b16 %v49
  %v370 = vunpack.c.l.b16 %v50
  %v371 = vunpack.c.l.b16 %v51
  %v372 = vunpack.c.l.b16 %v52
  %v373 = vunpack.c.l.b16 %v53
  %v374 = vunpack.c.l.b16 %v54
  %v375 = vunpack.c.l.b16 %v55
  %v376 = vunpack.c.l.b16 %v56
  %v377 = vunpack.c.l.b16 %v57
  %v378 = vunpack.c.l.b16 %v58
  %v379 = vunpack.c.l.b16 %v59
  %v380 = vunpack.c.l.b16 %v60
  %v381 = vunpack.c.l.b16 %v61
  %v382 = vunpack.c.l.b16 %v62
  %v383 = vunpack.c.l.b16 %v63
  %v384 = vunpack.c.l.b16 %v64
  %v385 = vunpack.c.l.b16 %v65
  %v386 = vunpack.c.l.b16 %v66
  %v387 = vunpack.c.l.b16 %v67
  %v388 = vunpack.c.l.b16 %v68
  %v389 = vunpack.c.l.b16 %v69
  %v390 = vunpack.c.l.b16 %v70
  %v391 = vunpack.c.l.b16 %v71
  %v392 = vunpack.c.l.b16 %v72
  %v393 = vunpack.c.l.b16 %v73
  %v394 = vunpack.c.l.b16 %v74
  %v395 = vunpack.c.l.b16 %v75
  %v396 = vunpack.c.l.b16 %v76
  %v397 = vunpack.c.l.b16 %v77
  %v398 = vunpack.c.l.b16 %v78
  %v399 = vunpack.c.l.b16 %v79
  %v400 = vunpack.c.l.b16 %v80
  %v401 = vunpack.c.l.b16 %v81
  %v402 = vunpack.c.l.b16 %v82
  %v403 = vunpack.c.l.b16 %v83
  %v404 = vunpack.c.l.b16 %v84
  %v405 = vunpack.c.l.b16 %v85
  %v406 = vunpack.c.l.b16 %v86
  %v407 = vunpack.c.l.b16 %v87
  %v408 = vunpack.c.l.b16 %v88
  %v409 = vunpack.c.l.b16 %v89
  %v410 = vunpack.c.l.b16 %v90
  %v411 = vunpack.c.l.b16 %v91
  %v412 = vunpack.c.l.b16 %v92
  %v413 = vunpack.c.l.b16 %v93
  %v414 = vunpack.c.l.b16 %v94
  %v415 = vunpack.c.l.b16 %v95
  %v416 = vunpack.c.l.b16 %v96
  %v417 = vunpack.c.l.b16 %v97
  %v418 = vunpack.c.l.b16 %v98
  %v419 = vunpack.c.l.b16 %v99
  %v420 = vunpack.c.l.b16 %v100
  %v421 = vunpack.c.l.b16 %v101
  %v422 = vunpack.c.l.b16 %v102
  %v423 = vunpack.c.l.b16 %v103
  %v424 = vunpack.c.l.b16 %v104
  %v425 = vunpack.c.l.b16 %v105
  %v426 = vunpack.c.l.b16 %v106
  %v427 = vunpack.c.l.b16 %v107
  %v428 = vunpack.c.l.b16 %v108
  %v429 = vunpack.c.l.b16 %v109
  %v430 = vunpack.c.l.b16 %v110
  %v431 = vunpack.c.l.b16 %v111
  %v432 = vunpack.c.l.b16 %v112
  %v433 = vunpack.c.l.b16 %v113
  %v434 = vunpack.c.l.b16 %v114
  %v435 = vunpack.c.l.b16 %v115
  %v436 = vunpack.c.l.b16 %v116
  %v437 = vunpack.c.l.b16 %v117
  %v438 = vunpack.c.l.b16 %v118
  %v439 = vunpack.c.l.b16 %v119
  %v440 = vunpack.c.l.b16 %v120
  %v441 = vunpack.c.l.b16 %v121
  %v442 = vunpack.c.l.b16 %v122
  %v443 = vunpack.c.l.b16 %v123
  %v444 = vunpack.c.l.b16 %v124
  %v445 = vunpack.c.l.b16 %v125
  %v446 = vunpack.c.l.b16 %v126
  %v447 = vunpack.c.l.b16 %v127
  %v448 = vunpack.c.l.b16 %v128
  %v449 = vunpack.c.l.b16 %v129
  %v450 = vunpack.c.l.b16 %v130
  %v451 = vunpack.c.l.b16 %v131
  %v452 = vunpack.c.l.b16 %v132
  %v453 = vunpack.c.l.b16 %v133
  %v454 = vunpack.c.l.b16 %v134
  %v455 = vunpack.c.l.b16 %v135
  %v456 = vunpack.c.l.b16 %v136
  %v457 = vunpack.c.l.b16 %v137
  %v458 = vunpack.c.l.b16 %v138
  %v459 = vunpack.c.l.b16 %v139
  %v460 = vunpack.c.l.b16 %v140
  %v461 = vunpack.c.l.b16 %v141
  %v462 = vunpack.c.l.b16 %v142
  %v463 = vunpack.c.l.b16 %v143
  %v464 = vunpack.c.l.b16 %v144
  %v465 = vunpack.c.l.b16 %v145
  %v466 = vunpack.c.l.b16 %v146
  %v467 = vunpack.c.l.b16 %v147
  %v468 = vunpack.c.l.b16 %v148
  %v469 = vunpack.c.l.b16 %v149
  %v470 = vunpack.c.l.b16 %v150
  %v471 = vunpack.c.l.b16 %v151
  %v472 = vunpack.c.l.b16 %v152
  %v473 = vunpack.c.l.b16 %v153
  %v474 = vunpack.c.l.b16 %v154
  %v475 = vunpack.c.l.b16 %v155
  %v476 = vunpack.c.l.b16 %v156
  %v477 = vunpack.c.l.b16 %v157
  %v478 = vunpack.c.l.b16 %v158
  %v479 = vunpack.c.l.b16 %v159
  %v480 = vunpack.c.l.b16 %v160
  %v481 = vunpack.c.l.b16 %v161
  %v482 = vunpack.c.l.b16 %v162
  %v483 = vunpack.c.l.b16 %v163
  %v484 = vunpack.c.l.b16 %v164
  %v485 = vunpack.c.l.b16 %v165
  %v486 = vunpack.c.l.b16 %v166
  %v487 = vunpack.c.l.b16 %v167
  %v488 = vunpack.c.l.b16 %v168
  %v489 = vpack.c.b16 %v346, %v345
  %v490 = vpack.c.b16 %v348, %v347
  %v491 = vpack.c.b16 %v350, %v349
  %v492 = vpack.c.b16 %v352, %v351
  %v493 = vpack.c.b16 %v354, %v353
  %v494 = vpack.c.b16 %v356, %v355
  %v495 = vpack.c.b16 %v358, %v357
  %v496 = vpack.c.b16 %v360, %v359
  %v497 = vpack.c.b16 %v362, %v361
  %v498 = vpack.c.b16 %v364, %v363
  %v499 = vpack.c.b16 %v366, %v365
  %v500 = vpack.c.b16 %v368, %v367
  %v501 = vpack.c.b16 %v370, %v369
  %v502 = vpack.c.b16 %v372, %v371
  %v503 = vpack.c.b16 %v374, %v373
  %v504 = vpack.c.b16 %v376, %v375
  %v505 = vpack.c.b16 %v378, %v377
  %v506 = vpack.c.b16 %v380, %v379
  %v507 = vpack.c.b16 %v382, %v381
  %v508 = vpack.c.b16 %v384, %v383
  %v509 = vpack.c.b16 %v386, %v385
  %v510 = vpack.c.b16 %v388, %v387
  %v511 = vpack.c.b16 %v390, %v389
  %v512 = vpack.c.b16 %v392, %v391
  %v513 = vpack.c.b16 %v394, %v393
  %v514 = vpack.c.b16 %v396, %v395
  %v515 = vpack.c.b16 %v398, %v397
  %v516 = vpack.c.b16 %v400, %v399
  %v517 = vpack.c.b16 %v402, %v401
  %v518 = vpack.c.b16 %v404, %v403
  %v519 = vpack.c.b16 %v406, %v405
  %v520 = vpack.c.b16 %v408, %v407
  %v521 = vpack.c.b16 %v410, %v409
  %v522 = vpack.c.b16 %v412, %v411
  %v523 = vpack.c.b16 %v414, %v413
  %v524 = vpack.c.b16 %v416, %v415
  %v525 = vpack.c.b16 %v418, %v417
  %v526 = vpack.c.b16 %v420, %v419
  %v527 = vpack.c.b16 %v422, %v421
  %v528 = vpack.c.b16 %v424, %v423
  %v529 = vpack.c.b16 %v426, %v425
  %v530 = vpack.c.b16 %v428, %v427
  %v531 = vpack.c.b16 %v430, %v429
  %v532 = vpack.c.b16 %v432, %v431
  %v533 = vpack.c.b16 %v434, %v433
  %v534 = vpack.c.b16 %v436, %v435
  %v535 = vpack.c.b16 %v438, %v437
  %v536 = vpack.c.b16 %v440, %v439
  %v537 = vpack.c.b16 %v442, %v441
  %v538 = vpack.c.b16 %v444, %v443
  %v539 = vpack.c.b16 %v446, %v445
  %v540 = vpack.c.b16 %v448, %v447
  %v541 = vpack.c.b16 %v450, %v449
  %v542 = vpack.c.b16 %v452, %v451
  %v543 = vpack.c.b16 %v454, %v453
  %v544 = vpack.c.b16 %v456, %v455
  %v545 = vpack.c.b16 %v458, %v457
  %v546 = vpack.c.b16 %v460, %v459
  %v547 = vpack.c.b16 %v462, %v461
  %v548 = vpack.c.b16 %v464, %v463
  %v549 = vpack.c.b16 %v466, %v465
  %v550 = vpack.c.b16 %v468, %v467
  %v551 = vpack.c.b16 %v470, %v469
  %v552 = vpack.c.b16 %v472, %v471
  %v553 = vpack.c.b16 %v474, %v473
  %v554 = vpack.c.b16 %v476, %v475
  %v555 = vpack.c.b16 %v478, %v477
  %v556 = vpack.c.b16 %v480, %v479
  %v557 = vpack.c.b16 %v482, %v481
  %v558 = vpack.c.b16 %v484, %v483
  %v559 = vpack.c.b16 %v486, %v485
  %v560 = vpack.c.b16 %v488, %v487
  %633 = vmatpush.bf16.msra.mxu0 %v496
  %634 = vmatpush.bf16.msra.mxu0 %v495
  %635 = vmatpush.bf16.msra.mxu0 %v494
  %636 = vmatpush.bf16.msra.mxu0 %v493
  %637 = vmatpush.bf16.msra.mxu0 %v492
  %638 = vmatpush.bf16.msra.mxu0 %v491
  %639 = vmatpush.bf16.msra.mxu0 %v490
  %640 = vmatpush.bf16.msra.mxu0 %v489
  %641 = vmatmul.bf16.gmra.mxu0 %v183
  %v642 = vpop.f32.mrf.mxu0
  %v643 = vadd.f32 0.0, %v642
  %v644 = vpop.f32.mrf.mxu0
  %645 = vdwg.mxu0
  %646 = vmatpush.bf16.msra.mxu0 %v504
  %647 = vmatpush.bf16.msra.mxu0 %v503
  %648 = vmatpush.bf16.msra.mxu0 %v502
  %649 = vmatpush.bf16.msra.mxu0 %v501
  %650 = vmatpush.bf16.msra.mxu0 %v500
  %651 = vmatpush.bf16.msra.mxu0 %v499
  %652 = vmatpush.bf16.msra.mxu0 %v498
  %653 = vmatpush.bf16.msra.mxu0 %v497
  %654 = vmatmul.bf16.gmra.mxu0 %v184
  %v655 = vpop.f32.mrf.mxu0
  %v656 = vadd.f32 %v643, %v655
  %v657 = vpop.f32.mrf.mxu0
  %658 = vdwg.mxu0
  %659 = vmatpush.bf16.msra.mxu0 %v512
  %660 = vmatpush.bf16.msra.mxu0 %v511
  %661 = vmatpush.bf16.msra.mxu0 %v510
  %662 = vmatpush.bf16.msra.mxu0 %v509
  %663 = vmatpush.bf16.msra.mxu0 %v508
  %664 = vmatpush.bf16.msra.mxu0 %v507
  %665 = vmatpush.bf16.msra.mxu0 %v506
  %666 = vmatpush.bf16.msra.mxu0 %v505
  %667 = vmatmul.bf16.gmra.mxu0 %v185
  %v668 = vpop.f32.mrf.mxu0
  %v669 = vadd.f32 %v656, %v668
  %v670 = vpop.f32.mrf.mxu0
  %671 = vdwg.mxu0
  %672 = vmatpush.bf16.msra.mxu0 %v520
  %673 = vmatpush.bf16.msra.mxu0 %v519
  %674 = vmatpush.bf16.msra.mxu0 %v518
  %675 = vmatpush.bf16.msra.mxu0 %v517
  %676 = vmatpush.bf16.msra.mxu0 %v516
  %677 = vmatpush.bf16.msra.mxu0 %v515
  %678 = vmatpush.bf16.msra.mxu0 %v514
  %679 = vmatpush.bf16.msra.mxu0 %v513
  %680 = vmatmul.bf16.gmra.mxu0 %v186
  %v681 = vpop.f32.mrf.mxu0
  %v682 = vadd.f32 %v669, %v681
  %v683 = vpop.f32.mrf.mxu0
  %684 = vdwg.mxu0
  %685 = vmatpush.bf16.msra.mxu0 %v528
  %686 = vmatpush.bf16.msra.mxu0 %v527
  %687 = vmatpush.bf16.msra.mxu0 %v526
  %688 = vmatpush.bf16.msra.mxu0 %v525
  %689 = vmatpush.bf16.msra.mxu0 %v524
  %690 = vmatpush.bf16.msra.mxu0 %v523
  %691 = vmatpush.bf16.msra.mxu0 %v522
  %692 = vmatpush.bf16.msra.mxu0 %v521
  %693 = vmatmul.bf16.gmra.mxu0 %v187
  %v694 = vpop.f32.mrf.mxu0
  %v695 = vadd.f32 %v682, %v694
  %v696 = vpop.f32.mrf.mxu0
  %697 = vdwg.mxu0
  %698 = vmatpush.bf16.msra.mxu0 %v536
  %699 = vmatpush.bf16.msra.mxu0 %v535
  %700 = vmatpush.bf16.msra.mxu0 %v534
  %701 = vmatpush.bf16.msra.mxu0 %v533
  %702 = vmatpush.bf16.msra.mxu0 %v532
  %703 = vmatpush.bf16.msra.mxu0 %v531
  %704 = vmatpush.bf16.msra.mxu0 %v530
  %705 = vmatpush.bf16.msra.mxu0 %v529
  %706 = vmatmul.bf16.gmra.mxu0 %v188
  %v707 = vpop.f32.mrf.mxu0
  %v708 = vadd.f32 %v695, %v707
  %v709 = vpop.f32.mrf.mxu0
  %710 = vdwg.mxu0
  %711 = vmatpush.bf16.msra.mxu0 %v544
  %712 = vmatpush.bf16.msra.mxu0 %v543
  %713 = vmatpush.bf16.msra.mxu0 %v542
  %714 = vmatpush.bf16.msra.mxu0 %v541
  %715 = vmatpush.bf16.msra.mxu0 %v540
  %716 = vmatpush.bf16.msra.mxu0 %v539
  %717 = vmatpush.bf16.msra.mxu0 %v538
  %718 = vmatpush.bf16.msra.mxu0 %v537
  %719 = vmatmul.bf16.gmra.mxu0 %v189
  %v720 = vpop.f32.mrf.mxu0
  %v721 = vadd.f32 %v708, %v720
  %v722 = vpop.f32.mrf.mxu0
  %723 = vdwg.mxu0
  %724 = vmatpush.bf16.msra.mxu0 %v552
  %725 = vmatpush.bf16.msra.mxu0 %v551
  %726 = vmatpush.bf16.msra.mxu0 %v550
  %727 = vmatpush.bf16.msra.mxu0 %v549
  %728 = vmatpush.bf16.msra.mxu0 %v548
  %729 = vmatpush.bf16.msra.mxu0 %v547
  %730 = vmatpush.bf16.msra.mxu0 %v546
  %731 = vmatpush.bf16.msra.mxu0 %v545
  %732 = vmatmul.bf16.gmra.mxu0 %v190
  %v733 = vpop.f32.mrf.mxu0
  %v734 = vadd.f32 %v721, %v733
  %v735 = vpop.f32.mrf.mxu0
  %736 = vdwg.mxu0
  %737 = vmatpush.bf16.msra.mxu0 %v560
  %738 = vmatpush.bf16.msra.mxu0 %v559
  %739 = vmatpush.bf16.msra.mxu0 %v558
  %740 = vmatpush.bf16.msra.mxu0 %v557
  %741 = vmatpush.bf16.msra.mxu0 %v556
  %742 = vmatpush.bf16.msra.mxu0 %v555
  %743 = vmatpush.bf16.msra.mxu0 %v554
  %744 = vmatpush.bf16.msra.mxu0 %v553
  %745 = vmatmul.bf16.gmra.mxu0 %v191
  %v746 = vpop.f32.mrf.mxu0
  %v747 = vadd.f32 %v734, %v746
  %v748 = vpop.f32.mrf.mxu0
  %749 = vdwg.mxu0
  %750 = vst [vmem:[%s2] sm:$0xff] %v747
  %v751 = vld [vmem:[%s3] sm:$0x1]
  %v752 = vrot.slane %v747, 4
  %v753 = vadd.f32 %v747, %v752
  %v754 = vrot.slane %v753, 2
  %v755 = vadd.f32 %v753, %v754
  %v756 = vrot.slane %v755, 1
  %v757 = vadd.f32 %v755, %v756
  %v758 = vadd.f32 %v751, %v757
  %759 = vst [vmem:[%s3] sm:$0x1] %v758
  %v760 = vld [vmem:[%s4] sm:$0x1]
  %v761 = vmul.f32 %v747, %v747
  %v762 = vrot.slane %v761, 4
  %v763 = vadd.f32 %v761, %v762
  %v764 = vrot.slane %v763, 2
  %v765 = vadd.f32 %v763, %v764
  %v766 = vrot.slane %v765, 1
  %v767 = vadd.f32 %v765, %v766
  %v768 = vadd.f32 %v760, %v767
  %769 = vst [vmem:[%s4] sm:$0x1] %v768
  // Predicated region
  $region14: #{resnet_encoder_forward.34} parent=0 // pred_check
    _
  $region15: #{resnet_encoder_forward.34} parent=0 // pred_check_branch
    %771 = sbr.rel (0) target = $region17
  $region16: #{resnet_encoder_forward.34} parent=0 // pred_region
    _
  $region17: #{resnet_encoder_forward.34} parent=0 // pred_fallthru
    _
  // Predicated region
  $region18: #{resnet_encoder_forward.34} parent=0 // pred_check
    _
  $region19: #{resnet_encoder_forward.34} parent=0 // pred_check_branch
    %773 = sbr.rel (0) target = $region21
  $region20: #{resnet_encoder_forward.34} parent=0 // pred_region
    _
  $region21: #{resnet_encoder_forward.34} parent=0 // pred_fallthru
    _
  // Predicated region
  $region22: #{resnet_encoder_forward.34} parent=0 // pred_check
    _
  $region23: #{resnet_encoder_forward.34} parent=0 // pred_check_branch
    %775 = sbr.rel (0) target = $region25
  $region24: #{resnet_encoder_forward.34} parent=0 // pred_region
    _
  $region25: #{resnet_encoder_forward.34} parent=0 // pred_fallthru
    _
  // Predicated region
  $region26: #{resnet_encoder_forward.34} parent=0 // pred_check
    _
  $region27: #{resnet_encoder_forward.34} parent=0 // pred_check_branch
    %777 = sbr.rel (0) target = $region29
  $region28: #{resnet_encoder_forward.34} parent=0 // pred_region
    _
  $region29: #{resnet_encoder_forward.34} parent=0 // pred_fallthru
    _
  // Predicated region
  $region30: #{resnet_encoder_forward.34} parent=0 // pred_check
    _
  $region31: #{resnet_encoder_forward.34} parent=0 // pred_check_branch
    %779 = sbr.rel (0) target = $region33
  $region32: #{resnet_encoder_forward.34} parent=0 // pred_region
    _
  $region33: #{resnet_encoder_forward.34} parent=0 // pred_fallthru
    _
  // Predicated region
  $region34: #{resnet_encoder_forward.34} parent=0 // pred_check
    _
  $region35: #{resnet_encoder_forward.34} parent=0 // pred_check_branch
    %781 = sbr.rel (0) target = $region37
  $region36: #{resnet_encoder_forward.34} parent=0 // pred_region
    _
  $region37: #{resnet_encoder_forward.34} parent=0 // pred_fallthru
    _

</llo_original>
